<compile_context>
chip_gen: v7x
topology: tpu7x:2x2x1
jax: 0.10.0
libtpu: 0.0.40
codegen_flags: <defaults>
</compile_context>

<pallas_src>
import numpy as np
import jax
import jax.numpy as jnp
from jax.experimental import pallas as pl
from jax.experimental.pallas import tpu as pltpu

NUM_CLASSES = 3
H = W = 16


# ----------------------------------------------------------------------------
# Host-built (compile-time) constant matrices for shift / pool / upsample.
# All act on the flattened spatial axis p = y*W + x  (row-major).
# ----------------------------------------------------------------------------
def _col_shift(h, w, dx):
    # M[p_in, p_out] = 1  iff  same row and x_in == x_out + dx (in bounds)
    idx = np.arange(h * w)
    y, x = idx // w, idx % w
    m = (y[:, None] == y[None, :]) & (x[:, None] == x[None, :] + dx)
    return m.astype(np.float32)


def _row_shift(h, w, dy):
    # M[p_in, p_out] = 1  iff  same column and y_in == y_out + dy (in bounds)
    idx = np.arange(h * w)
    y, x = idx // w, idx % w
    m = (x[:, None] == x[None, :]) & (y[:, None] == y[None, :] + dy)
    return m.astype(np.float32)


def _shift_bank(h, w):
    # order: [col -1, col +1, row -1, row +1]
    return np.stack([_col_shift(h, w, -1), _col_shift(h, w, +1),
                     _row_shift(h, w, -1), _row_shift(h, w, +1)], axis=0)


def _avgpool_mat(h, w):
    # (h*w, (h//2)*(w//2)) : 2x2 average pooling
    hs, ws = h // 2, w // 2
    ib = np.arange(h * w); yb, xb = ib // w, ib % w
    io = np.arange(hs * ws); ys, xs = io // ws, io % ws
    m = (yb[:, None] // 2 == ys[None, :]) & (xb[:, None] // 2 == xs[None, :])
    return 0.25 * m.astype(np.float32)


def _upsample_mat(h, w):
    # (h*w, (2h)*(2w)) : nearest-neighbor 2x upsample
    hb, wb = 2 * h, 2 * w
    io = np.arange(h * w); ys, xs = io // w, io % w
    ib = np.arange(hb * wb); yb, xb = ib // wb, ib % wb
    m = (ys[:, None] == yb[None, :] // 2) & (xs[:, None] == xb[None, :] // 2)
    return m.astype(np.float32)


# ----------------------------------------------------------------------------
# Fused U-Net forward kernel (one grid step == one batch element)
# ----------------------------------------------------------------------------
def _fused_unet_kernel(x_ref, sh16_ref, sh8_ref, p16_ref, p8_ref, u8_ref, u16_ref,
                       w1_ref, b1_ref, w2_ref, b2_ref,
                       w3a_ref, w3b_ref, b3_ref,
                       w4a_ref, w4b_ref, b4_ref,
                       w5_ref, b5_ref, o_ref):
    f32 = jnp.float32

    def mm(a, b):
        return jnp.dot(a, b, preferred_element_type=f32)

    def conv3x3(parts, b_ref, sh_ref, relu):
        # parts: list of (x2d (Cin_i, HW), w_ref (3, 3, Cout, Cin_i))
        # sh_ref: (4, HW, HW) shift bank [col-1, col+1, row-1, row+1]
        # out[co, (y,x)] = sum_{dy,dx,ci} W[co,ci,dy+1,dx+1] * in[ci, y+dy, x+dx]
        cout = b_ref.shape[0]
        hw = parts[0][0].shape[-1]

        # column(x)-shifted copies of every input part (MXU, boundary-zeroing)
        shifted = []
        for x2d, _ in parts:
            shifted.append({-1: mm(x2d, sh_ref[0]), 0: x2d, 1: mm(x2d, sh_ref[1])})

        acc = jnp.zeros((cout, hw), f32)
        for dy in (-1, 0, 1):
            s = jnp.zeros((cout, hw), f32)
            for dx in (-1, 0, 1):
                for (x2d, w_ref), sh in zip(parts, shifted):
                    s = s + mm(w_ref[dy + 1, dx + 1], sh[dx])
            if dy == -1:
                acc = acc + mm(s, sh_ref[2])
            elif dy == 0:
                acc = acc + s
            else:
                acc = acc + mm(s, sh_ref[3])

        acc = acc + b_ref[...]           # (Cout, 1) broadcast over lanes
        if relu:
            acc = jnp.maximum(acc, 0.0)
        return acc

    x0 = x_ref[0]                                                        # (4, 256)

    # ----- encoder -----
    e1 = conv3x3([(x0, w1_ref)], b1_ref, sh16_ref, True)                 # (8, 256)
    f1 = mm(e1, p16_ref[...])                                            # (8, 64)
    e2 = conv3x3([(f1, w2_ref)], b2_ref, sh8_ref, True)                  # (16, 64)
    f2 = mm(e2, p8_ref[...])                                             # (16, 16)

    # ----- decoder (skip concat folded into split weights) -----
    u2 = mm(f2, u8_ref[...])                                             # (16, 64)
    d1 = conv3x3([(u2, w3a_ref), (f1, w3b_ref)], b3_ref, sh8_ref, True)  # (16, 64)
    u1 = mm(d1, u16_ref[...])                                            # (16, 256)
    d2 = conv3x3([(u1, w4a_ref), (x0, w4b_ref)], b4_ref, sh16_ref, True) # (8, 256)

    # ----- segmentation head (no activation) -----
    m = conv3x3([(d2, w5_ref)], b5_ref, sh16_ref, False)                 # (3, 256)
    o_ref[0] = m.astype(o_ref.dtype)


# ----------------------------------------------------------------------------
# Parameters (PyTorch OIHW conv weights, deterministic init)
# ----------------------------------------------------------------------------
def init_params(key):
    ks = jax.random.split(key, 10)

    def winit(k, cout, cin):
        return jax.random.normal(k, (cout, cin, 3, 3), jnp.float32) / np.sqrt(9.0 * cin)

    def binit(k, c):
        return 0.1 * jax.random.normal(k, (c,), jnp.float32)

    return {
        "enc1_w": winit(ks[0], 8, 4),            "enc1_b": binit(ks[1], 8),
        "enc2_w": winit(ks[2], 16, 8),           "enc2_b": binit(ks[3], 16),
        "dec1_w": winit(ks[4], 16, 24),          "dec1_b": binit(ks[5], 16),
        "dec2_w": winit(ks[6], 8, 20),           "dec2_b": binit(ks[7], 8),
        "head_w": winit(ks[8], NUM_CLASSES, 8),  "head_b": binit(ks[9], NUM_CLASSES),
    }


# ----------------------------------------------------------------------------
# SegWrapper.forward equivalent (single pallas_call)
# ----------------------------------------------------------------------------
def seg_wrapper_forward(params, x_nchw):
    B, Cin, Hh, Ww = x_nchw.shape
    hw = Hh * Ww
    x_flat = x_nchw.reshape(B, Cin, hw).astype(jnp.float32)   # NCHW -> (B, C, H*W); no transpose

    # compile-time constants (numpy -> baked into the program, live in VMEM)
    sh16 = _shift_bank(16, 16)        # (4, 256, 256)
    sh8 = _shift_bank(8, 8)           # (4,  64,  64)
    p16 = _avgpool_mat(16, 16)        # (256, 64)
    p8 = _avgpool_mat(8, 8)           # (64, 16)
    u8 = _upsample_mat(4, 4)          # (16, 64)   4x4 -> 8x8
    u16 = _upsample_mat(8, 8)         # (64, 256)  8x8 -> 16x16

    def kt(w_oihw):                   # (O, I, 3, 3) -> (3, 3, O, I)
        return jnp.transpose(w_oihw, (2, 3, 0, 1))

    def col(b):
        return b.reshape(-1, 1)

    dec1_w, dec2_w = params["dec1_w"], params["dec2_w"]
    args = (
        x_flat,
        sh16, sh8, p16, p8, u8, u16,
        kt(params["enc1_w"]), col(params["enc1_b"]),
        kt(params["enc2_w"]), col(params["enc2_b"]),
        kt(dec1_w[:, :16]), kt(dec1_w[:, 16:]), col(params["dec1_b"]),
        kt(dec2_w[:, :16]), kt(dec2_w[:, 16:]), col(params["dec2_b"]),
        kt(params["head_w"]), col(params["head_b"]),
    )

    def full_spec(a):
        shape = tuple(np.shape(a))
        n = len(shape)

        def index_map(i):
            return (0,) * n

        return pl.BlockSpec(shape, index_map)

    in_specs = [pl.BlockSpec((1, Cin, hw), lambda i: (i, 0, 0))]
    in_specs += [full_spec(a) for a in args[1:]]

    masks_flat = pl.pallas_call(
        _fused_unet_kernel,
        out_shape=jax.ShapeDtypeStruct((B, NUM_CLASSES, hw), jnp.float32),
        grid=(B,),
        in_specs=in_specs,
        out_specs=pl.BlockSpec((1, NUM_CLASSES, hw), lambda i: (i, 0, 0)),
        compiler_params=pltpu.CompilerParams(
            dimension_semantics=("parallel",)),
    )(*args)

    masks = masks_flat.reshape(B, NUM_CLASSES, Hh, Ww)         # already NCHW
    labels = jnp.zeros((B, 1), x_nchw.dtype)                   # classification_head is None
    return masks, labels


# ----------------------------------------------------------------------------
# Pure-JAX reference (for a loose numerical sanity check)
# ----------------------------------------------------------------------------
def reference_forward(params, x_nchw):
    def conv(x, w, b):
        y = jax.lax.conv_general_dilated(
            x, w, window_strides=(1, 1), padding="SAME",
            dimension_numbers=("NCHW", "OIHW", "NCHW"),
            precision=jax.lax.Precision.HIGHEST)
        return y + b[None, :, None, None]

    def pool(x):
        b, c, h, w = x.shape
        return x.reshape(b, c, h // 2, 2, w // 2, 2).mean(axis=(3, 5))

    def up(x):
        return jnp.repeat(jnp.repeat(x, 2, axis=2), 2, axis=3)

    relu = lambda v: jnp.maximum(v, 0.0)
    x0 = x_nchw
    e1 = relu(conv(x0, params["enc1_w"], params["enc1_b"]))
    f1 = pool(e1)
    e2 = relu(conv(f1, params["enc2_w"], params["enc2_b"]))
    f2 = pool(e2)
    d1 = relu(conv(jnp.concatenate([up(f2), f1], axis=1),
                   params["dec1_w"], params["dec1_b"]))
    d2 = relu(conv(jnp.concatenate([up(d1), x0], axis=1),
                   params["dec2_w"], params["dec2_b"]))
    masks = conv(d2, params["head_w"], params["head_b"])
    labels = jnp.zeros((x_nchw.shape[0], 1), x_nchw.dtype)
    return masks, labels


if __name__ == "__main__":
    key = jax.random.PRNGKey(0)
    k_params, k_x = jax.random.split(key)
    params = init_params(k_params)
    x = jax.random.normal(k_x, (2, 4, H, W), jnp.float32)      # NCHW input

    masks, labels = jax.jit(seg_wrapper_forward)(params, x)
    jax.block_until_ready((masks, labels))

    assert masks.shape == (2, NUM_CLASSES, H, W), masks.shape
    assert labels.shape == (2, 1), labels.shape

    ref_masks, _ = jax.jit(reference_forward)(params, x)
    err = float(jnp.max(jnp.abs(masks - ref_masks)))
    assert err < 5e-2, f"max abs error vs reference: {err}"

    print("KERNEL_OK")
</pallas_src>

<mosaic_0001>
module attributes {stable_mosaic.version = 11 : i64} {
  func.func @_fused_unet_kernel(%arg0: i32, %arg1: memref<1x4x256xf32, #tpu.memory_space<vmem>>, %arg2: memref<4x256x256xf32, #tpu.memory_space<vmem>>, %arg3: memref<4x64x64xf32, #tpu.memory_space<vmem>>, %arg4: memref<256x64xf32, #tpu.memory_space<vmem>>, %arg5: memref<64x16xf32, #tpu.memory_space<vmem>>, %arg6: memref<16x64xf32, #tpu.memory_space<vmem>>, %arg7: memref<64x256xf32, #tpu.memory_space<vmem>>, %arg8: memref<3x3x8x4xf32, #tpu.memory_space<vmem>>, %arg9: memref<8x1xf32, #tpu.memory_space<vmem>>, %arg10: memref<3x3x16x8xf32, #tpu.memory_space<vmem>>, %arg11: memref<16x1xf32, #tpu.memory_space<vmem>>, %arg12: memref<3x3x16x16xf32, #tpu.memory_space<vmem>>, %arg13: memref<3x3x16x8xf32, #tpu.memory_space<vmem>>, %arg14: memref<16x1xf32, #tpu.memory_space<vmem>>, %arg15: memref<3x3x8x16xf32, #tpu.memory_space<vmem>>, %arg16: memref<3x3x8x4xf32, #tpu.memory_space<vmem>>, %arg17: memref<8x1xf32, #tpu.memory_space<vmem>>, %arg18: memref<3x3x3x8xf32, #tpu.memory_space<vmem>>, %arg19: memref<3x1xf32, #tpu.memory_space<vmem>>, %arg20: memref<1x3x256xf32, #tpu.memory_space<vmem>>) attributes {dimension_semantics = [#tpu.dimension_semantics<parallel>], iteration_bounds = array<i64: 2>, scalar_prefetch = 0 : i64, scratch_operands = 0 : i64, tpu.core_type = #tpu.core_type<tc>, window_params = [{transform_indices = @transform_0, window_bounds = array<i64: 1, 4, 256>}, {pipeline_mode = #tpu.pipeline_mode<synchronous>, transform_indices = @transform_1, window_bounds = array<i64: 4, 256, 256>}, {pipeline_mode = #tpu.pipeline_mode<synchronous>, transform_indices = @transform_2, window_bounds = array<i64: 4, 64, 64>}, {pipeline_mode = #tpu.pipeline_mode<synchronous>, transform_indices = @transform_3, window_bounds = array<i64: 256, 64>}, {pipeline_mode = #tpu.pipeline_mode<synchronous>, transform_indices = @transform_4, window_bounds = array<i64: 64, 16>}, {pipeline_mode = #tpu.pipeline_mode<synchronous>, transform_indices = @transform_5, window_bounds = array<i64: 16, 64>}, {pipeline_mode = #tpu.pipeline_mode<synchronous>, transform_indices = @transform_6, window_bounds = array<i64: 64, 256>}, {pipeline_mode = #tpu.pipeline_mode<synchronous>, transform_indices = @transform_7, window_bounds = array<i64: 3, 3, 8, 4>}, {pipeline_mode = #tpu.pipeline_mode<synchronous>, transform_indices = @transform_8, window_bounds = array<i64: 8, 1>}, {pipeline_mode = #tpu.pipeline_mode<synchronous>, transform_indices = @transform_9, window_bounds = array<i64: 3, 3, 16, 8>}, {pipeline_mode = #tpu.pipeline_mode<synchronous>, transform_indices = @transform_10, window_bounds = array<i64: 16, 1>}, {pipeline_mode = #tpu.pipeline_mode<synchronous>, transform_indices = @transform_11, window_bounds = array<i64: 3, 3, 16, 16>}, {pipeline_mode = #tpu.pipeline_mode<synchronous>, transform_indices = @transform_12, window_bounds = array<i64: 3, 3, 16, 8>}, {pipeline_mode = #tpu.pipeline_mode<synchronous>, transform_indices = @transform_13, window_bounds = array<i64: 16, 1>}, {pipeline_mode = #tpu.pipeline_mode<synchronous>, transform_indices = @transform_14, window_bounds = array<i64: 3, 3, 8, 16>}, {pipeline_mode = #tpu.pipeline_mode<synchronous>, transform_indices = @transform_15, window_bounds = array<i64: 3, 3, 8, 4>}, {pipeline_mode = #tpu.pipeline_mode<synchronous>, transform_indices = @transform_16, window_bounds = array<i64: 8, 1>}, {pipeline_mode = #tpu.pipeline_mode<synchronous>, transform_indices = @transform_17, window_bounds = array<i64: 3, 3, 3, 8>}, {pipeline_mode = #tpu.pipeline_mode<synchronous>, transform_indices = @transform_18, window_bounds = array<i64: 3, 1>}, {transform_indices = @transform_19, window_bounds = array<i64: 1, 3, 256>}]} {
    %c0 = arith.constant 0 : index
    %c0_0 = arith.constant 0 : index
    %c0_1 = arith.constant 0 : index
    %0 = vector.load %arg1[%c0, %c0_0, %c0_1] : memref<1x4x256xf32, #tpu.memory_space<vmem>>, vector<1x4x256xf32>
    %1 = vector.shape_cast %0 : vector<1x4x256xf32> to vector<4x256xf32>
    %c0_2 = arith.constant 0 : index
    %c0_3 = arith.constant 0 : index
    %c0_4 = arith.constant 0 : index
    %2 = vector.load %arg2[%c0_2, %c0_3, %c0_4] : memref<4x256x256xf32, #tpu.memory_space<vmem>>, vector<1x256x256xf32>
    %3 = vector.shape_cast %2 : vector<1x256x256xf32> to vector<256x256xf32>
    %cst = arith.constant dense<0.000000e+00> : vector<4x256xf32>
    %4 = tpu.matmul %1, %3, %cst {dimension_numbers = #tpu.dot_dimension_numbers<[1], [0], [0], [1], [0, 0, 1, 1], [], []>} : vector<4x256xf32>, vector<256x256xf32>, vector<4x256xf32> -> vector<4x256xf32>
    %c1 = arith.constant 1 : index
    %c0_5 = arith.constant 0 : index
    %c0_6 = arith.constant 0 : index
    %5 = vector.load %arg2[%c1, %c0_5, %c0_6] : memref<4x256x256xf32, #tpu.memory_space<vmem>>, vector<1x256x256xf32>
    %6 = vector.shape_cast %5 : vector<1x256x256xf32> to vector<256x256xf32>
    %cst_7 = arith.constant dense<0.000000e+00> : vector<4x256xf32>
    %7 = tpu.matmul %1, %6, %cst_7 {dimension_numbers = #tpu.dot_dimension_numbers<[1], [0], [0], [1], [0, 0, 1, 1], [], []>} : vector<4x256xf32>, vector<256x256xf32>, vector<4x256xf32> -> vector<4x256xf32>
    %cst_8 = arith.constant 0.000000e+00 : f32
    %8 = vector.broadcast %cst_8 : f32 to vector<8x256xf32>
    %cst_9 = arith.constant 0.000000e+00 : f32
    %9 = vector.broadcast %cst_9 : f32 to vector<8x256xf32>
    %c0_10 = arith.constant 0 : index
    %c0_11 = arith.constant 0 : index
    %c0_12 = arith.constant 0 : index
    %c0_13 = arith.constant 0 : index
    %10 = vector.load %arg8[%c0_10, %c0_11, %c0_12, %c0_13] : memref<3x3x8x4xf32, #tpu.memory_space<vmem>>, vector<1x1x8x4xf32>
    %11 = vector.shape_cast %10 : vector<1x1x8x4xf32> to vector<8x4xf32>
    %cst_14 = arith.constant dense<0.000000e+00> : vector<8x256xf32>
    %12 = tpu.matmul %11, %4, %cst_14 {dimension_numbers = #tpu.dot_dimension_numbers<[1], [0], [0], [1], [0, 0, 1, 1], [], []>} : vector<8x4xf32>, vector<4x256xf32>, vector<8x256xf32> -> vector<8x256xf32>
    %13 = arith.addf %9, %12 : vector<8x256xf32>
    %c0_15 = arith.constant 0 : index
    %c1_16 = arith.constant 1 : index
    %c0_17 = arith.constant 0 : index
    %c0_18 = arith.constant 0 : index
    %14 = vector.load %arg8[%c0_15, %c1_16, %c0_17, %c0_18] : memref<3x3x8x4xf32, #tpu.memory_space<vmem>>, vector<1x1x8x4xf32>
    %15 = vector.shape_cast %14 : vector<1x1x8x4xf32> to vector<8x4xf32>
    %cst_19 = arith.constant dense<0.000000e+00> : vector<8x256xf32>
    %16 = tpu.matmul %15, %1, %cst_19 {dimension_numbers = #tpu.dot_dimension_numbers<[1], [0], [0], [1], [0, 0, 1, 1], [], []>} : vector<8x4xf32>, vector<4x256xf32>, vector<8x256xf32> -> vector<8x256xf32>
    %17 = arith.addf %13, %16 : vector<8x256xf32>
    %c0_20 = arith.constant 0 : index
    %c2 = arith.constant 2 : index
    %c0_21 = arith.constant 0 : index
    %c0_22 = arith.constant 0 : index
    %18 = vector.load %arg8[%c0_20, %c2, %c0_21, %c0_22] : memref<3x3x8x4xf32, #tpu.memory_space<vmem>>, vector<1x1x8x4xf32>
    %19 = vector.shape_cast %18 : vector<1x1x8x4xf32> to vector<8x4xf32>
    %cst_23 = arith.constant dense<0.000000e+00> : vector<8x256xf32>
    %20 = tpu.matmul %19, %7, %cst_23 {dimension_numbers = #tpu.dot_dimension_numbers<[1], [0], [0], [1], [0, 0, 1, 1], [], []>} : vector<8x4xf32>, vector<4x256xf32>, vector<8x256xf32> -> vector<8x256xf32>
    %21 = arith.addf %17, %20 : vector<8x256xf32>
    %c2_24 = arith.constant 2 : index
    %c0_25 = arith.constant 0 : index
    %c0_26 = arith.constant 0 : index
    %22 = vector.load %arg2[%c2_24, %c0_25, %c0_26] : memref<4x256x256xf32, #tpu.memory_space<vmem>>, vector<1x256x256xf32>
    %23 = vector.shape_cast %22 : vector<1x256x256xf32> to vector<256x256xf32>
    %cst_27 = arith.constant dense<0.000000e+00> : vector<8x256xf32>
    %24 = tpu.matmul %21, %23, %cst_27 {dimension_numbers = #tpu.dot_dimension_numbers<[1], [0], [0], [1], [0, 0, 1, 1], [], []>} : vector<8x256xf32>, vector<256x256xf32>, vector<8x256xf32> -> vector<8x256xf32>
    %25 = arith.addf %8, %24 : vector<8x256xf32>
    %cst_28 = arith.constant 0.000000e+00 : f32
    %26 = vector.broadcast %cst_28 : f32 to vector<8x256xf32>
    %c1_29 = arith.constant 1 : index
    %c0_30 = arith.constant 0 : index
    %c0_31 = arith.constant 0 : index
    %c0_32 = arith.constant 0 : index
    %27 = vector.load %arg8[%c1_29, %c0_30, %c0_31, %c0_32] : memref<3x3x8x4xf32, #tpu.memory_space<vmem>>, vector<1x1x8x4xf32>
    %28 = vector.shape_cast %27 : vector<1x1x8x4xf32> to vector<8x4xf32>
    %cst_33 = arith.constant dense<0.000000e+00> : vector<8x256xf32>
    %29 = tpu.matmul %28, %4, %cst_33 {dimension_numbers = #tpu.dot_dimension_numbers<[1], [0], [0], [1], [0, 0, 1, 1], [], []>} : vector<8x4xf32>, vector<4x256xf32>, vector<8x256xf32> -> vector<8x256xf32>
    %30 = arith.addf %26, %29 : vector<8x256xf32>
    %c1_34 = arith.constant 1 : index
    %c1_35 = arith.constant 1 : index
    %c0_36 = arith.constant 0 : index
    %c0_37 = arith.constant 0 : index
    %31 = vector.load %arg8[%c1_34, %c1_35, %c0_36, %c0_37] : memref<3x3x8x4xf32, #tpu.memory_space<vmem>>, vector<1x1x8x4xf32>
    %32 = vector.shape_cast %31 : vector<1x1x8x4xf32> to vector<8x4xf32>
    %cst_38 = arith.constant dense<0.000000e+00> : vector<8x256xf32>
    %33 = tpu.matmul %32, %1, %cst_38 {dimension_numbers = #tpu.dot_dimension_numbers<[1], [0], [0], [1], [0, 0, 1, 1], [], []>} : vector<8x4xf32>, vector<4x256xf32>, vector<8x256xf32> -> vector<8x256xf32>
    %34 = arith.addf %30, %33 : vector<8x256xf32>
    %c1_39 = arith.constant 1 : index
    %c2_40 = arith.constant 2 : index
    %c0_41 = arith.constant 0 : index
    %c0_42 = arith.constant 0 : index
    %35 = vector.load %arg8[%c1_39, %c2_40, %c0_41, %c0_42] : memref<3x3x8x4xf32, #tpu.memory_space<vmem>>, vector<1x1x8x4xf32>
    %36 = vector.shape_cast %35 : vector<1x1x8x4xf32> to vector<8x4xf32>
    %cst_43 = arith.constant dense<0.000000e+00> : vector<8x256xf32>
    %37 = tpu.matmul %36, %7, %cst_43 {dimension_numbers = #tpu.dot_dimension_numbers<[1], [0], [0], [1], [0, 0, 1, 1], [], []>} : vector<8x4xf32>, vector<4x256xf32>, vector<8x256xf32> -> vector<8x256xf32>
    %38 = arith.addf %34, %37 : vector<8x256xf32>
    %39 = arith.addf %25, %38 : vector<8x256xf32>
    %cst_44 = arith.constant 0.000000e+00 : f32
    %40 = vector.broadcast %cst_44 : f32 to vector<8x256xf32>
    %c2_45 = arith.constant 2 : index
    %c0_46 = arith.constant 0 : index
    %c0_47 = arith.constant 0 : index
    %c0_48 = arith.constant 0 : index
    %41 = vector.load %arg8[%c2_45, %c0_46, %c0_47, %c0_48] : memref<3x3x8x4xf32, #tpu.memory_space<vmem>>, vector<1x1x8x4xf32>
    %42 = vector.shape_cast %41 : vector<1x1x8x4xf32> to vector<8x4xf32>
    %cst_49 = arith.constant dense<0.000000e+00> : vector<8x256xf32>
    %43 = tpu.matmul %42, %4, %cst_49 {dimension_numbers = #tpu.dot_dimension_numbers<[1], [0], [0], [1], [0, 0, 1, 1], [], []>} : vector<8x4xf32>, vector<4x256xf32>, vector<8x256xf32> -> vector<8x256xf32>
    %44 = arith.addf %40, %43 : vector<8x256xf32>
    %c2_50 = arith.constant 2 : index
    %c1_51 = arith.constant 1 : index
    %c0_52 = arith.constant 0 : index
    %c0_53 = arith.constant 0 : index
    %45 = vector.load %arg8[%c2_50, %c1_51, %c0_52, %c0_53] : memref<3x3x8x4xf32, #tpu.memory_space<vmem>>, vector<1x1x8x4xf32>
    %46 = vector.shape_cast %45 : vector<1x1x8x4xf32> to vector<8x4xf32>
    %cst_54 = arith.constant dense<0.000000e+00> : vector<8x256xf32>
    %47 = tpu.matmul %46, %1, %cst_54 {dimension_numbers = #tpu.dot_dimension_numbers<[1], [0], [0], [1], [0, 0, 1, 1], [], []>} : vector<8x4xf32>, vector<4x256xf32>, vector<8x256xf32> -> vector<8x256xf32>
    %48 = arith.addf %44, %47 : vector<8x256xf32>
    %c2_55 = arith.constant 2 : index
    %c2_56 = arith.constant 2 : index
    %c0_57 = arith.constant 0 : index
    %c0_58 = arith.constant 0 : index
    %49 = vector.load %arg8[%c2_55, %c2_56, %c0_57, %c0_58] : memref<3x3x8x4xf32, #tpu.memory_space<vmem>>, vector<1x1x8x4xf32>
    %50 = vector.shape_cast %49 : vector<1x1x8x4xf32> to vector<8x4xf32>
    %cst_59 = arith.constant dense<0.000000e+00> : vector<8x256xf32>
    %51 = tpu.matmul %50, %7, %cst_59 {dimension_numbers = #tpu.dot_dimension_numbers<[1], [0], [0], [1], [0, 0, 1, 1], [], []>} : vector<8x4xf32>, vector<4x256xf32>, vector<8x256xf32> -> vector<8x256xf32>
    %52 = arith.addf %48, %51 : vector<8x256xf32>
    %c3 = arith.constant 3 : index
    %c0_60 = arith.constant 0 : index
    %c0_61 = arith.constant 0 : index
    %53 = vector.load %arg2[%c3, %c0_60, %c0_61] : memref<4x256x256xf32, #tpu.memory_space<vmem>>, vector<1x256x256xf32>
    %54 = vector.shape_cast %53 : vector<1x256x256xf32> to vector<256x256xf32>
    %cst_62 = arith.constant dense<0.000000e+00> : vector<8x256xf32>
    %55 = tpu.matmul %52, %54, %cst_62 {dimension_numbers = #tpu.dot_dimension_numbers<[1], [0], [0], [1], [0, 0, 1, 1], [], []>} : vector<8x256xf32>, vector<256x256xf32>, vector<8x256xf32> -> vector<8x256xf32>
    %56 = arith.addf %39, %55 : vector<8x256xf32>
    %c0_63 = arith.constant 0 : index
    %c0_64 = arith.constant 0 : index
    %57 = vector.load %arg9[%c0_63, %c0_64] : memref<8x1xf32, #tpu.memory_space<vmem>>, vector<8x1xf32>
    %58 = vector.broadcast %57 : vector<8x1xf32> to vector<8x256xf32>
    %59 = arith.addf %56, %58 : vector<8x256xf32>
    %cst_65 = arith.constant 0.000000e+00 : f32
    %60 = vector.broadcast %cst_65 : f32 to vector<8x256xf32>
    %61 = arith.maximumf %59, %60 : vector<8x256xf32>
    %c0_66 = arith.constant 0 : index
    %c0_67 = arith.constant 0 : index
    %62 = vector.load %arg4[%c0_66, %c0_67] : memref<256x64xf32, #tpu.memory_space<vmem>>, vector<256x64xf32>
    %cst_68 = arith.constant dense<0.000000e+00> : vector<8x64xf32>
    %63 = tpu.matmul %61, %62, %cst_68 {dimension_numbers = #tpu.dot_dimension_numbers<[1], [0], [0], [1], [0, 0, 1, 1], [], []>} : vector<8x256xf32>, vector<256x64xf32>, vector<8x64xf32> -> vector<8x64xf32>
    %c0_69 = arith.constant 0 : index
    %c0_70 = arith.constant 0 : index
    %c0_71 = arith.constant 0 : index
    %64 = vector.load %arg3[%c0_69, %c0_70, %c0_71] : memref<4x64x64xf32, #tpu.memory_space<vmem>>, vector<1x64x64xf32>
    %65 = vector.shape_cast %64 : vector<1x64x64xf32> to vector<64x64xf32>
    %cst_72 = arith.constant dense<0.000000e+00> : vector<8x64xf32>
    %66 = tpu.matmul %63, %65, %cst_72 {dimension_numbers = #tpu.dot_dimension_numbers<[1], [0], [0], [1], [0, 0, 1, 1], [], []>} : vector<8x64xf32>, vector<64x64xf32>, vector<8x64xf32> -> vector<8x64xf32>
    %c1_73 = arith.constant 1 : index
    %c0_74 = arith.constant 0 : index
    %c0_75 = arith.constant 0 : index
    %67 = vector.load %arg3[%c1_73, %c0_74, %c0_75] : memref<4x64x64xf32, #tpu.memory_space<vmem>>, vector<1x64x64xf32>
    %68 = vector.shape_cast %67 : vector<1x64x64xf32> to vector<64x64xf32>
    %cst_76 = arith.constant dense<0.000000e+00> : vector<8x64xf32>
    %69 = tpu.matmul %63, %68, %cst_76 {dimension_numbers = #tpu.dot_dimension_numbers<[1], [0], [0], [1], [0, 0, 1, 1], [], []>} : vector<8x64xf32>, vector<64x64xf32>, vector<8x64xf32> -> vector<8x64xf32>
    %cst_77 = arith.constant 0.000000e+00 : f32
    %70 = vector.broadcast %cst_77 : f32 to vector<16x64xf32>
    %cst_78 = arith.constant 0.000000e+00 : f32
    %71 = vector.broadcast %cst_78 : f32 to vector<16x64xf32>
    %c0_79 = arith.constant 0 : index
    %c0_80 = arith.constant 0 : index
    %c0_81 = arith.constant 0 : index
    %c0_82 = arith.constant 0 : index
    %72 = vector.load %arg10[%c0_79, %c0_80, %c0_81, %c0_82] : memref<3x3x16x8xf32, #tpu.memory_space<vmem>>, vector<1x1x16x8xf32>
    %73 = vector.shape_cast %72 : vector<1x1x16x8xf32> to vector<16x8xf32>
    %cst_83 = arith.constant dense<0.000000e+00> : vector<16x64xf32>
    %74 = tpu.matmul %73, %66, %cst_83 {dimension_numbers = #tpu.dot_dimension_numbers<[1], [0], [0], [1], [0, 0, 1, 1], [], []>} : vector<16x8xf32>, vector<8x64xf32>, vector<16x64xf32> -> vector<16x64xf32>
    %75 = arith.addf %71, %74 : vector<16x64xf32>
    %c0_84 = arith.constant 0 : index
    %c1_85 = arith.constant 1 : index
    %c0_86 = arith.constant 0 : index
    %c0_87 = arith.constant 0 : index
    %76 = vector.load %arg10[%c0_84, %c1_85, %c0_86, %c0_87] : memref<3x3x16x8xf32, #tpu.memory_space<vmem>>, vector<1x1x16x8xf32>
    %77 = vector.shape_cast %76 : vector<1x1x16x8xf32> to vector<16x8xf32>
    %cst_88 = arith.constant dense<0.000000e+00> : vector<16x64xf32>
    %78 = tpu.matmul %77, %63, %cst_88 {dimension_numbers = #tpu.dot_dimension_numbers<[1], [0], [0], [1], [0, 0, 1, 1], [], []>} : vector<16x8xf32>, vector<8x64xf32>, vector<16x64xf32> -> vector<16x64xf32>
    %79 = arith.addf %75, %78 : vector<16x64xf32>
    %c0_89 = arith.constant 0 : index
    %c2_90 = arith.constant 2 : index
    %c0_91 = arith.constant 0 : index
    %c0_92 = arith.constant 0 : index
    %80 = vector.load %arg10[%c0_89, %c2_90, %c0_91, %c0_92] : memref<3x3x16x8xf32, #tpu.memory_space<vmem>>, vector<1x1x16x8xf32>
    %81 = vector.shape_cast %80 : vector<1x1x16x8xf32> to vector<16x8xf32>
    %cst_93 = arith.constant dense<0.000000e+00> : vector<16x64xf32>
    %82 = tpu.matmul %81, %69, %cst_93 {dimension_numbers = #tpu.dot_dimension_numbers<[1], [0], [0], [1], [0, 0, 1, 1], [], []>} : vector<16x8xf32>, vector<8x64xf32>, vector<16x64xf32> -> vector<16x64xf32>
    %83 = arith.addf %79, %82 : vector<16x64xf32>
    %c2_94 = arith.constant 2 : index
    %c0_95 = arith.constant 0 : index
    %c0_96 = arith.constant 0 : index
    %84 = vector.load %arg3[%c2_94, %c0_95, %c0_96] : memref<4x64x64xf32, #tpu.memory_space<vmem>>, vector<1x64x64xf32>
    %85 = vector.shape_cast %84 : vector<1x64x64xf32> to vector<64x64xf32>
    %cst_97 = arith.constant dense<0.000000e+00> : vector<16x64xf32>
    %86 = tpu.matmul %83, %85, %cst_97 {dimension_numbers = #tpu.dot_dimension_numbers<[1], [0], [0], [1], [0, 0, 1, 1], [], []>} : vector<16x64xf32>, vector<64x64xf32>, vector<16x64xf32> -> vector<16x64xf32>
    %87 = arith.addf %70, %86 : vector<16x64xf32>
    %cst_98 = arith.constant 0.000000e+00 : f32
    %88 = vector.broadcast %cst_98 : f32 to vector<16x64xf32>
    %c1_99 = arith.constant 1 : index
    %c0_100 = arith.constant 0 : index
    %c0_101 = arith.constant 0 : index
    %c0_102 = arith.constant 0 : index
    %89 = vector.load %arg10[%c1_99, %c0_100, %c0_101, %c0_102] : memref<3x3x16x8xf32, #tpu.memory_space<vmem>>, vector<1x1x16x8xf32>
    %90 = vector.shape_cast %89 : vector<1x1x16x8xf32> to vector<16x8xf32>
    %cst_103 = arith.constant dense<0.000000e+00> : vector<16x64xf32>
    %91 = tpu.matmul %90, %66, %cst_103 {dimension_numbers = #tpu.dot_dimension_numbers<[1], [0], [0], [1], [0, 0, 1, 1], [], []>} : vector<16x8xf32>, vector<8x64xf32>, vector<16x64xf32> -> vector<16x64xf32>
    %92 = arith.addf %88, %91 : vector<16x64xf32>
    %c1_104 = arith.constant 1 : index
    %c1_105 = arith.constant 1 : index
    %c0_106 = arith.constant 0 : index
    %c0_107 = arith.constant 0 : index
    %93 = vector.load %arg10[%c1_104, %c1_105, %c0_106, %c0_107] : memref<3x3x16x8xf32, #tpu.memory_space<vmem>>, vector<1x1x16x8xf32>
    %94 = vector.shape_cast %93 : vector<1x1x16x8xf32> to vector<16x8xf32>
    %cst_108 = arith.constant dense<0.000000e+00> : vector<16x64xf32>
    %95 = tpu.matmul %94, %63, %cst_108 {dimension_numbers = #tpu.dot_dimension_numbers<[1], [0], [0], [1], [0, 0, 1, 1], [], []>} : vector<16x8xf32>, vector<8x64xf32>, vector<16x64xf32> -> vector<16x64xf32>
    %96 = arith.addf %92, %95 : vector<16x64xf32>
    %c1_109 = arith.constant 1 : index
    %c2_110 = arith.constant 2 : index
    %c0_111 = arith.constant 0 : index
    %c0_112 = arith.constant 0 : index
    %97 = vector.load %arg10[%c1_109, %c2_110, %c0_111, %c0_112] : memref<3x3x16x8xf32, #tpu.memory_space<vmem>>, vector<1x1x16x8xf32>
    %98 = vector.shape_cast %97 : vector<1x1x16x8xf32> to vector<16x8xf32>
    %cst_113 = arith.constant dense<0.000000e+00> : vector<16x64xf32>
    %99 = tpu.matmul %98, %69, %cst_113 {dimension_numbers = #tpu.dot_dimension_numbers<[1], [0], [0], [1], [0, 0, 1, 1], [], []>} : vector<16x8xf32>, vector<8x64xf32>, vector<16x64xf32> -> vector<16x64xf32>
    %100 = arith.addf %96, %99 : vector<16x64xf32>
    %101 = arith.addf %87, %100 : vector<16x64xf32>
    %cst_114 = arith.constant 0.000000e+00 : f32
    %102 = vector.broadcast %cst_114 : f32 to vector<16x64xf32>
    %c2_115 = arith.constant 2 : index
    %c0_116 = arith.constant 0 : index
    %c0_117 = arith.constant 0 : index
    %c0_118 = arith.constant 0 : index
    %103 = vector.load %arg10[%c2_115, %c0_116, %c0_117, %c0_118] : memref<3x3x16x8xf32, #tpu.memory_space<vmem>>, vector<1x1x16x8xf32>
    %104 = vector.shape_cast %103 : vector<1x1x16x8xf32> to vector<16x8xf32>
    %cst_119 = arith.constant dense<0.000000e+00> : vector<16x64xf32>
    %105 = tpu.matmul %104, %66, %cst_119 {dimension_numbers = #tpu.dot_dimension_numbers<[1], [0], [0], [1], [0, 0, 1, 1], [], []>} : vector<16x8xf32>, vector<8x64xf32>, vector<16x64xf32> -> vector<16x64xf32>
    %106 = arith.addf %102, %105 : vector<16x64xf32>
    %c2_120 = arith.constant 2 : index
    %c1_121 = arith.constant 1 : index
    %c0_122 = arith.constant 0 : index
    %c0_123 = arith.constant 0 : index
    %107 = vector.load %arg10[%c2_120, %c1_121, %c0_122, %c0_123] : memref<3x3x16x8xf32, #tpu.memory_space<vmem>>, vector<1x1x16x8xf32>
    %108 = vector.shape_cast %107 : vector<1x1x16x8xf32> to vector<16x8xf32>
    %cst_124 = arith.constant dense<0.000000e+00> : vector<16x64xf32>
    %109 = tpu.matmul %108, %63, %cst_124 {dimension_numbers = #tpu.dot_dimension_numbers<[1], [0], [0], [1], [0, 0, 1, 1], [], []>} : vector<16x8xf32>, vector<8x64xf32>, vector<16x64xf32> -> vector<16x64xf32>
    %110 = arith.addf %106, %109 : vector<16x64xf32>
    %c2_125 = arith.constant 2 : index
    %c2_126 = arith.constant 2 : index
    %c0_127 = arith.constant 0 : index
    %c0_128 = arith.constant 0 : index
    %111 = vector.load %arg10[%c2_125, %c2_126, %c0_127, %c0_128] : memref<3x3x16x8xf32, #tpu.memory_space<vmem>>, vector<1x1x16x8xf32>
    %112 = vector.shape_cast %111 : vector<1x1x16x8xf32> to vector<16x8xf32>
    %cst_129 = arith.constant dense<0.000000e+00> : vector<16x64xf32>
    %113 = tpu.matmul %112, %69, %cst_129 {dimension_numbers = #tpu.dot_dimension_numbers<[1], [0], [0], [1], [0, 0, 1, 1], [], []>} : vector<16x8xf32>, vector<8x64xf32>, vector<16x64xf32> -> vector<16x64xf32>
    %114 = arith.addf %110, %113 : vector<16x64xf32>
    %c3_130 = arith.constant 3 : index
    %c0_131 = arith.constant 0 : index
    %c0_132 = arith.constant 0 : index
    %115 = vector.load %arg3[%c3_130, %c0_131, %c0_132] : memref<4x64x64xf32, #tpu.memory_space<vmem>>, vector<1x64x64xf32>
    %116 = vector.shape_cast %115 : vector<1x64x64xf32> to vector<64x64xf32>
    %cst_133 = arith.constant dense<0.000000e+00> : vector<16x64xf32>
    %117 = tpu.matmul %114, %116, %cst_133 {dimension_numbers = #tpu.dot_dimension_numbers<[1], [0], [0], [1], [0, 0, 1, 1], [], []>} : vector<16x64xf32>, vector<64x64xf32>, vector<16x64xf32> -> vector<16x64xf32>
    %118 = arith.addf %101, %117 : vector<16x64xf32>
    %c0_134 = arith.constant 0 : index
    %c0_135 = arith.constant 0 : index
    %119 = vector.load %arg11[%c0_134, %c0_135] : memref<16x1xf32, #tpu.memory_space<vmem>>, vector<16x1xf32>
    %120 = vector.broadcast %119 : vector<16x1xf32> to vector<16x64xf32>
    %121 = arith.addf %118, %120 : vector<16x64xf32>
    %cst_136 = arith.constant 0.000000e+00 : f32
    %122 = vector.broadcast %cst_136 : f32 to vector<16x64xf32>
    %123 = arith.maximumf %121, %122 : vector<16x64xf32>
    %c0_137 = arith.constant 0 : index
    %c0_138 = arith.constant 0 : index
    %124 = vector.load %arg5[%c0_137, %c0_138] : memref<64x16xf32, #tpu.memory_space<vmem>>, vector<64x16xf32>
    %cst_139 = arith.constant dense<0.000000e+00> : vector<16x16xf32>
    %125 = tpu.matmul %123, %124, %cst_139 {dimension_numbers = #tpu.dot_dimension_numbers<[1], [0], [0], [1], [0, 0, 1, 1], [], []>} : vector<16x64xf32>, vector<64x16xf32>, vector<16x16xf32> -> vector<16x16xf32>
    %c0_140 = arith.constant 0 : index
    %c0_141 = arith.constant 0 : index
    %126 = vector.load %arg6[%c0_140, %c0_141] : memref<16x64xf32, #tpu.memory_space<vmem>>, vector<16x64xf32>
    %cst_142 = arith.constant dense<0.000000e+00> : vector<16x64xf32>
    %127 = tpu.matmul %125, %126, %cst_142 {dimension_numbers = #tpu.dot_dimension_numbers<[1], [0], [0], [1], [0, 0, 1, 1], [], []>} : vector<16x16xf32>, vector<16x64xf32>, vector<16x64xf32> -> vector<16x64xf32>
    %c0_143 = arith.constant 0 : index
    %c0_144 = arith.constant 0 : index
    %c0_145 = arith.constant 0 : index
    %128 = vector.load %arg3[%c0_143, %c0_144, %c0_145] : memref<4x64x64xf32, #tpu.memory_space<vmem>>, vector<1x64x64xf32>
    %129 = vector.shape_cast %128 : vector<1x64x64xf32> to vector<64x64xf32>
    %cst_146 = arith.constant dense<0.000000e+00> : vector<16x64xf32>
    %130 = tpu.matmul %127, %129, %cst_146 {dimension_numbers = #tpu.dot_dimension_numbers<[1], [0], [0], [1], [0, 0, 1, 1], [], []>} : vector<16x64xf32>, vector<64x64xf32>, vector<16x64xf32> -> vector<16x64xf32>
    %c1_147 = arith.constant 1 : index
    %c0_148 = arith.constant 0 : index
    %c0_149 = arith.constant 0 : index
    %131 = vector.load %arg3[%c1_147, %c0_148, %c0_149] : memref<4x64x64xf32, #tpu.memory_space<vmem>>, vector<1x64x64xf32>
    %132 = vector.shape_cast %131 : vector<1x64x64xf32> to vector<64x64xf32>
    %cst_150 = arith.constant dense<0.000000e+00> : vector<16x64xf32>
    %133 = tpu.matmul %127, %132, %cst_150 {dimension_numbers = #tpu.dot_dimension_numbers<[1], [0], [0], [1], [0, 0, 1, 1], [], []>} : vector<16x64xf32>, vector<64x64xf32>, vector<16x64xf32> -> vector<16x64xf32>
    %c0_151 = arith.constant 0 : index
    %c0_152 = arith.constant 0 : index
    %c0_153 = arith.constant 0 : index
    %134 = vector.load %arg3[%c0_151, %c0_152, %c0_153] : memref<4x64x64xf32, #tpu.memory_space<vmem>>, vector<1x64x64xf32>
    %135 = vector.shape_cast %134 : vector<1x64x64xf32> to vector<64x64xf32>
    %cst_154 = arith.constant dense<0.000000e+00> : vector<8x64xf32>
    %136 = tpu.matmul %63, %135, %cst_154 {dimension_numbers = #tpu.dot_dimension_numbers<[1], [0], [0], [1], [0, 0, 1, 1], [], []>} : vector<8x64xf32>, vector<64x64xf32>, vector<8x64xf32> -> vector<8x64xf32>
    %c1_155 = arith.constant 1 : index
    %c0_156 = arith.constant 0 : index
    %c0_157 = arith.constant 0 : index
    %137 = vector.load %arg3[%c1_155, %c0_156, %c0_157] : memref<4x64x64xf32, #tpu.memory_space<vmem>>, vector<1x64x64xf32>
    %138 = vector.shape_cast %137 : vector<1x64x64xf32> to vector<64x64xf32>
    %cst_158 = arith.constant dense<0.000000e+00> : vector<8x64xf32>
    %139 = tpu.matmul %63, %138, %cst_158 {dimension_numbers = #tpu.dot_dimension_numbers<[1], [0], [0], [1], [0, 0, 1, 1], [], []>} : vector<8x64xf32>, vector<64x64xf32>, vector<8x64xf32> -> vector<8x64xf32>
    %cst_159 = arith.constant 0.000000e+00 : f32
    %140 = vector.broadcast %cst_159 : f32 to vector<16x64xf32>
    %cst_160 = arith.constant 0.000000e+00 : f32
    %141 = vector.broadcast %cst_160 : f32 to vector<16x64xf32>
    %c0_161 = arith.constant 0 : index
    %c0_162 = arith.constant 0 : index
    %c0_163 = arith.constant 0 : index
    %c0_164 = arith.constant 0 : index
    %142 = vector.load %arg12[%c0_161, %c0_162, %c0_163, %c0_164] : memref<3x3x16x16xf32, #tpu.memory_space<vmem>>, vector<1x1x16x16xf32>
    %143 = vector.shape_cast %142 : vector<1x1x16x16xf32> to vector<16x16xf32>
    %cst_165 = arith.constant dense<0.000000e+00> : vector<16x64xf32>
    %144 = tpu.matmul %143, %130, %cst_165 {dimension_numbers = #tpu.dot_dimension_numbers<[1], [0], [0], [1], [0, 0, 1, 1], [], []>} : vector<16x16xf32>, vector<16x64xf32>, vector<16x64xf32> -> vector<16x64xf32>
    %145 = arith.addf %141, %144 : vector<16x64xf32>
    %c0_166 = arith.constant 0 : index
    %c0_167 = arith.constant 0 : index
    %c0_168 = arith.constant 0 : index
    %c0_169 = arith.constant 0 : index
    %146 = vector.load %arg13[%c0_166, %c0_167, %c0_168, %c0_169] : memref<3x3x16x8xf32, #tpu.memory_space<vmem>>, vector<1x1x16x8xf32>
    %147 = vector.shape_cast %146 : vector<1x1x16x8xf32> to vector<16x8xf32>
    %cst_170 = arith.constant dense<0.000000e+00> : vector<16x64xf32>
    %148 = tpu.matmul %147, %136, %cst_170 {dimension_numbers = #tpu.dot_dimension_numbers<[1], [0], [0], [1], [0, 0, 1, 1], [], []>} : vector<16x8xf32>, vector<8x64xf32>, vector<16x64xf32> -> vector<16x64xf32>
    %149 = arith.addf %145, %148 : vector<16x64xf32>
    %c0_171 = arith.constant 0 : index
    %c1_172 = arith.constant 1 : index
    %c0_173 = arith.constant 0 : index
    %c0_174 = arith.constant 0 : index
    %150 = vector.load %arg12[%c0_171, %c1_172, %c0_173, %c0_174] : memref<3x3x16x16xf32, #tpu.memory_space<vmem>>, vector<1x1x16x16xf32>
    %151 = vector.shape_cast %150 : vector<1x1x16x16xf32> to vector<16x16xf32>
    %cst_175 = arith.constant dense<0.000000e+00> : vector<16x64xf32>
    %152 = tpu.matmul %151, %127, %cst_175 {dimension_numbers = #tpu.dot_dimension_numbers<[1], [0], [0], [1], [0, 0, 1, 1], [], []>} : vector<16x16xf32>, vector<16x64xf32>, vector<16x64xf32> -> vector<16x64xf32>
    %153 = arith.addf %149, %152 : vector<16x64xf32>
    %c0_176 = arith.constant 0 : index
    %c1_177 = arith.constant 1 : index
    %c0_178 = arith.constant 0 : index
    %c0_179 = arith.constant 0 : index
    %154 = vector.load %arg13[%c0_176, %c1_177, %c0_178, %c0_179] : memref<3x3x16x8xf32, #tpu.memory_space<vmem>>, vector<1x1x16x8xf32>
    %155 = vector.shape_cast %154 : vector<1x1x16x8xf32> to vector<16x8xf32>
    %cst_180 = arith.constant dense<0.000000e+00> : vector<16x64xf32>
    %156 = tpu.matmul %155, %63, %cst_180 {dimension_numbers = #tpu.dot_dimension_numbers<[1], [0], [0], [1], [0, 0, 1, 1], [], []>} : vector<16x8xf32>, vector<8x64xf32>, vector<16x64xf32> -> vector<16x64xf32>
    %157 = arith.addf %153, %156 : vector<16x64xf32>
    %c0_181 = arith.constant 0 : index
    %c2_182 = arith.constant 2 : index
    %c0_183 = arith.constant 0 : index
    %c0_184 = arith.constant 0 : index
    %158 = vector.load %arg12[%c0_181, %c2_182, %c0_183, %c0_184] : memref<3x3x16x16xf32, #tpu.memory_space<vmem>>, vector<1x1x16x16xf32>
    %159 = vector.shape_cast %158 : vector<1x1x16x16xf32> to vector<16x16xf32>
    %cst_185 = arith.constant dense<0.000000e+00> : vector<16x64xf32>
    %160 = tpu.matmul %159, %133, %cst_185 {dimension_numbers = #tpu.dot_dimension_numbers<[1], [0], [0], [1], [0, 0, 1, 1], [], []>} : vector<16x16xf32>, vector<16x64xf32>, vector<16x64xf32> -> vector<16x64xf32>
    %161 = arith.addf %157, %160 : vector<16x64xf32>
    %c0_186 = arith.constant 0 : index
    %c2_187 = arith.constant 2 : index
    %c0_188 = arith.constant 0 : index
    %c0_189 = arith.constant 0 : index
    %162 = vector.load %arg13[%c0_186, %c2_187, %c0_188, %c0_189] : memref<3x3x16x8xf32, #tpu.memory_space<vmem>>, vector<1x1x16x8xf32>
    %163 = vector.shape_cast %162 : vector<1x1x16x8xf32> to vector<16x8xf32>
    %cst_190 = arith.constant dense<0.000000e+00> : vector<16x64xf32>
    %164 = tpu.matmul %163, %139, %cst_190 {dimension_numbers = #tpu.dot_dimension_numbers<[1], [0], [0], [1], [0, 0, 1, 1], [], []>} : vector<16x8xf32>, vector<8x64xf32>, vector<16x64xf32> -> vector<16x64xf32>
    %165 = arith.addf %161, %164 : vector<16x64xf32>
    %c2_191 = arith.constant 2 : index
    %c0_192 = arith.constant 0 : index
    %c0_193 = arith.constant 0 : index
    %166 = vector.load %arg3[%c2_191, %c0_192, %c0_193] : memref<4x64x64xf32, #tpu.memory_space<vmem>>, vector<1x64x64xf32>
    %167 = vector.shape_cast %166 : vector<1x64x64xf32> to vector<64x64xf32>
    %cst_194 = arith.constant dense<0.000000e+00> : vector<16x64xf32>
    %168 = tpu.matmul %165, %167, %cst_194 {dimension_numbers = #tpu.dot_dimension_numbers<[1], [0], [0], [1], [0, 0, 1, 1], [], []>} : vector<16x64xf32>, vector<64x64xf32>, vector<16x64xf32> -> vector<16x64xf32>
    %169 = arith.addf %140, %168 : vector<16x64xf32>
    %cst_195 = arith.constant 0.000000e+00 : f32
    %170 = vector.broadcast %cst_195 : f32 to vector<16x64xf32>
    %c1_196 = arith.constant 1 : index
    %c0_197 = arith.constant 0 : index
    %c0_198 = arith.constant 0 : index
    %c0_199 = arith.constant 0 : index
    %171 = vector.load %arg12[%c1_196, %c0_197, %c0_198, %c0_199] : memref<3x3x16x16xf32, #tpu.memory_space<vmem>>, vector<1x1x16x16xf32>
    %172 = vector.shape_cast %171 : vector<1x1x16x16xf32> to vector<16x16xf32>
    %cst_200 = arith.constant dense<0.000000e+00> : vector<16x64xf32>
    %173 = tpu.matmul %172, %130, %cst_200 {dimension_numbers = #tpu.dot_dimension_numbers<[1], [0], [0], [1], [0, 0, 1, 1], [], []>} : vector<16x16xf32>, vector<16x64xf32>, vector<16x64xf32> -> vector<16x64xf32>
    %174 = arith.addf %170, %173 : vector<16x64xf32>
    %c1_201 = arith.constant 1 : index
    %c0_202 = arith.constant 0 : index
    %c0_203 = arith.constant 0 : index
    %c0_204 = arith.constant 0 : index
    %175 = vector.load %arg13[%c1_201, %c0_202, %c0_203, %c0_204] : memref<3x3x16x8xf32, #tpu.memory_space<vmem>>, vector<1x1x16x8xf32>
    %176 = vector.shape_cast %175 : vector<1x1x16x8xf32> to vector<16x8xf32>
    %cst_205 = arith.constant dense<0.000000e+00> : vector<16x64xf32>
    %177 = tpu.matmul %176, %136, %cst_205 {dimension_numbers = #tpu.dot_dimension_numbers<[1], [0], [0], [1], [0, 0, 1, 1], [], []>} : vector<16x8xf32>, vector<8x64xf32>, vector<16x64xf32> -> vector<16x64xf32>
    %178 = arith.addf %174, %177 : vector<16x64xf32>
    %c1_206 = arith.constant 1 : index
    %c1_207 = arith.constant 1 : index
    %c0_208 = arith.constant 0 : index
    %c0_209 = arith.constant 0 : index
    %179 = vector.load %arg12[%c1_206, %c1_207, %c0_208, %c0_209] : memref<3x3x16x16xf32, #tpu.memory_space<vmem>>, vector<1x1x16x16xf32>
    %180 = vector.shape_cast %179 : vector<1x1x16x16xf32> to vector<16x16xf32>
    %cst_210 = arith.constant dense<0.000000e+00> : vector<16x64xf32>
    %181 = tpu.matmul %180, %127, %cst_210 {dimension_numbers = #tpu.dot_dimension_numbers<[1], [0], [0], [1], [0, 0, 1, 1], [], []>} : vector<16x16xf32>, vector<16x64xf32>, vector<16x64xf32> -> vector<16x64xf32>
    %182 = arith.addf %178, %181 : vector<16x64xf32>
    %c1_211 = arith.constant 1 : index
    %c1_212 = arith.constant 1 : index
    %c0_213 = arith.constant 0 : index
    %c0_214 = arith.constant 0 : index
    %183 = vector.load %arg13[%c1_211, %c1_212, %c0_213, %c0_214] : memref<3x3x16x8xf32, #tpu.memory_space<vmem>>, vector<1x1x16x8xf32>
    %184 = vector.shape_cast %183 : vector<1x1x16x8xf32> to vector<16x8xf32>
    %cst_215 = arith.constant dense<0.000000e+00> : vector<16x64xf32>
    %185 = tpu.matmul %184, %63, %cst_215 {dimension_numbers = #tpu.dot_dimension_numbers<[1], [0], [0], [1], [0, 0, 1, 1], [], []>} : vector<16x8xf32>, vector<8x64xf32>, vector<16x64xf32> -> vector<16x64xf32>
    %186 = arith.addf %182, %185 : vector<16x64xf32>
    %c1_216 = arith.constant 1 : index
    %c2_217 = arith.constant 2 : index
    %c0_218 = arith.constant 0 : index
    %c0_219 = arith.constant 0 : index
    %187 = vector.load %arg12[%c1_216, %c2_217, %c0_218, %c0_219] : memref<3x3x16x16xf32, #tpu.memory_space<vmem>>, vector<1x1x16x16xf32>
    %188 = vector.shape_cast %187 : vector<1x1x16x16xf32> to vector<16x16xf32>
    %cst_220 = arith.constant dense<0.000000e+00> : vector<16x64xf32>
    %189 = tpu.matmul %188, %133, %cst_220 {dimension_numbers = #tpu.dot_dimension_numbers<[1], [0], [0], [1], [0, 0, 1, 1], [], []>} : vector<16x16xf32>, vector<16x64xf32>, vector<16x64xf32> -> vector<16x64xf32>
    %190 = arith.addf %186, %189 : vector<16x64xf32>
    %c1_221 = arith.constant 1 : index
    %c2_222 = arith.constant 2 : index
    %c0_223 = arith.constant 0 : index
    %c0_224 = arith.constant 0 : index
    %191 = vector.load %arg13[%c1_221, %c2_222, %c0_223, %c0_224] : memref<3x3x16x8xf32, #tpu.memory_space<vmem>>, vector<1x1x16x8xf32>
    %192 = vector.shape_cast %191 : vector<1x1x16x8xf32> to vector<16x8xf32>
    %cst_225 = arith.constant dense<0.000000e+00> : vector<16x64xf32>
    %193 = tpu.matmul %192, %139, %cst_225 {dimension_numbers = #tpu.dot_dimension_numbers<[1], [0], [0], [1], [0, 0, 1, 1], [], []>} : vector<16x8xf32>, vector<8x64xf32>, vector<16x64xf32> -> vector<16x64xf32>
    %194 = arith.addf %190, %193 : vector<16x64xf32>
    %195 = arith.addf %169, %194 : vector<16x64xf32>
    %cst_226 = arith.constant 0.000000e+00 : f32
    %196 = vector.broadcast %cst_226 : f32 to vector<16x64xf32>
    %c2_227 = arith.constant 2 : index
    %c0_228 = arith.constant 0 : index
    %c0_229 = arith.constant 0 : index
    %c0_230 = arith.constant 0 : index
    %197 = vector.load %arg12[%c2_227, %c0_228, %c0_229, %c0_230] : memref<3x3x16x16xf32, #tpu.memory_space<vmem>>, vector<1x1x16x16xf32>
    %198 = vector.shape_cast %197 : vector<1x1x16x16xf32> to vector<16x16xf32>
    %cst_231 = arith.constant dense<0.000000e+00> : vector<16x64xf32>
    %199 = tpu.matmul %198, %130, %cst_231 {dimension_numbers = #tpu.dot_dimension_numbers<[1], [0], [0], [1], [0, 0, 1, 1], [], []>} : vector<16x16xf32>, vector<16x64xf32>, vector<16x64xf32> -> vector<16x64xf32>
    %200 = arith.addf %196, %199 : vector<16x64xf32>
    %c2_232 = arith.constant 2 : index
    %c0_233 = arith.constant 0 : index
    %c0_234 = arith.constant 0 : index
    %c0_235 = arith.constant 0 : index
    %201 = vector.load %arg13[%c2_232, %c0_233, %c0_234, %c0_235] : memref<3x3x16x8xf32, #tpu.memory_space<vmem>>, vector<1x1x16x8xf32>
    %202 = vector.shape_cast %201 : vector<1x1x16x8xf32> to vector<16x8xf32>
    %cst_236 = arith.constant dense<0.000000e+00> : vector<16x64xf32>
    %203 = tpu.matmul %202, %136, %cst_236 {dimension_numbers = #tpu.dot_dimension_numbers<[1], [0], [0], [1], [0, 0, 1, 1], [], []>} : vector<16x8xf32>, vector<8x64xf32>, vector<16x64xf32> -> vector<16x64xf32>
    %204 = arith.addf %200, %203 : vector<16x64xf32>
    %c2_237 = arith.constant 2 : index
    %c1_238 = arith.constant 1 : index
    %c0_239 = arith.constant 0 : index
    %c0_240 = arith.constant 0 : index
    %205 = vector.load %arg12[%c2_237, %c1_238, %c0_239, %c0_240] : memref<3x3x16x16xf32, #tpu.memory_space<vmem>>, vector<1x1x16x16xf32>
    %206 = vector.shape_cast %205 : vector<1x1x16x16xf32> to vector<16x16xf32>
    %cst_241 = arith.constant dense<0.000000e+00> : vector<16x64xf32>
    %207 = tpu.matmul %206, %127, %cst_241 {dimension_numbers = #tpu.dot_dimension_numbers<[1], [0], [0], [1], [0, 0, 1, 1], [], []>} : vector<16x16xf32>, vector<16x64xf32>, vector<16x64xf32> -> vector<16x64xf32>
    %208 = arith.addf %204, %207 : vector<16x64xf32>
    %c2_242 = arith.constant 2 : index
    %c1_243 = arith.constant 1 : index
    %c0_244 = arith.constant 0 : index
    %c0_245 = arith.constant 0 : index
    %209 = vector.load %arg13[%c2_242, %c1_243, %c0_244, %c0_245] : memref<3x3x16x8xf32, #tpu.memory_space<vmem>>, vector<1x1x16x8xf32>
    %210 = vector.shape_cast %209 : vector<1x1x16x8xf32> to vector<16x8xf32>
    %cst_246 = arith.constant dense<0.000000e+00> : vector<16x64xf32>
    %211 = tpu.matmul %210, %63, %cst_246 {dimension_numbers = #tpu.dot_dimension_numbers<[1], [0], [0], [1], [0, 0, 1, 1], [], []>} : vector<16x8xf32>, vector<8x64xf32>, vector<16x64xf32> -> vector<16x64xf32>
    %212 = arith.addf %208, %211 : vector<16x64xf32>
    %c2_247 = arith.constant 2 : index
    %c2_248 = arith.constant 2 : index
    %c0_249 = arith.constant 0 : index
    %c0_250 = arith.constant 0 : index
    %213 = vector.load %arg12[%c2_247, %c2_248, %c0_249, %c0_250] : memref<3x3x16x16xf32, #tpu.memory_space<vmem>>, vector<1x1x16x16xf32>
    %214 = vector.shape_cast %213 : vector<1x1x16x16xf32> to vector<16x16xf32>
    %cst_251 = arith.constant dense<0.000000e+00> : vector<16x64xf32>
    %215 = tpu.matmul %214, %133, %cst_251 {dimension_numbers = #tpu.dot_dimension_numbers<[1], [0], [0], [1], [0, 0, 1, 1], [], []>} : vector<16x16xf32>, vector<16x64xf32>, vector<16x64xf32> -> vector<16x64xf32>
    %216 = arith.addf %212, %215 : vector<16x64xf32>
    %c2_252 = arith.constant 2 : index
    %c2_253 = arith.constant 2 : index
    %c0_254 = arith.constant 0 : index
    %c0_255 = arith.constant 0 : index
    %217 = vector.load %arg13[%c2_252, %c2_253, %c0_254, %c0_255] : memref<3x3x16x8xf32, #tpu.memory_space<vmem>>, vector<1x1x16x8xf32>
    %218 = vector.shape_cast %217 : vector<1x1x16x8xf32> to vector<16x8xf32>
    %cst_256 = arith.constant dense<0.000000e+00> : vector<16x64xf32>
    %219 = tpu.matmul %218, %139, %cst_256 {dimension_numbers = #tpu.dot_dimension_numbers<[1], [0], [0], [1], [0, 0, 1, 1], [], []>} : vector<16x8xf32>, vector<8x64xf32>, vector<16x64xf32> -> vector<16x64xf32>
    %220 = arith.addf %216, %219 : vector<16x64xf32>
    %c3_257 = arith.constant 3 : index
    %c0_258 = arith.constant 0 : index
    %c0_259 = arith.constant 0 : index
    %221 = vector.load %arg3[%c3_257, %c0_258, %c0_259] : memref<4x64x64xf32, #tpu.memory_space<vmem>>, vector<1x64x64xf32>
    %222 = vector.shape_cast %221 : vector<1x64x64xf32> to vector<64x64xf32>
    %cst_260 = arith.constant dense<0.000000e+00> : vector<16x64xf32>
    %223 = tpu.matmul %220, %222, %cst_260 {dimension_numbers = #tpu.dot_dimension_numbers<[1], [0], [0], [1], [0, 0, 1, 1], [], []>} : vector<16x64xf32>, vector<64x64xf32>, vector<16x64xf32> -> vector<16x64xf32>
    %224 = arith.addf %195, %223 : vector<16x64xf32>
    %c0_261 = arith.constant 0 : index
    %c0_262 = arith.constant 0 : index
    %225 = vector.load %arg14[%c0_261, %c0_262] : memref<16x1xf32, #tpu.memory_space<vmem>>, vector<16x1xf32>
    %226 = vector.broadcast %225 : vector<16x1xf32> to vector<16x64xf32>
    %227 = arith.addf %224, %226 : vector<16x64xf32>
    %cst_263 = arith.constant 0.000000e+00 : f32
    %228 = vector.broadcast %cst_263 : f32 to vector<16x64xf32>
    %229 = arith.maximumf %227, %228 : vector<16x64xf32>
    %c0_264 = arith.constant 0 : index
    %c0_265 = arith.constant 0 : index
    %230 = vector.load %arg7[%c0_264, %c0_265] : memref<64x256xf32, #tpu.memory_space<vmem>>, vector<64x256xf32>
    %cst_266 = arith.constant dense<0.000000e+00> : vector<16x256xf32>
    %231 = tpu.matmul %229, %230, %cst_266 {dimension_numbers = #tpu.dot_dimension_numbers<[1], [0], [0], [1], [0, 0, 1, 1], [], []>} : vector<16x64xf32>, vector<64x256xf32>, vector<16x256xf32> -> vector<16x256xf32>
    %c0_267 = arith.constant 0 : index
    %c0_268 = arith.constant 0 : index
    %c0_269 = arith.constant 0 : index
    %232 = vector.load %arg2[%c0_267, %c0_268, %c0_269] : memref<4x256x256xf32, #tpu.memory_space<vmem>>, vector<1x256x256xf32>
    %233 = vector.shape_cast %232 : vector<1x256x256xf32> to vector<256x256xf32>
    %cst_270 = arith.constant dense<0.000000e+00> : vector<16x256xf32>
    %234 = tpu.matmul %231, %233, %cst_270 {dimension_numbers = #tpu.dot_dimension_numbers<[1], [0], [0], [1], [0, 0, 1, 1], [], []>} : vector<16x256xf32>, vector<256x256xf32>, vector<16x256xf32> -> vector<16x256xf32>
    %c1_271 = arith.constant 1 : index
    %c0_272 = arith.constant 0 : index
    %c0_273 = arith.constant 0 : index
    %235 = vector.load %arg2[%c1_271, %c0_272, %c0_273] : memref<4x256x256xf32, #tpu.memory_space<vmem>>, vector<1x256x256xf32>
    %236 = vector.shape_cast %235 : vector<1x256x256xf32> to vector<256x256xf32>
    %cst_274 = arith.constant dense<0.000000e+00> : vector<16x256xf32>
    %237 = tpu.matmul %231, %236, %cst_274 {dimension_numbers = #tpu.dot_dimension_numbers<[1], [0], [0], [1], [0, 0, 1, 1], [], []>} : vector<16x256xf32>, vector<256x256xf32>, vector<16x256xf32> -> vector<16x256xf32>
    %c0_275 = arith.constant 0 : index
    %c0_276 = arith.constant 0 : index
    %c0_277 = arith.constant 0 : index
    %238 = vector.load %arg2[%c0_275, %c0_276, %c0_277] : memref<4x256x256xf32, #tpu.memory_space<vmem>>, vector<1x256x256xf32>
    %239 = vector.shape_cast %238 : vector<1x256x256xf32> to vector<256x256xf32>
    %cst_278 = arith.constant dense<0.000000e+00> : vector<4x256xf32>
    %240 = tpu.matmul %1, %239, %cst_278 {dimension_numbers = #tpu.dot_dimension_numbers<[1], [0], [0], [1], [0, 0, 1, 1], [], []>} : vector<4x256xf32>, vector<256x256xf32>, vector<4x256xf32> -> vector<4x256xf32>
    %c1_279 = arith.constant 1 : index
    %c0_280 = arith.constant 0 : index
    %c0_281 = arith.constant 0 : index
    %241 = vector.load %arg2[%c1_279, %c0_280, %c0_281] : memref<4x256x256xf32, #tpu.memory_space<vmem>>, vector<1x256x256xf32>
    %242 = vector.shape_cast %241 : vector<1x256x256xf32> to vector<256x256xf32>
    %cst_282 = arith.constant dense<0.000000e+00> : vector<4x256xf32>
    %243 = tpu.matmul %1, %242, %cst_282 {dimension_numbers = #tpu.dot_dimension_numbers<[1], [0], [0], [1], [0, 0, 1, 1], [], []>} : vector<4x256xf32>, vector<256x256xf32>, vector<4x256xf32> -> vector<4x256xf32>
    %cst_283 = arith.constant 0.000000e+00 : f32
    %244 = vector.broadcast %cst_283 : f32 to vector<8x256xf32>
    %cst_284 = arith.constant 0.000000e+00 : f32
    %245 = vector.broadcast %cst_284 : f32 to vector<8x256xf32>
    %c0_285 = arith.constant 0 : index
    %c0_286 = arith.constant 0 : index
    %c0_287 = arith.constant 0 : index
    %c0_288 = arith.constant 0 : index
    %246 = vector.load %arg15[%c0_285, %c0_286, %c0_287, %c0_288] : memref<3x3x8x16xf32, #tpu.memory_space<vmem>>, vector<1x1x8x16xf32>
    %247 = vector.shape_cast %246 : vector<1x1x8x16xf32> to vector<8x16xf32>
    %cst_289 = arith.constant dense<0.000000e+00> : vector<8x256xf32>
    %248 = tpu.matmul %247, %234, %cst_289 {dimension_numbers = #tpu.dot_dimension_numbers<[1], [0], [0], [1], [0, 0, 1, 1], [], []>} : vector<8x16xf32>, vector<16x256xf32>, vector<8x256xf32> -> vector<8x256xf32>
    %249 = arith.addf %245, %248 : vector<8x256xf32>
    %c0_290 = arith.constant 0 : index
    %c0_291 = arith.constant 0 : index
    %c0_292 = arith.constant 0 : index
    %c0_293 = arith.constant 0 : index
    %250 = vector.load %arg16[%c0_290, %c0_291, %c0_292, %c0_293] : memref<3x3x8x4xf32, #tpu.memory_space<vmem>>, vector<1x1x8x4xf32>
    %251 = vector.shape_cast %250 : vector<1x1x8x4xf32> to vector<8x4xf32>
    %cst_294 = arith.constant dense<0.000000e+00> : vector<8x256xf32>
    %252 = tpu.matmul %251, %240, %cst_294 {dimension_numbers = #tpu.dot_dimension_numbers<[1], [0], [0], [1], [0, 0, 1, 1], [], []>} : vector<8x4xf32>, vector<4x256xf32>, vector<8x256xf32> -> vector<8x256xf32>
    %253 = arith.addf %249, %252 : vector<8x256xf32>
    %c0_295 = arith.constant 0 : index
    %c1_296 = arith.constant 1 : index
    %c0_297 = arith.constant 0 : index
    %c0_298 = arith.constant 0 : index
    %254 = vector.load %arg15[%c0_295, %c1_296, %c0_297, %c0_298] : memref<3x3x8x16xf32, #tpu.memory_space<vmem>>, vector<1x1x8x16xf32>
    %255 = vector.shape_cast %254 : vector<1x1x8x16xf32> to vector<8x16xf32>
    %cst_299 = arith.constant dense<0.000000e+00> : vector<8x256xf32>
    %256 = tpu.matmul %255, %231, %cst_299 {dimension_numbers = #tpu.dot_dimension_numbers<[1], [0], [0], [1], [0, 0, 1, 1], [], []>} : vector<8x16xf32>, vector<16x256xf32>, vector<8x256xf32> -> vector<8x256xf32>
    %257 = arith.addf %253, %256 : vector<8x256xf32>
    %c0_300 = arith.constant 0 : index
    %c1_301 = arith.constant 1 : index
    %c0_302 = arith.constant 0 : index
    %c0_303 = arith.constant 0 : index
    %258 = vector.load %arg16[%c0_300, %c1_301, %c0_302, %c0_303] : memref<3x3x8x4xf32, #tpu.memory_space<vmem>>, vector<1x1x8x4xf32>
    %259 = vector.shape_cast %258 : vector<1x1x8x4xf32> to vector<8x4xf32>
    %cst_304 = arith.constant dense<0.000000e+00> : vector<8x256xf32>
    %260 = tpu.matmul %259, %1, %cst_304 {dimension_numbers = #tpu.dot_dimension_numbers<[1], [0], [0], [1], [0, 0, 1, 1], [], []>} : vector<8x4xf32>, vector<4x256xf32>, vector<8x256xf32> -> vector<8x256xf32>
    %261 = arith.addf %257, %260 : vector<8x256xf32>
    %c0_305 = arith.constant 0 : index
    %c2_306 = arith.constant 2 : index
    %c0_307 = arith.constant 0 : index
    %c0_308 = arith.constant 0 : index
    %262 = vector.load %arg15[%c0_305, %c2_306, %c0_307, %c0_308] : memref<3x3x8x16xf32, #tpu.memory_space<vmem>>, vector<1x1x8x16xf32>
    %263 = vector.shape_cast %262 : vector<1x1x8x16xf32> to vector<8x16xf32>
    %cst_309 = arith.constant dense<0.000000e+00> : vector<8x256xf32>
    %264 = tpu.matmul %263, %237, %cst_309 {dimension_numbers = #tpu.dot_dimension_numbers<[1], [0], [0], [1], [0, 0, 1, 1], [], []>} : vector<8x16xf32>, vector<16x256xf32>, vector<8x256xf32> -> vector<8x256xf32>
    %265 = arith.addf %261, %264 : vector<8x256xf32>
    %c0_310 = arith.constant 0 : index
    %c2_311 = arith.constant 2 : index
    %c0_312 = arith.constant 0 : index
    %c0_313 = arith.constant 0 : index
    %266 = vector.load %arg16[%c0_310, %c2_311, %c0_312, %c0_313] : memref<3x3x8x4xf32, #tpu.memory_space<vmem>>, vector<1x1x8x4xf32>
    %267 = vector.shape_cast %266 : vector<1x1x8x4xf32> to vector<8x4xf32>
    %cst_314 = arith.constant dense<0.000000e+00> : vector<8x256xf32>
    %268 = tpu.matmul %267, %243, %cst_314 {dimension_numbers = #tpu.dot_dimension_numbers<[1], [0], [0], [1], [0, 0, 1, 1], [], []>} : vector<8x4xf32>, vector<4x256xf32>, vector<8x256xf32> -> vector<8x256xf32>
    %269 = arith.addf %265, %268 : vector<8x256xf32>
    %c2_315 = arith.constant 2 : index
    %c0_316 = arith.constant 0 : index
    %c0_317 = arith.constant 0 : index
    %270 = vector.load %arg2[%c2_315, %c0_316, %c0_317] : memref<4x256x256xf32, #tpu.memory_space<vmem>>, vector<1x256x256xf32>
    %271 = vector.shape_cast %270 : vector<1x256x256xf32> to vector<256x256xf32>
    %cst_318 = arith.constant dense<0.000000e+00> : vector<8x256xf32>
    %272 = tpu.matmul %269, %271, %cst_318 {dimension_numbers = #tpu.dot_dimension_numbers<[1], [0], [0], [1], [0, 0, 1, 1], [], []>} : vector<8x256xf32>, vector<256x256xf32>, vector<8x256xf32> -> vector<8x256xf32>
    %273 = arith.addf %244, %272 : vector<8x256xf32>
    %cst_319 = arith.constant 0.000000e+00 : f32
    %274 = vector.broadcast %cst_319 : f32 to vector<8x256xf32>
    %c1_320 = arith.constant 1 : index
    %c0_321 = arith.constant 0 : index
    %c0_322 = arith.constant 0 : index
    %c0_323 = arith.constant 0 : index
    %275 = vector.load %arg15[%c1_320, %c0_321, %c0_322, %c0_323] : memref<3x3x8x16xf32, #tpu.memory_space<vmem>>, vector<1x1x8x16xf32>
    %276 = vector.shape_cast %275 : vector<1x1x8x16xf32> to vector<8x16xf32>
    %cst_324 = arith.constant dense<0.000000e+00> : vector<8x256xf32>
    %277 = tpu.matmul %276, %234, %cst_324 {dimension_numbers = #tpu.dot_dimension_numbers<[1], [0], [0], [1], [0, 0, 1, 1], [], []>} : vector<8x16xf32>, vector<16x256xf32>, vector<8x256xf32> -> vector<8x256xf32>
    %278 = arith.addf %274, %277 : vector<8x256xf32>
    %c1_325 = arith.constant 1 : index
    %c0_326 = arith.constant 0 : index
    %c0_327 = arith.constant 0 : index
    %c0_328 = arith.constant 0 : index
    %279 = vector.load %arg16[%c1_325, %c0_326, %c0_327, %c0_328] : memref<3x3x8x4xf32, #tpu.memory_space<vmem>>, vector<1x1x8x4xf32>
    %280 = vector.shape_cast %279 : vector<1x1x8x4xf32> to vector<8x4xf32>
    %cst_329 = arith.constant dense<0.000000e+00> : vector<8x256xf32>
    %281 = tpu.matmul %280, %240, %cst_329 {dimension_numbers = #tpu.dot_dimension_numbers<[1], [0], [0], [1], [0, 0, 1, 1], [], []>} : vector<8x4xf32>, vector<4x256xf32>, vector<8x256xf32> -> vector<8x256xf32>
    %282 = arith.addf %278, %281 : vector<8x256xf32>
    %c1_330 = arith.constant 1 : index
    %c1_331 = arith.constant 1 : index
    %c0_332 = arith.constant 0 : index
    %c0_333 = arith.constant 0 : index
    %283 = vector.load %arg15[%c1_330, %c1_331, %c0_332, %c0_333] : memref<3x3x8x16xf32, #tpu.memory_space<vmem>>, vector<1x1x8x16xf32>
    %284 = vector.shape_cast %283 : vector<1x1x8x16xf32> to vector<8x16xf32>
    %cst_334 = arith.constant dense<0.000000e+00> : vector<8x256xf32>
    %285 = tpu.matmul %284, %231, %cst_334 {dimension_numbers = #tpu.dot_dimension_numbers<[1], [0], [0], [1], [0, 0, 1, 1], [], []>} : vector<8x16xf32>, vector<16x256xf32>, vector<8x256xf32> -> vector<8x256xf32>
    %286 = arith.addf %282, %285 : vector<8x256xf32>
    %c1_335 = arith.constant 1 : index
    %c1_336 = arith.constant 1 : index
    %c0_337 = arith.constant 0 : index
    %c0_338 = arith.constant 0 : index
    %287 = vector.load %arg16[%c1_335, %c1_336, %c0_337, %c0_338] : memref<3x3x8x4xf32, #tpu.memory_space<vmem>>, vector<1x1x8x4xf32>
    %288 = vector.shape_cast %287 : vector<1x1x8x4xf32> to vector<8x4xf32>
    %cst_339 = arith.constant dense<0.000000e+00> : vector<8x256xf32>
    %289 = tpu.matmul %288, %1, %cst_339 {dimension_numbers = #tpu.dot_dimension_numbers<[1], [0], [0], [1], [0, 0, 1, 1], [], []>} : vector<8x4xf32>, vector<4x256xf32>, vector<8x256xf32> -> vector<8x256xf32>
    %290 = arith.addf %286, %289 : vector<8x256xf32>
    %c1_340 = arith.constant 1 : index
    %c2_341 = arith.constant 2 : index
    %c0_342 = arith.constant 0 : index
    %c0_343 = arith.constant 0 : index
    %291 = vector.load %arg15[%c1_340, %c2_341, %c0_342, %c0_343] : memref<3x3x8x16xf32, #tpu.memory_space<vmem>>, vector<1x1x8x16xf32>
    %292 = vector.shape_cast %291 : vector<1x1x8x16xf32> to vector<8x16xf32>
    %cst_344 = arith.constant dense<0.000000e+00> : vector<8x256xf32>
    %293 = tpu.matmul %292, %237, %cst_344 {dimension_numbers = #tpu.dot_dimension_numbers<[1], [0], [0], [1], [0, 0, 1, 1], [], []>} : vector<8x16xf32>, vector<16x256xf32>, vector<8x256xf32> -> vector<8x256xf32>
    %294 = arith.addf %290, %293 : vector<8x256xf32>
    %c1_345 = arith.constant 1 : index
    %c2_346 = arith.constant 2 : index
    %c0_347 = arith.constant 0 : index
    %c0_348 = arith.constant 0 : index
    %295 = vector.load %arg16[%c1_345, %c2_346, %c0_347, %c0_348] : memref<3x3x8x4xf32, #tpu.memory_space<vmem>>, vector<1x1x8x4xf32>
    %296 = vector.shape_cast %295 : vector<1x1x8x4xf32> to vector<8x4xf32>
    %cst_349 = arith.constant dense<0.000000e+00> : vector<8x256xf32>
    %297 = tpu.matmul %296, %243, %cst_349 {dimension_numbers = #tpu.dot_dimension_numbers<[1], [0], [0], [1], [0, 0, 1, 1], [], []>} : vector<8x4xf32>, vector<4x256xf32>, vector<8x256xf32> -> vector<8x256xf32>
    %298 = arith.addf %294, %297 : vector<8x256xf32>
    %299 = arith.addf %273, %298 : vector<8x256xf32>
    %cst_350 = arith.constant 0.000000e+00 : f32
    %300 = vector.broadcast %cst_350 : f32 to vector<8x256xf32>
    %c2_351 = arith.constant 2 : index
    %c0_352 = arith.constant 0 : index
    %c0_353 = arith.constant 0 : index
    %c0_354 = arith.constant 0 : index
    %301 = vector.load %arg15[%c2_351, %c0_352, %c0_353, %c0_354] : memref<3x3x8x16xf32, #tpu.memory_space<vmem>>, vector<1x1x8x16xf32>
    %302 = vector.shape_cast %301 : vector<1x1x8x16xf32> to vector<8x16xf32>
    %cst_355 = arith.constant dense<0.000000e+00> : vector<8x256xf32>
    %303 = tpu.matmul %302, %234, %cst_355 {dimension_numbers = #tpu.dot_dimension_numbers<[1], [0], [0], [1], [0, 0, 1, 1], [], []>} : vector<8x16xf32>, vector<16x256xf32>, vector<8x256xf32> -> vector<8x256xf32>
    %304 = arith.addf %300, %303 : vector<8x256xf32>
    %c2_356 = arith.constant 2 : index
    %c0_357 = arith.constant 0 : index
    %c0_358 = arith.constant 0 : index
    %c0_359 = arith.constant 0 : index
    %305 = vector.load %arg16[%c2_356, %c0_357, %c0_358, %c0_359] : memref<3x3x8x4xf32, #tpu.memory_space<vmem>>, vector<1x1x8x4xf32>
    %306 = vector.shape_cast %305 : vector<1x1x8x4xf32> to vector<8x4xf32>
    %cst_360 = arith.constant dense<0.000000e+00> : vector<8x256xf32>
    %307 = tpu.matmul %306, %240, %cst_360 {dimension_numbers = #tpu.dot_dimension_numbers<[1], [0], [0], [1], [0, 0, 1, 1], [], []>} : vector<8x4xf32>, vector<4x256xf32>, vector<8x256xf32> -> vector<8x256xf32>
    %308 = arith.addf %304, %307 : vector<8x256xf32>
    %c2_361 = arith.constant 2 : index
    %c1_362 = arith.constant 1 : index
    %c0_363 = arith.constant 0 : index
    %c0_364 = arith.constant 0 : index
    %309 = vector.load %arg15[%c2_361, %c1_362, %c0_363, %c0_364] : memref<3x3x8x16xf32, #tpu.memory_space<vmem>>, vector<1x1x8x16xf32>
    %310 = vector.shape_cast %309 : vector<1x1x8x16xf32> to vector<8x16xf32>
    %cst_365 = arith.constant dense<0.000000e+00> : vector<8x256xf32>
    %311 = tpu.matmul %310, %231, %cst_365 {dimension_numbers = #tpu.dot_dimension_numbers<[1], [0], [0], [1], [0, 0, 1, 1], [], []>} : vector<8x16xf32>, vector<16x256xf32>, vector<8x256xf32> -> vector<8x256xf32>
    %312 = arith.addf %308, %311 : vector<8x256xf32>
    %c2_366 = arith.constant 2 : index
    %c1_367 = arith.constant 1 : index
    %c0_368 = arith.constant 0 : index
    %c0_369 = arith.constant 0 : index
    %313 = vector.load %arg16[%c2_366, %c1_367, %c0_368, %c0_369] : memref<3x3x8x4xf32, #tpu.memory_space<vmem>>, vector<1x1x8x4xf32>
    %314 = vector.shape_cast %313 : vector<1x1x8x4xf32> to vector<8x4xf32>
    %cst_370 = arith.constant dense<0.000000e+00> : vector<8x256xf32>
    %315 = tpu.matmul %314, %1, %cst_370 {dimension_numbers = #tpu.dot_dimension_numbers<[1], [0], [0], [1], [0, 0, 1, 1], [], []>} : vector<8x4xf32>, vector<4x256xf32>, vector<8x256xf32> -> vector<8x256xf32>
    %316 = arith.addf %312, %315 : vector<8x256xf32>
    %c2_371 = arith.constant 2 : index
    %c2_372 = arith.constant 2 : index
    %c0_373 = arith.constant 0 : index
    %c0_374 = arith.constant 0 : index
    %317 = vector.load %arg15[%c2_371, %c2_372, %c0_373, %c0_374] : memref<3x3x8x16xf32, #tpu.memory_space<vmem>>, vector<1x1x8x16xf32>
    %318 = vector.shape_cast %317 : vector<1x1x8x16xf32> to vector<8x16xf32>
    %cst_375 = arith.constant dense<0.000000e+00> : vector<8x256xf32>
    %319 = tpu.matmul %318, %237, %cst_375 {dimension_numbers = #tpu.dot_dimension_numbers<[1], [0], [0], [1], [0, 0, 1, 1], [], []>} : vector<8x16xf32>, vector<16x256xf32>, vector<8x256xf32> -> vector<8x256xf32>
    %320 = arith.addf %316, %319 : vector<8x256xf32>
    %c2_376 = arith.constant 2 : index
    %c2_377 = arith.constant 2 : index
    %c0_378 = arith.constant 0 : index
    %c0_379 = arith.constant 0 : index
    %321 = vector.load %arg16[%c2_376, %c2_377, %c0_378, %c0_379] : memref<3x3x8x4xf32, #tpu.memory_space<vmem>>, vector<1x1x8x4xf32>
    %322 = vector.shape_cast %321 : vector<1x1x8x4xf32> to vector<8x4xf32>
    %cst_380 = arith.constant dense<0.000000e+00> : vector<8x256xf32>
    %323 = tpu.matmul %322, %243, %cst_380 {dimension_numbers = #tpu.dot_dimension_numbers<[1], [0], [0], [1], [0, 0, 1, 1], [], []>} : vector<8x4xf32>, vector<4x256xf32>, vector<8x256xf32> -> vector<8x256xf32>
    %324 = arith.addf %320, %323 : vector<8x256xf32>
    %c3_381 = arith.constant 3 : index
    %c0_382 = arith.constant 0 : index
    %c0_383 = arith.constant 0 : index
    %325 = vector.load %arg2[%c3_381, %c0_382, %c0_383] : memref<4x256x256xf32, #tpu.memory_space<vmem>>, vector<1x256x256xf32>
    %326 = vector.shape_cast %325 : vector<1x256x256xf32> to vector<256x256xf32>
    %cst_384 = arith.constant dense<0.000000e+00> : vector<8x256xf32>
    %327 = tpu.matmul %324, %326, %cst_384 {dimension_numbers = #tpu.dot_dimension_numbers<[1], [0], [0], [1], [0, 0, 1, 1], [], []>} : vector<8x256xf32>, vector<256x256xf32>, vector<8x256xf32> -> vector<8x256xf32>
    %328 = arith.addf %299, %327 : vector<8x256xf32>
    %c0_385 = arith.constant 0 : index
    %c0_386 = arith.constant 0 : index
    %329 = vector.load %arg17[%c0_385, %c0_386] : memref<8x1xf32, #tpu.memory_space<vmem>>, vector<8x1xf32>
    %330 = vector.broadcast %329 : vector<8x1xf32> to vector<8x256xf32>
    %331 = arith.addf %328, %330 : vector<8x256xf32>
    %cst_387 = arith.constant 0.000000e+00 : f32
    %332 = vector.broadcast %cst_387 : f32 to vector<8x256xf32>
    %333 = arith.maximumf %331, %332 : vector<8x256xf32>
    %c0_388 = arith.constant 0 : index
    %c0_389 = arith.constant 0 : index
    %c0_390 = arith.constant 0 : index
    %334 = vector.load %arg2[%c0_388, %c0_389, %c0_390] : memref<4x256x256xf32, #tpu.memory_space<vmem>>, vector<1x256x256xf32>
    %335 = vector.shape_cast %334 : vector<1x256x256xf32> to vector<256x256xf32>
    %cst_391 = arith.constant dense<0.000000e+00> : vector<8x256xf32>
    %336 = tpu.matmul %333, %335, %cst_391 {dimension_numbers = #tpu.dot_dimension_numbers<[1], [0], [0], [1], [0, 0, 1, 1], [], []>} : vector<8x256xf32>, vector<256x256xf32>, vector<8x256xf32> -> vector<8x256xf32>
    %c1_392 = arith.constant 1 : index
    %c0_393 = arith.constant 0 : index
    %c0_394 = arith.constant 0 : index
    %337 = vector.load %arg2[%c1_392, %c0_393, %c0_394] : memref<4x256x256xf32, #tpu.memory_space<vmem>>, vector<1x256x256xf32>
    %338 = vector.shape_cast %337 : vector<1x256x256xf32> to vector<256x256xf32>
    %cst_395 = arith.constant dense<0.000000e+00> : vector<8x256xf32>
    %339 = tpu.matmul %333, %338, %cst_395 {dimension_numbers = #tpu.dot_dimension_numbers<[1], [0], [0], [1], [0, 0, 1, 1], [], []>} : vector<8x256xf32>, vector<256x256xf32>, vector<8x256xf32> -> vector<8x256xf32>
    %cst_396 = arith.constant 0.000000e+00 : f32
    %340 = vector.broadcast %cst_396 : f32 to vector<3x256xf32>
    %cst_397 = arith.constant 0.000000e+00 : f32
    %341 = vector.broadcast %cst_397 : f32 to vector<3x256xf32>
    %c0_398 = arith.constant 0 : index
    %c0_399 = arith.constant 0 : index
    %c0_400 = arith.constant 0 : index
    %c0_401 = arith.constant 0 : index
    %342 = vector.load %arg18[%c0_398, %c0_399, %c0_400, %c0_401] : memref<3x3x3x8xf32, #tpu.memory_space<vmem>>, vector<1x1x3x8xf32>
    %343 = vector.shape_cast %342 : vector<1x1x3x8xf32> to vector<3x8xf32>
    %cst_402 = arith.constant dense<0.000000e+00> : vector<3x256xf32>
    %344 = tpu.matmul %343, %336, %cst_402 {dimension_numbers = #tpu.dot_dimension_numbers<[1], [0], [0], [1], [0, 0, 1, 1], [], []>} : vector<3x8xf32>, vector<8x256xf32>, vector<3x256xf32> -> vector<3x256xf32>
    %345 = arith.addf %341, %344 : vector<3x256xf32>
    %c0_403 = arith.constant 0 : index
    %c1_404 = arith.constant 1 : index
    %c0_405 = arith.constant 0 : index
    %c0_406 = arith.constant 0 : index
    %346 = vector.load %arg18[%c0_403, %c1_404, %c0_405, %c0_406] : memref<3x3x3x8xf32, #tpu.memory_space<vmem>>, vector<1x1x3x8xf32>
    %347 = vector.shape_cast %346 : vector<1x1x3x8xf32> to vector<3x8xf32>
    %cst_407 = arith.constant dense<0.000000e+00> : vector<3x256xf32>
    %348 = tpu.matmul %347, %333, %cst_407 {dimension_numbers = #tpu.dot_dimension_numbers<[1], [0], [0], [1], [0, 0, 1, 1], [], []>} : vector<3x8xf32>, vector<8x256xf32>, vector<3x256xf32> -> vector<3x256xf32>
    %349 = arith.addf %345, %348 : vector<3x256xf32>
    %c0_408 = arith.constant 0 : index
    %c2_409 = arith.constant 2 : index
    %c0_410 = arith.constant 0 : index
    %c0_411 = arith.constant 0 : index
    %350 = vector.load %arg18[%c0_408, %c2_409, %c0_410, %c0_411] : memref<3x3x3x8xf32, #tpu.memory_space<vmem>>, vector<1x1x3x8xf32>
    %351 = vector.shape_cast %350 : vector<1x1x3x8xf32> to vector<3x8xf32>
    %cst_412 = arith.constant dense<0.000000e+00> : vector<3x256xf32>
    %352 = tpu.matmul %351, %339, %cst_412 {dimension_numbers = #tpu.dot_dimension_numbers<[1], [0], [0], [1], [0, 0, 1, 1], [], []>} : vector<3x8xf32>, vector<8x256xf32>, vector<3x256xf32> -> vector<3x256xf32>
    %353 = arith.addf %349, %352 : vector<3x256xf32>
    %c2_413 = arith.constant 2 : index
    %c0_414 = arith.constant 0 : index
    %c0_415 = arith.constant 0 : index
    %354 = vector.load %arg2[%c2_413, %c0_414, %c0_415] : memref<4x256x256xf32, #tpu.memory_space<vmem>>, vector<1x256x256xf32>
    %355 = vector.shape_cast %354 : vector<1x256x256xf32> to vector<256x256xf32>
    %cst_416 = arith.constant dense<0.000000e+00> : vector<3x256xf32>
    %356 = tpu.matmul %353, %355, %cst_416 {dimension_numbers = #tpu.dot_dimension_numbers<[1], [0], [0], [1], [0, 0, 1, 1], [], []>} : vector<3x256xf32>, vector<256x256xf32>, vector<3x256xf32> -> vector<3x256xf32>
    %357 = arith.addf %340, %356 : vector<3x256xf32>
    %cst_417 = arith.constant 0.000000e+00 : f32
    %358 = vector.broadcast %cst_417 : f32 to vector<3x256xf32>
    %c1_418 = arith.constant 1 : index
    %c0_419 = arith.constant 0 : index
    %c0_420 = arith.constant 0 : index
    %c0_421 = arith.constant 0 : index
    %359 = vector.load %arg18[%c1_418, %c0_419, %c0_420, %c0_421] : memref<3x3x3x8xf32, #tpu.memory_space<vmem>>, vector<1x1x3x8xf32>
    %360 = vector.shape_cast %359 : vector<1x1x3x8xf32> to vector<3x8xf32>
    %cst_422 = arith.constant dense<0.000000e+00> : vector<3x256xf32>
    %361 = tpu.matmul %360, %336, %cst_422 {dimension_numbers = #tpu.dot_dimension_numbers<[1], [0], [0], [1], [0, 0, 1, 1], [], []>} : vector<3x8xf32>, vector<8x256xf32>, vector<3x256xf32> -> vector<3x256xf32>
    %362 = arith.addf %358, %361 : vector<3x256xf32>
    %c1_423 = arith.constant 1 : index
    %c1_424 = arith.constant 1 : index
    %c0_425 = arith.constant 0 : index
    %c0_426 = arith.constant 0 : index
    %363 = vector.load %arg18[%c1_423, %c1_424, %c0_425, %c0_426] : memref<3x3x3x8xf32, #tpu.memory_space<vmem>>, vector<1x1x3x8xf32>
    %364 = vector.shape_cast %363 : vector<1x1x3x8xf32> to vector<3x8xf32>
    %cst_427 = arith.constant dense<0.000000e+00> : vector<3x256xf32>
    %365 = tpu.matmul %364, %333, %cst_427 {dimension_numbers = #tpu.dot_dimension_numbers<[1], [0], [0], [1], [0, 0, 1, 1], [], []>} : vector<3x8xf32>, vector<8x256xf32>, vector<3x256xf32> -> vector<3x256xf32>
    %366 = arith.addf %362, %365 : vector<3x256xf32>
    %c1_428 = arith.constant 1 : index
    %c2_429 = arith.constant 2 : index
    %c0_430 = arith.constant 0 : index
    %c0_431 = arith.constant 0 : index
    %367 = vector.load %arg18[%c1_428, %c2_429, %c0_430, %c0_431] : memref<3x3x3x8xf32, #tpu.memory_space<vmem>>, vector<1x1x3x8xf32>
    %368 = vector.shape_cast %367 : vector<1x1x3x8xf32> to vector<3x8xf32>
    %cst_432 = arith.constant dense<0.000000e+00> : vector<3x256xf32>
    %369 = tpu.matmul %368, %339, %cst_432 {dimension_numbers = #tpu.dot_dimension_numbers<[1], [0], [0], [1], [0, 0, 1, 1], [], []>} : vector<3x8xf32>, vector<8x256xf32>, vector<3x256xf32> -> vector<3x256xf32>
    %370 = arith.addf %366, %369 : vector<3x256xf32>
    %371 = arith.addf %357, %370 : vector<3x256xf32>
    %cst_433 = arith.constant 0.000000e+00 : f32
    %372 = vector.broadcast %cst_433 : f32 to vector<3x256xf32>
    %c2_434 = arith.constant 2 : index
    %c0_435 = arith.constant 0 : index
    %c0_436 = arith.constant 0 : index
    %c0_437 = arith.constant 0 : index
    %373 = vector.load %arg18[%c2_434, %c0_435, %c0_436, %c0_437] : memref<3x3x3x8xf32, #tpu.memory_space<vmem>>, vector<1x1x3x8xf32>
    %374 = vector.shape_cast %373 : vector<1x1x3x8xf32> to vector<3x8xf32>
    %cst_438 = arith.constant dense<0.000000e+00> : vector<3x256xf32>
    %375 = tpu.matmul %374, %336, %cst_438 {dimension_numbers = #tpu.dot_dimension_numbers<[1], [0], [0], [1], [0, 0, 1, 1], [], []>} : vector<3x8xf32>, vector<8x256xf32>, vector<3x256xf32> -> vector<3x256xf32>
    %376 = arith.addf %372, %375 : vector<3x256xf32>
    %c2_439 = arith.constant 2 : index
    %c1_440 = arith.constant 1 : index
    %c0_441 = arith.constant 0 : index
    %c0_442 = arith.constant 0 : index
    %377 = vector.load %arg18[%c2_439, %c1_440, %c0_441, %c0_442] : memref<3x3x3x8xf32, #tpu.memory_space<vmem>>, vector<1x1x3x8xf32>
    %378 = vector.shape_cast %377 : vector<1x1x3x8xf32> to vector<3x8xf32>
    %cst_443 = arith.constant dense<0.000000e+00> : vector<3x256xf32>
    %379 = tpu.matmul %378, %333, %cst_443 {dimension_numbers = #tpu.dot_dimension_numbers<[1], [0], [0], [1], [0, 0, 1, 1], [], []>} : vector<3x8xf32>, vector<8x256xf32>, vector<3x256xf32> -> vector<3x256xf32>
    %380 = arith.addf %376, %379 : vector<3x256xf32>
    %c2_444 = arith.constant 2 : index
    %c2_445 = arith.constant 2 : index
    %c0_446 = arith.constant 0 : index
    %c0_447 = arith.constant 0 : index
    %381 = vector.load %arg18[%c2_444, %c2_445, %c0_446, %c0_447] : memref<3x3x3x8xf32, #tpu.memory_space<vmem>>, vector<1x1x3x8xf32>
    %382 = vector.shape_cast %381 : vector<1x1x3x8xf32> to vector<3x8xf32>
    %cst_448 = arith.constant dense<0.000000e+00> : vector<3x256xf32>
    %383 = tpu.matmul %382, %339, %cst_448 {dimension_numbers = #tpu.dot_dimension_numbers<[1], [0], [0], [1], [0, 0, 1, 1], [], []>} : vector<3x8xf32>, vector<8x256xf32>, vector<3x256xf32> -> vector<3x256xf32>
    %384 = arith.addf %380, %383 : vector<3x256xf32>
    %c3_449 = arith.constant 3 : index
    %c0_450 = arith.constant 0 : index
    %c0_451 = arith.constant 0 : index
    %385 = vector.load %arg2[%c3_449, %c0_450, %c0_451] : memref<4x256x256xf32, #tpu.memory_space<vmem>>, vector<1x256x256xf32>
    %386 = vector.shape_cast %385 : vector<1x256x256xf32> to vector<256x256xf32>
    %cst_452 = arith.constant dense<0.000000e+00> : vector<3x256xf32>
    %387 = tpu.matmul %384, %386, %cst_452 {dimension_numbers = #tpu.dot_dimension_numbers<[1], [0], [0], [1], [0, 0, 1, 1], [], []>} : vector<3x256xf32>, vector<256x256xf32>, vector<3x256xf32> -> vector<3x256xf32>
    %388 = arith.addf %371, %387 : vector<3x256xf32>
    %c0_453 = arith.constant 0 : index
    %c0_454 = arith.constant 0 : index
    %389 = vector.load %arg19[%c0_453, %c0_454] : memref<3x1xf32, #tpu.memory_space<vmem>>, vector<3x1xf32>
    %390 = vector.broadcast %389 : vector<3x1xf32> to vector<3x256xf32>
    %391 = arith.addf %388, %390 : vector<3x256xf32>
    %c0_455 = arith.constant 0 : index
    %c0_456 = arith.constant 0 : index
    %c0_457 = arith.constant 0 : index
    %392 = vector.load %arg20[%c0_455, %c0_456, %c0_457] : memref<1x3x256xf32, #tpu.memory_space<vmem>>, vector<1x3x256xf32>
    %393 = vector.shape_cast %392 : vector<1x3x256xf32> to vector<3x256xf32>
    %394 = vector.shape_cast %391 : vector<3x256xf32> to vector<1x3x256xf32>
    tpu.vector_store %arg20[%c0_455, %c0_456, %c0_457], %394 {strides = array<i32>} : memref<1x3x256xf32, #tpu.memory_space<vmem>>, vector<1x3x256xf32>,
    return
  }
  func.func @transform_0(%arg0: i32) -> (i32, i32, i32) {
    %c0_i32 = arith.constant 0 : i32
    %c0_i32_0 = arith.constant 0 : i32
    %c0_i32_1 = arith.constant 0 : i32
    return %arg0, %c0_i32, %c0_i32_0 : i32, i32, i32
  }
  func.func @transform_1(%arg0: i32) -> (i32, i32, i32) {
    %c0_i32 = arith.constant 0 : i32
    %c0_i32_0 = arith.constant 0 : i32
    %c0_i32_1 = arith.constant 0 : i32
    %c0_i32_2 = arith.constant 0 : i32
    return %c0_i32, %c0_i32_0, %c0_i32_1 : i32, i32, i32
  }
  func.func @transform_2(%arg0: i32) -> (i32, i32, i32) {
    %c0_i32 = arith.constant 0 : i32
    %c0_i32_0 = arith.constant 0 : i32
    %c0_i32_1 = arith.constant 0 : i32
    %c0_i32_2 = arith.constant 0 : i32
    return %c0_i32, %c0_i32_0, %c0_i32_1 : i32, i32, i32
  }
  func.func @transform_3(%arg0: i32) -> (i32, i32) {
    %c0_i32 = arith.constant 0 : i32
    %c0_i32_0 = arith.constant 0 : i32
    %c0_i32_1 = arith.constant 0 : i32
    return %c0_i32, %c0_i32_0 : i32, i32
  }
  func.func @transform_4(%arg0: i32) -> (i32, i32) {
    %c0_i32 = arith.constant 0 : i32
    %c0_i32_0 = arith.constant 0 : i32
    %c0_i32_1 = arith.constant 0 : i32
    return %c0_i32, %c0_i32_0 : i32, i32
  }
  func.func @transform_5(%arg0: i32) -> (i32, i32) {
    %c0_i32 = arith.constant 0 : i32
    %c0_i32_0 = arith.constant 0 : i32
    %c0_i32_1 = arith.constant 0 : i32
    return %c0_i32, %c0_i32_0 : i32, i32
  }
  func.func @transform_6(%arg0: i32) -> (i32, i32) {
    %c0_i32 = arith.constant 0 : i32
    %c0_i32_0 = arith.constant 0 : i32
    %c0_i32_1 = arith.constant 0 : i32
    return %c0_i32, %c0_i32_0 : i32, i32
  }
  func.func @transform_7(%arg0: i32) -> (i32, i32, i32, i32) {
    %c0_i32 = arith.constant 0 : i32
    %c0_i32_0 = arith.constant 0 : i32
    %c0_i32_1 = arith.constant 0 : i32
    %c0_i32_2 = arith.constant 0 : i32
    %c0_i32_3 = arith.constant 0 : i32
    return %c0_i32, %c0_i32_0, %c0_i32_1, %c0_i32_2 : i32, i32, i32, i32
  }
  func.func @transform_8(%arg0: i32) -> (i32, i32) {
    %c0_i32 = arith.constant 0 : i32
    %c0_i32_0 = arith.constant 0 : i32
    %c0_i32_1 = arith.constant 0 : i32
    return %c0_i32, %c0_i32_0 : i32, i32
  }
  func.func @transform_9(%arg0: i32) -> (i32, i32, i32, i32) {
    %c0_i32 = arith.constant 0 : i32
    %c0_i32_0 = arith.constant 0 : i32
    %c0_i32_1 = arith.constant 0 : i32
    %c0_i32_2 = arith.constant 0 : i32
    %c0_i32_3 = arith.constant 0 : i32
    return %c0_i32, %c0_i32_0, %c0_i32_1, %c0_i32_2 : i32, i32, i32, i32
  }
  func.func @transform_10(%arg0: i32) -> (i32, i32) {
    %c0_i32 = arith.constant 0 : i32
    %c0_i32_0 = arith.constant 0 : i32
    %c0_i32_1 = arith.constant 0 : i32
    return %c0_i32, %c0_i32_0 : i32, i32
  }
  func.func @transform_11(%arg0: i32) -> (i32, i32, i32, i32) {
    %c0_i32 = arith.constant 0 : i32
    %c0_i32_0 = arith.constant 0 : i32
    %c0_i32_1 = arith.constant 0 : i32
    %c0_i32_2 = arith.constant 0 : i32
    %c0_i32_3 = arith.constant 0 : i32
    return %c0_i32, %c0_i32_0, %c0_i32_1, %c0_i32_2 : i32, i32, i32, i32
  }
  func.func @transform_12(%arg0: i32) -> (i32, i32, i32, i32) {
    %c0_i32 = arith.constant 0 : i32
    %c0_i32_0 = arith.constant 0 : i32
    %c0_i32_1 = arith.constant 0 : i32
    %c0_i32_2 = arith.constant 0 : i32
    %c0_i32_3 = arith.constant 0 : i32
    return %c0_i32, %c0_i32_0, %c0_i32_1, %c0_i32_2 : i32, i32, i32, i32
  }
  func.func @transform_13(%arg0: i32) -> (i32, i32) {
    %c0_i32 = arith.constant 0 : i32
    %c0_i32_0 = arith.constant 0 : i32
    %c0_i32_1 = arith.constant 0 : i32
    return %c0_i32, %c0_i32_0 : i32, i32
  }
  func.func @transform_14(%arg0: i32) -> (i32, i32, i32, i32) {
    %c0_i32 = arith.constant 0 : i32
    %c0_i32_0 = arith.constant 0 : i32
    %c0_i32_1 = arith.constant 0 : i32
    %c0_i32_2 = arith.constant 0 : i32
    %c0_i32_3 = arith.constant 0 : i32
    return %c0_i32, %c0_i32_0, %c0_i32_1, %c0_i32_2 : i32, i32, i32, i32
  }
  func.func @transform_15(%arg0: i32) -> (i32, i32, i32, i32) {
    %c0_i32 = arith.constant 0 : i32
    %c0_i32_0 = arith.constant 0 : i32
    %c0_i32_1 = arith.constant 0 : i32
    %c0_i32_2 = arith.constant 0 : i32
    %c0_i32_3 = arith.constant 0 : i32
    return %c0_i32, %c0_i32_0, %c0_i32_1, %c0_i32_2 : i32, i32, i32, i32
  }
  func.func @transform_16(%arg0: i32) -> (i32, i32) {
    %c0_i32 = arith.constant 0 : i32
    %c0_i32_0 = arith.constant 0 : i32
    %c0_i32_1 = arith.constant 0 : i32
    return %c0_i32, %c0_i32_0 : i32, i32
  }
  func.func @transform_17(%arg0: i32) -> (i32, i32, i32, i32) {
    %c0_i32 = arith.constant 0 : i32
    %c0_i32_0 = arith.constant 0 : i32
    %c0_i32_1 = arith.constant 0 : i32
    %c0_i32_2 = arith.constant 0 : i32
    %c0_i32_3 = arith.constant 0 : i32
    return %c0_i32, %c0_i32_0, %c0_i32_1, %c0_i32_2 : i32, i32, i32, i32
  }
  func.func @transform_18(%arg0: i32) -> (i32, i32) {
    %c0_i32 = arith.constant 0 : i32
    %c0_i32_0 = arith.constant 0 : i32
    %c0_i32_1 = arith.constant 0 : i32
    return %c0_i32, %c0_i32_0 : i32, i32
  }
  func.func @transform_19(%arg0: i32) -> (i32, i32, i32) {
    %c0_i32 = arith.constant 0 : i32
    %c0_i32_0 = arith.constant 0 : i32
    %c0_i32_1 = arith.constant 0 : i32
    return %arg0, %c0_i32, %c0_i32_0 : i32, i32, i32
  }
}

</mosaic_0001>

<llo_original>
// kernel: seg_wrapper_forward.1
$region0: #{seg_wrapper_forward.1}
  #allocation0 [shape = 'u32[]', space=smem, size = 0x4, offset = 0x4, fixed_abs, tag = 'smem constant byte address 0x4 - core index']
  #allocation1 [shape = 'u32[144,128]{1,0:T(1,128)}', space=vmem, size = 0x12000, scoped, tag = 'internal scratch']
  %s0 = inlined_call_operand.vmem [shape: f32[2,4,256], index: 0, kind: input, shape index: {}]
  %s1 = inlined_call_operand.hbm [shape: f32[4,256,256], index: 1, kind: input, shape index: {}]
  %s2 = inlined_call_operand.vmem [shape: f32[4,64,64], index: 2, kind: input, shape index: {}]
  %s3 = inlined_call_operand.vmem [shape: f32[256,64], index: 3, kind: input, shape index: {}]
  %s4 = inlined_call_operand.vmem [shape: f32[64,16], index: 4, kind: input, shape index: {}]
  %s5 = inlined_call_operand.vmem [shape: f32[16,64], index: 5, kind: input, shape index: {}]
  %s6 = inlined_call_operand.vmem [shape: f32[64,256], index: 6, kind: input, shape index: {}]
  %s7 = inlined_call_operand.vmem [shape: f32[3,3,8,4], index: 7, kind: input, shape index: {}]
  %s8 = inlined_call_operand.vmem [shape: f32[8,1], index: 8, kind: input, shape index: {}]
  %s9 = inlined_call_operand.vmem [shape: f32[3,3,16,8], index: 9, kind: input, shape index: {}]
  %s10 = inlined_call_operand.vmem [shape: f32[16,1], index: 10, kind: input, shape index: {}]
  %s11 = inlined_call_operand.vmem [shape: f32[3,3,16,16], index: 11, kind: input, shape index: {}]
  %s12 = inlined_call_operand.vmem [shape: f32[3,3,16,8], index: 12, kind: input, shape index: {}]
  %s13 = inlined_call_operand.vmem [shape: f32[16,1], index: 13, kind: input, shape index: {}]
  %s14 = inlined_call_operand.vmem [shape: f32[3,3,8,16], index: 14, kind: input, shape index: {}]
  %s15 = inlined_call_operand.vmem [shape: f32[3,3,8,4], index: 15, kind: input, shape index: {}]
  %s16 = inlined_call_operand.vmem [shape: f32[8,1], index: 16, kind: input, shape index: {}]
  %s17 = inlined_call_operand.vmem [shape: f32[3,3,3,8], index: 17, kind: input, shape index: {}]
  %s18 = inlined_call_operand.vmem [shape: f32[3,1], index: 18, kind: input, shape index: {}]
  %s19 = inlined_call_operand.vmem [shape: f32[2,3,256], index: 19, kind: output, shape index: {}]
  %s20 = sld [smem:[#allocation0]]
  $region113: #{seg_wrapper_forward.1} parent=0
    _
  %s22 = ssub.s32 1, %s20
  %s23 = scalar_select 0, %s22, %s20
  $region1: #{seg_wrapper_forward.1} parent=0
    #allocation2 [shape = 'u8[1048576]{0}', space=vmem, size = 0x100000, scoped, tag = 'input window, operand 1, single buffered']
    #allocation3 [shape = 's32[2]{0}', space=sflag, size = 0x8, scoped, tag = 'scoped memory for seg_wrapper_forward.1']
    %24 = vsyncpa [#allocation3], 0
    loop: start=0, step=1, limit=4
    $region2: #{seg_wrapper_forward.1} parent=1 // loop_pre_header
      _
    $region3: #{seg_wrapper_forward.1} parent=1 // loop_header
      %s26 = sphi 0, %s30
      %p27 = scmp.ge.s32.totalorder %s26, 4
      %s36 = sphi 0, %s38
      %s39 = sphi 0, %s36
      %s40 = sphi 0, %s39
      %s56 = sphi 0, %s40
      %s60 = sphi 0, %s60
      %s62 = sphi 0, %s60
      %s63 = sphi 0, %s62
      %s77 = sphi 0, %s63
      %s81 = sphi 0, %s81
      %s83 = sphi 0, %s81
      %s84 = sphi 0, %s83
      %s98 = sphi 0, %s84
      %s102 = sphi 0, %s102
      %s104 = sphi 0, %s102
      %s105 = sphi 0, %s104
      %s119 = sphi 0, %s105
      %s123 = sphi 0, %s123
      %s125 = sphi 0, %s123
      %s126 = sphi 0, %s125
      %s140 = sphi 0, %s126
      %s144 = sphi 0, %s144
      %s146 = sphi 0, %s144
      %s147 = sphi 0, %s146
      %s161 = sphi 0, %s147
      %s165 = sphi 0, %s165
      %s167 = sphi 0, %s165
      %s168 = sphi 0, %s167
      %s182 = sphi 0, %s168
      %s186 = sphi 0, %s186
      %s188 = sphi 0, %s186
      %s189 = sphi 0, %s188
      %s203 = sphi 0, %s189
      %s207 = sphi 0, %s207
      %s209 = sphi 0, %s207
      %s210 = sphi 0, %s209
      %s224 = sphi 0, %s210
      %s228 = sphi 0, %s228
      %s230 = sphi 0, %s228
      %s231 = sphi 0, %s230
      %s245 = sphi 0, %s231
      %s249 = sphi 0, %s249
      %s251 = sphi 0, %s249
      %s252 = sphi 0, %s251
      %s266 = sphi 0, %s252
      %s270 = sphi 0, %s270
      %s272 = sphi 0, %s270
      %s273 = sphi 0, %s272
      %s287 = sphi 0, %s273
      %s291 = sphi 0, %s291
      %s293 = sphi 0, %s291
      %s294 = sphi 0, %s293
      %s308 = sphi 0, %s294
      %s312 = sphi 0, %s312
      %s314 = sphi 0, %s312
      %s315 = sphi 0, %s314
      %s329 = sphi 0, %s315
      %s333 = sphi 0, %s333
      %s335 = sphi 0, %s333
      %s336 = sphi 0, %s335
      %s350 = sphi 0, %s336
      %s354 = sphi 0, %s354
      %s356 = sphi 0, %s354
      %s357 = sphi 0, %s356
      %s371 = sphi 0, %s357
      %s375 = sphi 0, %s375
      %s377 = sphi 0, %s375
      %s378 = sphi 0, %s377
      %s392 = sphi 0, %s378
      %s396 = sphi 0, %s396
      %s398 = sphi 0, %s396
      %s399 = sphi 0, %s398
      %s413 = sphi 0, %s399
      %s417 = sphi 0, %s417
      %s419 = sphi 0, %s417
      %s420 = sphi 0, %s419
      %s434 = sphi 0, %s420
      %s440 = sphi 0, %s442
      %s443 = sphi 0, %s440
      %s444 = sphi 0, %s443
      %s460 = sphi 0, %s444
    $region4: #{seg_wrapper_forward.1} parent=1 // loop_header_branch
      %29 = sbr.rel (%p27) target = $region8
    $region5: #{seg_wrapper_forward.1} parent=1 // loop_body
      %s31 = ssub.s32 %s26, 1
      %s32 = ssub.s32 %s26, 2
      %s33 = sadd.s32 %s26, 1
      %s34 = ssub.s32 %s26, %s33
      %p35 = scmp.eq.s32.totalorder %s34, 0
      %s37 = sadd.s32 %s36, 1
      %s38 = scalar_select %p35, %s36, %s37
      %p41 = pneg %p35
      %p42 = scmp.eq.s32.totalorder %s26, 1
      %p43 = por %p41, %p42
      %p44 = scmp.ne.s32.totalorder %s36, %s39
      %p45 = scmp.eq.s32.totalorder %s26, 0
      %p46 = por %p44, %p45
      %p47 = scmp.ne.s32.totalorder %s36, %s39
      %p48 = scmp.eq.s32.totalorder %s31, 1
      %p49 = por %p47, %p48
      %p50 = scmp.ne.s32.totalorder %s39, %s40
      %p51 = scmp.eq.s32.totalorder %s31, 0
      %p52 = por %p50, %p51
      %p53 = scmp.ne.s32.totalorder %s39, %s40
      %p54 = scmp.eq.s32.totalorder %s32, 1
      %p55 = por %p53, %p54
      %p57 = scmp.ne.s32.totalorder %s40, %s56
      %p58 = scmp.eq.s32.totalorder %s32, 0
      %p59 = por %p57, %p58
      %s61 = sadd.s32 %s60, 1
      %p64 = scmp.eq.s32.totalorder %s26, 1
      %p65 = scmp.ne.s32.totalorder %s60, %s62
      %p66 = scmp.eq.s32.totalorder %s26, 0
      %p67 = por %p65, %p66
      %p68 = scmp.ne.s32.totalorder %s60, %s62
      %p69 = scmp.eq.s32.totalorder %s31, 1
      %p70 = por %p68, %p69
      %p71 = scmp.ne.s32.totalorder %s62, %s63
      %p72 = scmp.eq.s32.totalorder %s31, 0
      %p73 = por %p71, %p72
      %p74 = scmp.ne.s32.totalorder %s62, %s63
      %p75 = scmp.eq.s32.totalorder %s32, 1
      %p76 = por %p74, %p75
      %p78 = scmp.ne.s32.totalorder %s63, %s77
      %p79 = scmp.eq.s32.totalorder %s32, 0
      %p80 = por %p78, %p79
      %s82 = sadd.s32 %s81, 1
      %p85 = scmp.eq.s32.totalorder %s26, 1
      %p86 = scmp.ne.s32.totalorder %s81, %s83
      %p87 = scmp.eq.s32.totalorder %s26, 0
      %p88 = por %p86, %p87
      %p89 = scmp.ne.s32.totalorder %s81, %s83
      %p90 = scmp.eq.s32.totalorder %s31, 1
      %p91 = por %p89, %p90
      %p92 = scmp.ne.s32.totalorder %s83, %s84
      %p93 = scmp.eq.s32.totalorder %s31, 0
      %p94 = por %p92, %p93
      %p95 = scmp.ne.s32.totalorder %s83, %s84
      %p96 = scmp.eq.s32.totalorder %s32, 1
      %p97 = por %p95, %p96
      %p99 = scmp.ne.s32.totalorder %s84, %s98
      %p100 = scmp.eq.s32.totalorder %s32, 0
      %p101 = por %p99, %p100
      %s103 = sadd.s32 %s102, 1
      %p106 = scmp.eq.s32.totalorder %s26, 1
      %p107 = scmp.ne.s32.totalorder %s102, %s104
      %p108 = scmp.eq.s32.totalorder %s26, 0
      %p109 = por %p107, %p108
      %p110 = scmp.ne.s32.totalorder %s102, %s104
      %p111 = scmp.eq.s32.totalorder %s31, 1
      %p112 = por %p110, %p111
      %p113 = scmp.ne.s32.totalorder %s104, %s105
      %p114 = scmp.eq.s32.totalorder %s31, 0
      %p115 = por %p113, %p114
      %p116 = scmp.ne.s32.totalorder %s104, %s105
      %p117 = scmp.eq.s32.totalorder %s32, 1
      %p118 = por %p116, %p117
      %p120 = scmp.ne.s32.totalorder %s105, %s119
      %p121 = scmp.eq.s32.totalorder %s32, 0
      %p122 = por %p120, %p121
      %s124 = sadd.s32 %s123, 1
      %p127 = scmp.eq.s32.totalorder %s26, 1
      %p128 = scmp.ne.s32.totalorder %s123, %s125
      %p129 = scmp.eq.s32.totalorder %s26, 0
      %p130 = por %p128, %p129
      %p131 = scmp.ne.s32.totalorder %s123, %s125
      %p132 = scmp.eq.s32.totalorder %s31, 1
      %p133 = por %p131, %p132
      %p134 = scmp.ne.s32.totalorder %s125, %s126
      %p135 = scmp.eq.s32.totalorder %s31, 0
      %p136 = por %p134, %p135
      %p137 = scmp.ne.s32.totalorder %s125, %s126
      %p138 = scmp.eq.s32.totalorder %s32, 1
      %p139 = por %p137, %p138
      %p141 = scmp.ne.s32.totalorder %s126, %s140
      %p142 = scmp.eq.s32.totalorder %s32, 0
      %p143 = por %p141, %p142
      %s145 = sadd.s32 %s144, 1
      %p148 = scmp.eq.s32.totalorder %s26, 1
      %p149 = scmp.ne.s32.totalorder %s144, %s146
      %p150 = scmp.eq.s32.totalorder %s26, 0
      %p151 = por %p149, %p150
      %p152 = scmp.ne.s32.totalorder %s144, %s146
      %p153 = scmp.eq.s32.totalorder %s31, 1
      %p154 = por %p152, %p153
      %p155 = scmp.ne.s32.totalorder %s146, %s147
      %p156 = scmp.eq.s32.totalorder %s31, 0
      %p157 = por %p155, %p156
      %p158 = scmp.ne.s32.totalorder %s146, %s147
      %p159 = scmp.eq.s32.totalorder %s32, 1
      %p160 = por %p158, %p159
      %p162 = scmp.ne.s32.totalorder %s147, %s161
      %p163 = scmp.eq.s32.totalorder %s32, 0
      %p164 = por %p162, %p163
      %s166 = sadd.s32 %s165, 1
      %p169 = scmp.eq.s32.totalorder %s26, 1
      %p170 = scmp.ne.s32.totalorder %s165, %s167
      %p171 = scmp.eq.s32.totalorder %s26, 0
      %p172 = por %p170, %p171
      %p173 = scmp.ne.s32.totalorder %s165, %s167
      %p174 = scmp.eq.s32.totalorder %s31, 1
      %p175 = por %p173, %p174
      %p176 = scmp.ne.s32.totalorder %s167, %s168
      %p177 = scmp.eq.s32.totalorder %s31, 0
      %p178 = por %p176, %p177
      %p179 = scmp.ne.s32.totalorder %s167, %s168
      %p180 = scmp.eq.s32.totalorder %s32, 1
      %p181 = por %p179, %p180
      %p183 = scmp.ne.s32.totalorder %s168, %s182
      %p184 = scmp.eq.s32.totalorder %s32, 0
      %p185 = por %p183, %p184
      %s187 = sadd.s32 %s186, 1
      %p190 = scmp.eq.s32.totalorder %s26, 1
      %p191 = scmp.ne.s32.totalorder %s186, %s188
      %p192 = scmp.eq.s32.totalorder %s26, 0
      %p193 = por %p191, %p192
      %p194 = scmp.ne.s32.totalorder %s186, %s188
      %p195 = scmp.eq.s32.totalorder %s31, 1
      %p196 = por %p194, %p195
      %p197 = scmp.ne.s32.totalorder %s188, %s189
      %p198 = scmp.eq.s32.totalorder %s31, 0
      %p199 = por %p197, %p198
      %p200 = scmp.ne.s32.totalorder %s188, %s189
      %p201 = scmp.eq.s32.totalorder %s32, 1
      %p202 = por %p200, %p201
      %p204 = scmp.ne.s32.totalorder %s189, %s203
      %p205 = scmp.eq.s32.totalorder %s32, 0
      %p206 = por %p204, %p205
      %s208 = sadd.s32 %s207, 1
      %p211 = scmp.eq.s32.totalorder %s26, 1
      %p212 = scmp.ne.s32.totalorder %s207, %s209
      %p213 = scmp.eq.s32.totalorder %s26, 0
      %p214 = por %p212, %p213
      %p215 = scmp.ne.s32.totalorder %s207, %s209
      %p216 = scmp.eq.s32.totalorder %s31, 1
      %p217 = por %p215, %p216
      %p218 = scmp.ne.s32.totalorder %s209, %s210
      %p219 = scmp.eq.s32.totalorder %s31, 0
      %p220 = por %p218, %p219
      %p221 = scmp.ne.s32.totalorder %s209, %s210
      %p222 = scmp.eq.s32.totalorder %s32, 1
      %p223 = por %p221, %p222
      %p225 = scmp.ne.s32.totalorder %s210, %s224
      %p226 = scmp.eq.s32.totalorder %s32, 0
      %p227 = por %p225, %p226
      %s229 = sadd.s32 %s228, 1
      %p232 = scmp.eq.s32.totalorder %s26, 1
      %p233 = scmp.ne.s32.totalorder %s228, %s230
      %p234 = scmp.eq.s32.totalorder %s26, 0
      %p235 = por %p233, %p234
      %p236 = scmp.ne.s32.totalorder %s228, %s230
      %p237 = scmp.eq.s32.totalorder %s31, 1
      %p238 = por %p236, %p237
      %p239 = scmp.ne.s32.totalorder %s230, %s231
      %p240 = scmp.eq.s32.totalorder %s31, 0
      %p241 = por %p239, %p240
      %p242 = scmp.ne.s32.totalorder %s230, %s231
      %p243 = scmp.eq.s32.totalorder %s32, 1
      %p244 = por %p242, %p243
      %p246 = scmp.ne.s32.totalorder %s231, %s245
      %p247 = scmp.eq.s32.totalorder %s32, 0
      %p248 = por %p246, %p247
      %s250 = sadd.s32 %s249, 1
      %p253 = scmp.eq.s32.totalorder %s26, 1
      %p254 = scmp.ne.s32.totalorder %s249, %s251
      %p255 = scmp.eq.s32.totalorder %s26, 0
      %p256 = por %p254, %p255
      %p257 = scmp.ne.s32.totalorder %s249, %s251
      %p258 = scmp.eq.s32.totalorder %s31, 1
      %p259 = por %p257, %p258
      %p260 = scmp.ne.s32.totalorder %s251, %s252
      %p261 = scmp.eq.s32.totalorder %s31, 0
      %p262 = por %p260, %p261
      %p263 = scmp.ne.s32.totalorder %s251, %s252
      %p264 = scmp.eq.s32.totalorder %s32, 1
      %p265 = por %p263, %p264
      %p267 = scmp.ne.s32.totalorder %s252, %s266
      %p268 = scmp.eq.s32.totalorder %s32, 0
      %p269 = por %p267, %p268
      %s271 = sadd.s32 %s270, 1
      %p274 = scmp.eq.s32.totalorder %s26, 1
      %p275 = scmp.ne.s32.totalorder %s270, %s272
      %p276 = scmp.eq.s32.totalorder %s26, 0
      %p277 = por %p275, %p276
      %p278 = scmp.ne.s32.totalorder %s270, %s272
      %p279 = scmp.eq.s32.totalorder %s31, 1
      %p280 = por %p278, %p279
      %p281 = scmp.ne.s32.totalorder %s272, %s273
      %p282 = scmp.eq.s32.totalorder %s31, 0
      %p283 = por %p281, %p282
      %p284 = scmp.ne.s32.totalorder %s272, %s273
      %p285 = scmp.eq.s32.totalorder %s32, 1
      %p286 = por %p284, %p285
      %p288 = scmp.ne.s32.totalorder %s273, %s287
      %p289 = scmp.eq.s32.totalorder %s32, 0
      %p290 = por %p288, %p289
      %s292 = sadd.s32 %s291, 1
      %p295 = scmp.eq.s32.totalorder %s26, 1
      %p296 = scmp.ne.s32.totalorder %s291, %s293
      %p297 = scmp.eq.s32.totalorder %s26, 0
      %p298 = por %p296, %p297
      %p299 = scmp.ne.s32.totalorder %s291, %s293
      %p300 = scmp.eq.s32.totalorder %s31, 1
      %p301 = por %p299, %p300
      %p302 = scmp.ne.s32.totalorder %s293, %s294
      %p303 = scmp.eq.s32.totalorder %s31, 0
      %p304 = por %p302, %p303
      %p305 = scmp.ne.s32.totalorder %s293, %s294
      %p306 = scmp.eq.s32.totalorder %s32, 1
      %p307 = por %p305, %p306
      %p309 = scmp.ne.s32.totalorder %s294, %s308
      %p310 = scmp.eq.s32.totalorder %s32, 0
      %p311 = por %p309, %p310
      %s313 = sadd.s32 %s312, 1
      %p316 = scmp.eq.s32.totalorder %s26, 1
      %p317 = scmp.ne.s32.totalorder %s312, %s314
      %p318 = scmp.eq.s32.totalorder %s26, 0
      %p319 = por %p317, %p318
      %p320 = scmp.ne.s32.totalorder %s312, %s314
      %p321 = scmp.eq.s32.totalorder %s31, 1
      %p322 = por %p320, %p321
      %p323 = scmp.ne.s32.totalorder %s314, %s315
      %p324 = scmp.eq.s32.totalorder %s31, 0
      %p325 = por %p323, %p324
      %p326 = scmp.ne.s32.totalorder %s314, %s315
      %p327 = scmp.eq.s32.totalorder %s32, 1
      %p328 = por %p326, %p327
      %p330 = scmp.ne.s32.totalorder %s315, %s329
      %p331 = scmp.eq.s32.totalorder %s32, 0
      %p332 = por %p330, %p331
      %s334 = sadd.s32 %s333, 1
      %p337 = scmp.eq.s32.totalorder %s26, 1
      %p338 = scmp.ne.s32.totalorder %s333, %s335
      %p339 = scmp.eq.s32.totalorder %s26, 0
      %p340 = por %p338, %p339
      %p341 = scmp.ne.s32.totalorder %s333, %s335
      %p342 = scmp.eq.s32.totalorder %s31, 1
      %p343 = por %p341, %p342
      %p344 = scmp.ne.s32.totalorder %s335, %s336
      %p345 = scmp.eq.s32.totalorder %s31, 0
      %p346 = por %p344, %p345
      %p347 = scmp.ne.s32.totalorder %s335, %s336
      %p348 = scmp.eq.s32.totalorder %s32, 1
      %p349 = por %p347, %p348
      %p351 = scmp.ne.s32.totalorder %s336, %s350
      %p352 = scmp.eq.s32.totalorder %s32, 0
      %p353 = por %p351, %p352
      %s355 = sadd.s32 %s354, 1
      %p358 = scmp.eq.s32.totalorder %s26, 1
      %p359 = scmp.ne.s32.totalorder %s354, %s356
      %p360 = scmp.eq.s32.totalorder %s26, 0
      %p361 = por %p359, %p360
      %p362 = scmp.ne.s32.totalorder %s354, %s356
      %p363 = scmp.eq.s32.totalorder %s31, 1
      %p364 = por %p362, %p363
      %p365 = scmp.ne.s32.totalorder %s356, %s357
      %p366 = scmp.eq.s32.totalorder %s31, 0
      %p367 = por %p365, %p366
      %p368 = scmp.ne.s32.totalorder %s356, %s357
      %p369 = scmp.eq.s32.totalorder %s32, 1
      %p370 = por %p368, %p369
      %p372 = scmp.ne.s32.totalorder %s357, %s371
      %p373 = scmp.eq.s32.totalorder %s32, 0
      %p374 = por %p372, %p373
      %s376 = sadd.s32 %s375, 1
      %p379 = scmp.eq.s32.totalorder %s26, 1
      %p380 = scmp.ne.s32.totalorder %s375, %s377
      %p381 = scmp.eq.s32.totalorder %s26, 0
      %p382 = por %p380, %p381
      %p383 = scmp.ne.s32.totalorder %s375, %s377
      %p384 = scmp.eq.s32.totalorder %s31, 1
      %p385 = por %p383, %p384
      %p386 = scmp.ne.s32.totalorder %s377, %s378
      %p387 = scmp.eq.s32.totalorder %s31, 0
      %p388 = por %p386, %p387
      %p389 = scmp.ne.s32.totalorder %s377, %s378
      %p390 = scmp.eq.s32.totalorder %s32, 1
      %p391 = por %p389, %p390
      %p393 = scmp.ne.s32.totalorder %s378, %s392
      %p394 = scmp.eq.s32.totalorder %s32, 0
      %p395 = por %p393, %p394
      %s397 = sadd.s32 %s396, 1
      %p400 = scmp.eq.s32.totalorder %s26, 1
      %p401 = scmp.ne.s32.totalorder %s396, %s398
      %p402 = scmp.eq.s32.totalorder %s26, 0
      %p403 = por %p401, %p402
      %p404 = scmp.ne.s32.totalorder %s396, %s398
      %p405 = scmp.eq.s32.totalorder %s31, 1
      %p406 = por %p404, %p405
      %p407 = scmp.ne.s32.totalorder %s398, %s399
      %p408 = scmp.eq.s32.totalorder %s31, 0
      %p409 = por %p407, %p408
      %p410 = scmp.ne.s32.totalorder %s398, %s399
      %p411 = scmp.eq.s32.totalorder %s32, 1
      %p412 = por %p410, %p411
      %p414 = scmp.ne.s32.totalorder %s399, %s413
      %p415 = scmp.eq.s32.totalorder %s32, 0
      %p416 = por %p414, %p415
      %s418 = sadd.s32 %s417, 1
      %p421 = scmp.eq.s32.totalorder %s26, 1
      %p422 = scmp.ne.s32.totalorder %s417, %s419
      %p423 = scmp.eq.s32.totalorder %s26, 0
      %p424 = por %p422, %p423
      %p425 = scmp.ne.s32.totalorder %s417, %s419
      %p426 = scmp.eq.s32.totalorder %s31, 1
      %p427 = por %p425, %p426
      %p428 = scmp.ne.s32.totalorder %s419, %s420
      %p429 = scmp.eq.s32.totalorder %s31, 0
      %p430 = por %p428, %p429
      %p431 = scmp.ne.s32.totalorder %s419, %s420
      %p432 = scmp.eq.s32.totalorder %s32, 1
      %p433 = por %p431, %p432
      %p435 = scmp.ne.s32.totalorder %s420, %s434
      %p436 = scmp.eq.s32.totalorder %s32, 0
      %p437 = por %p435, %p436
      %s438 = ssub.s32 %s26, %s33
      %p439 = scmp.eq.s32.totalorder %s438, 0
      %s441 = sadd.s32 %s440, 1
      %s442 = scalar_select %p439, %s440, %s441
      %p445 = pneg %p439
      %p446 = scmp.eq.s32.totalorder %s26, 1
      %p447 = por %p445, %p446
      %p448 = scmp.ne.s32.totalorder %s440, %s443
      %p449 = scmp.eq.s32.totalorder %s26, 0
      %p450 = por %p448, %p449
      %p451 = scmp.ne.s32.totalorder %s440, %s443
      %p452 = scmp.eq.s32.totalorder %s31, 1
      %p453 = por %p451, %p452
      %p454 = scmp.ne.s32.totalorder %s443, %s444
      %p455 = scmp.eq.s32.totalorder %s31, 0
      %p456 = por %p454, %p455
      %p457 = scmp.ne.s32.totalorder %s443, %s444
      %p458 = scmp.eq.s32.totalorder %s32, 1
      %p459 = por %p457, %p458
      %p461 = scmp.ne.s32.totalorder %s444, %s460
      %p462 = scmp.eq.s32.totalorder %s32, 0
      %p463 = por %p461, %p462
      %p464 = scmp.le.s32.totalorder 1, %s26
      %p465 = scmp.lt.s32.totalorder %s26, 3
      %p466 = pnand %p464, %p465
      %p467 = pneg %p466
      // Predicated region
      $region9: #{seg_wrapper_forward.1} parent=5 // pred_check
        _
      $region10: #{seg_wrapper_forward.1} parent=5 // pred_check_branch
        %469 = sbr.rel (%p466) target = $region12
      $region11: #{seg_wrapper_forward.1} parent=5 // pred_region
        %s470 = ssub.s32 %s26, 1
        // Predicated region
        $region13: #{seg_wrapper_forward.1} parent=11 // pred_check
          %p471 = pneg %p73
        $region14: #{seg_wrapper_forward.1} parent=11 // pred_check_branch
          %473 = sbr.rel (%p471) target = $region16
        $region15: #{seg_wrapper_forward.1} parent=11 // pred_region
          %s475 = ssub.s32 32768, 32768
          %476 = vsyncadd [#allocation3], %s475
          %s477 = sshll.u32 [#allocation2], 4
          %s478 = int_to_ptr.vmem [resolvable:$true] %s477
          %483 = dma.hbm_to_vmem [thread:$0]  %s1, 32768, %s478, [#allocation3], 256, 256, 16
        $region16: #{seg_wrapper_forward.1} parent=11 // pred_fallthru
          _
        // Predicated region
        $region17: #{seg_wrapper_forward.1} parent=11 // pred_check
          %p484 = pneg %p94
        $region18: #{seg_wrapper_forward.1} parent=11 // pred_check_branch
          %486 = sbr.rel (%p484) target = $region20
        $region19: #{seg_wrapper_forward.1} parent=11 // pred_region
          _
        $region20: #{seg_wrapper_forward.1} parent=11 // pred_fallthru
          _
        // Predicated region
        $region21: #{seg_wrapper_forward.1} parent=11 // pred_check
          %p487 = pneg %p115
        $region22: #{seg_wrapper_forward.1} parent=11 // pred_check_branch
          %489 = sbr.rel (%p487) target = $region24
        $region23: #{seg_wrapper_forward.1} parent=11 // pred_region
          _
        $region24: #{seg_wrapper_forward.1} parent=11 // pred_fallthru
          _
        // Predicated region
        $region25: #{seg_wrapper_forward.1} parent=11 // pred_check
          %p490 = pneg %p136
        $region26: #{seg_wrapper_forward.1} parent=11 // pred_check_branch
          %492 = sbr.rel (%p490) target = $region28
        $region27: #{seg_wrapper_forward.1} parent=11 // pred_region
          _
        $region28: #{seg_wrapper_forward.1} parent=11 // pred_fallthru
          _
        // Predicated region
        $region29: #{seg_wrapper_forward.1} parent=11 // pred_check
          %p493 = pneg %p157
        $region30: #{seg_wrapper_forward.1} parent=11 // pred_check_branch
          %495 = sbr.rel (%p493) target = $region32
        $region31: #{seg_wrapper_forward.1} parent=11 // pred_region
          _
        $region32: #{seg_wrapper_forward.1} parent=11 // pred_fallthru
          _
        // Predicated region
        $region33: #{seg_wrapper_forward.1} parent=11 // pred_check
          %p496 = pneg %p178
        $region34: #{seg_wrapper_forward.1} parent=11 // pred_check_branch
          %498 = sbr.rel (%p496) target = $region36
        $region35: #{seg_wrapper_forward.1} parent=11 // pred_region
          _
        $region36: #{seg_wrapper_forward.1} parent=11 // pred_fallthru
          _
        // Predicated region
        $region37: #{seg_wrapper_forward.1} parent=11 // pred_check
          %p499 = pneg %p199
        $region38: #{seg_wrapper_forward.1} parent=11 // pred_check_branch
          %501 = sbr.rel (%p499) target = $region40
        $region39: #{seg_wrapper_forward.1} parent=11 // pred_region
          _
        $region40: #{seg_wrapper_forward.1} parent=11 // pred_fallthru
          _
        // Predicated region
        $region41: #{seg_wrapper_forward.1} parent=11 // pred_check
          %p502 = pneg %p220
        $region42: #{seg_wrapper_forward.1} parent=11 // pred_check_branch
          %504 = sbr.rel (%p502) target = $region44
        $region43: #{seg_wrapper_forward.1} parent=11 // pred_region
          _
        $region44: #{seg_wrapper_forward.1} parent=11 // pred_fallthru
          _
        // Predicated region
        $region45: #{seg_wrapper_forward.1} parent=11 // pred_check
          %p505 = pneg %p241
        $region46: #{seg_wrapper_forward.1} parent=11 // pred_check_branch
          %507 = sbr.rel (%p505) target = $region48
        $region47: #{seg_wrapper_forward.1} parent=11 // pred_region
          _
        $region48: #{seg_wrapper_forward.1} parent=11 // pred_fallthru
          _
        // Predicated region
        $region49: #{seg_wrapper_forward.1} parent=11 // pred_check
          %p508 = pneg %p262
        $region50: #{seg_wrapper_forward.1} parent=11 // pred_check_branch
          %510 = sbr.rel (%p508) target = $region52
        $region51: #{seg_wrapper_forward.1} parent=11 // pred_region
          _
        $region52: #{seg_wrapper_forward.1} parent=11 // pred_fallthru
          _
        // Predicated region
        $region53: #{seg_wrapper_forward.1} parent=11 // pred_check
          %p511 = pneg %p283
        $region54: #{seg_wrapper_forward.1} parent=11 // pred_check_branch
          %513 = sbr.rel (%p511) target = $region56
        $region55: #{seg_wrapper_forward.1} parent=11 // pred_region
          _
        $region56: #{seg_wrapper_forward.1} parent=11 // pred_fallthru
          _
        // Predicated region
        $region57: #{seg_wrapper_forward.1} parent=11 // pred_check
          %p514 = pneg %p304
        $region58: #{seg_wrapper_forward.1} parent=11 // pred_check_branch
          %516 = sbr.rel (%p514) target = $region60
        $region59: #{seg_wrapper_forward.1} parent=11 // pred_region
          _
        $region60: #{seg_wrapper_forward.1} parent=11 // pred_fallthru
          _
        // Predicated region
        $region61: #{seg_wrapper_forward.1} parent=11 // pred_check
          %p517 = pneg %p325
        $region62: #{seg_wrapper_forward.1} parent=11 // pred_check_branch
          %519 = sbr.rel (%p517) target = $region64
        $region63: #{seg_wrapper_forward.1} parent=11 // pred_region
          _
        $region64: #{seg_wrapper_forward.1} parent=11 // pred_fallthru
          _
        // Predicated region
        $region65: #{seg_wrapper_forward.1} parent=11 // pred_check
          %p520 = pneg %p346
        $region66: #{seg_wrapper_forward.1} parent=11 // pred_check_branch
          %522 = sbr.rel (%p520) target = $region68
        $region67: #{seg_wrapper_forward.1} parent=11 // pred_region
          _
        $region68: #{seg_wrapper_forward.1} parent=11 // pred_fallthru
          _
        // Predicated region
        $region69: #{seg_wrapper_forward.1} parent=11 // pred_check
          %p523 = pneg %p367
        $region70: #{seg_wrapper_forward.1} parent=11 // pred_check_branch
          %525 = sbr.rel (%p523) target = $region72
        $region71: #{seg_wrapper_forward.1} parent=11 // pred_region
          _
        $region72: #{seg_wrapper_forward.1} parent=11 // pred_fallthru
          _
        // Predicated region
        $region73: #{seg_wrapper_forward.1} parent=11 // pred_check
          %p526 = pneg %p388
        $region74: #{seg_wrapper_forward.1} parent=11 // pred_check_branch
          %528 = sbr.rel (%p526) target = $region76
        $region75: #{seg_wrapper_forward.1} parent=11 // pred_region
          _
        $region76: #{seg_wrapper_forward.1} parent=11 // pred_fallthru
          _
        // Predicated region
        $region77: #{seg_wrapper_forward.1} parent=11 // pred_check
          %p529 = pneg %p409
        $region78: #{seg_wrapper_forward.1} parent=11 // pred_check_branch
          %531 = sbr.rel (%p529) target = $region80
        $region79: #{seg_wrapper_forward.1} parent=11 // pred_region
          _
        $region80: #{seg_wrapper_forward.1} parent=11 // pred_fallthru
          _
        // Predicated region
        $region81: #{seg_wrapper_forward.1} parent=11 // pred_check
          %p532 = pneg %p430
        $region82: #{seg_wrapper_forward.1} parent=11 // pred_check_branch
          %534 = sbr.rel (%p532) target = $region84
        $region83: #{seg_wrapper_forward.1} parent=11 // pred_region
          _
        $region84: #{seg_wrapper_forward.1} parent=11 // pred_fallthru
          _
      $region12: #{seg_wrapper_forward.1} parent=5 // pred_fallthru
        _
      %p535 = scmp.lt.s32.totalorder %s26, 2
      // Predicated region
      $region85: #{seg_wrapper_forward.1} parent=5 // pred_check
        %p536 = pneg %p535
      $region86: #{seg_wrapper_forward.1} parent=5 // pred_check_branch
        %538 = sbr.rel (%p536) target = $region88
      $region87: #{seg_wrapper_forward.1} parent=5 // pred_region
        // Predicated region
        $region89: #{seg_wrapper_forward.1} parent=87 // pred_check
          %p539 = pneg %p46
        $region90: #{seg_wrapper_forward.1} parent=87 // pred_check_branch
          %541 = sbr.rel (%p539) target = $region92
        $region91: #{seg_wrapper_forward.1} parent=87 // pred_region
          %p542 = scmp.lt.s32.totalorder %s26, 1
          %s543 = scalar_select %p542, %s26, 1
          %s544 = smul.addr %s543, 2
          %s545 = smul.addr %s544, 4
          %s546 = scalar_lea.vmem %s0, %s545
        $region92: #{seg_wrapper_forward.1} parent=87 // pred_fallthru
          _
      $region88: #{seg_wrapper_forward.1} parent=5 // pred_fallthru
        _
      %p547 = scmp.le.s32.totalorder 1, %s26
      %p548 = scmp.lt.s32.totalorder %s26, 3
      %p549 = pnand %p547, %p548
      %p550 = pneg %p549
      // Predicated region
      $region93: #{seg_wrapper_forward.1} parent=5 // pred_check
        _
      $region94: #{seg_wrapper_forward.1} parent=5 // pred_check_branch
        %552 = sbr.rel (%p549) target = $region96
      $region95: #{seg_wrapper_forward.1} parent=5 // pred_region
        %s553 = ssub.s32 %s26, 1
        // Predicated region
        $region97: #{seg_wrapper_forward.1} parent=95 // pred_check
          %p554 = pneg %p73
        $region98: #{seg_wrapper_forward.1} parent=95 // pred_check_branch
          %556 = sbr.rel (%p554) target = $region100
        $region99: #{seg_wrapper_forward.1} parent=95 // pred_region
          %557 = dma.done [#allocation3], 32768
        $region100: #{seg_wrapper_forward.1} parent=95 // pred_fallthru
          _
        %p558 = scmp.lt.s32.totalorder %s31, 1
        %s559 = scalar_select %p558, %s31, 1
        %s560 = smul.addr %s559, 2
        %s561 = smul.addr %s560, 4
        %s562 = scalar_lea.vmem %s0, %s561
        %p563 = pneg %p52
        %p564 = pneg %p49
        %p565 = pneg %p73
        %p566 = pneg %p70
        %p567 = pneg %p94
        %p568 = pneg %p91
        %p569 = pneg %p115
        %p570 = pneg %p112
        %p571 = pneg %p136
        %p572 = pneg %p133
        %p573 = pneg %p157
        %p574 = pneg %p154
        %p575 = pneg %p178
        %p576 = pneg %p175
        %p577 = pneg %p199
        %p578 = pneg %p196
        %p579 = pneg %p220
        %p580 = pneg %p217
        %p581 = pneg %p241
        %p582 = pneg %p238
        %p583 = pneg %p262
        %p584 = pneg %p259
        %p585 = pneg %p283
        %p586 = pneg %p280
        %p587 = pneg %p304
        %p588 = pneg %p301
        %p589 = pneg %p325
        %p590 = pneg %p322
        %p591 = pneg %p346
        %p592 = pneg %p343
        %p593 = pneg %p367
        %p594 = pneg %p364
        %p595 = pneg %p388
        %p596 = pneg %p385
        %p597 = pneg %p409
        %p598 = pneg %p406
        %p599 = pneg %p430
        %p600 = pneg %p427
        %p601 = pneg %p456
        %p602 = pneg %p453
        %p603 = scmp.lt.s32.totalorder %s31, 1
        %s604 = scalar_select %p603, %s31, 1
        %s605 = smul.addr %s604, 2
        %s606 = smul.addr %s605, 4
        %s607 = scalar_lea.vmem %s19, %s606
        %p608 = scmp.lt.s32.totalorder %s31, 1
        %s609 = scalar_select %p608, %s31, 1
        %s610 = smul.addr %s609, 2
        %s611 = smul.addr %s610, 4
        %s612 = scalar_lea.vmem %s0, %s611
        %p613 = scmp.lt.s32.totalorder %s31, 1
        %s614 = scalar_select %p613, %s31, 1
        %s615 = smul.addr %s614, 2
        %s616 = smul.addr %s615, 4
        %s617 = scalar_lea.vmem %s19, %s616
        %v618 = vld [vmem:[%s612] sm:$0xff]
        %v619 = vld [vmem:[#allocation2] sm:$0xff]
        %v620 = vld [vmem:[#allocation2 + $0x8] sm:$0xff]
        %v621 = vld [vmem:[#allocation2 + $0x10] sm:$0xff]
        %v622 = vld [vmem:[#allocation2 + $0x18] sm:$0xff]
        %v623 = vld [vmem:[#allocation2 + $0x20] sm:$0xff]
        %v624 = vld [vmem:[#allocation2 + $0x28] sm:$0xff]
        %v625 = vld [vmem:[#allocation2 + $0x30] sm:$0xff]
        %v626 = vld [vmem:[#allocation2 + $0x38] sm:$0xff]
        %v627 = vld [vmem:[#allocation2 + $0x40] sm:$0xff]
        %v628 = vld [vmem:[#allocation2 + $0x48] sm:$0xff]
        %v629 = vld [vmem:[#allocation2 + $0x50] sm:$0xff]
        %v630 = vld [vmem:[#allocation2 + $0x58] sm:$0xff]
        %v631 = vld [vmem:[#allocation2 + $0x60] sm:$0xff]
        %v632 = vld [vmem:[#allocation2 + $0x68] sm:$0xff]
        %v633 = vld [vmem:[#allocation2 + $0x70] sm:$0xff]
        %v634 = vld [vmem:[#allocation2 + $0x78] sm:$0xff]
        %v635 = vld [vmem:[#allocation2 + $0x80] sm:$0xff]
        %v636 = vld [vmem:[#allocation2 + $0x88] sm:$0xff]
        %v637 = vld [vmem:[#allocation2 + $0x90] sm:$0xff]
        %v638 = vld [vmem:[#allocation2 + $0x98] sm:$0xff]
        %v639 = vld [vmem:[#allocation2 + $0xa0] sm:$0xff]
        %v640 = vld [vmem:[#allocation2 + $0xa8] sm:$0xff]
        %v641 = vld [vmem:[#allocation2 + $0xb0] sm:$0xff]
        %v642 = vld [vmem:[#allocation2 + $0xb8] sm:$0xff]
        %v643 = vld [vmem:[#allocation2 + $0xc0] sm:$0xff]
        %v644 = vld [vmem:[#allocation2 + $0xc8] sm:$0xff]
        %v645 = vld [vmem:[#allocation2 + $0xd0] sm:$0xff]
        %v646 = vld [vmem:[#allocation2 + $0xd8] sm:$0xff]
        %v647 = vld [vmem:[#allocation2 + $0xe0] sm:$0xff]
        %v648 = vld [vmem:[#allocation2 + $0xe8] sm:$0xff]
        %v649 = vld [vmem:[#allocation2 + $0xf0] sm:$0xff]
        %v650 = vld [vmem:[#allocation2 + $0xf8] sm:$0xff]
        %v651 = vld [vmem:[#allocation2 + $0x100] sm:$0xff]
        %v652 = vld [vmem:[#allocation2 + $0x108] sm:$0xff]
        %v653 = vld [vmem:[#allocation2 + $0x110] sm:$0xff]
        %v654 = vld [vmem:[#allocation2 + $0x118] sm:$0xff]
        %v655 = vld [vmem:[#allocation2 + $0x120] sm:$0xff]
        %v656 = vld [vmem:[#allocation2 + $0x128] sm:$0xff]
        %v657 = vld [vmem:[#allocation2 + $0x130] sm:$0xff]
        %v658 = vld [vmem:[#allocation2 + $0x138] sm:$0xff]
        %v659 = vld [vmem:[#allocation2 + $0x140] sm:$0xff]
        %v660 = vld [vmem:[#allocation2 + $0x148] sm:$0xff]
        %v661 = vld [vmem:[#allocation2 + $0x150] sm:$0xff]
        %v662 = vld [vmem:[#allocation2 + $0x158] sm:$0xff]
        %v663 = vld [vmem:[#allocation2 + $0x160] sm:$0xff]
        %v664 = vld [vmem:[#allocation2 + $0x168] sm:$0xff]
        %v665 = vld [vmem:[#allocation2 + $0x170] sm:$0xff]
        %v666 = vld [vmem:[#allocation2 + $0x178] sm:$0xff]
        %v667 = vld [vmem:[#allocation2 + $0x180] sm:$0xff]
        %v668 = vld [vmem:[#allocation2 + $0x188] sm:$0xff]
        %v669 = vld [vmem:[#allocation2 + $0x190] sm:$0xff]
        %v670 = vld [vmem:[#allocation2 + $0x198] sm:$0xff]
        %v671 = vld [vmem:[#allocation2 + $0x1a0] sm:$0xff]
        %v672 = vld [vmem:[#allocation2 + $0x1a8] sm:$0xff]
        %v673 = vld [vmem:[#allocation2 + $0x1b0] sm:$0xff]
        %v674 = vld [vmem:[#allocation2 + $0x1b8] sm:$0xff]
        %v675 = vld [vmem:[#allocation2 + $0x1c0] sm:$0xff]
        %v676 = vld [vmem:[#allocation2 + $0x1c8] sm:$0xff]
        %v677 = vld [vmem:[#allocation2 + $0x1d0] sm:$0xff]
        %v678 = vld [vmem:[#allocation2 + $0x1d8] sm:$0xff]
        %v679 = vld [vmem:[#allocation2 + $0x1e0] sm:$0xff]
        %v680 = vld [vmem:[#allocation2 + $0x1e8] sm:$0xff]
        %v681 = vld [vmem:[#allocation2 + $0x1f0] sm:$0xff]
        %v682 = vld [vmem:[#allocation2 + $0x1f8] sm:$0xff]
        %v684 = vcombine.high %v618, %v618
        %686 = vmatprep.subr.mxu0 %v620
        %687 = vmatpush1.msra.mxu0 %v619
        %688 = vmatprep.subr.mxu0 %v622
        %689 = vmatpush1.msra.mxu0 %v621
        %690 = vmatprep.subr.mxu0 %v624
        %691 = vmatpush1.msra.mxu0 %v623
        %692 = vmatprep.subr.mxu0 %v626
        %693 = vmatpush1.msra.mxu0 %v625
        %694 = vmatprep.subr.mxu0 %v628
        %695 = vmatpush1.msra.mxu0 %v627
        %696 = vmatprep.subr.mxu0 %v630
        %697 = vmatpush1.msra.mxu0 %v629
        %698 = vmatprep.subr.mxu0 %v632
        %699 = vmatpush1.msra.mxu0 %v631
        %700 = vmatprep.subr.mxu0 %v634
        %701 = vmatpush1.msra.mxu0 %v633
        %702 = vmatprep.subr.mxu0 %v636
        %703 = vmatpush1.msra.mxu0 %v635
        %704 = vmatprep.subr.mxu0 %v638
        %705 = vmatpush1.msra.mxu0 %v637
        %706 = vmatprep.subr.mxu0 %v640
        %707 = vmatpush1.msra.mxu0 %v639
        %708 = vmatprep.subr.mxu0 %v642
        %709 = vmatpush1.msra.mxu0 %v641
        %710 = vmatprep.subr.mxu0 %v644
        %711 = vmatpush1.msra.mxu0 %v643
        %712 = vmatprep.subr.mxu0 %v646
        %713 = vmatpush1.msra.mxu0 %v645
        %714 = vmatprep.subr.mxu0 %v648
        %715 = vmatpush1.msra.mxu0 %v647
        %716 = vmatprep.subr.mxu0 %v650
        %717 = vmatpush1.msra.mxu0 %v649
        %718 = vmatprep.subr.mxu0 %v652
        %719 = vmatpush1.msra.mxu0 %v651
        %720 = vmatprep.subr.mxu0 %v654
        %721 = vmatpush1.msra.mxu0 %v653
        %722 = vmatprep.subr.mxu0 %v656
        %723 = vmatpush1.msra.mxu0 %v655
        %724 = vmatprep.subr.mxu0 %v658
        %725 = vmatpush1.msra.mxu0 %v657
        %726 = vmatprep.subr.mxu0 %v660
        %727 = vmatpush1.msra.mxu0 %v659
        %728 = vmatprep.subr.mxu0 %v662
        %729 = vmatpush1.msra.mxu0 %v661
        %730 = vmatprep.subr.mxu0 %v664
        %731 = vmatpush1.msra.mxu0 %v663
        %732 = vmatprep.subr.mxu0 %v666
        %733 = vmatpush1.msra.mxu0 %v665
        %734 = vmatprep.subr.mxu0 %v668
        %735 = vmatpush1.msra.mxu0 %v667
        %736 = vmatprep.subr.mxu0 %v670
        %737 = vmatpush1.msra.mxu0 %v669
        %738 = vmatprep.subr.mxu0 %v672
        %739 = vmatpush1.msra.mxu0 %v671
        %740 = vmatprep.subr.mxu0 %v674
        %741 = vmatpush1.msra.mxu0 %v673
        %742 = vmatprep.subr.mxu0 %v676
        %743 = vmatpush1.msra.mxu0 %v675
        %744 = vmatprep.subr.mxu0 %v678
        %745 = vmatpush1.msra.mxu0 %v677
        %746 = vmatprep.subr.mxu0 %v680
        %747 = vmatpush1.msra.mxu0 %v679
        %748 = vmatprep.subr.mxu0 %v682
        %749 = vmatpush1.msra.mxu0 %v681
        %750 = vmatprep.mubr.f32.mxu0 %v684
        %751 = vmatmul.mubr.f32.gmra.mrb[0].mxu0 %v618
        %v752 = vpop.f32.mrb[0].mxu0
        %v753 = vadd.f32 0.0, %v752
        %v754 = vpop.f32.mrb[0].mxu0
        %v755 = vadd.f32 0.0, %v754
        %756 = vdwg.mxu0
        %s757 = scalar_lea.vmem [#allocation2], 512
        %v758 = vld [vmem:[%s757] sm:$0xff]
        %v759 = vld [vmem:[%s757 + $0x8] sm:$0xff]
        %v760 = vld [vmem:[%s757 + $0x10] sm:$0xff]
        %v761 = vld [vmem:[%s757 + $0x18] sm:$0xff]
        %v762 = vld [vmem:[%s757 + $0x20] sm:$0xff]
        %v763 = vld [vmem:[%s757 + $0x28] sm:$0xff]
        %v764 = vld [vmem:[%s757 + $0x30] sm:$0xff]
        %v765 = vld [vmem:[%s757 + $0x38] sm:$0xff]
        %v766 = vld [vmem:[%s757 + $0x40] sm:$0xff]
        %v767 = vld [vmem:[%s757 + $0x48] sm:$0xff]
        %v768 = vld [vmem:[%s757 + $0x50] sm:$0xff]
        %v769 = vld [vmem:[%s757 + $0x58] sm:$0xff]
        %v770 = vld [vmem:[%s757 + $0x60] sm:$0xff]
        %v771 = vld [vmem:[%s757 + $0x68] sm:$0xff]
        %v772 = vld [vmem:[%s757 + $0x70] sm:$0xff]
        %v773 = vld [vmem:[%s757 + $0x78] sm:$0xff]
        %v774 = vld [vmem:[%s757 + $0x80] sm:$0xff]
        %v775 = vld [vmem:[%s757 + $0x88] sm:$0xff]
        %v776 = vld [vmem:[%s757 + $0x90] sm:$0xff]
        %v777 = vld [vmem:[%s757 + $0x98] sm:$0xff]
        %v778 = vld [vmem:[%s757 + $0xa0] sm:$0xff]
        %v779 = vld [vmem:[%s757 + $0xa8] sm:$0xff]
        %v780 = vld [vmem:[%s757 + $0xb0] sm:$0xff]
        %v781 = vld [vmem:[%s757 + $0xb8] sm:$0xff]
        %v782 = vld [vmem:[%s757 + $0xc0] sm:$0xff]
        %v783 = vld [vmem:[%s757 + $0xc8] sm:$0xff]
        %v784 = vld [vmem:[%s757 + $0xd0] sm:$0xff]
        %v785 = vld [vmem:[%s757 + $0xd8] sm:$0xff]
        %v786 = vld [vmem:[%s757 + $0xe0] sm:$0xff]
        %v787 = vld [vmem:[%s757 + $0xe8] sm:$0xff]
        %v788 = vld [vmem:[%s757 + $0xf0] sm:$0xff]
        %v789 = vld [vmem:[%s757 + $0xf8] sm:$0xff]
        %v790 = vld [vmem:[%s757 + $0x100] sm:$0xff]
        %v791 = vld [vmem:[%s757 + $0x108] sm:$0xff]
        %v792 = vld [vmem:[%s757 + $0x110] sm:$0xff]
        %v793 = vld [vmem:[%s757 + $0x118] sm:$0xff]
        %v794 = vld [vmem:[%s757 + $0x120] sm:$0xff]
        %v795 = vld [vmem:[%s757 + $0x128] sm:$0xff]
        %v796 = vld [vmem:[%s757 + $0x130] sm:$0xff]
        %v797 = vld [vmem:[%s757 + $0x138] sm:$0xff]
        %v798 = vld [vmem:[%s757 + $0x140] sm:$0xff]
        %v799 = vld [vmem:[%s757 + $0x148] sm:$0xff]
        %v800 = vld [vmem:[%s757 + $0x150] sm:$0xff]
        %v801 = vld [vmem:[%s757 + $0x158] sm:$0xff]
        %v802 = vld [vmem:[%s757 + $0x160] sm:$0xff]
        %v803 = vld [vmem:[%s757 + $0x168] sm:$0xff]
        %v804 = vld [vmem:[%s757 + $0x170] sm:$0xff]
        %v805 = vld [vmem:[%s757 + $0x178] sm:$0xff]
        %v806 = vld [vmem:[%s757 + $0x180] sm:$0xff]
        %v807 = vld [vmem:[%s757 + $0x188] sm:$0xff]
        %v808 = vld [vmem:[%s757 + $0x190] sm:$0xff]
        %v809 = vld [vmem:[%s757 + $0x198] sm:$0xff]
        %v810 = vld [vmem:[%s757 + $0x1a0] sm:$0xff]
        %v811 = vld [vmem:[%s757 + $0x1a8] sm:$0xff]
        %v812 = vld [vmem:[%s757 + $0x1b0] sm:$0xff]
        %v813 = vld [vmem:[%s757 + $0x1b8] sm:$0xff]
        %v814 = vld [vmem:[%s757 + $0x1c0] sm:$0xff]
        %v815 = vld [vmem:[%s757 + $0x1c8] sm:$0xff]
        %v816 = vld [vmem:[%s757 + $0x1d0] sm:$0xff]
        %v817 = vld [vmem:[%s757 + $0x1d8] sm:$0xff]
        %v818 = vld [vmem:[%s757 + $0x1e0] sm:$0xff]
        %v819 = vld [vmem:[%s757 + $0x1e8] sm:$0xff]
        %v820 = vld [vmem:[%s757 + $0x1f0] sm:$0xff]
        %v821 = vld [vmem:[%s757 + $0x1f8] sm:$0xff]
        %822 = vmatprep.subr.mxu0 %v759
        %823 = vmatpush1.msra.mxu0 %v758
        %824 = vmatprep.subr.mxu0 %v761
        %825 = vmatpush1.msra.mxu0 %v760
        %826 = vmatprep.subr.mxu0 %v763
        %827 = vmatpush1.msra.mxu0 %v762
        %828 = vmatprep.subr.mxu0 %v765
        %829 = vmatpush1.msra.mxu0 %v764
        %830 = vmatprep.subr.mxu0 %v767
        %831 = vmatpush1.msra.mxu0 %v766
        %832 = vmatprep.subr.mxu0 %v769
        %833 = vmatpush1.msra.mxu0 %v768
        %834 = vmatprep.subr.mxu0 %v771
        %835 = vmatpush1.msra.mxu0 %v770
        %836 = vmatprep.subr.mxu0 %v773
        %837 = vmatpush1.msra.mxu0 %v772
        %838 = vmatprep.subr.mxu0 %v775
        %839 = vmatpush1.msra.mxu0 %v774
        %840 = vmatprep.subr.mxu0 %v777
        %841 = vmatpush1.msra.mxu0 %v776
        %842 = vmatprep.subr.mxu0 %v779
        %843 = vmatpush1.msra.mxu0 %v778
        %844 = vmatprep.subr.mxu0 %v781
        %845 = vmatpush1.msra.mxu0 %v780
        %846 = vmatprep.subr.mxu0 %v783
        %847 = vmatpush1.msra.mxu0 %v782
        %848 = vmatprep.subr.mxu0 %v785
        %849 = vmatpush1.msra.mxu0 %v784
        %850 = vmatprep.subr.mxu0 %v787
        %851 = vmatpush1.msra.mxu0 %v786
        %852 = vmatprep.subr.mxu0 %v789
        %853 = vmatpush1.msra.mxu0 %v788
        %854 = vmatprep.subr.mxu0 %v791
        %855 = vmatpush1.msra.mxu0 %v790
        %856 = vmatprep.subr.mxu0 %v793
        %857 = vmatpush1.msra.mxu0 %v792
        %858 = vmatprep.subr.mxu0 %v795
        %859 = vmatpush1.msra.mxu0 %v794
        %860 = vmatprep.subr.mxu0 %v797
        %861 = vmatpush1.msra.mxu0 %v796
        %862 = vmatprep.subr.mxu0 %v799
        %863 = vmatpush1.msra.mxu0 %v798
        %864 = vmatprep.subr.mxu0 %v801
        %865 = vmatpush1.msra.mxu0 %v800
        %866 = vmatprep.subr.mxu0 %v803
        %867 = vmatpush1.msra.mxu0 %v802
        %868 = vmatprep.subr.mxu0 %v805
        %869 = vmatpush1.msra.mxu0 %v804
        %870 = vmatprep.subr.mxu0 %v807
        %871 = vmatpush1.msra.mxu0 %v806
        %872 = vmatprep.subr.mxu0 %v809
        %873 = vmatpush1.msra.mxu0 %v808
        %874 = vmatprep.subr.mxu0 %v811
        %875 = vmatpush1.msra.mxu0 %v810
        %876 = vmatprep.subr.mxu0 %v813
        %877 = vmatpush1.msra.mxu0 %v812
        %878 = vmatprep.subr.mxu0 %v815
        %879 = vmatpush1.msra.mxu0 %v814
        %880 = vmatprep.subr.mxu0 %v817
        %881 = vmatpush1.msra.mxu0 %v816
        %882 = vmatprep.subr.mxu0 %v819
        %883 = vmatpush1.msra.mxu0 %v818
        %884 = vmatprep.subr.mxu0 %v821
        %885 = vmatpush1.msra.mxu0 %v820
        %886 = vmatprep.mubr.f32.mxu0 %v684
        %887 = vmatmul.mubr.f32.gmra.mrb[0].mxu0 %v618
        %v888 = vpop.f32.mrb[0].mxu0
        %v889 = vadd.f32 0.0, %v888
        %v890 = vpop.f32.mrb[0].mxu0
        %v891 = vadd.f32 0.0, %v890
        %892 = vdwg.mxu0
        %v893 = vld [vmem:[%s7] sm:$0xff]
        %s894 = scalar_lea.vmem %s7, 8
        %v895 = vld [vmem:[%s894] sm:$0xff]
        %vm896 = vcmask 31744
        %v898 = vsel %vm896, %v895, 0
        %vm900 = vcmask 1043456
        %v901 = vsel %vm900, %v618, 0
        %v903 = vsel %vm900, %v684, 0
        %905 = vmatprep.subr.mxu0 %v903
        %906 = vmatpush1.msra.mxu0 %v901
        %907 = vmatprep.subr.mxu0 0.0
        %908 = vmatpush1.msra.mxu0 0.0
        %909 = vmatprep.subr.mxu0 0.0
        %910 = vmatpush1.msra.mxu0 0.0
        %911 = vmatprep.subr.mxu0 0.0
        %912 = vmatpush1.msra.mxu0 0.0
        %913 = vmatprep.subr.mxu0 0.0
        %914 = vmatpush1.msra.mxu0 0.0
        %915 = vmatprep.subr.mxu0 0.0
        %916 = vmatpush1.msra.mxu0 0.0
        %917 = vmatprep.subr.mxu0 0.0
        %918 = vmatpush1.msra.mxu0 0.0
        %919 = vmatprep.subr.mxu0 0.0
        %920 = vmatpush1.msra.mxu0 0.0
        %921 = vmatprep.subr.mxu0 0.0
        %922 = vmatpush1.msra.mxu0 0.0
        %923 = vmatprep.subr.mxu0 0.0
        %924 = vmatpush1.msra.mxu0 0.0
        %925 = vmatprep.subr.mxu0 0.0
        %926 = vmatpush1.msra.mxu0 0.0
        %927 = vmatprep.subr.mxu0 0.0
        %928 = vmatpush1.msra.mxu0 0.0
        %929 = vmatprep.subr.mxu0 0.0
        %930 = vmatpush1.msra.mxu0 0.0
        %931 = vmatprep.subr.mxu0 0.0
        %932 = vmatpush1.msra.mxu0 0.0
        %933 = vmatprep.subr.mxu0 0.0
        %934 = vmatpush1.msra.mxu0 0.0
        %935 = vmatprep.subr.mxu0 0.0
        %936 = vmatpush1.msra.mxu0 0.0
        %937 = vmatprep.subr.mxu0 0.0
        %938 = vmatpush1.msra.mxu0 0.0
        %939 = vmatprep.subr.mxu0 0.0
        %940 = vmatpush1.msra.mxu0 0.0
        %941 = vmatprep.subr.mxu0 0.0
        %942 = vmatpush1.msra.mxu0 0.0
        %943 = vmatprep.subr.mxu0 0.0
        %944 = vmatpush1.msra.mxu0 0.0
        %945 = vmatprep.subr.mxu0 0.0
        %946 = vmatpush1.msra.mxu0 0.0
        %947 = vmatprep.subr.mxu0 0.0
        %948 = vmatpush1.msra.mxu0 0.0
        %949 = vmatprep.subr.mxu0 0.0
        %950 = vmatpush1.msra.mxu0 0.0
        %951 = vmatprep.subr.mxu0 0.0
        %952 = vmatpush1.msra.mxu0 0.0
        %953 = vmatprep.subr.mxu0 0.0
        %954 = vmatpush1.msra.mxu0 0.0
        %955 = vmatprep.subr.mxu0 0.0
        %956 = vmatpush1.msra.mxu0 0.0
        %957 = vmatprep.subr.mxu0 0.0
        %958 = vmatpush1.msra.mxu0 0.0
        %959 = vmatprep.subr.mxu0 0.0
        %960 = vmatpush1.msra.mxu0 0.0
        %961 = vmatprep.subr.mxu0 0.0
        %962 = vmatpush1.msra.mxu0 0.0
        %963 = vmatprep.subr.mxu0 0.0
        %964 = vmatpush1.msra.mxu0 0.0
        %965 = vmatprep.subr.mxu0 0.0
        %966 = vmatpush1.msra.mxu0 0.0
        %967 = vmatprep.subr.mxu0 0.0
        %968 = vmatpush1.msra.mxu0 0.0
        %969 = vmatprep.mubr.f32.mxu0 0.0
        %970 = vmatmul.mubr.f32.gmra.mrb[0].mxu0 %v898
        %v971 = vpop.f32.mrb[0].mxu0
        %v972 = vadd.f32 0.0, %v971
        %v973 = vpop.f32.mrb[0].mxu0
        %v974 = vadd.f32 0.0, %v973
        %975 = vdwg.mxu0
        %v977 = vsel %vm896, %v893, 0
        %v980 = vsel %vm900, %v753, 0
        %v983 = vsel %vm900, %v755, 0
        %985 = vmatprep.subr.mxu0 %v983
        %986 = vmatpush1.msra.mxu0 %v980
        %987 = vmatprep.subr.mxu0 0.0
        %988 = vmatpush1.msra.mxu0 0.0
        %989 = vmatprep.subr.mxu0 0.0
        %990 = vmatpush1.msra.mxu0 0.0
        %991 = vmatprep.subr.mxu0 0.0
        %992 = vmatpush1.msra.mxu0 0.0
        %993 = vmatprep.subr.mxu0 0.0
        %994 = vmatpush1.msra.mxu0 0.0
        %995 = vmatprep.subr.mxu0 0.0
        %996 = vmatpush1.msra.mxu0 0.0
        %997 = vmatprep.subr.mxu0 0.0
        %998 = vmatpush1.msra.mxu0 0.0
        %999 = vmatprep.subr.mxu0 0.0
        %1000 = vmatpush1.msra.mxu0 0.0
        %1001 = vmatprep.subr.mxu0 0.0
        %1002 = vmatpush1.msra.mxu0 0.0
        %1003 = vmatprep.subr.mxu0 0.0
        %1004 = vmatpush1.msra.mxu0 0.0
        %1005 = vmatprep.subr.mxu0 0.0
        %1006 = vmatpush1.msra.mxu0 0.0
        %1007 = vmatprep.subr.mxu0 0.0
        %1008 = vmatpush1.msra.mxu0 0.0
        %1009 = vmatprep.subr.mxu0 0.0
        %1010 = vmatpush1.msra.mxu0 0.0
        %1011 = vmatprep.subr.mxu0 0.0
        %1012 = vmatpush1.msra.mxu0 0.0
        %1013 = vmatprep.subr.mxu0 0.0
        %1014 = vmatpush1.msra.mxu0 0.0
        %1015 = vmatprep.subr.mxu0 0.0
        %1016 = vmatpush1.msra.mxu0 0.0
        %1017 = vmatprep.subr.mxu0 0.0
        %1018 = vmatpush1.msra.mxu0 0.0
        %1019 = vmatprep.subr.mxu0 0.0
        %1020 = vmatpush1.msra.mxu0 0.0
        %1021 = vmatprep.subr.mxu0 0.0
        %1022 = vmatpush1.msra.mxu0 0.0
        %1023 = vmatprep.subr.mxu0 0.0
        %1024 = vmatpush1.msra.mxu0 0.0
        %1025 = vmatprep.subr.mxu0 0.0
        %1026 = vmatpush1.msra.mxu0 0.0
        %1027 = vmatprep.subr.mxu0 0.0
        %1028 = vmatpush1.msra.mxu0 0.0
        %1029 = vmatprep.subr.mxu0 0.0
        %1030 = vmatpush1.msra.mxu0 0.0
        %1031 = vmatprep.subr.mxu0 0.0
        %1032 = vmatpush1.msra.mxu0 0.0
        %1033 = vmatprep.subr.mxu0 0.0
        %1034 = vmatpush1.msra.mxu0 0.0
        %1035 = vmatprep.subr.mxu0 0.0
        %1036 = vmatpush1.msra.mxu0 0.0
        %1037 = vmatprep.subr.mxu0 0.0
        %1038 = vmatpush1.msra.mxu0 0.0
        %1039 = vmatprep.subr.mxu0 0.0
        %1040 = vmatpush1.msra.mxu0 0.0
        %1041 = vmatprep.subr.mxu0 0.0
        %1042 = vmatpush1.msra.mxu0 0.0
        %1043 = vmatprep.subr.mxu0 0.0
        %1044 = vmatpush1.msra.mxu0 0.0
        %1045 = vmatprep.subr.mxu0 0.0
        %1046 = vmatpush1.msra.mxu0 0.0
        %1047 = vmatprep.subr.mxu0 0.0
        %1048 = vmatpush1.msra.mxu0 0.0
        %1049 = vmatprep.mubr.f32.mxu0 0.0
        %1050 = vmatmul.mubr.f32.gmra.mrb[0].mxu0 %v977
        %v1051 = vpop.f32.mrb[0].mxu0
        %v1052 = vadd.f32 %v972, %v1051
        %v1053 = vpop.f32.mrb[0].mxu0
        %v1054 = vadd.f32 %v974, %v1053
        %1055 = vdwg.mxu0
        %s1056 = scalar_lea.vmem %s7, 16
        %v1057 = vld [vmem:[%s1056] sm:$0xff]
        %v1059 = vsel %vm896, %v1057, 0
        %v1062 = vsel %vm900, %v889, 0
        %v1065 = vsel %vm900, %v891, 0
        %1067 = vmatprep.subr.mxu0 %v1065
        %1068 = vmatpush1.msra.mxu0 %v1062
        %1069 = vmatprep.subr.mxu0 0.0
        %1070 = vmatpush1.msra.mxu0 0.0
        %1071 = vmatprep.subr.mxu0 0.0
        %1072 = vmatpush1.msra.mxu0 0.0
        %1073 = vmatprep.subr.mxu0 0.0
        %1074 = vmatpush1.msra.mxu0 0.0
        %1075 = vmatprep.subr.mxu0 0.0
        %1076 = vmatpush1.msra.mxu0 0.0
        %1077 = vmatprep.subr.mxu0 0.0
        %1078 = vmatpush1.msra.mxu0 0.0
        %1079 = vmatprep.subr.mxu0 0.0
        %1080 = vmatpush1.msra.mxu0 0.0
        %1081 = vmatprep.subr.mxu0 0.0
        %1082 = vmatpush1.msra.mxu0 0.0
        %1083 = vmatprep.subr.mxu0 0.0
        %1084 = vmatpush1.msra.mxu0 0.0
        %1085 = vmatprep.subr.mxu0 0.0
        %1086 = vmatpush1.msra.mxu0 0.0
        %1087 = vmatprep.subr.mxu0 0.0
        %1088 = vmatpush1.msra.mxu0 0.0
        %1089 = vmatprep.subr.mxu0 0.0
        %1090 = vmatpush1.msra.mxu0 0.0
        %1091 = vmatprep.subr.mxu0 0.0
        %1092 = vmatpush1.msra.mxu0 0.0
        %1093 = vmatprep.subr.mxu0 0.0
        %1094 = vmatpush1.msra.mxu0 0.0
        %1095 = vmatprep.subr.mxu0 0.0
        %1096 = vmatpush1.msra.mxu0 0.0
        %1097 = vmatprep.subr.mxu0 0.0
        %1098 = vmatpush1.msra.mxu0 0.0
        %1099 = vmatprep.subr.mxu0 0.0
        %1100 = vmatpush1.msra.mxu0 0.0
        %1101 = vmatprep.subr.mxu0 0.0
        %1102 = vmatpush1.msra.mxu0 0.0
        %1103 = vmatprep.subr.mxu0 0.0
        %1104 = vmatpush1.msra.mxu0 0.0
        %1105 = vmatprep.subr.mxu0 0.0
        %1106 = vmatpush1.msra.mxu0 0.0
        %1107 = vmatprep.subr.mxu0 0.0
        %1108 = vmatpush1.msra.mxu0 0.0
        %1109 = vmatprep.subr.mxu0 0.0
        %1110 = vmatpush1.msra.mxu0 0.0
        %1111 = vmatprep.subr.mxu0 0.0
        %1112 = vmatpush1.msra.mxu0 0.0
        %1113 = vmatprep.subr.mxu0 0.0
        %1114 = vmatpush1.msra.mxu0 0.0
        %1115 = vmatprep.subr.mxu0 0.0
        %1116 = vmatpush1.msra.mxu0 0.0
        %1117 = vmatprep.subr.mxu0 0.0
        %1118 = vmatpush1.msra.mxu0 0.0
        %1119 = vmatprep.subr.mxu0 0.0
        %1120 = vmatpush1.msra.mxu0 0.0
        %1121 = vmatprep.subr.mxu0 0.0
        %1122 = vmatpush1.msra.mxu0 0.0
        %1123 = vmatprep.subr.mxu0 0.0
        %1124 = vmatpush1.msra.mxu0 0.0
        %1125 = vmatprep.subr.mxu0 0.0
        %1126 = vmatpush1.msra.mxu0 0.0
        %1127 = vmatprep.subr.mxu0 0.0
        %1128 = vmatpush1.msra.mxu0 0.0
        %1129 = vmatprep.subr.mxu0 0.0
        %1130 = vmatpush1.msra.mxu0 0.0
        %1131 = vmatprep.mubr.f32.mxu0 0.0
        %1132 = vmatmul.mubr.f32.gmra.mrb[0].mxu0 %v1059
        %v1133 = vpop.f32.mrb[0].mxu0
        %v1134 = vadd.f32 0.0, %v1133
        %v1135 = vpop.f32.mrb[0].mxu0
        %v1136 = vadd.f32 0.0, %v1135
        %1137 = vdwg.mxu0
        %v1138 = vadd.f32 %v1052, %v1134
        %v1139 = vadd.f32 %v1054, %v1136
        %s1140 = scalar_lea.vmem [#allocation2], 1024
        %v1141 = vld [vmem:[%s1140] sm:$0xff]
        %v1142 = vld [vmem:[%s1140 + $0x8] sm:$0xff]
        %v1143 = vld [vmem:[%s1140 + $0x10] sm:$0xff]
        %v1144 = vld [vmem:[%s1140 + $0x18] sm:$0xff]
        %v1145 = vld [vmem:[%s1140 + $0x20] sm:$0xff]
        %v1146 = vld [vmem:[%s1140 + $0x28] sm:$0xff]
        %v1147 = vld [vmem:[%s1140 + $0x30] sm:$0xff]
        %v1148 = vld [vmem:[%s1140 + $0x38] sm:$0xff]
        %v1149 = vld [vmem:[%s1140 + $0x40] sm:$0xff]
        %v1150 = vld [vmem:[%s1140 + $0x48] sm:$0xff]
        %v1151 = vld [vmem:[%s1140 + $0x50] sm:$0xff]
        %v1152 = vld [vmem:[%s1140 + $0x58] sm:$0xff]
        %v1153 = vld [vmem:[%s1140 + $0x60] sm:$0xff]
        %v1154 = vld [vmem:[%s1140 + $0x68] sm:$0xff]
        %v1155 = vld [vmem:[%s1140 + $0x70] sm:$0xff]
        %v1156 = vld [vmem:[%s1140 + $0x78] sm:$0xff]
        %v1157 = vld [vmem:[%s1140 + $0x80] sm:$0xff]
        %v1158 = vld [vmem:[%s1140 + $0x88] sm:$0xff]
        %v1159 = vld [vmem:[%s1140 + $0x90] sm:$0xff]
        %v1160 = vld [vmem:[%s1140 + $0x98] sm:$0xff]
        %v1161 = vld [vmem:[%s1140 + $0xa0] sm:$0xff]
        %v1162 = vld [vmem:[%s1140 + $0xa8] sm:$0xff]
        %v1163 = vld [vmem:[%s1140 + $0xb0] sm:$0xff]
        %v1164 = vld [vmem:[%s1140 + $0xb8] sm:$0xff]
        %v1165 = vld [vmem:[%s1140 + $0xc0] sm:$0xff]
        %v1166 = vld [vmem:[%s1140 + $0xc8] sm:$0xff]
        %v1167 = vld [vmem:[%s1140 + $0xd0] sm:$0xff]
        %v1168 = vld [vmem:[%s1140 + $0xd8] sm:$0xff]
        %v1169 = vld [vmem:[%s1140 + $0xe0] sm:$0xff]
        %v1170 = vld [vmem:[%s1140 + $0xe8] sm:$0xff]
        %v1171 = vld [vmem:[%s1140 + $0xf0] sm:$0xff]
        %v1172 = vld [vmem:[%s1140 + $0xf8] sm:$0xff]
        %v1173 = vld [vmem:[%s1140 + $0x100] sm:$0xff]
        %v1174 = vld [vmem:[%s1140 + $0x108] sm:$0xff]
        %v1175 = vld [vmem:[%s1140 + $0x110] sm:$0xff]
        %v1176 = vld [vmem:[%s1140 + $0x118] sm:$0xff]
        %v1177 = vld [vmem:[%s1140 + $0x120] sm:$0xff]
        %v1178 = vld [vmem:[%s1140 + $0x128] sm:$0xff]
        %v1179 = vld [vmem:[%s1140 + $0x130] sm:$0xff]
        %v1180 = vld [vmem:[%s1140 + $0x138] sm:$0xff]
        %v1181 = vld [vmem:[%s1140 + $0x140] sm:$0xff]
        %v1182 = vld [vmem:[%s1140 + $0x148] sm:$0xff]
        %v1183 = vld [vmem:[%s1140 + $0x150] sm:$0xff]
        %v1184 = vld [vmem:[%s1140 + $0x158] sm:$0xff]
        %v1185 = vld [vmem:[%s1140 + $0x160] sm:$0xff]
        %v1186 = vld [vmem:[%s1140 + $0x168] sm:$0xff]
        %v1187 = vld [vmem:[%s1140 + $0x170] sm:$0xff]
        %v1188 = vld [vmem:[%s1140 + $0x178] sm:$0xff]
        %v1189 = vld [vmem:[%s1140 + $0x180] sm:$0xff]
        %v1190 = vld [vmem:[%s1140 + $0x188] sm:$0xff]
        %v1191 = vld [vmem:[%s1140 + $0x190] sm:$0xff]
        %v1192 = vld [vmem:[%s1140 + $0x198] sm:$0xff]
        %v1193 = vld [vmem:[%s1140 + $0x1a0] sm:$0xff]
        %v1194 = vld [vmem:[%s1140 + $0x1a8] sm:$0xff]
        %v1195 = vld [vmem:[%s1140 + $0x1b0] sm:$0xff]
        %v1196 = vld [vmem:[%s1140 + $0x1b8] sm:$0xff]
        %v1197 = vld [vmem:[%s1140 + $0x1c0] sm:$0xff]
        %v1198 = vld [vmem:[%s1140 + $0x1c8] sm:$0xff]
        %v1199 = vld [vmem:[%s1140 + $0x1d0] sm:$0xff]
        %v1200 = vld [vmem:[%s1140 + $0x1d8] sm:$0xff]
        %v1201 = vld [vmem:[%s1140 + $0x1e0] sm:$0xff]
        %v1202 = vld [vmem:[%s1140 + $0x1e8] sm:$0xff]
        %v1203 = vld [vmem:[%s1140 + $0x1f0] sm:$0xff]
        %v1204 = vld [vmem:[%s1140 + $0x1f8] sm:$0xff]
        %s1205 = scalar_lea.vmem %s7, 24
        %v1206 = vld [vmem:[%s1205] sm:$0xff]
        %s1207 = scalar_lea.vmem %s7, 32
        %v1208 = vld [vmem:[%s1207] sm:$0xff]
        %v1210 = vsel %vm896, %v1208, 0
        %1212 = vmatprep.subr.mxu0 %v903
        %1213 = vmatpush1.msra.mxu0 %v901
        %1214 = vmatprep.subr.mxu0 0.0
        %1215 = vmatpush1.msra.mxu0 0.0
        %1216 = vmatprep.subr.mxu0 0.0
        %1217 = vmatpush1.msra.mxu0 0.0
        %1218 = vmatprep.subr.mxu0 0.0
        %1219 = vmatpush1.msra.mxu0 0.0
        %1220 = vmatprep.subr.mxu0 0.0
        %1221 = vmatpush1.msra.mxu0 0.0
        %1222 = vmatprep.subr.mxu0 0.0
        %1223 = vmatpush1.msra.mxu0 0.0
        %1224 = vmatprep.subr.mxu0 0.0
        %1225 = vmatpush1.msra.mxu0 0.0
        %1226 = vmatprep.subr.mxu0 0.0
        %1227 = vmatpush1.msra.mxu0 0.0
        %1228 = vmatprep.subr.mxu0 0.0
        %1229 = vmatpush1.msra.mxu0 0.0
        %1230 = vmatprep.subr.mxu0 0.0
        %1231 = vmatpush1.msra.mxu0 0.0
        %1232 = vmatprep.subr.mxu0 0.0
        %1233 = vmatpush1.msra.mxu0 0.0
        %1234 = vmatprep.subr.mxu0 0.0
        %1235 = vmatpush1.msra.mxu0 0.0
        %1236 = vmatprep.subr.mxu0 0.0
        %1237 = vmatpush1.msra.mxu0 0.0
        %1238 = vmatprep.subr.mxu0 0.0
        %1239 = vmatpush1.msra.mxu0 0.0
        %1240 = vmatprep.subr.mxu0 0.0
        %1241 = vmatpush1.msra.mxu0 0.0
        %1242 = vmatprep.subr.mxu0 0.0
        %1243 = vmatpush1.msra.mxu0 0.0
        %1244 = vmatprep.subr.mxu0 0.0
        %1245 = vmatpush1.msra.mxu0 0.0
        %1246 = vmatprep.subr.mxu0 0.0
        %1247 = vmatpush1.msra.mxu0 0.0
        %1248 = vmatprep.subr.mxu0 0.0
        %1249 = vmatpush1.msra.mxu0 0.0
        %1250 = vmatprep.subr.mxu0 0.0
        %1251 = vmatpush1.msra.mxu0 0.0
        %1252 = vmatprep.subr.mxu0 0.0
        %1253 = vmatpush1.msra.mxu0 0.0
        %1254 = vmatprep.subr.mxu0 0.0
        %1255 = vmatpush1.msra.mxu0 0.0
        %1256 = vmatprep.subr.mxu0 0.0
        %1257 = vmatpush1.msra.mxu0 0.0
        %1258 = vmatprep.subr.mxu0 0.0
        %1259 = vmatpush1.msra.mxu0 0.0
        %1260 = vmatprep.subr.mxu0 0.0
        %1261 = vmatpush1.msra.mxu0 0.0
        %1262 = vmatprep.subr.mxu0 0.0
        %1263 = vmatpush1.msra.mxu0 0.0
        %1264 = vmatprep.subr.mxu0 0.0
        %1265 = vmatpush1.msra.mxu0 0.0
        %1266 = vmatprep.subr.mxu0 0.0
        %1267 = vmatpush1.msra.mxu0 0.0
        %1268 = vmatprep.subr.mxu0 0.0
        %1269 = vmatpush1.msra.mxu0 0.0
        %1270 = vmatprep.subr.mxu0 0.0
        %1271 = vmatpush1.msra.mxu0 0.0
        %1272 = vmatprep.subr.mxu0 0.0
        %1273 = vmatpush1.msra.mxu0 0.0
        %1274 = vmatprep.subr.mxu0 0.0
        %1275 = vmatpush1.msra.mxu0 0.0
        %1276 = vmatprep.mubr.f32.mxu0 0.0
        %1277 = vmatmul.mubr.f32.gmra.mrb[0].mxu0 %v1210
        %v1278 = vpop.f32.mrb[0].mxu0
        %v1279 = vadd.f32 0.0, %v1278
        %v1280 = vpop.f32.mrb[0].mxu0
        %v1281 = vadd.f32 0.0, %v1280
        %1282 = vdwg.mxu0
        %v1284 = vsel %vm896, %v1206, 0
        %1286 = vmatprep.subr.mxu0 %v983
        %1287 = vmatpush1.msra.mxu0 %v980
        %1288 = vmatprep.subr.mxu0 0.0
        %1289 = vmatpush1.msra.mxu0 0.0
        %1290 = vmatprep.subr.mxu0 0.0
        %1291 = vmatpush1.msra.mxu0 0.0
        %1292 = vmatprep.subr.mxu0 0.0
        %1293 = vmatpush1.msra.mxu0 0.0
        %1294 = vmatprep.subr.mxu0 0.0
        %1295 = vmatpush1.msra.mxu0 0.0
        %1296 = vmatprep.subr.mxu0 0.0
        %1297 = vmatpush1.msra.mxu0 0.0
        %1298 = vmatprep.subr.mxu0 0.0
        %1299 = vmatpush1.msra.mxu0 0.0
        %1300 = vmatprep.subr.mxu0 0.0
        %1301 = vmatpush1.msra.mxu0 0.0
        %1302 = vmatprep.subr.mxu0 0.0
        %1303 = vmatpush1.msra.mxu0 0.0
        %1304 = vmatprep.subr.mxu0 0.0
        %1305 = vmatpush1.msra.mxu0 0.0
        %1306 = vmatprep.subr.mxu0 0.0
        %1307 = vmatpush1.msra.mxu0 0.0
        %1308 = vmatprep.subr.mxu0 0.0
        %1309 = vmatpush1.msra.mxu0 0.0
        %1310 = vmatprep.subr.mxu0 0.0
        %1311 = vmatpush1.msra.mxu0 0.0
        %1312 = vmatprep.subr.mxu0 0.0
        %1313 = vmatpush1.msra.mxu0 0.0
        %1314 = vmatprep.subr.mxu0 0.0
        %1315 = vmatpush1.msra.mxu0 0.0
        %1316 = vmatprep.subr.mxu0 0.0
        %1317 = vmatpush1.msra.mxu0 0.0
        %1318 = vmatprep.subr.mxu0 0.0
        %1319 = vmatpush1.msra.mxu0 0.0
        %1320 = vmatprep.subr.mxu0 0.0
        %1321 = vmatpush1.msra.mxu0 0.0
        %1322 = vmatprep.subr.mxu0 0.0
        %1323 = vmatpush1.msra.mxu0 0.0
        %1324 = vmatprep.subr.mxu0 0.0
        %1325 = vmatpush1.msra.mxu0 0.0
        %1326 = vmatprep.subr.mxu0 0.0
        %1327 = vmatpush1.msra.mxu0 0.0
        %1328 = vmatprep.subr.mxu0 0.0
        %1329 = vmatpush1.msra.mxu0 0.0
        %1330 = vmatprep.subr.mxu0 0.0
        %1331 = vmatpush1.msra.mxu0 0.0
        %1332 = vmatprep.subr.mxu0 0.0
        %1333 = vmatpush1.msra.mxu0 0.0
        %1334 = vmatprep.subr.mxu0 0.0
        %1335 = vmatpush1.msra.mxu0 0.0
        %1336 = vmatprep.subr.mxu0 0.0
        %1337 = vmatpush1.msra.mxu0 0.0
        %1338 = vmatprep.subr.mxu0 0.0
        %1339 = vmatpush1.msra.mxu0 0.0
        %1340 = vmatprep.subr.mxu0 0.0
        %1341 = vmatpush1.msra.mxu0 0.0
        %1342 = vmatprep.subr.mxu0 0.0
        %1343 = vmatpush1.msra.mxu0 0.0
        %1344 = vmatprep.subr.mxu0 0.0
        %1345 = vmatpush1.msra.mxu0 0.0
        %1346 = vmatprep.subr.mxu0 0.0
        %1347 = vmatpush1.msra.mxu0 0.0
        %1348 = vmatprep.subr.mxu0 0.0
        %1349 = vmatpush1.msra.mxu0 0.0
        %1350 = vmatprep.mubr.f32.mxu0 0.0
        %1351 = vmatmul.mubr.f32.gmra.mrb[0].mxu0 %v1284
        %v1352 = vpop.f32.mrb[0].mxu0
        %v1353 = vadd.f32 %v1279, %v1352
        %v1354 = vpop.f32.mrb[0].mxu0
        %v1355 = vadd.f32 %v1281, %v1354
        %1356 = vdwg.mxu0
        %s1357 = scalar_lea.vmem %s7, 40
        %v1358 = vld [vmem:[%s1357] sm:$0xff]
        %v1360 = vsel %vm896, %v1358, 0
        %1362 = vmatprep.subr.mxu0 %v1065
        %1363 = vmatpush1.msra.mxu0 %v1062
        %1364 = vmatprep.subr.mxu0 0.0
        %1365 = vmatpush1.msra.mxu0 0.0
        %1366 = vmatprep.subr.mxu0 0.0
        %1367 = vmatpush1.msra.mxu0 0.0
        %1368 = vmatprep.subr.mxu0 0.0
        %1369 = vmatpush1.msra.mxu0 0.0
        %1370 = vmatprep.subr.mxu0 0.0
        %1371 = vmatpush1.msra.mxu0 0.0
        %1372 = vmatprep.subr.mxu0 0.0
        %1373 = vmatpush1.msra.mxu0 0.0
        %1374 = vmatprep.subr.mxu0 0.0
        %1375 = vmatpush1.msra.mxu0 0.0
        %1376 = vmatprep.subr.mxu0 0.0
        %1377 = vmatpush1.msra.mxu0 0.0
        %1378 = vmatprep.subr.mxu0 0.0
        %1379 = vmatpush1.msra.mxu0 0.0
        %1380 = vmatprep.subr.mxu0 0.0
        %1381 = vmatpush1.msra.mxu0 0.0
        %1382 = vmatprep.subr.mxu0 0.0
        %1383 = vmatpush1.msra.mxu0 0.0
        %1384 = vmatprep.subr.mxu0 0.0
        %1385 = vmatpush1.msra.mxu0 0.0
        %1386 = vmatprep.subr.mxu0 0.0
        %1387 = vmatpush1.msra.mxu0 0.0
        %1388 = vmatprep.subr.mxu0 0.0
        %1389 = vmatpush1.msra.mxu0 0.0
        %1390 = vmatprep.subr.mxu0 0.0
        %1391 = vmatpush1.msra.mxu0 0.0
        %1392 = vmatprep.subr.mxu0 0.0
        %1393 = vmatpush1.msra.mxu0 0.0
        %1394 = vmatprep.subr.mxu0 0.0
        %1395 = vmatpush1.msra.mxu0 0.0
        %1396 = vmatprep.subr.mxu0 0.0
        %1397 = vmatpush1.msra.mxu0 0.0
        %1398 = vmatprep.subr.mxu0 0.0
        %1399 = vmatpush1.msra.mxu0 0.0
        %1400 = vmatprep.subr.mxu0 0.0
        %1401 = vmatpush1.msra.mxu0 0.0
        %1402 = vmatprep.subr.mxu0 0.0
        %1403 = vmatpush1.msra.mxu0 0.0
        %1404 = vmatprep.subr.mxu0 0.0
        %1405 = vmatpush1.msra.mxu0 0.0
        %1406 = vmatprep.subr.mxu0 0.0
        %1407 = vmatpush1.msra.mxu0 0.0
        %1408 = vmatprep.subr.mxu0 0.0
        %1409 = vmatpush1.msra.mxu0 0.0
        %1410 = vmatprep.subr.mxu0 0.0
        %1411 = vmatpush1.msra.mxu0 0.0
        %1412 = vmatprep.subr.mxu0 0.0
        %1413 = vmatpush1.msra.mxu0 0.0
        %1414 = vmatprep.subr.mxu0 0.0
        %1415 = vmatpush1.msra.mxu0 0.0
        %1416 = vmatprep.subr.mxu0 0.0
        %1417 = vmatpush1.msra.mxu0 0.0
        %1418 = vmatprep.subr.mxu0 0.0
        %1419 = vmatpush1.msra.mxu0 0.0
        %1420 = vmatprep.subr.mxu0 0.0
        %1421 = vmatpush1.msra.mxu0 0.0
        %1422 = vmatprep.subr.mxu0 0.0
        %1423 = vmatpush1.msra.mxu0 0.0
        %1424 = vmatprep.subr.mxu0 0.0
        %1425 = vmatpush1.msra.mxu0 0.0
        %1426 = vmatprep.mubr.f32.mxu0 0.0
        %1427 = vmatmul.mubr.f32.gmra.mrb[0].mxu0 %v1360
        %v1428 = vpop.f32.mrb[0].mxu0
        %v1429 = vadd.f32 0.0, %v1428
        %v1430 = vpop.f32.mrb[0].mxu0
        %v1431 = vadd.f32 0.0, %v1430
        %1432 = vdwg.mxu0
        %v1433 = vadd.f32 %v1353, %v1429
        %v1434 = vadd.f32 %v1355, %v1431
        %1435 = vmatprep.subr.mxu0 %v1142
        %1436 = vmatpush1.msra.mxu0 %v1141
        %1437 = vmatprep.subr.mxu0 %v1144
        %1438 = vmatpush1.msra.mxu0 %v1143
        %1439 = vmatprep.subr.mxu0 %v1146
        %1440 = vmatpush1.msra.mxu0 %v1145
        %1441 = vmatprep.subr.mxu0 %v1148
        %1442 = vmatpush1.msra.mxu0 %v1147
        %1443 = vmatprep.subr.mxu0 %v1150
        %1444 = vmatpush1.msra.mxu0 %v1149
        %1445 = vmatprep.subr.mxu0 %v1152
        %1446 = vmatpush1.msra.mxu0 %v1151
        %1447 = vmatprep.subr.mxu0 %v1154
        %1448 = vmatpush1.msra.mxu0 %v1153
        %1449 = vmatprep.subr.mxu0 %v1156
        %1450 = vmatpush1.msra.mxu0 %v1155
        %1451 = vmatprep.subr.mxu0 %v1158
        %1452 = vmatpush1.msra.mxu0 %v1157
        %1453 = vmatprep.subr.mxu0 %v1160
        %1454 = vmatpush1.msra.mxu0 %v1159
        %1455 = vmatprep.subr.mxu0 %v1162
        %1456 = vmatpush1.msra.mxu0 %v1161
        %1457 = vmatprep.subr.mxu0 %v1164
        %1458 = vmatpush1.msra.mxu0 %v1163
        %1459 = vmatprep.subr.mxu0 %v1166
        %1460 = vmatpush1.msra.mxu0 %v1165
        %1461 = vmatprep.subr.mxu0 %v1168
        %1462 = vmatpush1.msra.mxu0 %v1167
        %1463 = vmatprep.subr.mxu0 %v1170
        %1464 = vmatpush1.msra.mxu0 %v1169
        %1465 = vmatprep.subr.mxu0 %v1172
        %1466 = vmatpush1.msra.mxu0 %v1171
        %1467 = vmatprep.subr.mxu0 %v1174
        %1468 = vmatpush1.msra.mxu0 %v1173
        %1469 = vmatprep.subr.mxu0 %v1176
        %1470 = vmatpush1.msra.mxu0 %v1175
        %1471 = vmatprep.subr.mxu0 %v1178
        %1472 = vmatpush1.msra.mxu0 %v1177
        %1473 = vmatprep.subr.mxu0 %v1180
        %1474 = vmatpush1.msra.mxu0 %v1179
        %1475 = vmatprep.subr.mxu0 %v1182
        %1476 = vmatpush1.msra.mxu0 %v1181
        %1477 = vmatprep.subr.mxu0 %v1184
        %1478 = vmatpush1.msra.mxu0 %v1183
        %1479 = vmatprep.subr.mxu0 %v1186
        %1480 = vmatpush1.msra.mxu0 %v1185
        %1481 = vmatprep.subr.mxu0 %v1188
        %1482 = vmatpush1.msra.mxu0 %v1187
        %1483 = vmatprep.subr.mxu0 %v1190
        %1484 = vmatpush1.msra.mxu0 %v1189
        %1485 = vmatprep.subr.mxu0 %v1192
        %1486 = vmatpush1.msra.mxu0 %v1191
        %1487 = vmatprep.subr.mxu0 %v1194
        %1488 = vmatpush1.msra.mxu0 %v1193
        %1489 = vmatprep.subr.mxu0 %v1196
        %1490 = vmatpush1.msra.mxu0 %v1195
        %1491 = vmatprep.subr.mxu0 %v1198
        %1492 = vmatpush1.msra.mxu0 %v1197
        %1493 = vmatprep.subr.mxu0 %v1200
        %1494 = vmatpush1.msra.mxu0 %v1199
        %1495 = vmatprep.subr.mxu0 %v1202
        %1496 = vmatpush1.msra.mxu0 %v1201
        %1497 = vmatprep.subr.mxu0 %v1204
        %1498 = vmatpush1.msra.mxu0 %v1203
        %1499 = vmatprep.mubr.f32.mxu0 %v1139
        %1500 = vmatmul.mubr.f32.gmra.mrb[0].mxu0 %v1138
        %v1501 = vpop.f32.mrb[0].mxu0
        %v1502 = vadd.f32 %v1433, %v1501
        %v1503 = vpop.f32.mrb[0].mxu0
        %v1504 = vadd.f32 %v1434, %v1503
        %1505 = vdwg.mxu0
        %s1506 = scalar_lea.vmem %s7, 48
        %v1507 = vld [vmem:[%s1506] sm:$0xff]
        %s1508 = scalar_lea.vmem %s7, 56
        %v1509 = vld [vmem:[%s1508] sm:$0xff]
        %v1511 = vsel %vm896, %v1509, 0
        %1513 = vmatprep.subr.mxu0 %v903
        %1514 = vmatpush1.msra.mxu0 %v901
        %1515 = vmatprep.subr.mxu0 0.0
        %1516 = vmatpush1.msra.mxu0 0.0
        %1517 = vmatprep.subr.mxu0 0.0
        %1518 = vmatpush1.msra.mxu0 0.0
        %1519 = vmatprep.subr.mxu0 0.0
        %1520 = vmatpush1.msra.mxu0 0.0
        %1521 = vmatprep.subr.mxu0 0.0
        %1522 = vmatpush1.msra.mxu0 0.0
        %1523 = vmatprep.subr.mxu0 0.0
        %1524 = vmatpush1.msra.mxu0 0.0
        %1525 = vmatprep.subr.mxu0 0.0
        %1526 = vmatpush1.msra.mxu0 0.0
        %1527 = vmatprep.subr.mxu0 0.0
        %1528 = vmatpush1.msra.mxu0 0.0
        %1529 = vmatprep.subr.mxu0 0.0
        %1530 = vmatpush1.msra.mxu0 0.0
        %1531 = vmatprep.subr.mxu0 0.0
        %1532 = vmatpush1.msra.mxu0 0.0
        %1533 = vmatprep.subr.mxu0 0.0
        %1534 = vmatpush1.msra.mxu0 0.0
        %1535 = vmatprep.subr.mxu0 0.0
        %1536 = vmatpush1.msra.mxu0 0.0
        %1537 = vmatprep.subr.mxu0 0.0
        %1538 = vmatpush1.msra.mxu0 0.0
        %1539 = vmatprep.subr.mxu0 0.0
        %1540 = vmatpush1.msra.mxu0 0.0
        %1541 = vmatprep.subr.mxu0 0.0
        %1542 = vmatpush1.msra.mxu0 0.0
        %1543 = vmatprep.subr.mxu0 0.0
        %1544 = vmatpush1.msra.mxu0 0.0
        %1545 = vmatprep.subr.mxu0 0.0
        %1546 = vmatpush1.msra.mxu0 0.0
        %1547 = vmatprep.subr.mxu0 0.0
        %1548 = vmatpush1.msra.mxu0 0.0
        %1549 = vmatprep.subr.mxu0 0.0
        %1550 = vmatpush1.msra.mxu0 0.0
        %1551 = vmatprep.subr.mxu0 0.0
        %1552 = vmatpush1.msra.mxu0 0.0
        %1553 = vmatprep.subr.mxu0 0.0
        %1554 = vmatpush1.msra.mxu0 0.0
        %1555 = vmatprep.subr.mxu0 0.0
        %1556 = vmatpush1.msra.mxu0 0.0
        %1557 = vmatprep.subr.mxu0 0.0
        %1558 = vmatpush1.msra.mxu0 0.0
        %1559 = vmatprep.subr.mxu0 0.0
        %1560 = vmatpush1.msra.mxu0 0.0
        %1561 = vmatprep.subr.mxu0 0.0
        %1562 = vmatpush1.msra.mxu0 0.0
        %1563 = vmatprep.subr.mxu0 0.0
        %1564 = vmatpush1.msra.mxu0 0.0
        %1565 = vmatprep.subr.mxu0 0.0
        %1566 = vmatpush1.msra.mxu0 0.0
        %1567 = vmatprep.subr.mxu0 0.0
        %1568 = vmatpush1.msra.mxu0 0.0
        %1569 = vmatprep.subr.mxu0 0.0
        %1570 = vmatpush1.msra.mxu0 0.0
        %1571 = vmatprep.subr.mxu0 0.0
        %1572 = vmatpush1.msra.mxu0 0.0
        %1573 = vmatprep.subr.mxu0 0.0
        %1574 = vmatpush1.msra.mxu0 0.0
        %1575 = vmatprep.subr.mxu0 0.0
        %1576 = vmatpush1.msra.mxu0 0.0
        %1577 = vmatprep.mubr.f32.mxu0 0.0
        %1578 = vmatmul.mubr.f32.gmra.mrb[0].mxu0 %v1511
        %v1579 = vpop.f32.mrb[0].mxu0
        %v1580 = vadd.f32 0.0, %v1579
        %v1581 = vpop.f32.mrb[0].mxu0
        %v1582 = vadd.f32 0.0, %v1581
        %1583 = vdwg.mxu0
        %v1585 = vsel %vm896, %v1507, 0
        %1587 = vmatprep.subr.mxu0 %v983
        %1588 = vmatpush1.msra.mxu0 %v980
        %1589 = vmatprep.subr.mxu0 0.0
        %1590 = vmatpush1.msra.mxu0 0.0
        %1591 = vmatprep.subr.mxu0 0.0
        %1592 = vmatpush1.msra.mxu0 0.0
        %1593 = vmatprep.subr.mxu0 0.0
        %1594 = vmatpush1.msra.mxu0 0.0
        %1595 = vmatprep.subr.mxu0 0.0
        %1596 = vmatpush1.msra.mxu0 0.0
        %1597 = vmatprep.subr.mxu0 0.0
        %1598 = vmatpush1.msra.mxu0 0.0
        %1599 = vmatprep.subr.mxu0 0.0
        %1600 = vmatpush1.msra.mxu0 0.0
        %1601 = vmatprep.subr.mxu0 0.0
        %1602 = vmatpush1.msra.mxu0 0.0
        %1603 = vmatprep.subr.mxu0 0.0
        %1604 = vmatpush1.msra.mxu0 0.0
        %1605 = vmatprep.subr.mxu0 0.0
        %1606 = vmatpush1.msra.mxu0 0.0
        %1607 = vmatprep.subr.mxu0 0.0
        %1608 = vmatpush1.msra.mxu0 0.0
        %1609 = vmatprep.subr.mxu0 0.0
        %1610 = vmatpush1.msra.mxu0 0.0
        %1611 = vmatprep.subr.mxu0 0.0
        %1612 = vmatpush1.msra.mxu0 0.0
        %1613 = vmatprep.subr.mxu0 0.0
        %1614 = vmatpush1.msra.mxu0 0.0
        %1615 = vmatprep.subr.mxu0 0.0
        %1616 = vmatpush1.msra.mxu0 0.0
        %1617 = vmatprep.subr.mxu0 0.0
        %1618 = vmatpush1.msra.mxu0 0.0
        %1619 = vmatprep.subr.mxu0 0.0
        %1620 = vmatpush1.msra.mxu0 0.0
        %1621 = vmatprep.subr.mxu0 0.0
        %1622 = vmatpush1.msra.mxu0 0.0
        %1623 = vmatprep.subr.mxu0 0.0
        %1624 = vmatpush1.msra.mxu0 0.0
        %1625 = vmatprep.subr.mxu0 0.0
        %1626 = vmatpush1.msra.mxu0 0.0
        %1627 = vmatprep.subr.mxu0 0.0
        %1628 = vmatpush1.msra.mxu0 0.0
        %1629 = vmatprep.subr.mxu0 0.0
        %1630 = vmatpush1.msra.mxu0 0.0
        %1631 = vmatprep.subr.mxu0 0.0
        %1632 = vmatpush1.msra.mxu0 0.0
        %1633 = vmatprep.subr.mxu0 0.0
        %1634 = vmatpush1.msra.mxu0 0.0
        %1635 = vmatprep.subr.mxu0 0.0
        %1636 = vmatpush1.msra.mxu0 0.0
        %1637 = vmatprep.subr.mxu0 0.0
        %1638 = vmatpush1.msra.mxu0 0.0
        %1639 = vmatprep.subr.mxu0 0.0
        %1640 = vmatpush1.msra.mxu0 0.0
        %1641 = vmatprep.subr.mxu0 0.0
        %1642 = vmatpush1.msra.mxu0 0.0
        %1643 = vmatprep.subr.mxu0 0.0
        %1644 = vmatpush1.msra.mxu0 0.0
        %1645 = vmatprep.subr.mxu0 0.0
        %1646 = vmatpush1.msra.mxu0 0.0
        %1647 = vmatprep.subr.mxu0 0.0
        %1648 = vmatpush1.msra.mxu0 0.0
        %1649 = vmatprep.subr.mxu0 0.0
        %1650 = vmatpush1.msra.mxu0 0.0
        %1651 = vmatprep.mubr.f32.mxu0 0.0
        %1652 = vmatmul.mubr.f32.gmra.mrb[0].mxu0 %v1585
        %v1653 = vpop.f32.mrb[0].mxu0
        %v1654 = vadd.f32 %v1580, %v1653
        %v1655 = vpop.f32.mrb[0].mxu0
        %v1656 = vadd.f32 %v1582, %v1655
        %1657 = vdwg.mxu0
        %s1658 = scalar_lea.vmem %s7, 64
        %v1659 = vld [vmem:[%s1658] sm:$0xff]
        %v1661 = vsel %vm896, %v1659, 0
        %1663 = vmatprep.subr.mxu0 %v1065
        %1664 = vmatpush1.msra.mxu0 %v1062
        %1665 = vmatprep.subr.mxu0 0.0
        %1666 = vmatpush1.msra.mxu0 0.0
        %1667 = vmatprep.subr.mxu0 0.0
        %1668 = vmatpush1.msra.mxu0 0.0
        %1669 = vmatprep.subr.mxu0 0.0
        %1670 = vmatpush1.msra.mxu0 0.0
        %1671 = vmatprep.subr.mxu0 0.0
        %1672 = vmatpush1.msra.mxu0 0.0
        %1673 = vmatprep.subr.mxu0 0.0
        %1674 = vmatpush1.msra.mxu0 0.0
        %1675 = vmatprep.subr.mxu0 0.0
        %1676 = vmatpush1.msra.mxu0 0.0
        %1677 = vmatprep.subr.mxu0 0.0
        %1678 = vmatpush1.msra.mxu0 0.0
        %1679 = vmatprep.subr.mxu0 0.0
        %1680 = vmatpush1.msra.mxu0 0.0
        %1681 = vmatprep.subr.mxu0 0.0
        %1682 = vmatpush1.msra.mxu0 0.0
        %1683 = vmatprep.subr.mxu0 0.0
        %1684 = vmatpush1.msra.mxu0 0.0
        %1685 = vmatprep.subr.mxu0 0.0
        %1686 = vmatpush1.msra.mxu0 0.0
        %1687 = vmatprep.subr.mxu0 0.0
        %1688 = vmatpush1.msra.mxu0 0.0
        %1689 = vmatprep.subr.mxu0 0.0
        %1690 = vmatpush1.msra.mxu0 0.0
        %1691 = vmatprep.subr.mxu0 0.0
        %1692 = vmatpush1.msra.mxu0 0.0
        %1693 = vmatprep.subr.mxu0 0.0
        %1694 = vmatpush1.msra.mxu0 0.0
        %1695 = vmatprep.subr.mxu0 0.0
        %1696 = vmatpush1.msra.mxu0 0.0
        %1697 = vmatprep.subr.mxu0 0.0
        %1698 = vmatpush1.msra.mxu0 0.0
        %1699 = vmatprep.subr.mxu0 0.0
        %1700 = vmatpush1.msra.mxu0 0.0
        %1701 = vmatprep.subr.mxu0 0.0
        %1702 = vmatpush1.msra.mxu0 0.0
        %1703 = vmatprep.subr.mxu0 0.0
        %1704 = vmatpush1.msra.mxu0 0.0
        %1705 = vmatprep.subr.mxu0 0.0
        %1706 = vmatpush1.msra.mxu0 0.0
        %1707 = vmatprep.subr.mxu0 0.0
        %1708 = vmatpush1.msra.mxu0 0.0
        %1709 = vmatprep.subr.mxu0 0.0
        %1710 = vmatpush1.msra.mxu0 0.0
        %1711 = vmatprep.subr.mxu0 0.0
        %1712 = vmatpush1.msra.mxu0 0.0
        %1713 = vmatprep.subr.mxu0 0.0
        %1714 = vmatpush1.msra.mxu0 0.0
        %1715 = vmatprep.subr.mxu0 0.0
        %1716 = vmatpush1.msra.mxu0 0.0
        %1717 = vmatprep.subr.mxu0 0.0
        %1718 = vmatpush1.msra.mxu0 0.0
        %1719 = vmatprep.subr.mxu0 0.0
        %1720 = vmatpush1.msra.mxu0 0.0
        %1721 = vmatprep.subr.mxu0 0.0
        %1722 = vmatpush1.msra.mxu0 0.0
        %1723 = vmatprep.subr.mxu0 0.0
        %1724 = vmatpush1.msra.mxu0 0.0
        %1725 = vmatprep.subr.mxu0 0.0
        %1726 = vmatpush1.msra.mxu0 0.0
        %1727 = vmatprep.mubr.f32.mxu0 0.0
        %1728 = vmatmul.mubr.f32.gmra.mrb[0].mxu0 %v1661
        %v1729 = vpop.f32.mrb[0].mxu0
        %v1730 = vadd.f32 0.0, %v1729
        %v1731 = vpop.f32.mrb[0].mxu0
        %v1732 = vadd.f32 0.0, %v1731
        %1733 = vdwg.mxu0
        %v1734 = vadd.f32 %v1654, %v1730
        %v1735 = vadd.f32 %v1656, %v1732
        %s1736 = scalar_lea.vmem [#allocation2], 1536
        %v1737 = vld [vmem:[%s1736] sm:$0xff]
        %v1738 = vld [vmem:[%s1736 + $0x8] sm:$0xff]
        %v1739 = vld [vmem:[%s1736 + $0x10] sm:$0xff]
        %v1740 = vld [vmem:[%s1736 + $0x18] sm:$0xff]
        %v1741 = vld [vmem:[%s1736 + $0x20] sm:$0xff]
        %v1742 = vld [vmem:[%s1736 + $0x28] sm:$0xff]
        %v1743 = vld [vmem:[%s1736 + $0x30] sm:$0xff]
        %v1744 = vld [vmem:[%s1736 + $0x38] sm:$0xff]
        %v1745 = vld [vmem:[%s1736 + $0x40] sm:$0xff]
        %v1746 = vld [vmem:[%s1736 + $0x48] sm:$0xff]
        %v1747 = vld [vmem:[%s1736 + $0x50] sm:$0xff]
        %v1748 = vld [vmem:[%s1736 + $0x58] sm:$0xff]
        %v1749 = vld [vmem:[%s1736 + $0x60] sm:$0xff]
        %v1750 = vld [vmem:[%s1736 + $0x68] sm:$0xff]
        %v1751 = vld [vmem:[%s1736 + $0x70] sm:$0xff]
        %v1752 = vld [vmem:[%s1736 + $0x78] sm:$0xff]
        %v1753 = vld [vmem:[%s1736 + $0x80] sm:$0xff]
        %v1754 = vld [vmem:[%s1736 + $0x88] sm:$0xff]
        %v1755 = vld [vmem:[%s1736 + $0x90] sm:$0xff]
        %v1756 = vld [vmem:[%s1736 + $0x98] sm:$0xff]
        %v1757 = vld [vmem:[%s1736 + $0xa0] sm:$0xff]
        %v1758 = vld [vmem:[%s1736 + $0xa8] sm:$0xff]
        %v1759 = vld [vmem:[%s1736 + $0xb0] sm:$0xff]
        %v1760 = vld [vmem:[%s1736 + $0xb8] sm:$0xff]
        %v1761 = vld [vmem:[%s1736 + $0xc0] sm:$0xff]
        %v1762 = vld [vmem:[%s1736 + $0xc8] sm:$0xff]
        %v1763 = vld [vmem:[%s1736 + $0xd0] sm:$0xff]
        %v1764 = vld [vmem:[%s1736 + $0xd8] sm:$0xff]
        %v1765 = vld [vmem:[%s1736 + $0xe0] sm:$0xff]
        %v1766 = vld [vmem:[%s1736 + $0xe8] sm:$0xff]
        %v1767 = vld [vmem:[%s1736 + $0xf0] sm:$0xff]
        %v1768 = vld [vmem:[%s1736 + $0xf8] sm:$0xff]
        %v1769 = vld [vmem:[%s1736 + $0x100] sm:$0xff]
        %v1770 = vld [vmem:[%s1736 + $0x108] sm:$0xff]
        %v1771 = vld [vmem:[%s1736 + $0x110] sm:$0xff]
        %v1772 = vld [vmem:[%s1736 + $0x118] sm:$0xff]
        %v1773 = vld [vmem:[%s1736 + $0x120] sm:$0xff]
        %v1774 = vld [vmem:[%s1736 + $0x128] sm:$0xff]
        %v1775 = vld [vmem:[%s1736 + $0x130] sm:$0xff]
        %v1776 = vld [vmem:[%s1736 + $0x138] sm:$0xff]
        %v1777 = vld [vmem:[%s1736 + $0x140] sm:$0xff]
        %v1778 = vld [vmem:[%s1736 + $0x148] sm:$0xff]
        %v1779 = vld [vmem:[%s1736 + $0x150] sm:$0xff]
        %v1780 = vld [vmem:[%s1736 + $0x158] sm:$0xff]
        %v1781 = vld [vmem:[%s1736 + $0x160] sm:$0xff]
        %v1782 = vld [vmem:[%s1736 + $0x168] sm:$0xff]
        %v1783 = vld [vmem:[%s1736 + $0x170] sm:$0xff]
        %v1784 = vld [vmem:[%s1736 + $0x178] sm:$0xff]
        %v1785 = vld [vmem:[%s1736 + $0x180] sm:$0xff]
        %v1786 = vld [vmem:[%s1736 + $0x188] sm:$0xff]
        %v1787 = vld [vmem:[%s1736 + $0x190] sm:$0xff]
        %v1788 = vld [vmem:[%s1736 + $0x198] sm:$0xff]
        %v1789 = vld [vmem:[%s1736 + $0x1a0] sm:$0xff]
        %v1790 = vld [vmem:[%s1736 + $0x1a8] sm:$0xff]
        %v1791 = vld [vmem:[%s1736 + $0x1b0] sm:$0xff]
        %v1792 = vld [vmem:[%s1736 + $0x1b8] sm:$0xff]
        %v1793 = vld [vmem:[%s1736 + $0x1c0] sm:$0xff]
        %v1794 = vld [vmem:[%s1736 + $0x1c8] sm:$0xff]
        %v1795 = vld [vmem:[%s1736 + $0x1d0] sm:$0xff]
        %v1796 = vld [vmem:[%s1736 + $0x1d8] sm:$0xff]
        %v1797 = vld [vmem:[%s1736 + $0x1e0] sm:$0xff]
        %v1798 = vld [vmem:[%s1736 + $0x1e8] sm:$0xff]
        %v1799 = vld [vmem:[%s1736 + $0x1f0] sm:$0xff]
        %v1800 = vld [vmem:[%s1736 + $0x1f8] sm:$0xff]
        %1801 = vmatprep.subr.mxu0 %v1738
        %1802 = vmatpush1.msra.mxu0 %v1737
        %1803 = vmatprep.subr.mxu0 %v1740
        %1804 = vmatpush1.msra.mxu0 %v1739
        %1805 = vmatprep.subr.mxu0 %v1742
        %1806 = vmatpush1.msra.mxu0 %v1741
        %1807 = vmatprep.subr.mxu0 %v1744
        %1808 = vmatpush1.msra.mxu0 %v1743
        %1809 = vmatprep.subr.mxu0 %v1746
        %1810 = vmatpush1.msra.mxu0 %v1745
        %1811 = vmatprep.subr.mxu0 %v1748
        %1812 = vmatpush1.msra.mxu0 %v1747
        %1813 = vmatprep.subr.mxu0 %v1750
        %1814 = vmatpush1.msra.mxu0 %v1749
        %1815 = vmatprep.subr.mxu0 %v1752
        %1816 = vmatpush1.msra.mxu0 %v1751
        %1817 = vmatprep.subr.mxu0 %v1754
        %1818 = vmatpush1.msra.mxu0 %v1753
        %1819 = vmatprep.subr.mxu0 %v1756
        %1820 = vmatpush1.msra.mxu0 %v1755
        %1821 = vmatprep.subr.mxu0 %v1758
        %1822 = vmatpush1.msra.mxu0 %v1757
        %1823 = vmatprep.subr.mxu0 %v1760
        %1824 = vmatpush1.msra.mxu0 %v1759
        %1825 = vmatprep.subr.mxu0 %v1762
        %1826 = vmatpush1.msra.mxu0 %v1761
        %1827 = vmatprep.subr.mxu0 %v1764
        %1828 = vmatpush1.msra.mxu0 %v1763
        %1829 = vmatprep.subr.mxu0 %v1766
        %1830 = vmatpush1.msra.mxu0 %v1765
        %1831 = vmatprep.subr.mxu0 %v1768
        %1832 = vmatpush1.msra.mxu0 %v1767
        %1833 = vmatprep.subr.mxu0 %v1770
        %1834 = vmatpush1.msra.mxu0 %v1769
        %1835 = vmatprep.subr.mxu0 %v1772
        %1836 = vmatpush1.msra.mxu0 %v1771
        %1837 = vmatprep.subr.mxu0 %v1774
        %1838 = vmatpush1.msra.mxu0 %v1773
        %1839 = vmatprep.subr.mxu0 %v1776
        %1840 = vmatpush1.msra.mxu0 %v1775
        %1841 = vmatprep.subr.mxu0 %v1778
        %1842 = vmatpush1.msra.mxu0 %v1777
        %1843 = vmatprep.subr.mxu0 %v1780
        %1844 = vmatpush1.msra.mxu0 %v1779
        %1845 = vmatprep.subr.mxu0 %v1782
        %1846 = vmatpush1.msra.mxu0 %v1781
        %1847 = vmatprep.subr.mxu0 %v1784
        %1848 = vmatpush1.msra.mxu0 %v1783
        %1849 = vmatprep.subr.mxu0 %v1786
        %1850 = vmatpush1.msra.mxu0 %v1785
        %1851 = vmatprep.subr.mxu0 %v1788
        %1852 = vmatpush1.msra.mxu0 %v1787
        %1853 = vmatprep.subr.mxu0 %v1790
        %1854 = vmatpush1.msra.mxu0 %v1789
        %1855 = vmatprep.subr.mxu0 %v1792
        %1856 = vmatpush1.msra.mxu0 %v1791
        %1857 = vmatprep.subr.mxu0 %v1794
        %1858 = vmatpush1.msra.mxu0 %v1793
        %1859 = vmatprep.subr.mxu0 %v1796
        %1860 = vmatpush1.msra.mxu0 %v1795
        %1861 = vmatprep.subr.mxu0 %v1798
        %1862 = vmatpush1.msra.mxu0 %v1797
        %1863 = vmatprep.subr.mxu0 %v1800
        %1864 = vmatpush1.msra.mxu0 %v1799
        %1865 = vmatprep.mubr.f32.mxu0 %v1735
        %1866 = vmatmul.mubr.f32.gmra.mrb[0].mxu0 %v1734
        %v1867 = vpop.f32.mrb[0].mxu0
        %v1868 = vadd.f32 0.0, %v1867
        %v1869 = vpop.f32.mrb[0].mxu0
        %v1870 = vadd.f32 0.0, %v1869
        %1871 = vdwg.mxu0
        %v1872 = vadd.f32 %v1502, %v1868
        %v1873 = vadd.f32 %v1504, %v1870
        %v1874 = vld [vmem:[%s8] sm:$0xff]
        %1876 = vset.pattern.permute.xlu0 0
        %1877 = vperm.xlu0 %1876, %v1874
        %v1878 = vpop.permute.xlu0 %1877
        %v1880 = vadd.f32 %v1872, %v1878
        %v1881 = vadd.f32 %v1873, %v1878
        %v1882 = vmax.f32 %v1880, 0.0
        %v1883 = vmax.f32 %v1881, 0.0
        %v1884 = vld [vmem:[%s3] sm:$0xff]
        %v1885 = vld [vmem:[%s3 + $0x8] sm:$0xff]
        %v1886 = vld [vmem:[%s3 + $0x10] sm:$0xff]
        %v1887 = vld [vmem:[%s3 + $0x18] sm:$0xff]
        %v1888 = vld [vmem:[%s3 + $0x20] sm:$0xff]
        %v1889 = vld [vmem:[%s3 + $0x28] sm:$0xff]
        %v1890 = vld [vmem:[%s3 + $0x30] sm:$0xff]
        %v1891 = vld [vmem:[%s3 + $0x38] sm:$0xff]
        %v1892 = vld [vmem:[%s3 + $0x40] sm:$0xff]
        %v1893 = vld [vmem:[%s3 + $0x48] sm:$0xff]
        %v1894 = vld [vmem:[%s3 + $0x50] sm:$0xff]
        %v1895 = vld [vmem:[%s3 + $0x58] sm:$0xff]
        %v1896 = vld [vmem:[%s3 + $0x60] sm:$0xff]
        %v1897 = vld [vmem:[%s3 + $0x68] sm:$0xff]
        %v1898 = vld [vmem:[%s3 + $0x70] sm:$0xff]
        %v1899 = vld [vmem:[%s3 + $0x78] sm:$0xff]
        %v1900 = vld [vmem:[%s3 + $0x80] sm:$0xff]
        %v1901 = vld [vmem:[%s3 + $0x88] sm:$0xff]
        %v1902 = vld [vmem:[%s3 + $0x90] sm:$0xff]
        %v1903 = vld [vmem:[%s3 + $0x98] sm:$0xff]
        %v1904 = vld [vmem:[%s3 + $0xa0] sm:$0xff]
        %v1905 = vld [vmem:[%s3 + $0xa8] sm:$0xff]
        %v1906 = vld [vmem:[%s3 + $0xb0] sm:$0xff]
        %v1907 = vld [vmem:[%s3 + $0xb8] sm:$0xff]
        %v1908 = vld [vmem:[%s3 + $0xc0] sm:$0xff]
        %v1909 = vld [vmem:[%s3 + $0xc8] sm:$0xff]
        %v1910 = vld [vmem:[%s3 + $0xd0] sm:$0xff]
        %v1911 = vld [vmem:[%s3 + $0xd8] sm:$0xff]
        %v1912 = vld [vmem:[%s3 + $0xe0] sm:$0xff]
        %v1913 = vld [vmem:[%s3 + $0xe8] sm:$0xff]
        %v1914 = vld [vmem:[%s3 + $0xf0] sm:$0xff]
        %v1915 = vld [vmem:[%s3 + $0xf8] sm:$0xff]
        %1916 = vmatprep.subr.mxu0 0.0
        %1917 = vmatpush1.msra.mxu0 %v1884
        %1918 = vmatprep.subr.mxu0 0.0
        %1919 = vmatpush1.msra.mxu0 %v1885
        %1920 = vmatprep.subr.mxu0 0.0
        %1921 = vmatpush1.msra.mxu0 %v1886
        %1922 = vmatprep.subr.mxu0 0.0
        %1923 = vmatpush1.msra.mxu0 %v1887
        %1924 = vmatprep.subr.mxu0 0.0
        %1925 = vmatpush1.msra.mxu0 %v1888
        %1926 = vmatprep.subr.mxu0 0.0
        %1927 = vmatpush1.msra.mxu0 %v1889
        %1928 = vmatprep.subr.mxu0 0.0
        %1929 = vmatpush1.msra.mxu0 %v1890
        %1930 = vmatprep.subr.mxu0 0.0
        %1931 = vmatpush1.msra.mxu0 %v1891
        %1932 = vmatprep.subr.mxu0 0.0
        %1933 = vmatpush1.msra.mxu0 %v1892
        %1934 = vmatprep.subr.mxu0 0.0
        %1935 = vmatpush1.msra.mxu0 %v1893
        %1936 = vmatprep.subr.mxu0 0.0
        %1937 = vmatpush1.msra.mxu0 %v1894
        %1938 = vmatprep.subr.mxu0 0.0
        %1939 = vmatpush1.msra.mxu0 %v1895
        %1940 = vmatprep.subr.mxu0 0.0
        %1941 = vmatpush1.msra.mxu0 %v1896
        %1942 = vmatprep.subr.mxu0 0.0
        %1943 = vmatpush1.msra.mxu0 %v1897
        %1944 = vmatprep.subr.mxu0 0.0
        %1945 = vmatpush1.msra.mxu0 %v1898
        %1946 = vmatprep.subr.mxu0 0.0
        %1947 = vmatpush1.msra.mxu0 %v1899
        %1948 = vmatprep.subr.mxu0 0.0
        %1949 = vmatpush1.msra.mxu0 %v1900
        %1950 = vmatprep.subr.mxu0 0.0
        %1951 = vmatpush1.msra.mxu0 %v1901
        %1952 = vmatprep.subr.mxu0 0.0
        %1953 = vmatpush1.msra.mxu0 %v1902
        %1954 = vmatprep.subr.mxu0 0.0
        %1955 = vmatpush1.msra.mxu0 %v1903
        %1956 = vmatprep.subr.mxu0 0.0
        %1957 = vmatpush1.msra.mxu0 %v1904
        %1958 = vmatprep.subr.mxu0 0.0
        %1959 = vmatpush1.msra.mxu0 %v1905
        %1960 = vmatprep.subr.mxu0 0.0
        %1961 = vmatpush1.msra.mxu0 %v1906
        %1962 = vmatprep.subr.mxu0 0.0
        %1963 = vmatpush1.msra.mxu0 %v1907
        %1964 = vmatprep.subr.mxu0 0.0
        %1965 = vmatpush1.msra.mxu0 %v1908
        %1966 = vmatprep.subr.mxu0 0.0
        %1967 = vmatpush1.msra.mxu0 %v1909
        %1968 = vmatprep.subr.mxu0 0.0
        %1969 = vmatpush1.msra.mxu0 %v1910
        %1970 = vmatprep.subr.mxu0 0.0
        %1971 = vmatpush1.msra.mxu0 %v1911
        %1972 = vmatprep.subr.mxu0 0.0
        %1973 = vmatpush1.msra.mxu0 %v1912
        %1974 = vmatprep.subr.mxu0 0.0
        %1975 = vmatpush1.msra.mxu0 %v1913
        %1976 = vmatprep.subr.mxu0 0.0
        %1977 = vmatpush1.msra.mxu0 %v1914
        %1978 = vmatprep.subr.mxu0 0.0
        %1979 = vmatpush1.msra.mxu0 %v1915
        %1980 = vmatprep.mubr.f32.mxu0 %v1883
        %1981 = vmatmul.mubr.f32.gmra.mrb[0].mxu0 %v1882
        %v1982 = vpop.f32.mrb[0].mxu0
        %v1983 = vadd.f32 0.0, %v1982
        %v1984 = vpop.f32.mrb[0].mxu0
        %1985 = vdwg.mxu0
        %v1986 = vld [vmem:[%s2] sm:$0xff]
        %v1987 = vld [vmem:[%s2 + $0x8] sm:$0xff]
        %v1988 = vld [vmem:[%s2 + $0x10] sm:$0xff]
        %v1989 = vld [vmem:[%s2 + $0x18] sm:$0xff]
        %v1990 = vld [vmem:[%s2 + $0x20] sm:$0xff]
        %v1991 = vld [vmem:[%s2 + $0x28] sm:$0xff]
        %v1992 = vld [vmem:[%s2 + $0x30] sm:$0xff]
        %v1993 = vld [vmem:[%s2 + $0x38] sm:$0xff]
        %vm1994 = vcmask 523264
        %v1996 = vsel %vm1994, %v1983, 0
        %1998 = vmatprep.subr.mxu0 0.0
        %1999 = vmatpush1.msra.mxu0 %v1986
        %2000 = vmatprep.subr.mxu0 0.0
        %2001 = vmatpush1.msra.mxu0 %v1987
        %2002 = vmatprep.subr.mxu0 0.0
        %2003 = vmatpush1.msra.mxu0 %v1988
        %2004 = vmatprep.subr.mxu0 0.0
        %2005 = vmatpush1.msra.mxu0 %v1989
        %2006 = vmatprep.subr.mxu0 0.0
        %2007 = vmatpush1.msra.mxu0 %v1990
        %2008 = vmatprep.subr.mxu0 0.0
        %2009 = vmatpush1.msra.mxu0 %v1991
        %2010 = vmatprep.subr.mxu0 0.0
        %2011 = vmatpush1.msra.mxu0 %v1992
        %2012 = vmatprep.subr.mxu0 0.0
        %2013 = vmatpush1.msra.mxu0 %v1993
        %2014 = vmatprep.subr.mxu0 0.0
        %2015 = vmatpush1.msra.mxu0 0.0
        %2016 = vmatprep.subr.mxu0 0.0
        %2017 = vmatpush1.msra.mxu0 0.0
        %2018 = vmatprep.subr.mxu0 0.0
        %2019 = vmatpush1.msra.mxu0 0.0
        %2020 = vmatprep.subr.mxu0 0.0
        %2021 = vmatpush1.msra.mxu0 0.0
        %2022 = vmatprep.subr.mxu0 0.0
        %2023 = vmatpush1.msra.mxu0 0.0
        %2024 = vmatprep.subr.mxu0 0.0
        %2025 = vmatpush1.msra.mxu0 0.0
        %2026 = vmatprep.subr.mxu0 0.0
        %2027 = vmatpush1.msra.mxu0 0.0
        %2028 = vmatprep.subr.mxu0 0.0
        %2029 = vmatpush1.msra.mxu0 0.0
        %2030 = vmatprep.subr.mxu0 0.0
        %2031 = vmatpush1.msra.mxu0 0.0
        %2032 = vmatprep.subr.mxu0 0.0
        %2033 = vmatpush1.msra.mxu0 0.0
        %2034 = vmatprep.subr.mxu0 0.0
        %2035 = vmatpush1.msra.mxu0 0.0
        %2036 = vmatprep.subr.mxu0 0.0
        %2037 = vmatpush1.msra.mxu0 0.0
        %2038 = vmatprep.subr.mxu0 0.0
        %2039 = vmatpush1.msra.mxu0 0.0
        %2040 = vmatprep.subr.mxu0 0.0
        %2041 = vmatpush1.msra.mxu0 0.0
        %2042 = vmatprep.subr.mxu0 0.0
        %2043 = vmatpush1.msra.mxu0 0.0
        %2044 = vmatprep.subr.mxu0 0.0
        %2045 = vmatpush1.msra.mxu0 0.0
        %2046 = vmatprep.subr.mxu0 0.0
        %2047 = vmatpush1.msra.mxu0 0.0
        %2048 = vmatprep.subr.mxu0 0.0
        %2049 = vmatpush1.msra.mxu0 0.0
        %2050 = vmatprep.subr.mxu0 0.0
        %2051 = vmatpush1.msra.mxu0 0.0
        %2052 = vmatprep.subr.mxu0 0.0
        %2053 = vmatpush1.msra.mxu0 0.0
        %2054 = vmatprep.subr.mxu0 0.0
        %2055 = vmatpush1.msra.mxu0 0.0
        %2056 = vmatprep.subr.mxu0 0.0
        %2057 = vmatpush1.msra.mxu0 0.0
        %2058 = vmatprep.subr.mxu0 0.0
        %2059 = vmatpush1.msra.mxu0 0.0
        %2060 = vmatprep.subr.mxu0 0.0
        %2061 = vmatpush1.msra.mxu0 0.0
        %2062 = vmatprep.mubr.f32.mxu0 0.0
        %2063 = vmatmul.mubr.f32.gmra.mrb[0].mxu0 %v1996
        %v2064 = vpop.f32.mrb[0].mxu0
        %v2065 = vadd.f32 0.0, %v2064
        %v2066 = vpop.f32.mrb[0].mxu0
        %2067 = vdwg.mxu0
        %s2068 = scalar_lea.vmem %s2, 64
        %v2069 = vld [vmem:[%s2068] sm:$0xff]
        %v2070 = vld [vmem:[%s2068 + $0x8] sm:$0xff]
        %v2071 = vld [vmem:[%s2068 + $0x10] sm:$0xff]
        %v2072 = vld [vmem:[%s2068 + $0x18] sm:$0xff]
        %v2073 = vld [vmem:[%s2068 + $0x20] sm:$0xff]
        %v2074 = vld [vmem:[%s2068 + $0x28] sm:$0xff]
        %v2075 = vld [vmem:[%s2068 + $0x30] sm:$0xff]
        %v2076 = vld [vmem:[%s2068 + $0x38] sm:$0xff]
        %2077 = vmatprep.subr.mxu0 0.0
        %2078 = vmatpush1.msra.mxu0 %v2069
        %2079 = vmatprep.subr.mxu0 0.0
        %2080 = vmatpush1.msra.mxu0 %v2070
        %2081 = vmatprep.subr.mxu0 0.0
        %2082 = vmatpush1.msra.mxu0 %v2071
        %2083 = vmatprep.subr.mxu0 0.0
        %2084 = vmatpush1.msra.mxu0 %v2072
        %2085 = vmatprep.subr.mxu0 0.0
        %2086 = vmatpush1.msra.mxu0 %v2073
        %2087 = vmatprep.subr.mxu0 0.0
        %2088 = vmatpush1.msra.mxu0 %v2074
        %2089 = vmatprep.subr.mxu0 0.0
        %2090 = vmatpush1.msra.mxu0 %v2075
        %2091 = vmatprep.subr.mxu0 0.0
        %2092 = vmatpush1.msra.mxu0 %v2076
        %2093 = vmatprep.subr.mxu0 0.0
        %2094 = vmatpush1.msra.mxu0 0.0
        %2095 = vmatprep.subr.mxu0 0.0
        %2096 = vmatpush1.msra.mxu0 0.0
        %2097 = vmatprep.subr.mxu0 0.0
        %2098 = vmatpush1.msra.mxu0 0.0
        %2099 = vmatprep.subr.mxu0 0.0
        %2100 = vmatpush1.msra.mxu0 0.0
        %2101 = vmatprep.subr.mxu0 0.0
        %2102 = vmatpush1.msra.mxu0 0.0
        %2103 = vmatprep.subr.mxu0 0.0
        %2104 = vmatpush1.msra.mxu0 0.0
        %2105 = vmatprep.subr.mxu0 0.0
        %2106 = vmatpush1.msra.mxu0 0.0
        %2107 = vmatprep.subr.mxu0 0.0
        %2108 = vmatpush1.msra.mxu0 0.0
        %2109 = vmatprep.subr.mxu0 0.0
        %2110 = vmatpush1.msra.mxu0 0.0
        %2111 = vmatprep.subr.mxu0 0.0
        %2112 = vmatpush1.msra.mxu0 0.0
        %2113 = vmatprep.subr.mxu0 0.0
        %2114 = vmatpush1.msra.mxu0 0.0
        %2115 = vmatprep.subr.mxu0 0.0
        %2116 = vmatpush1.msra.mxu0 0.0
        %2117 = vmatprep.subr.mxu0 0.0
        %2118 = vmatpush1.msra.mxu0 0.0
        %2119 = vmatprep.subr.mxu0 0.0
        %2120 = vmatpush1.msra.mxu0 0.0
        %2121 = vmatprep.subr.mxu0 0.0
        %2122 = vmatpush1.msra.mxu0 0.0
        %2123 = vmatprep.subr.mxu0 0.0
        %2124 = vmatpush1.msra.mxu0 0.0
        %2125 = vmatprep.subr.mxu0 0.0
        %2126 = vmatpush1.msra.mxu0 0.0
        %2127 = vmatprep.subr.mxu0 0.0
        %2128 = vmatpush1.msra.mxu0 0.0
        %2129 = vmatprep.subr.mxu0 0.0
        %2130 = vmatpush1.msra.mxu0 0.0
        %2131 = vmatprep.subr.mxu0 0.0
        %2132 = vmatpush1.msra.mxu0 0.0
        %2133 = vmatprep.subr.mxu0 0.0
        %2134 = vmatpush1.msra.mxu0 0.0
        %2135 = vmatprep.subr.mxu0 0.0
        %2136 = vmatpush1.msra.mxu0 0.0
        %2137 = vmatprep.subr.mxu0 0.0
        %2138 = vmatpush1.msra.mxu0 0.0
        %2139 = vmatprep.subr.mxu0 0.0
        %2140 = vmatpush1.msra.mxu0 0.0
        %2141 = vmatprep.mubr.f32.mxu0 0.0
        %2142 = vmatmul.mubr.f32.gmra.mrb[0].mxu0 %v1996
        %v2143 = vpop.f32.mrb[0].mxu0
        %v2144 = vadd.f32 0.0, %v2143
        %v2145 = vpop.f32.mrb[0].mxu0
        %2146 = vdwg.mxu0
        %v2147 = vld [vmem:[%s9] sm:$0xff]
        %v2148 = vld [vmem:[%s9 + $0x8] sm:$0xff]
        %s2149 = scalar_lea.vmem %s9, 16
        %v2150 = vld [vmem:[%s2149] sm:$0xff]
        %v2151 = vld [vmem:[%s2149 + $0x8] sm:$0xff]
        %vm2152 = vcmask 64512
        %v2154 = vsel %vm2152, %v2150, 0
        %v2157 = vsel %vm2152, %v2151, 0
        %2159 = vmatprep.subr.mxu0 0.0
        %2160 = vmatpush1.msra.mxu0 %v1983
        %2161 = vmatprep.subr.mxu0 0.0
        %2162 = vmatpush1.msra.mxu0 0.0
        %2163 = vmatprep.subr.mxu0 0.0
        %2164 = vmatpush1.msra.mxu0 0.0
        %2165 = vmatprep.subr.mxu0 0.0
        %2166 = vmatpush1.msra.mxu0 0.0
        %2167 = vmatprep.subr.mxu0 0.0
        %2168 = vmatpush1.msra.mxu0 0.0
        %2169 = vmatprep.subr.mxu0 0.0
        %2170 = vmatpush1.msra.mxu0 0.0
        %2171 = vmatprep.subr.mxu0 0.0
        %2172 = vmatpush1.msra.mxu0 0.0
        %2173 = vmatprep.subr.mxu0 0.0
        %2174 = vmatpush1.msra.mxu0 0.0
        %2175 = vmatprep.subr.mxu0 0.0
        %2176 = vmatpush1.msra.mxu0 0.0
        %2177 = vmatprep.subr.mxu0 0.0
        %2178 = vmatpush1.msra.mxu0 0.0
        %2179 = vmatprep.subr.mxu0 0.0
        %2180 = vmatpush1.msra.mxu0 0.0
        %2181 = vmatprep.subr.mxu0 0.0
        %2182 = vmatpush1.msra.mxu0 0.0
        %2183 = vmatprep.subr.mxu0 0.0
        %2184 = vmatpush1.msra.mxu0 0.0
        %2185 = vmatprep.subr.mxu0 0.0
        %2186 = vmatpush1.msra.mxu0 0.0
        %2187 = vmatprep.subr.mxu0 0.0
        %2188 = vmatpush1.msra.mxu0 0.0
        %2189 = vmatprep.subr.mxu0 0.0
        %2190 = vmatpush1.msra.mxu0 0.0
        %2191 = vmatprep.subr.mxu0 0.0
        %2192 = vmatpush1.msra.mxu0 0.0
        %2193 = vmatprep.subr.mxu0 0.0
        %2194 = vmatpush1.msra.mxu0 0.0
        %2195 = vmatprep.subr.mxu0 0.0
        %2196 = vmatpush1.msra.mxu0 0.0
        %2197 = vmatprep.subr.mxu0 0.0
        %2198 = vmatpush1.msra.mxu0 0.0
        %2199 = vmatprep.subr.mxu0 0.0
        %2200 = vmatpush1.msra.mxu0 0.0
        %2201 = vmatprep.subr.mxu0 0.0
        %2202 = vmatpush1.msra.mxu0 0.0
        %2203 = vmatprep.subr.mxu0 0.0
        %2204 = vmatpush1.msra.mxu0 0.0
        %2205 = vmatprep.subr.mxu0 0.0
        %2206 = vmatpush1.msra.mxu0 0.0
        %2207 = vmatprep.subr.mxu0 0.0
        %2208 = vmatpush1.msra.mxu0 0.0
        %2209 = vmatprep.subr.mxu0 0.0
        %2210 = vmatpush1.msra.mxu0 0.0
        %2211 = vmatprep.subr.mxu0 0.0
        %2212 = vmatpush1.msra.mxu0 0.0
        %2213 = vmatprep.subr.mxu0 0.0
        %2214 = vmatpush1.msra.mxu0 0.0
        %2215 = vmatprep.subr.mxu0 0.0
        %2216 = vmatpush1.msra.mxu0 0.0
        %2217 = vmatprep.subr.mxu0 0.0
        %2218 = vmatpush1.msra.mxu0 0.0
        %2219 = vmatprep.subr.mxu0 0.0
        %2220 = vmatpush1.msra.mxu0 0.0
        %2221 = vmatprep.subr.mxu0 0.0
        %2222 = vmatpush1.msra.mxu0 0.0
        %2223 = vmatprep.mubr.f32.mxu0 0.0
        %2224 = vmatmul.mubr.f32.gmra.mrb[0].mxu0 %v2154
        %v2225 = vpop.f32.mrb[0].mxu0
        %v2226 = vadd.f32 0.0, %v2225
        %v2227 = vpop.f32.mrb[0].mxu0
        %2228 = vmatprep.mubr.f32.mxu0 0.0
        %2229 = vmatmul.mubr.f32.gmra.mrb[0].mxu0 %v2157
        %v2230 = vpop.f32.mrb[0].mxu0
        %v2231 = vadd.f32 0.0, %v2230
        %v2232 = vpop.f32.mrb[0].mxu0
        %2233 = vdwg.mxu0
        %v2235 = vsel %vm2152, %v2147, 0
        %v2238 = vsel %vm2152, %v2148, 0
        %2240 = vmatprep.subr.mxu0 0.0
        %2241 = vmatpush1.msra.mxu0 %v2065
        %2242 = vmatprep.subr.mxu0 0.0
        %2243 = vmatpush1.msra.mxu0 0.0
        %2244 = vmatprep.subr.mxu0 0.0
        %2245 = vmatpush1.msra.mxu0 0.0
        %2246 = vmatprep.subr.mxu0 0.0
        %2247 = vmatpush1.msra.mxu0 0.0
        %2248 = vmatprep.subr.mxu0 0.0
        %2249 = vmatpush1.msra.mxu0 0.0
        %2250 = vmatprep.subr.mxu0 0.0
        %2251 = vmatpush1.msra.mxu0 0.0
        %2252 = vmatprep.subr.mxu0 0.0
        %2253 = vmatpush1.msra.mxu0 0.0
        %2254 = vmatprep.subr.mxu0 0.0
        %2255 = vmatpush1.msra.mxu0 0.0
        %2256 = vmatprep.subr.mxu0 0.0
        %2257 = vmatpush1.msra.mxu0 0.0
        %2258 = vmatprep.subr.mxu0 0.0
        %2259 = vmatpush1.msra.mxu0 0.0
        %2260 = vmatprep.subr.mxu0 0.0
        %2261 = vmatpush1.msra.mxu0 0.0
        %2262 = vmatprep.subr.mxu0 0.0
        %2263 = vmatpush1.msra.mxu0 0.0
        %2264 = vmatprep.subr.mxu0 0.0
        %2265 = vmatpush1.msra.mxu0 0.0
        %2266 = vmatprep.subr.mxu0 0.0
        %2267 = vmatpush1.msra.mxu0 0.0
        %2268 = vmatprep.subr.mxu0 0.0
        %2269 = vmatpush1.msra.mxu0 0.0
        %2270 = vmatprep.subr.mxu0 0.0
        %2271 = vmatpush1.msra.mxu0 0.0
        %2272 = vmatprep.subr.mxu0 0.0
        %2273 = vmatpush1.msra.mxu0 0.0
        %2274 = vmatprep.subr.mxu0 0.0
        %2275 = vmatpush1.msra.mxu0 0.0
        %2276 = vmatprep.subr.mxu0 0.0
        %2277 = vmatpush1.msra.mxu0 0.0
        %2278 = vmatprep.subr.mxu0 0.0
        %2279 = vmatpush1.msra.mxu0 0.0
        %2280 = vmatprep.subr.mxu0 0.0
        %2281 = vmatpush1.msra.mxu0 0.0
        %2282 = vmatprep.subr.mxu0 0.0
        %2283 = vmatpush1.msra.mxu0 0.0
        %2284 = vmatprep.subr.mxu0 0.0
        %2285 = vmatpush1.msra.mxu0 0.0
        %2286 = vmatprep.subr.mxu0 0.0
        %2287 = vmatpush1.msra.mxu0 0.0
        %2288 = vmatprep.subr.mxu0 0.0
        %2289 = vmatpush1.msra.mxu0 0.0
        %2290 = vmatprep.subr.mxu0 0.0
        %2291 = vmatpush1.msra.mxu0 0.0
        %2292 = vmatprep.subr.mxu0 0.0
        %2293 = vmatpush1.msra.mxu0 0.0
        %2294 = vmatprep.subr.mxu0 0.0
        %2295 = vmatpush1.msra.mxu0 0.0
        %2296 = vmatprep.subr.mxu0 0.0
        %2297 = vmatpush1.msra.mxu0 0.0
        %2298 = vmatprep.subr.mxu0 0.0
        %2299 = vmatpush1.msra.mxu0 0.0
        %2300 = vmatprep.subr.mxu0 0.0
        %2301 = vmatpush1.msra.mxu0 0.0
        %2302 = vmatprep.subr.mxu0 0.0
        %2303 = vmatpush1.msra.mxu0 0.0
        %2304 = vmatprep.mubr.f32.mxu0 0.0
        %2305 = vmatmul.mubr.f32.gmra.mrb[0].mxu0 %v2235
        %v2306 = vpop.f32.mrb[0].mxu0
        %v2307 = vadd.f32 %v2226, %v2306
        %v2308 = vpop.f32.mrb[0].mxu0
        %2309 = vmatprep.mubr.f32.mxu0 0.0
        %2310 = vmatmul.mubr.f32.gmra.mrb[0].mxu0 %v2238
        %v2311 = vpop.f32.mrb[0].mxu0
        %v2312 = vadd.f32 %v2231, %v2311
        %v2313 = vpop.f32.mrb[0].mxu0
        %2314 = vdwg.mxu0
        %s2315 = scalar_lea.vmem %s9, 32
        %v2316 = vld [vmem:[%s2315] sm:$0xff]
        %v2317 = vld [vmem:[%s2315 + $0x8] sm:$0xff]
        %v2319 = vsel %vm2152, %v2316, 0
        %v2322 = vsel %vm2152, %v2317, 0
        %2324 = vmatprep.subr.mxu0 0.0
        %2325 = vmatpush1.msra.mxu0 %v2144
        %2326 = vmatprep.subr.mxu0 0.0
        %2327 = vmatpush1.msra.mxu0 0.0
        %2328 = vmatprep.subr.mxu0 0.0
        %2329 = vmatpush1.msra.mxu0 0.0
        %2330 = vmatprep.subr.mxu0 0.0
        %2331 = vmatpush1.msra.mxu0 0.0
        %2332 = vmatprep.subr.mxu0 0.0
        %2333 = vmatpush1.msra.mxu0 0.0
        %2334 = vmatprep.subr.mxu0 0.0
        %2335 = vmatpush1.msra.mxu0 0.0
        %2336 = vmatprep.subr.mxu0 0.0
        %2337 = vmatpush1.msra.mxu0 0.0
        %2338 = vmatprep.subr.mxu0 0.0
        %2339 = vmatpush1.msra.mxu0 0.0
        %2340 = vmatprep.subr.mxu0 0.0
        %2341 = vmatpush1.msra.mxu0 0.0
        %2342 = vmatprep.subr.mxu0 0.0
        %2343 = vmatpush1.msra.mxu0 0.0
        %2344 = vmatprep.subr.mxu0 0.0
        %2345 = vmatpush1.msra.mxu0 0.0
        %2346 = vmatprep.subr.mxu0 0.0
        %2347 = vmatpush1.msra.mxu0 0.0
        %2348 = vmatprep.subr.mxu0 0.0
        %2349 = vmatpush1.msra.mxu0 0.0
        %2350 = vmatprep.subr.mxu0 0.0
        %2351 = vmatpush1.msra.mxu0 0.0
        %2352 = vmatprep.subr.mxu0 0.0
        %2353 = vmatpush1.msra.mxu0 0.0
        %2354 = vmatprep.subr.mxu0 0.0
        %2355 = vmatpush1.msra.mxu0 0.0
        %2356 = vmatprep.subr.mxu0 0.0
        %2357 = vmatpush1.msra.mxu0 0.0
        %2358 = vmatprep.subr.mxu0 0.0
        %2359 = vmatpush1.msra.mxu0 0.0
        %2360 = vmatprep.subr.mxu0 0.0
        %2361 = vmatpush1.msra.mxu0 0.0
        %2362 = vmatprep.subr.mxu0 0.0
        %2363 = vmatpush1.msra.mxu0 0.0
        %2364 = vmatprep.subr.mxu0 0.0
        %2365 = vmatpush1.msra.mxu0 0.0
        %2366 = vmatprep.subr.mxu0 0.0
        %2367 = vmatpush1.msra.mxu0 0.0
        %2368 = vmatprep.subr.mxu0 0.0
        %2369 = vmatpush1.msra.mxu0 0.0
        %2370 = vmatprep.subr.mxu0 0.0
        %2371 = vmatpush1.msra.mxu0 0.0
        %2372 = vmatprep.subr.mxu0 0.0
        %2373 = vmatpush1.msra.mxu0 0.0
        %2374 = vmatprep.subr.mxu0 0.0
        %2375 = vmatpush1.msra.mxu0 0.0
        %2376 = vmatprep.subr.mxu0 0.0
        %2377 = vmatpush1.msra.mxu0 0.0
        %2378 = vmatprep.subr.mxu0 0.0
        %2379 = vmatpush1.msra.mxu0 0.0
        %2380 = vmatprep.subr.mxu0 0.0
        %2381 = vmatpush1.msra.mxu0 0.0
        %2382 = vmatprep.subr.mxu0 0.0
        %2383 = vmatpush1.msra.mxu0 0.0
        %2384 = vmatprep.subr.mxu0 0.0
        %2385 = vmatpush1.msra.mxu0 0.0
        %2386 = vmatprep.subr.mxu0 0.0
        %2387 = vmatpush1.msra.mxu0 0.0
        %2388 = vmatprep.mubr.f32.mxu0 0.0
        %2389 = vmatmul.mubr.f32.gmra.mrb[0].mxu0 %v2319
        %v2390 = vpop.f32.mrb[0].mxu0
        %v2391 = vadd.f32 0.0, %v2390
        %v2392 = vpop.f32.mrb[0].mxu0
        %2393 = vmatprep.mubr.f32.mxu0 0.0
        %2394 = vmatmul.mubr.f32.gmra.mrb[0].mxu0 %v2322
        %v2395 = vpop.f32.mrb[0].mxu0
        %v2396 = vadd.f32 0.0, %v2395
        %v2397 = vpop.f32.mrb[0].mxu0
        %2398 = vdwg.mxu0
        %v2399 = vadd.f32 %v2307, %v2391
        %v2400 = vadd.f32 %v2312, %v2396
        %s2401 = scalar_lea.vmem %s2, 128
        %v2402 = vld [vmem:[%s2401] sm:$0xff]
        %v2403 = vld [vmem:[%s2401 + $0x8] sm:$0xff]
        %v2404 = vld [vmem:[%s2401 + $0x10] sm:$0xff]
        %v2405 = vld [vmem:[%s2401 + $0x18] sm:$0xff]
        %v2406 = vld [vmem:[%s2401 + $0x20] sm:$0xff]
        %v2407 = vld [vmem:[%s2401 + $0x28] sm:$0xff]
        %v2408 = vld [vmem:[%s2401 + $0x30] sm:$0xff]
        %v2409 = vld [vmem:[%s2401 + $0x38] sm:$0xff]
        %s2410 = scalar_lea.vmem %s9, 48
        %v2411 = vld [vmem:[%s2410] sm:$0xff]
        %v2412 = vld [vmem:[%s2410 + $0x8] sm:$0xff]
        %s2413 = scalar_lea.vmem %s9, 64
        %v2414 = vld [vmem:[%s2413] sm:$0xff]
        %v2415 = vld [vmem:[%s2413 + $0x8] sm:$0xff]
        %v2417 = vsel %vm2152, %v2414, 0
        %v2420 = vsel %vm2152, %v2415, 0
        %2422 = vmatprep.subr.mxu0 0.0
        %2423 = vmatpush1.msra.mxu0 %v1983
        %2424 = vmatprep.subr.mxu0 0.0
        %2425 = vmatpush1.msra.mxu0 0.0
        %2426 = vmatprep.subr.mxu0 0.0
        %2427 = vmatpush1.msra.mxu0 0.0
        %2428 = vmatprep.subr.mxu0 0.0
        %2429 = vmatpush1.msra.mxu0 0.0
        %2430 = vmatprep.subr.mxu0 0.0
        %2431 = vmatpush1.msra.mxu0 0.0
        %2432 = vmatprep.subr.mxu0 0.0
        %2433 = vmatpush1.msra.mxu0 0.0
        %2434 = vmatprep.subr.mxu0 0.0
        %2435 = vmatpush1.msra.mxu0 0.0
        %2436 = vmatprep.subr.mxu0 0.0
        %2437 = vmatpush1.msra.mxu0 0.0
        %2438 = vmatprep.subr.mxu0 0.0
        %2439 = vmatpush1.msra.mxu0 0.0
        %2440 = vmatprep.subr.mxu0 0.0
        %2441 = vmatpush1.msra.mxu0 0.0
        %2442 = vmatprep.subr.mxu0 0.0
        %2443 = vmatpush1.msra.mxu0 0.0
        %2444 = vmatprep.subr.mxu0 0.0
        %2445 = vmatpush1.msra.mxu0 0.0
        %2446 = vmatprep.subr.mxu0 0.0
        %2447 = vmatpush1.msra.mxu0 0.0
        %2448 = vmatprep.subr.mxu0 0.0
        %2449 = vmatpush1.msra.mxu0 0.0
        %2450 = vmatprep.subr.mxu0 0.0
        %2451 = vmatpush1.msra.mxu0 0.0
        %2452 = vmatprep.subr.mxu0 0.0
        %2453 = vmatpush1.msra.mxu0 0.0
        %2454 = vmatprep.subr.mxu0 0.0
        %2455 = vmatpush1.msra.mxu0 0.0
        %2456 = vmatprep.subr.mxu0 0.0
        %2457 = vmatpush1.msra.mxu0 0.0
        %2458 = vmatprep.subr.mxu0 0.0
        %2459 = vmatpush1.msra.mxu0 0.0
        %2460 = vmatprep.subr.mxu0 0.0
        %2461 = vmatpush1.msra.mxu0 0.0
        %2462 = vmatprep.subr.mxu0 0.0
        %2463 = vmatpush1.msra.mxu0 0.0
        %2464 = vmatprep.subr.mxu0 0.0
        %2465 = vmatpush1.msra.mxu0 0.0
        %2466 = vmatprep.subr.mxu0 0.0
        %2467 = vmatpush1.msra.mxu0 0.0
        %2468 = vmatprep.subr.mxu0 0.0
        %2469 = vmatpush1.msra.mxu0 0.0
        %2470 = vmatprep.subr.mxu0 0.0
        %2471 = vmatpush1.msra.mxu0 0.0
        %2472 = vmatprep.subr.mxu0 0.0
        %2473 = vmatpush1.msra.mxu0 0.0
        %2474 = vmatprep.subr.mxu0 0.0
        %2475 = vmatpush1.msra.mxu0 0.0
        %2476 = vmatprep.subr.mxu0 0.0
        %2477 = vmatpush1.msra.mxu0 0.0
        %2478 = vmatprep.subr.mxu0 0.0
        %2479 = vmatpush1.msra.mxu0 0.0
        %2480 = vmatprep.subr.mxu0 0.0
        %2481 = vmatpush1.msra.mxu0 0.0
        %2482 = vmatprep.subr.mxu0 0.0
        %2483 = vmatpush1.msra.mxu0 0.0
        %2484 = vmatprep.subr.mxu0 0.0
        %2485 = vmatpush1.msra.mxu0 0.0
        %2486 = vmatprep.mubr.f32.mxu0 0.0
        %2487 = vmatmul.mubr.f32.gmra.mrb[0].mxu0 %v2417
        %v2488 = vpop.f32.mrb[0].mxu0
        %v2489 = vadd.f32 0.0, %v2488
        %v2490 = vpop.f32.mrb[0].mxu0
        %2491 = vmatprep.mubr.f32.mxu0 0.0
        %2492 = vmatmul.mubr.f32.gmra.mrb[0].mxu0 %v2420
        %v2493 = vpop.f32.mrb[0].mxu0
        %v2494 = vadd.f32 0.0, %v2493
        %v2495 = vpop.f32.mrb[0].mxu0
        %2496 = vdwg.mxu0
        %v2498 = vsel %vm2152, %v2411, 0
        %v2501 = vsel %vm2152, %v2412, 0
        %2503 = vmatprep.subr.mxu0 0.0
        %2504 = vmatpush1.msra.mxu0 %v2065
        %2505 = vmatprep.subr.mxu0 0.0
        %2506 = vmatpush1.msra.mxu0 0.0
        %2507 = vmatprep.subr.mxu0 0.0
        %2508 = vmatpush1.msra.mxu0 0.0
        %2509 = vmatprep.subr.mxu0 0.0
        %2510 = vmatpush1.msra.mxu0 0.0
        %2511 = vmatprep.subr.mxu0 0.0
        %2512 = vmatpush1.msra.mxu0 0.0
        %2513 = vmatprep.subr.mxu0 0.0
        %2514 = vmatpush1.msra.mxu0 0.0
        %2515 = vmatprep.subr.mxu0 0.0
        %2516 = vmatpush1.msra.mxu0 0.0
        %2517 = vmatprep.subr.mxu0 0.0
        %2518 = vmatpush1.msra.mxu0 0.0
        %2519 = vmatprep.subr.mxu0 0.0
        %2520 = vmatpush1.msra.mxu0 0.0
        %2521 = vmatprep.subr.mxu0 0.0
        %2522 = vmatpush1.msra.mxu0 0.0
        %2523 = vmatprep.subr.mxu0 0.0
        %2524 = vmatpush1.msra.mxu0 0.0
        %2525 = vmatprep.subr.mxu0 0.0
        %2526 = vmatpush1.msra.mxu0 0.0
        %2527 = vmatprep.subr.mxu0 0.0
        %2528 = vmatpush1.msra.mxu0 0.0
        %2529 = vmatprep.subr.mxu0 0.0
        %2530 = vmatpush1.msra.mxu0 0.0
        %2531 = vmatprep.subr.mxu0 0.0
        %2532 = vmatpush1.msra.mxu0 0.0
        %2533 = vmatprep.subr.mxu0 0.0
        %2534 = vmatpush1.msra.mxu0 0.0
        %2535 = vmatprep.subr.mxu0 0.0
        %2536 = vmatpush1.msra.mxu0 0.0
        %2537 = vmatprep.subr.mxu0 0.0
        %2538 = vmatpush1.msra.mxu0 0.0
        %2539 = vmatprep.subr.mxu0 0.0
        %2540 = vmatpush1.msra.mxu0 0.0
        %2541 = vmatprep.subr.mxu0 0.0
        %2542 = vmatpush1.msra.mxu0 0.0
        %2543 = vmatprep.subr.mxu0 0.0
        %2544 = vmatpush1.msra.mxu0 0.0
        %2545 = vmatprep.subr.mxu0 0.0
        %2546 = vmatpush1.msra.mxu0 0.0
        %2547 = vmatprep.subr.mxu0 0.0
        %2548 = vmatpush1.msra.mxu0 0.0
        %2549 = vmatprep.subr.mxu0 0.0
        %2550 = vmatpush1.msra.mxu0 0.0
        %2551 = vmatprep.subr.mxu0 0.0
        %2552 = vmatpush1.msra.mxu0 0.0
        %2553 = vmatprep.subr.mxu0 0.0
        %2554 = vmatpush1.msra.mxu0 0.0
        %2555 = vmatprep.subr.mxu0 0.0
        %2556 = vmatpush1.msra.mxu0 0.0
        %2557 = vmatprep.subr.mxu0 0.0
        %2558 = vmatpush1.msra.mxu0 0.0
        %2559 = vmatprep.subr.mxu0 0.0
        %2560 = vmatpush1.msra.mxu0 0.0
        %2561 = vmatprep.subr.mxu0 0.0
        %2562 = vmatpush1.msra.mxu0 0.0
        %2563 = vmatprep.subr.mxu0 0.0
        %2564 = vmatpush1.msra.mxu0 0.0
        %2565 = vmatprep.subr.mxu0 0.0
        %2566 = vmatpush1.msra.mxu0 0.0
        %2567 = vmatprep.mubr.f32.mxu0 0.0
        %2568 = vmatmul.mubr.f32.gmra.mrb[0].mxu0 %v2498
        %v2569 = vpop.f32.mrb[0].mxu0
        %v2570 = vadd.f32 %v2489, %v2569
        %v2571 = vpop.f32.mrb[0].mxu0
        %2572 = vmatprep.mubr.f32.mxu0 0.0
        %2573 = vmatmul.mubr.f32.gmra.mrb[0].mxu0 %v2501
        %v2574 = vpop.f32.mrb[0].mxu0
        %v2575 = vadd.f32 %v2494, %v2574
        %v2576 = vpop.f32.mrb[0].mxu0
        %2577 = vdwg.mxu0
        %s2578 = scalar_lea.vmem %s9, 80
        %v2579 = vld [vmem:[%s2578] sm:$0xff]
        %v2580 = vld [vmem:[%s2578 + $0x8] sm:$0xff]
        %v2582 = vsel %vm2152, %v2579, 0
        %v2585 = vsel %vm2152, %v2580, 0
        %2587 = vmatprep.subr.mxu0 0.0
        %2588 = vmatpush1.msra.mxu0 %v2144
        %2589 = vmatprep.subr.mxu0 0.0
        %2590 = vmatpush1.msra.mxu0 0.0
        %2591 = vmatprep.subr.mxu0 0.0
        %2592 = vmatpush1.msra.mxu0 0.0
        %2593 = vmatprep.subr.mxu0 0.0
        %2594 = vmatpush1.msra.mxu0 0.0
        %2595 = vmatprep.subr.mxu0 0.0
        %2596 = vmatpush1.msra.mxu0 0.0
        %2597 = vmatprep.subr.mxu0 0.0
        %2598 = vmatpush1.msra.mxu0 0.0
        %2599 = vmatprep.subr.mxu0 0.0
        %2600 = vmatpush1.msra.mxu0 0.0
        %2601 = vmatprep.subr.mxu0 0.0
        %2602 = vmatpush1.msra.mxu0 0.0
        %2603 = vmatprep.subr.mxu0 0.0
        %2604 = vmatpush1.msra.mxu0 0.0
        %2605 = vmatprep.subr.mxu0 0.0
        %2606 = vmatpush1.msra.mxu0 0.0
        %2607 = vmatprep.subr.mxu0 0.0
        %2608 = vmatpush1.msra.mxu0 0.0
        %2609 = vmatprep.subr.mxu0 0.0
        %2610 = vmatpush1.msra.mxu0 0.0
        %2611 = vmatprep.subr.mxu0 0.0
        %2612 = vmatpush1.msra.mxu0 0.0
        %2613 = vmatprep.subr.mxu0 0.0
        %2614 = vmatpush1.msra.mxu0 0.0
        %2615 = vmatprep.subr.mxu0 0.0
        %2616 = vmatpush1.msra.mxu0 0.0
        %2617 = vmatprep.subr.mxu0 0.0
        %2618 = vmatpush1.msra.mxu0 0.0
        %2619 = vmatprep.subr.mxu0 0.0
        %2620 = vmatpush1.msra.mxu0 0.0
        %2621 = vmatprep.subr.mxu0 0.0
        %2622 = vmatpush1.msra.mxu0 0.0
        %2623 = vmatprep.subr.mxu0 0.0
        %2624 = vmatpush1.msra.mxu0 0.0
        %2625 = vmatprep.subr.mxu0 0.0
        %2626 = vmatpush1.msra.mxu0 0.0
        %2627 = vmatprep.subr.mxu0 0.0
        %2628 = vmatpush1.msra.mxu0 0.0
        %2629 = vmatprep.subr.mxu0 0.0
        %2630 = vmatpush1.msra.mxu0 0.0
        %2631 = vmatprep.subr.mxu0 0.0
        %2632 = vmatpush1.msra.mxu0 0.0
        %2633 = vmatprep.subr.mxu0 0.0
        %2634 = vmatpush1.msra.mxu0 0.0
        %2635 = vmatprep.subr.mxu0 0.0
        %2636 = vmatpush1.msra.mxu0 0.0
        %2637 = vmatprep.subr.mxu0 0.0
        %2638 = vmatpush1.msra.mxu0 0.0
        %2639 = vmatprep.subr.mxu0 0.0
        %2640 = vmatpush1.msra.mxu0 0.0
        %2641 = vmatprep.subr.mxu0 0.0
        %2642 = vmatpush1.msra.mxu0 0.0
        %2643 = vmatprep.subr.mxu0 0.0
        %2644 = vmatpush1.msra.mxu0 0.0
        %2645 = vmatprep.subr.mxu0 0.0
        %2646 = vmatpush1.msra.mxu0 0.0
        %2647 = vmatprep.subr.mxu0 0.0
        %2648 = vmatpush1.msra.mxu0 0.0
        %2649 = vmatprep.subr.mxu0 0.0
        %2650 = vmatpush1.msra.mxu0 0.0
        %2651 = vmatprep.mubr.f32.mxu0 0.0
        %2652 = vmatmul.mubr.f32.gmra.mrb[0].mxu0 %v2582
        %v2653 = vpop.f32.mrb[0].mxu0
        %v2654 = vadd.f32 0.0, %v2653
        %v2655 = vpop.f32.mrb[0].mxu0
        %2656 = vmatprep.mubr.f32.mxu0 0.0
        %2657 = vmatmul.mubr.f32.gmra.mrb[0].mxu0 %v2585
        %v2658 = vpop.f32.mrb[0].mxu0
        %v2659 = vadd.f32 0.0, %v2658
        %v2660 = vpop.f32.mrb[0].mxu0
        %2661 = vdwg.mxu0
        %v2662 = vadd.f32 %v2570, %v2654
        %v2663 = vadd.f32 %v2575, %v2659
        %v2665 = vsel %vm1994, %v2399, 0
        %v2668 = vsel %vm1994, %v2400, 0
        %2670 = vmatprep.subr.mxu0 0.0
        %2671 = vmatpush1.msra.mxu0 %v2402
        %2672 = vmatprep.subr.mxu0 0.0
        %2673 = vmatpush1.msra.mxu0 %v2403
        %2674 = vmatprep.subr.mxu0 0.0
        %2675 = vmatpush1.msra.mxu0 %v2404
        %2676 = vmatprep.subr.mxu0 0.0
        %2677 = vmatpush1.msra.mxu0 %v2405
        %2678 = vmatprep.subr.mxu0 0.0
        %2679 = vmatpush1.msra.mxu0 %v2406
        %2680 = vmatprep.subr.mxu0 0.0
        %2681 = vmatpush1.msra.mxu0 %v2407
        %2682 = vmatprep.subr.mxu0 0.0
        %2683 = vmatpush1.msra.mxu0 %v2408
        %2684 = vmatprep.subr.mxu0 0.0
        %2685 = vmatpush1.msra.mxu0 %v2409
        %2686 = vmatprep.subr.mxu0 0.0
        %2687 = vmatpush1.msra.mxu0 0.0
        %2688 = vmatprep.subr.mxu0 0.0
        %2689 = vmatpush1.msra.mxu0 0.0
        %2690 = vmatprep.subr.mxu0 0.0
        %2691 = vmatpush1.msra.mxu0 0.0
        %2692 = vmatprep.subr.mxu0 0.0
        %2693 = vmatpush1.msra.mxu0 0.0
        %2694 = vmatprep.subr.mxu0 0.0
        %2695 = vmatpush1.msra.mxu0 0.0
        %2696 = vmatprep.subr.mxu0 0.0
        %2697 = vmatpush1.msra.mxu0 0.0
        %2698 = vmatprep.subr.mxu0 0.0
        %2699 = vmatpush1.msra.mxu0 0.0
        %2700 = vmatprep.subr.mxu0 0.0
        %2701 = vmatpush1.msra.mxu0 0.0
        %2702 = vmatprep.subr.mxu0 0.0
        %2703 = vmatpush1.msra.mxu0 0.0
        %2704 = vmatprep.subr.mxu0 0.0
        %2705 = vmatpush1.msra.mxu0 0.0
        %2706 = vmatprep.subr.mxu0 0.0
        %2707 = vmatpush1.msra.mxu0 0.0
        %2708 = vmatprep.subr.mxu0 0.0
        %2709 = vmatpush1.msra.mxu0 0.0
        %2710 = vmatprep.subr.mxu0 0.0
        %2711 = vmatpush1.msra.mxu0 0.0
        %2712 = vmatprep.subr.mxu0 0.0
        %2713 = vmatpush1.msra.mxu0 0.0
        %2714 = vmatprep.subr.mxu0 0.0
        %2715 = vmatpush1.msra.mxu0 0.0
        %2716 = vmatprep.subr.mxu0 0.0
        %2717 = vmatpush1.msra.mxu0 0.0
        %2718 = vmatprep.subr.mxu0 0.0
        %2719 = vmatpush1.msra.mxu0 0.0
        %2720 = vmatprep.subr.mxu0 0.0
        %2721 = vmatpush1.msra.mxu0 0.0
        %2722 = vmatprep.subr.mxu0 0.0
        %2723 = vmatpush1.msra.mxu0 0.0
        %2724 = vmatprep.subr.mxu0 0.0
        %2725 = vmatpush1.msra.mxu0 0.0
        %2726 = vmatprep.subr.mxu0 0.0
        %2727 = vmatpush1.msra.mxu0 0.0
        %2728 = vmatprep.subr.mxu0 0.0
        %2729 = vmatpush1.msra.mxu0 0.0
        %2730 = vmatprep.subr.mxu0 0.0
        %2731 = vmatpush1.msra.mxu0 0.0
        %2732 = vmatprep.subr.mxu0 0.0
        %2733 = vmatpush1.msra.mxu0 0.0
        %2734 = vmatprep.mubr.f32.mxu0 0.0
        %2735 = vmatmul.mubr.f32.gmra.mrb[0].mxu0 %v2665
        %v2736 = vpop.f32.mrb[0].mxu0
        %v2737 = vadd.f32 %v2662, %v2736
        %v2738 = vpop.f32.mrb[0].mxu0
        %2739 = vmatprep.mubr.f32.mxu0 0.0
        %2740 = vmatmul.mubr.f32.gmra.mrb[0].mxu0 %v2668
        %v2741 = vpop.f32.mrb[0].mxu0
        %v2742 = vadd.f32 %v2663, %v2741
        %v2743 = vpop.f32.mrb[0].mxu0
        %2744 = vdwg.mxu0
        %s2745 = scalar_lea.vmem %s9, 96
        %v2746 = vld [vmem:[%s2745] sm:$0xff]
        %v2747 = vld [vmem:[%s2745 + $0x8] sm:$0xff]
        %s2748 = scalar_lea.vmem %s9, 112
        %v2749 = vld [vmem:[%s2748] sm:$0xff]
        %v2750 = vld [vmem:[%s2748 + $0x8] sm:$0xff]
        %v2752 = vsel %vm2152, %v2749, 0
        %v2755 = vsel %vm2152, %v2750, 0
        %2757 = vmatprep.subr.mxu0 0.0
        %2758 = vmatpush1.msra.mxu0 %v1983
        %2759 = vmatprep.subr.mxu0 0.0
        %2760 = vmatpush1.msra.mxu0 0.0
        %2761 = vmatprep.subr.mxu0 0.0
        %2762 = vmatpush1.msra.mxu0 0.0
        %2763 = vmatprep.subr.mxu0 0.0
        %2764 = vmatpush1.msra.mxu0 0.0
        %2765 = vmatprep.subr.mxu0 0.0
        %2766 = vmatpush1.msra.mxu0 0.0
        %2767 = vmatprep.subr.mxu0 0.0
        %2768 = vmatpush1.msra.mxu0 0.0
        %2769 = vmatprep.subr.mxu0 0.0
        %2770 = vmatpush1.msra.mxu0 0.0
        %2771 = vmatprep.subr.mxu0 0.0
        %2772 = vmatpush1.msra.mxu0 0.0
        %2773 = vmatprep.subr.mxu0 0.0
        %2774 = vmatpush1.msra.mxu0 0.0
        %2775 = vmatprep.subr.mxu0 0.0
        %2776 = vmatpush1.msra.mxu0 0.0
        %2777 = vmatprep.subr.mxu0 0.0
        %2778 = vmatpush1.msra.mxu0 0.0
        %2779 = vmatprep.subr.mxu0 0.0
        %2780 = vmatpush1.msra.mxu0 0.0
        %2781 = vmatprep.subr.mxu0 0.0
        %2782 = vmatpush1.msra.mxu0 0.0
        %2783 = vmatprep.subr.mxu0 0.0
        %2784 = vmatpush1.msra.mxu0 0.0
        %2785 = vmatprep.subr.mxu0 0.0
        %2786 = vmatpush1.msra.mxu0 0.0
        %2787 = vmatprep.subr.mxu0 0.0
        %2788 = vmatpush1.msra.mxu0 0.0
        %2789 = vmatprep.subr.mxu0 0.0
        %2790 = vmatpush1.msra.mxu0 0.0
        %2791 = vmatprep.subr.mxu0 0.0
        %2792 = vmatpush1.msra.mxu0 0.0
        %2793 = vmatprep.subr.mxu0 0.0
        %2794 = vmatpush1.msra.mxu0 0.0
        %2795 = vmatprep.subr.mxu0 0.0
        %2796 = vmatpush1.msra.mxu0 0.0
        %2797 = vmatprep.subr.mxu0 0.0
        %2798 = vmatpush1.msra.mxu0 0.0
        %2799 = vmatprep.subr.mxu0 0.0
        %2800 = vmatpush1.msra.mxu0 0.0
        %2801 = vmatprep.subr.mxu0 0.0
        %2802 = vmatpush1.msra.mxu0 0.0
        %2803 = vmatprep.subr.mxu0 0.0
        %2804 = vmatpush1.msra.mxu0 0.0
        %2805 = vmatprep.subr.mxu0 0.0
        %2806 = vmatpush1.msra.mxu0 0.0
        %2807 = vmatprep.subr.mxu0 0.0
        %2808 = vmatpush1.msra.mxu0 0.0
        %2809 = vmatprep.subr.mxu0 0.0
        %2810 = vmatpush1.msra.mxu0 0.0
        %2811 = vmatprep.subr.mxu0 0.0
        %2812 = vmatpush1.msra.mxu0 0.0
        %2813 = vmatprep.subr.mxu0 0.0
        %2814 = vmatpush1.msra.mxu0 0.0
        %2815 = vmatprep.subr.mxu0 0.0
        %2816 = vmatpush1.msra.mxu0 0.0
        %2817 = vmatprep.subr.mxu0 0.0
        %2818 = vmatpush1.msra.mxu0 0.0
        %2819 = vmatprep.subr.mxu0 0.0
        %2820 = vmatpush1.msra.mxu0 0.0
        %2821 = vmatprep.mubr.f32.mxu0 0.0
        %2822 = vmatmul.mubr.f32.gmra.mrb[0].mxu0 %v2752
        %v2823 = vpop.f32.mrb[0].mxu0
        %v2824 = vadd.f32 0.0, %v2823
        %v2825 = vpop.f32.mrb[0].mxu0
        %2826 = vmatprep.mubr.f32.mxu0 0.0
        %2827 = vmatmul.mubr.f32.gmra.mrb[0].mxu0 %v2755
        %v2828 = vpop.f32.mrb[0].mxu0
        %v2829 = vadd.f32 0.0, %v2828
        %v2830 = vpop.f32.mrb[0].mxu0
        %2831 = vdwg.mxu0
        %v2833 = vsel %vm2152, %v2746, 0
        %v2836 = vsel %vm2152, %v2747, 0
        %2838 = vmatprep.subr.mxu0 0.0
        %2839 = vmatpush1.msra.mxu0 %v2065
        %2840 = vmatprep.subr.mxu0 0.0
        %2841 = vmatpush1.msra.mxu0 0.0
        %2842 = vmatprep.subr.mxu0 0.0
        %2843 = vmatpush1.msra.mxu0 0.0
        %2844 = vmatprep.subr.mxu0 0.0
        %2845 = vmatpush1.msra.mxu0 0.0
        %2846 = vmatprep.subr.mxu0 0.0
        %2847 = vmatpush1.msra.mxu0 0.0
        %2848 = vmatprep.subr.mxu0 0.0
        %2849 = vmatpush1.msra.mxu0 0.0
        %2850 = vmatprep.subr.mxu0 0.0
        %2851 = vmatpush1.msra.mxu0 0.0
        %2852 = vmatprep.subr.mxu0 0.0
        %2853 = vmatpush1.msra.mxu0 0.0
        %2854 = vmatprep.subr.mxu0 0.0
        %2855 = vmatpush1.msra.mxu0 0.0
        %2856 = vmatprep.subr.mxu0 0.0
        %2857 = vmatpush1.msra.mxu0 0.0
        %2858 = vmatprep.subr.mxu0 0.0
        %2859 = vmatpush1.msra.mxu0 0.0
        %2860 = vmatprep.subr.mxu0 0.0
        %2861 = vmatpush1.msra.mxu0 0.0
        %2862 = vmatprep.subr.mxu0 0.0
        %2863 = vmatpush1.msra.mxu0 0.0
        %2864 = vmatprep.subr.mxu0 0.0
        %2865 = vmatpush1.msra.mxu0 0.0
        %2866 = vmatprep.subr.mxu0 0.0
        %2867 = vmatpush1.msra.mxu0 0.0
        %2868 = vmatprep.subr.mxu0 0.0
        %2869 = vmatpush1.msra.mxu0 0.0
        %2870 = vmatprep.subr.mxu0 0.0
        %2871 = vmatpush1.msra.mxu0 0.0
        %2872 = vmatprep.subr.mxu0 0.0
        %2873 = vmatpush1.msra.mxu0 0.0
        %2874 = vmatprep.subr.mxu0 0.0
        %2875 = vmatpush1.msra.mxu0 0.0
        %2876 = vmatprep.subr.mxu0 0.0
        %2877 = vmatpush1.msra.mxu0 0.0
        %2878 = vmatprep.subr.mxu0 0.0
        %2879 = vmatpush1.msra.mxu0 0.0
        %2880 = vmatprep.subr.mxu0 0.0
        %2881 = vmatpush1.msra.mxu0 0.0
        %2882 = vmatprep.subr.mxu0 0.0
        %2883 = vmatpush1.msra.mxu0 0.0
        %2884 = vmatprep.subr.mxu0 0.0
        %2885 = vmatpush1.msra.mxu0 0.0
        %2886 = vmatprep.subr.mxu0 0.0
        %2887 = vmatpush1.msra.mxu0 0.0
        %2888 = vmatprep.subr.mxu0 0.0
        %2889 = vmatpush1.msra.mxu0 0.0
        %2890 = vmatprep.subr.mxu0 0.0
        %2891 = vmatpush1.msra.mxu0 0.0
        %2892 = vmatprep.subr.mxu0 0.0
        %2893 = vmatpush1.msra.mxu0 0.0
        %2894 = vmatprep.subr.mxu0 0.0
        %2895 = vmatpush1.msra.mxu0 0.0
        %2896 = vmatprep.subr.mxu0 0.0
        %2897 = vmatpush1.msra.mxu0 0.0
        %2898 = vmatprep.subr.mxu0 0.0
        %2899 = vmatpush1.msra.mxu0 0.0
        %2900 = vmatprep.subr.mxu0 0.0
        %2901 = vmatpush1.msra.mxu0 0.0
        %2902 = vmatprep.mubr.f32.mxu0 0.0
        %2903 = vmatmul.mubr.f32.gmra.mrb[0].mxu0 %v2833
        %v2904 = vpop.f32.mrb[0].mxu0
        %v2905 = vadd.f32 %v2824, %v2904
        %v2906 = vpop.f32.mrb[0].mxu0
        %2907 = vmatprep.mubr.f32.mxu0 0.0
        %2908 = vmatmul.mubr.f32.gmra.mrb[0].mxu0 %v2836
        %v2909 = vpop.f32.mrb[0].mxu0
        %v2910 = vadd.f32 %v2829, %v2909
        %v2911 = vpop.f32.mrb[0].mxu0
        %2912 = vdwg.mxu0
        %s2913 = scalar_lea.vmem %s9, 128
        %v2914 = vld [vmem:[%s2913] sm:$0xff]
        %v2915 = vld [vmem:[%s2913 + $0x8] sm:$0xff]
        %v2917 = vsel %vm2152, %v2914, 0
        %v2920 = vsel %vm2152, %v2915, 0
        %2922 = vmatprep.subr.mxu0 0.0
        %2923 = vmatpush1.msra.mxu0 %v2144
        %2924 = vmatprep.subr.mxu0 0.0
        %2925 = vmatpush1.msra.mxu0 0.0
        %2926 = vmatprep.subr.mxu0 0.0
        %2927 = vmatpush1.msra.mxu0 0.0
        %2928 = vmatprep.subr.mxu0 0.0
        %2929 = vmatpush1.msra.mxu0 0.0
        %2930 = vmatprep.subr.mxu0 0.0
        %2931 = vmatpush1.msra.mxu0 0.0
        %2932 = vmatprep.subr.mxu0 0.0
        %2933 = vmatpush1.msra.mxu0 0.0
        %2934 = vmatprep.subr.mxu0 0.0
        %2935 = vmatpush1.msra.mxu0 0.0
        %2936 = vmatprep.subr.mxu0 0.0
        %2937 = vmatpush1.msra.mxu0 0.0
        %2938 = vmatprep.subr.mxu0 0.0
        %2939 = vmatpush1.msra.mxu0 0.0
        %2940 = vmatprep.subr.mxu0 0.0
        %2941 = vmatpush1.msra.mxu0 0.0
        %2942 = vmatprep.subr.mxu0 0.0
        %2943 = vmatpush1.msra.mxu0 0.0
        %2944 = vmatprep.subr.mxu0 0.0
        %2945 = vmatpush1.msra.mxu0 0.0
        %2946 = vmatprep.subr.mxu0 0.0
        %2947 = vmatpush1.msra.mxu0 0.0
        %2948 = vmatprep.subr.mxu0 0.0
        %2949 = vmatpush1.msra.mxu0 0.0
        %2950 = vmatprep.subr.mxu0 0.0
        %2951 = vmatpush1.msra.mxu0 0.0
        %2952 = vmatprep.subr.mxu0 0.0
        %2953 = vmatpush1.msra.mxu0 0.0
        %2954 = vmatprep.subr.mxu0 0.0
        %2955 = vmatpush1.msra.mxu0 0.0
        %2956 = vmatprep.subr.mxu0 0.0
        %2957 = vmatpush1.msra.mxu0 0.0
        %2958 = vmatprep.subr.mxu0 0.0
        %2959 = vmatpush1.msra.mxu0 0.0
        %2960 = vmatprep.subr.mxu0 0.0
        %2961 = vmatpush1.msra.mxu0 0.0
        %2962 = vmatprep.subr.mxu0 0.0
        %2963 = vmatpush1.msra.mxu0 0.0
        %2964 = vmatprep.subr.mxu0 0.0
        %2965 = vmatpush1.msra.mxu0 0.0
        %2966 = vmatprep.subr.mxu0 0.0
        %2967 = vmatpush1.msra.mxu0 0.0
        %2968 = vmatprep.subr.mxu0 0.0
        %2969 = vmatpush1.msra.mxu0 0.0
        %2970 = vmatprep.subr.mxu0 0.0
        %2971 = vmatpush1.msra.mxu0 0.0
        %2972 = vmatprep.subr.mxu0 0.0
        %2973 = vmatpush1.msra.mxu0 0.0
        %2974 = vmatprep.subr.mxu0 0.0
        %2975 = vmatpush1.msra.mxu0 0.0
        %2976 = vmatprep.subr.mxu0 0.0
        %2977 = vmatpush1.msra.mxu0 0.0
        %2978 = vmatprep.subr.mxu0 0.0
        %2979 = vmatpush1.msra.mxu0 0.0
        %2980 = vmatprep.subr.mxu0 0.0
        %2981 = vmatpush1.msra.mxu0 0.0
        %2982 = vmatprep.subr.mxu0 0.0
        %2983 = vmatpush1.msra.mxu0 0.0
        %2984 = vmatprep.subr.mxu0 0.0
        %2985 = vmatpush1.msra.mxu0 0.0
        %2986 = vmatprep.mubr.f32.mxu0 0.0
        %2987 = vmatmul.mubr.f32.gmra.mrb[0].mxu0 %v2917
        %v2988 = vpop.f32.mrb[0].mxu0
        %v2989 = vadd.f32 0.0, %v2988
        %v2990 = vpop.f32.mrb[0].mxu0
        %2991 = vmatprep.mubr.f32.mxu0 0.0
        %2992 = vmatmul.mubr.f32.gmra.mrb[0].mxu0 %v2920
        %v2993 = vpop.f32.mrb[0].mxu0
        %v2994 = vadd.f32 0.0, %v2993
        %v2995 = vpop.f32.mrb[0].mxu0
        %2996 = vdwg.mxu0
        %v2997 = vadd.f32 %v2905, %v2989
        %v2998 = vadd.f32 %v2910, %v2994
        %s2999 = scalar_lea.vmem %s2, 192
        %v3000 = vld [vmem:[%s2999] sm:$0xff]
        %v3001 = vld [vmem:[%s2999 + $0x8] sm:$0xff]
        %v3002 = vld [vmem:[%s2999 + $0x10] sm:$0xff]
        %v3003 = vld [vmem:[%s2999 + $0x18] sm:$0xff]
        %v3004 = vld [vmem:[%s2999 + $0x20] sm:$0xff]
        %v3005 = vld [vmem:[%s2999 + $0x28] sm:$0xff]
        %v3006 = vld [vmem:[%s2999 + $0x30] sm:$0xff]
        %v3007 = vld [vmem:[%s2999 + $0x38] sm:$0xff]
        %v3009 = vsel %vm1994, %v2997, 0
        %v3012 = vsel %vm1994, %v2998, 0
        %3014 = vmatprep.subr.mxu0 0.0
        %3015 = vmatpush1.msra.mxu0 %v3000
        %3016 = vmatprep.subr.mxu0 0.0
        %3017 = vmatpush1.msra.mxu0 %v3001
        %3018 = vmatprep.subr.mxu0 0.0
        %3019 = vmatpush1.msra.mxu0 %v3002
        %3020 = vmatprep.subr.mxu0 0.0
        %3021 = vmatpush1.msra.mxu0 %v3003
        %3022 = vmatprep.subr.mxu0 0.0
        %3023 = vmatpush1.msra.mxu0 %v3004
        %3024 = vmatprep.subr.mxu0 0.0
        %3025 = vmatpush1.msra.mxu0 %v3005
        %3026 = vmatprep.subr.mxu0 0.0
        %3027 = vmatpush1.msra.mxu0 %v3006
        %3028 = vmatprep.subr.mxu0 0.0
        %3029 = vmatpush1.msra.mxu0 %v3007
        %3030 = vmatprep.subr.mxu0 0.0
        %3031 = vmatpush1.msra.mxu0 0.0
        %3032 = vmatprep.subr.mxu0 0.0
        %3033 = vmatpush1.msra.mxu0 0.0
        %3034 = vmatprep.subr.mxu0 0.0
        %3035 = vmatpush1.msra.mxu0 0.0
        %3036 = vmatprep.subr.mxu0 0.0
        %3037 = vmatpush1.msra.mxu0 0.0
        %3038 = vmatprep.subr.mxu0 0.0
        %3039 = vmatpush1.msra.mxu0 0.0
        %3040 = vmatprep.subr.mxu0 0.0
        %3041 = vmatpush1.msra.mxu0 0.0
        %3042 = vmatprep.subr.mxu0 0.0
        %3043 = vmatpush1.msra.mxu0 0.0
        %3044 = vmatprep.subr.mxu0 0.0
        %3045 = vmatpush1.msra.mxu0 0.0
        %3046 = vmatprep.subr.mxu0 0.0
        %3047 = vmatpush1.msra.mxu0 0.0
        %3048 = vmatprep.subr.mxu0 0.0
        %3049 = vmatpush1.msra.mxu0 0.0
        %3050 = vmatprep.subr.mxu0 0.0
        %3051 = vmatpush1.msra.mxu0 0.0
        %3052 = vmatprep.subr.mxu0 0.0
        %3053 = vmatpush1.msra.mxu0 0.0
        %3054 = vmatprep.subr.mxu0 0.0
        %3055 = vmatpush1.msra.mxu0 0.0
        %3056 = vmatprep.subr.mxu0 0.0
        %3057 = vmatpush1.msra.mxu0 0.0
        %3058 = vmatprep.subr.mxu0 0.0
        %3059 = vmatpush1.msra.mxu0 0.0
        %3060 = vmatprep.subr.mxu0 0.0
        %3061 = vmatpush1.msra.mxu0 0.0
        %3062 = vmatprep.subr.mxu0 0.0
        %3063 = vmatpush1.msra.mxu0 0.0
        %3064 = vmatprep.subr.mxu0 0.0
        %3065 = vmatpush1.msra.mxu0 0.0
        %3066 = vmatprep.subr.mxu0 0.0
        %3067 = vmatpush1.msra.mxu0 0.0
        %3068 = vmatprep.subr.mxu0 0.0
        %3069 = vmatpush1.msra.mxu0 0.0
        %3070 = vmatprep.subr.mxu0 0.0
        %3071 = vmatpush1.msra.mxu0 0.0
        %3072 = vmatprep.subr.mxu0 0.0
        %3073 = vmatpush1.msra.mxu0 0.0
        %3074 = vmatprep.subr.mxu0 0.0
        %3075 = vmatpush1.msra.mxu0 0.0
        %3076 = vmatprep.subr.mxu0 0.0
        %3077 = vmatpush1.msra.mxu0 0.0
        %3078 = vmatprep.mubr.f32.mxu0 0.0
        %3079 = vmatmul.mubr.f32.gmra.mrb[0].mxu0 %v3009
        %v3080 = vpop.f32.mrb[0].mxu0
        %v3081 = vadd.f32 0.0, %v3080
        %v3082 = vpop.f32.mrb[0].mxu0
        %3083 = vmatprep.mubr.f32.mxu0 0.0
        %3084 = vmatmul.mubr.f32.gmra.mrb[0].mxu0 %v3012
        %v3085 = vpop.f32.mrb[0].mxu0
        %v3086 = vadd.f32 0.0, %v3085
        %v3087 = vpop.f32.mrb[0].mxu0
        %3088 = vdwg.mxu0
        %v3089 = vadd.f32 %v2737, %v3081
        %v3090 = vadd.f32 %v2742, %v3086
        %v3091 = vld [vmem:[%s10] sm:$0xff]
        %v3092 = vld [vmem:[%s10 + $0x8] sm:$0xff]
        %3094 = vset.pattern.permute.xlu0 0
        %3095 = vperm.xlu0 %3094, %v3091
        %v3096 = vpop.permute.xlu0 %3095
        %3099 = vset.pattern.permute.xlu0 0
        %3100 = vperm.xlu0 %3099, %v3092
        %v3101 = vpop.permute.xlu0 %3100
        %v3103 = vadd.f32 %v3089, %v3096
        %v3104 = vadd.f32 %v3090, %v3101
        %v3105 = vmax.f32 %v3103, 0.0
        %v3106 = vmax.f32 %v3104, 0.0
        %v3107 = vld [vmem:[%s4] sm:$0xff]
        %v3108 = vld [vmem:[%s4 + $0x8] sm:$0xff]
        %v3109 = vld [vmem:[%s4 + $0x10] sm:$0xff]
        %v3110 = vld [vmem:[%s4 + $0x18] sm:$0xff]
        %v3111 = vld [vmem:[%s4 + $0x20] sm:$0xff]
        %v3112 = vld [vmem:[%s4 + $0x28] sm:$0xff]
        %v3113 = vld [vmem:[%s4 + $0x30] sm:$0xff]
        %v3114 = vld [vmem:[%s4 + $0x38] sm:$0xff]
        %v3116 = vsel %vm1994, %v3105, 0
        %v3119 = vsel %vm1994, %v3106, 0
        %3121 = vmatprep.subr.mxu0 0.0
        %3122 = vmatpush1.msra.mxu0 %v3107
        %3123 = vmatprep.subr.mxu0 0.0
        %3124 = vmatpush1.msra.mxu0 %v3108
        %3125 = vmatprep.subr.mxu0 0.0
        %3126 = vmatpush1.msra.mxu0 %v3109
        %3127 = vmatprep.subr.mxu0 0.0
        %3128 = vmatpush1.msra.mxu0 %v3110
        %3129 = vmatprep.subr.mxu0 0.0
        %3130 = vmatpush1.msra.mxu0 %v3111
        %3131 = vmatprep.subr.mxu0 0.0
        %3132 = vmatpush1.msra.mxu0 %v3112
        %3133 = vmatprep.subr.mxu0 0.0
        %3134 = vmatpush1.msra.mxu0 %v3113
        %3135 = vmatprep.subr.mxu0 0.0
        %3136 = vmatpush1.msra.mxu0 %v3114
        %3137 = vmatprep.subr.mxu0 0.0
        %3138 = vmatpush1.msra.mxu0 0.0
        %3139 = vmatprep.subr.mxu0 0.0
        %3140 = vmatpush1.msra.mxu0 0.0
        %3141 = vmatprep.subr.mxu0 0.0
        %3142 = vmatpush1.msra.mxu0 0.0
        %3143 = vmatprep.subr.mxu0 0.0
        %3144 = vmatpush1.msra.mxu0 0.0
        %3145 = vmatprep.subr.mxu0 0.0
        %3146 = vmatpush1.msra.mxu0 0.0
        %3147 = vmatprep.subr.mxu0 0.0
        %3148 = vmatpush1.msra.mxu0 0.0
        %3149 = vmatprep.subr.mxu0 0.0
        %3150 = vmatpush1.msra.mxu0 0.0
        %3151 = vmatprep.subr.mxu0 0.0
        %3152 = vmatpush1.msra.mxu0 0.0
        %3153 = vmatprep.subr.mxu0 0.0
        %3154 = vmatpush1.msra.mxu0 0.0
        %3155 = vmatprep.subr.mxu0 0.0
        %3156 = vmatpush1.msra.mxu0 0.0
        %3157 = vmatprep.subr.mxu0 0.0
        %3158 = vmatpush1.msra.mxu0 0.0
        %3159 = vmatprep.subr.mxu0 0.0
        %3160 = vmatpush1.msra.mxu0 0.0
        %3161 = vmatprep.subr.mxu0 0.0
        %3162 = vmatpush1.msra.mxu0 0.0
        %3163 = vmatprep.subr.mxu0 0.0
        %3164 = vmatpush1.msra.mxu0 0.0
        %3165 = vmatprep.subr.mxu0 0.0
        %3166 = vmatpush1.msra.mxu0 0.0
        %3167 = vmatprep.subr.mxu0 0.0
        %3168 = vmatpush1.msra.mxu0 0.0
        %3169 = vmatprep.subr.mxu0 0.0
        %3170 = vmatpush1.msra.mxu0 0.0
        %3171 = vmatprep.subr.mxu0 0.0
        %3172 = vmatpush1.msra.mxu0 0.0
        %3173 = vmatprep.subr.mxu0 0.0
        %3174 = vmatpush1.msra.mxu0 0.0
        %3175 = vmatprep.subr.mxu0 0.0
        %3176 = vmatpush1.msra.mxu0 0.0
        %3177 = vmatprep.subr.mxu0 0.0
        %3178 = vmatpush1.msra.mxu0 0.0
        %3179 = vmatprep.subr.mxu0 0.0
        %3180 = vmatpush1.msra.mxu0 0.0
        %3181 = vmatprep.subr.mxu0 0.0
        %3182 = vmatpush1.msra.mxu0 0.0
        %3183 = vmatprep.subr.mxu0 0.0
        %3184 = vmatpush1.msra.mxu0 0.0
        %3185 = vmatprep.mubr.f32.mxu0 0.0
        %3186 = vmatmul.mubr.f32.gmra.mrb[0].mxu0 %v3116
        %v3187 = vpop.f32.mrb[0].mxu0
        %v3188 = vadd.f32 0.0, %v3187
        %v3189 = vpop.f32.mrb[0].mxu0
        %3190 = vmatprep.mubr.f32.mxu0 0.0
        %3191 = vmatmul.mubr.f32.gmra.mrb[0].mxu0 %v3119
        %v3192 = vpop.f32.mrb[0].mxu0
        %v3193 = vadd.f32 0.0, %v3192
        %v3194 = vpop.f32.mrb[0].mxu0
        %3195 = vdwg.mxu0
        %v3196 = vld [vmem:[%s5] sm:$0xff]
        %v3197 = vld [vmem:[%s5 + $0x8] sm:$0xff]
        %vm3198 = vcmask 130048
        %v3200 = vsel %vm3198, %v3188, 0
        %v3203 = vsel %vm3198, %v3193, 0
        %3205 = vmatprep.subr.mxu0 0.0
        %3206 = vmatpush1.msra.mxu0 %v3196
        %3207 = vmatprep.subr.mxu0 0.0
        %3208 = vmatpush1.msra.mxu0 %v3197
        %3209 = vmatprep.subr.mxu0 0.0
        %3210 = vmatpush1.msra.mxu0 0.0
        %3211 = vmatprep.subr.mxu0 0.0
        %3212 = vmatpush1.msra.mxu0 0.0
        %3213 = vmatprep.subr.mxu0 0.0
        %3214 = vmatpush1.msra.mxu0 0.0
        %3215 = vmatprep.subr.mxu0 0.0
        %3216 = vmatpush1.msra.mxu0 0.0
        %3217 = vmatprep.subr.mxu0 0.0
        %3218 = vmatpush1.msra.mxu0 0.0
        %3219 = vmatprep.subr.mxu0 0.0
        %3220 = vmatpush1.msra.mxu0 0.0
        %3221 = vmatprep.subr.mxu0 0.0
        %3222 = vmatpush1.msra.mxu0 0.0
        %3223 = vmatprep.subr.mxu0 0.0
        %3224 = vmatpush1.msra.mxu0 0.0
        %3225 = vmatprep.subr.mxu0 0.0
        %3226 = vmatpush1.msra.mxu0 0.0
        %3227 = vmatprep.subr.mxu0 0.0
        %3228 = vmatpush1.msra.mxu0 0.0
        %3229 = vmatprep.subr.mxu0 0.0
        %3230 = vmatpush1.msra.mxu0 0.0
        %3231 = vmatprep.subr.mxu0 0.0
        %3232 = vmatpush1.msra.mxu0 0.0
        %3233 = vmatprep.subr.mxu0 0.0
        %3234 = vmatpush1.msra.mxu0 0.0
        %3235 = vmatprep.subr.mxu0 0.0
        %3236 = vmatpush1.msra.mxu0 0.0
        %3237 = vmatprep.subr.mxu0 0.0
        %3238 = vmatpush1.msra.mxu0 0.0
        %3239 = vmatprep.subr.mxu0 0.0
        %3240 = vmatpush1.msra.mxu0 0.0
        %3241 = vmatprep.subr.mxu0 0.0
        %3242 = vmatpush1.msra.mxu0 0.0
        %3243 = vmatprep.subr.mxu0 0.0
        %3244 = vmatpush1.msra.mxu0 0.0
        %3245 = vmatprep.subr.mxu0 0.0
        %3246 = vmatpush1.msra.mxu0 0.0
        %3247 = vmatprep.subr.mxu0 0.0
        %3248 = vmatpush1.msra.mxu0 0.0
        %3249 = vmatprep.subr.mxu0 0.0
        %3250 = vmatpush1.msra.mxu0 0.0
        %3251 = vmatprep.subr.mxu0 0.0
        %3252 = vmatpush1.msra.mxu0 0.0
        %3253 = vmatprep.subr.mxu0 0.0
        %3254 = vmatpush1.msra.mxu0 0.0
        %3255 = vmatprep.subr.mxu0 0.0
        %3256 = vmatpush1.msra.mxu0 0.0
        %3257 = vmatprep.subr.mxu0 0.0
        %3258 = vmatpush1.msra.mxu0 0.0
        %3259 = vmatprep.subr.mxu0 0.0
        %3260 = vmatpush1.msra.mxu0 0.0
        %3261 = vmatprep.subr.mxu0 0.0
        %3262 = vmatpush1.msra.mxu0 0.0
        %3263 = vmatprep.subr.mxu0 0.0
        %3264 = vmatpush1.msra.mxu0 0.0
        %3265 = vmatprep.subr.mxu0 0.0
        %3266 = vmatpush1.msra.mxu0 0.0
        %3267 = vmatprep.subr.mxu0 0.0
        %3268 = vmatpush1.msra.mxu0 0.0
        %3269 = vmatprep.mubr.f32.mxu0 0.0
        %3270 = vmatmul.mubr.f32.gmra.mrb[0].mxu0 %v3200
        %v3271 = vpop.f32.mrb[0].mxu0
        %v3272 = vadd.f32 0.0, %v3271
        %v3273 = vpop.f32.mrb[0].mxu0
        %3274 = vmatprep.mubr.f32.mxu0 0.0
        %3275 = vmatmul.mubr.f32.gmra.mrb[0].mxu0 %v3203
        %v3276 = vpop.f32.mrb[0].mxu0
        %v3277 = vadd.f32 0.0, %v3276
        %v3278 = vpop.f32.mrb[0].mxu0
        %3279 = vdwg.mxu0
        %v3281 = vsel %vm1994, %v3272, 0
        %v3284 = vsel %vm1994, %v3277, 0
        %3286 = vmatprep.subr.mxu0 0.0
        %3287 = vmatpush1.msra.mxu0 %v1986
        %3288 = vmatprep.subr.mxu0 0.0
        %3289 = vmatpush1.msra.mxu0 %v1987
        %3290 = vmatprep.subr.mxu0 0.0
        %3291 = vmatpush1.msra.mxu0 %v1988
        %3292 = vmatprep.subr.mxu0 0.0
        %3293 = vmatpush1.msra.mxu0 %v1989
        %3294 = vmatprep.subr.mxu0 0.0
        %3295 = vmatpush1.msra.mxu0 %v1990
        %3296 = vmatprep.subr.mxu0 0.0
        %3297 = vmatpush1.msra.mxu0 %v1991
        %3298 = vmatprep.subr.mxu0 0.0
        %3299 = vmatpush1.msra.mxu0 %v1992
        %3300 = vmatprep.subr.mxu0 0.0
        %3301 = vmatpush1.msra.mxu0 %v1993
        %3302 = vmatprep.subr.mxu0 0.0
        %3303 = vmatpush1.msra.mxu0 0.0
        %3304 = vmatprep.subr.mxu0 0.0
        %3305 = vmatpush1.msra.mxu0 0.0
        %3306 = vmatprep.subr.mxu0 0.0
        %3307 = vmatpush1.msra.mxu0 0.0
        %3308 = vmatprep.subr.mxu0 0.0
        %3309 = vmatpush1.msra.mxu0 0.0
        %3310 = vmatprep.subr.mxu0 0.0
        %3311 = vmatpush1.msra.mxu0 0.0
        %3312 = vmatprep.subr.mxu0 0.0
        %3313 = vmatpush1.msra.mxu0 0.0
        %3314 = vmatprep.subr.mxu0 0.0
        %3315 = vmatpush1.msra.mxu0 0.0
        %3316 = vmatprep.subr.mxu0 0.0
        %3317 = vmatpush1.msra.mxu0 0.0
        %3318 = vmatprep.subr.mxu0 0.0
        %3319 = vmatpush1.msra.mxu0 0.0
        %3320 = vmatprep.subr.mxu0 0.0
        %3321 = vmatpush1.msra.mxu0 0.0
        %3322 = vmatprep.subr.mxu0 0.0
        %3323 = vmatpush1.msra.mxu0 0.0
        %3324 = vmatprep.subr.mxu0 0.0
        %3325 = vmatpush1.msra.mxu0 0.0
        %3326 = vmatprep.subr.mxu0 0.0
        %3327 = vmatpush1.msra.mxu0 0.0
        %3328 = vmatprep.subr.mxu0 0.0
        %3329 = vmatpush1.msra.mxu0 0.0
        %3330 = vmatprep.subr.mxu0 0.0
        %3331 = vmatpush1.msra.mxu0 0.0
        %3332 = vmatprep.subr.mxu0 0.0
        %3333 = vmatpush1.msra.mxu0 0.0
        %3334 = vmatprep.subr.mxu0 0.0
        %3335 = vmatpush1.msra.mxu0 0.0
        %3336 = vmatprep.subr.mxu0 0.0
        %3337 = vmatpush1.msra.mxu0 0.0
        %3338 = vmatprep.subr.mxu0 0.0
        %3339 = vmatpush1.msra.mxu0 0.0
        %3340 = vmatprep.subr.mxu0 0.0
        %3341 = vmatpush1.msra.mxu0 0.0
        %3342 = vmatprep.subr.mxu0 0.0
        %3343 = vmatpush1.msra.mxu0 0.0
        %3344 = vmatprep.subr.mxu0 0.0
        %3345 = vmatpush1.msra.mxu0 0.0
        %3346 = vmatprep.subr.mxu0 0.0
        %3347 = vmatpush1.msra.mxu0 0.0
        %3348 = vmatprep.subr.mxu0 0.0
        %3349 = vmatpush1.msra.mxu0 0.0
        %3350 = vmatprep.mubr.f32.mxu0 0.0
        %3351 = vmatmul.mubr.f32.gmra.mrb[0].mxu0 %v3281
        %v3352 = vpop.f32.mrb[0].mxu0
        %v3353 = vadd.f32 0.0, %v3352
        %v3354 = vpop.f32.mrb[0].mxu0
        %3355 = vmatprep.mubr.f32.mxu0 0.0
        %3356 = vmatmul.mubr.f32.gmra.mrb[0].mxu0 %v3284
        %v3357 = vpop.f32.mrb[0].mxu0
        %v3358 = vadd.f32 0.0, %v3357
        %v3359 = vpop.f32.mrb[0].mxu0
        %3360 = vdwg.mxu0
        %3361 = vmatprep.subr.mxu0 0.0
        %3362 = vmatpush1.msra.mxu0 %v2069
        %3363 = vmatprep.subr.mxu0 0.0
        %3364 = vmatpush1.msra.mxu0 %v2070
        %3365 = vmatprep.subr.mxu0 0.0
        %3366 = vmatpush1.msra.mxu0 %v2071
        %3367 = vmatprep.subr.mxu0 0.0
        %3368 = vmatpush1.msra.mxu0 %v2072
        %3369 = vmatprep.subr.mxu0 0.0
        %3370 = vmatpush1.msra.mxu0 %v2073
        %3371 = vmatprep.subr.mxu0 0.0
        %3372 = vmatpush1.msra.mxu0 %v2074
        %3373 = vmatprep.subr.mxu0 0.0
        %3374 = vmatpush1.msra.mxu0 %v2075
        %3375 = vmatprep.subr.mxu0 0.0
        %3376 = vmatpush1.msra.mxu0 %v2076
        %3377 = vmatprep.subr.mxu0 0.0
        %3378 = vmatpush1.msra.mxu0 0.0
        %3379 = vmatprep.subr.mxu0 0.0
        %3380 = vmatpush1.msra.mxu0 0.0
        %3381 = vmatprep.subr.mxu0 0.0
        %3382 = vmatpush1.msra.mxu0 0.0
        %3383 = vmatprep.subr.mxu0 0.0
        %3384 = vmatpush1.msra.mxu0 0.0
        %3385 = vmatprep.subr.mxu0 0.0
        %3386 = vmatpush1.msra.mxu0 0.0
        %3387 = vmatprep.subr.mxu0 0.0
        %3388 = vmatpush1.msra.mxu0 0.0
        %3389 = vmatprep.subr.mxu0 0.0
        %3390 = vmatpush1.msra.mxu0 0.0
        %3391 = vmatprep.subr.mxu0 0.0
        %3392 = vmatpush1.msra.mxu0 0.0
        %3393 = vmatprep.subr.mxu0 0.0
        %3394 = vmatpush1.msra.mxu0 0.0
        %3395 = vmatprep.subr.mxu0 0.0
        %3396 = vmatpush1.msra.mxu0 0.0
        %3397 = vmatprep.subr.mxu0 0.0
        %3398 = vmatpush1.msra.mxu0 0.0
        %3399 = vmatprep.subr.mxu0 0.0
        %3400 = vmatpush1.msra.mxu0 0.0
        %3401 = vmatprep.subr.mxu0 0.0
        %3402 = vmatpush1.msra.mxu0 0.0
        %3403 = vmatprep.subr.mxu0 0.0
        %3404 = vmatpush1.msra.mxu0 0.0
        %3405 = vmatprep.subr.mxu0 0.0
        %3406 = vmatpush1.msra.mxu0 0.0
        %3407 = vmatprep.subr.mxu0 0.0
        %3408 = vmatpush1.msra.mxu0 0.0
        %3409 = vmatprep.subr.mxu0 0.0
        %3410 = vmatpush1.msra.mxu0 0.0
        %3411 = vmatprep.subr.mxu0 0.0
        %3412 = vmatpush1.msra.mxu0 0.0
        %3413 = vmatprep.subr.mxu0 0.0
        %3414 = vmatpush1.msra.mxu0 0.0
        %3415 = vmatprep.subr.mxu0 0.0
        %3416 = vmatpush1.msra.mxu0 0.0
        %3417 = vmatprep.subr.mxu0 0.0
        %3418 = vmatpush1.msra.mxu0 0.0
        %3419 = vmatprep.subr.mxu0 0.0
        %3420 = vmatpush1.msra.mxu0 0.0
        %3421 = vmatprep.subr.mxu0 0.0
        %3422 = vmatpush1.msra.mxu0 0.0
        %3423 = vmatprep.subr.mxu0 0.0
        %3424 = vmatpush1.msra.mxu0 0.0
        %3425 = vmatprep.mubr.f32.mxu0 0.0
        %3426 = vmatmul.mubr.f32.gmra.mrb[0].mxu0 %v3281
        %v3427 = vpop.f32.mrb[0].mxu0
        %v3428 = vadd.f32 0.0, %v3427
        %v3429 = vpop.f32.mrb[0].mxu0
        %3430 = vmatprep.mubr.f32.mxu0 0.0
        %3431 = vmatmul.mubr.f32.gmra.mrb[0].mxu0 %v3284
        %v3432 = vpop.f32.mrb[0].mxu0
        %v3433 = vadd.f32 0.0, %v3432
        %v3434 = vpop.f32.mrb[0].mxu0
        %3435 = vdwg.mxu0
        %v3436 = vld [vmem:[%s11] sm:$0xff]
        %v3437 = vld [vmem:[%s11 + $0x8] sm:$0xff]
        %v3438 = vld [vmem:[%s12] sm:$0xff]
        %v3439 = vld [vmem:[%s12 + $0x8] sm:$0xff]
        %v3441 = vsel %vm2152, %v3438, 0
        %v3444 = vsel %vm2152, %v3439, 0
        %3446 = vmatprep.subr.mxu0 0.0
        %3447 = vmatpush1.msra.mxu0 %v2065
        %3448 = vmatprep.subr.mxu0 0.0
        %3449 = vmatpush1.msra.mxu0 0.0
        %3450 = vmatprep.subr.mxu0 0.0
        %3451 = vmatpush1.msra.mxu0 0.0
        %3452 = vmatprep.subr.mxu0 0.0
        %3453 = vmatpush1.msra.mxu0 0.0
        %3454 = vmatprep.subr.mxu0 0.0
        %3455 = vmatpush1.msra.mxu0 0.0
        %3456 = vmatprep.subr.mxu0 0.0
        %3457 = vmatpush1.msra.mxu0 0.0
        %3458 = vmatprep.subr.mxu0 0.0
        %3459 = vmatpush1.msra.mxu0 0.0
        %3460 = vmatprep.subr.mxu0 0.0
        %3461 = vmatpush1.msra.mxu0 0.0
        %3462 = vmatprep.subr.mxu0 0.0
        %3463 = vmatpush1.msra.mxu0 0.0
        %3464 = vmatprep.subr.mxu0 0.0
        %3465 = vmatpush1.msra.mxu0 0.0
        %3466 = vmatprep.subr.mxu0 0.0
        %3467 = vmatpush1.msra.mxu0 0.0
        %3468 = vmatprep.subr.mxu0 0.0
        %3469 = vmatpush1.msra.mxu0 0.0
        %3470 = vmatprep.subr.mxu0 0.0
        %3471 = vmatpush1.msra.mxu0 0.0
        %3472 = vmatprep.subr.mxu0 0.0
        %3473 = vmatpush1.msra.mxu0 0.0
        %3474 = vmatprep.subr.mxu0 0.0
        %3475 = vmatpush1.msra.mxu0 0.0
        %3476 = vmatprep.subr.mxu0 0.0
        %3477 = vmatpush1.msra.mxu0 0.0
        %3478 = vmatprep.subr.mxu0 0.0
        %3479 = vmatpush1.msra.mxu0 0.0
        %3480 = vmatprep.subr.mxu0 0.0
        %3481 = vmatpush1.msra.mxu0 0.0
        %3482 = vmatprep.subr.mxu0 0.0
        %3483 = vmatpush1.msra.mxu0 0.0
        %3484 = vmatprep.subr.mxu0 0.0
        %3485 = vmatpush1.msra.mxu0 0.0
        %3486 = vmatprep.subr.mxu0 0.0
        %3487 = vmatpush1.msra.mxu0 0.0
        %3488 = vmatprep.subr.mxu0 0.0
        %3489 = vmatpush1.msra.mxu0 0.0
        %3490 = vmatprep.subr.mxu0 0.0
        %3491 = vmatpush1.msra.mxu0 0.0
        %3492 = vmatprep.subr.mxu0 0.0
        %3493 = vmatpush1.msra.mxu0 0.0
        %3494 = vmatprep.subr.mxu0 0.0
        %3495 = vmatpush1.msra.mxu0 0.0
        %3496 = vmatprep.subr.mxu0 0.0
        %3497 = vmatpush1.msra.mxu0 0.0
        %3498 = vmatprep.subr.mxu0 0.0
        %3499 = vmatpush1.msra.mxu0 0.0
        %3500 = vmatprep.subr.mxu0 0.0
        %3501 = vmatpush1.msra.mxu0 0.0
        %3502 = vmatprep.subr.mxu0 0.0
        %3503 = vmatpush1.msra.mxu0 0.0
        %3504 = vmatprep.subr.mxu0 0.0
        %3505 = vmatpush1.msra.mxu0 0.0
        %3506 = vmatprep.subr.mxu0 0.0
        %3507 = vmatpush1.msra.mxu0 0.0
        %3508 = vmatprep.subr.mxu0 0.0
        %3509 = vmatpush1.msra.mxu0 0.0
        %3510 = vmatprep.mubr.f32.mxu0 0.0
        %3511 = vmatmul.mubr.f32.gmra.mrb[0].mxu0 %v3441
        %v3512 = vpop.f32.mrb[0].mxu0
        %v3513 = vadd.f32 0.0, %v3512
        %v3514 = vpop.f32.mrb[0].mxu0
        %3515 = vmatprep.mubr.f32.mxu0 0.0
        %3516 = vmatmul.mubr.f32.gmra.mrb[0].mxu0 %v3444
        %v3517 = vpop.f32.mrb[0].mxu0
        %v3518 = vadd.f32 0.0, %v3517
        %v3519 = vpop.f32.mrb[0].mxu0
        %3520 = vdwg.mxu0
        %v3522 = vsel %vm3198, %v3436, 0
        %v3525 = vsel %vm3198, %v3437, 0
        %3527 = vmatprep.subr.mxu0 0.0
        %3528 = vmatpush1.msra.mxu0 %v3353
        %3529 = vmatprep.subr.mxu0 0.0
        %3530 = vmatpush1.msra.mxu0 %v3358
        %3531 = vmatprep.subr.mxu0 0.0
        %3532 = vmatpush1.msra.mxu0 0.0
        %3533 = vmatprep.subr.mxu0 0.0
        %3534 = vmatpush1.msra.mxu0 0.0
        %3535 = vmatprep.subr.mxu0 0.0
        %3536 = vmatpush1.msra.mxu0 0.0
        %3537 = vmatprep.subr.mxu0 0.0
        %3538 = vmatpush1.msra.mxu0 0.0
        %3539 = vmatprep.subr.mxu0 0.0
        %3540 = vmatpush1.msra.mxu0 0.0
        %3541 = vmatprep.subr.mxu0 0.0
        %3542 = vmatpush1.msra.mxu0 0.0
        %3543 = vmatprep.subr.mxu0 0.0
        %3544 = vmatpush1.msra.mxu0 0.0
        %3545 = vmatprep.subr.mxu0 0.0
        %3546 = vmatpush1.msra.mxu0 0.0
        %3547 = vmatprep.subr.mxu0 0.0
        %3548 = vmatpush1.msra.mxu0 0.0
        %3549 = vmatprep.subr.mxu0 0.0
        %3550 = vmatpush1.msra.mxu0 0.0
        %3551 = vmatprep.subr.mxu0 0.0
        %3552 = vmatpush1.msra.mxu0 0.0
        %3553 = vmatprep.subr.mxu0 0.0
        %3554 = vmatpush1.msra.mxu0 0.0
        %3555 = vmatprep.subr.mxu0 0.0
        %3556 = vmatpush1.msra.mxu0 0.0
        %3557 = vmatprep.subr.mxu0 0.0
        %3558 = vmatpush1.msra.mxu0 0.0
        %3559 = vmatprep.subr.mxu0 0.0
        %3560 = vmatpush1.msra.mxu0 0.0
        %3561 = vmatprep.subr.mxu0 0.0
        %3562 = vmatpush1.msra.mxu0 0.0
        %3563 = vmatprep.subr.mxu0 0.0
        %3564 = vmatpush1.msra.mxu0 0.0
        %3565 = vmatprep.subr.mxu0 0.0
        %3566 = vmatpush1.msra.mxu0 0.0
        %3567 = vmatprep.subr.mxu0 0.0
        %3568 = vmatpush1.msra.mxu0 0.0
        %3569 = vmatprep.subr.mxu0 0.0
        %3570 = vmatpush1.msra.mxu0 0.0
        %3571 = vmatprep.subr.mxu0 0.0
        %3572 = vmatpush1.msra.mxu0 0.0
        %3573 = vmatprep.subr.mxu0 0.0
        %3574 = vmatpush1.msra.mxu0 0.0
        %3575 = vmatprep.subr.mxu0 0.0
        %3576 = vmatpush1.msra.mxu0 0.0
        %3577 = vmatprep.subr.mxu0 0.0
        %3578 = vmatpush1.msra.mxu0 0.0
        %3579 = vmatprep.subr.mxu0 0.0
        %3580 = vmatpush1.msra.mxu0 0.0
        %3581 = vmatprep.subr.mxu0 0.0
        %3582 = vmatpush1.msra.mxu0 0.0
        %3583 = vmatprep.subr.mxu0 0.0
        %3584 = vmatpush1.msra.mxu0 0.0
        %3585 = vmatprep.subr.mxu0 0.0
        %3586 = vmatpush1.msra.mxu0 0.0
        %3587 = vmatprep.subr.mxu0 0.0
        %3588 = vmatpush1.msra.mxu0 0.0
        %3589 = vmatprep.subr.mxu0 0.0
        %3590 = vmatpush1.msra.mxu0 0.0
        %3591 = vmatprep.mubr.f32.mxu0 0.0
        %3592 = vmatmul.mubr.f32.gmra.mrb[0].mxu0 %v3522
        %v3593 = vpop.f32.mrb[0].mxu0
        %v3594 = vadd.f32 %v3513, %v3593
        %v3595 = vpop.f32.mrb[0].mxu0
        %3596 = vmatprep.mubr.f32.mxu0 0.0
        %3597 = vmatmul.mubr.f32.gmra.mrb[0].mxu0 %v3525
        %v3598 = vpop.f32.mrb[0].mxu0
        %v3599 = vadd.f32 %v3518, %v3598
        %v3600 = vpop.f32.mrb[0].mxu0
        %3601 = vdwg.mxu0
        %s3602 = scalar_lea.vmem %s11, 16
        %v3603 = vld [vmem:[%s3602] sm:$0xff]
        %v3604 = vld [vmem:[%s3602 + $0x8] sm:$0xff]
        %v3606 = vsel %vm3198, %v3603, 0
        %v3609 = vsel %vm3198, %v3604, 0
        %3611 = vmatprep.subr.mxu0 0.0
        %3612 = vmatpush1.msra.mxu0 %v3272
        %3613 = vmatprep.subr.mxu0 0.0
        %3614 = vmatpush1.msra.mxu0 %v3277
        %3615 = vmatprep.subr.mxu0 0.0
        %3616 = vmatpush1.msra.mxu0 0.0
        %3617 = vmatprep.subr.mxu0 0.0
        %3618 = vmatpush1.msra.mxu0 0.0
        %3619 = vmatprep.subr.mxu0 0.0
        %3620 = vmatpush1.msra.mxu0 0.0
        %3621 = vmatprep.subr.mxu0 0.0
        %3622 = vmatpush1.msra.mxu0 0.0
        %3623 = vmatprep.subr.mxu0 0.0
        %3624 = vmatpush1.msra.mxu0 0.0
        %3625 = vmatprep.subr.mxu0 0.0
        %3626 = vmatpush1.msra.mxu0 0.0
        %3627 = vmatprep.subr.mxu0 0.0
        %3628 = vmatpush1.msra.mxu0 0.0
        %3629 = vmatprep.subr.mxu0 0.0
        %3630 = vmatpush1.msra.mxu0 0.0
        %3631 = vmatprep.subr.mxu0 0.0
        %3632 = vmatpush1.msra.mxu0 0.0
        %3633 = vmatprep.subr.mxu0 0.0
        %3634 = vmatpush1.msra.mxu0 0.0
        %3635 = vmatprep.subr.mxu0 0.0
        %3636 = vmatpush1.msra.mxu0 0.0
        %3637 = vmatprep.subr.mxu0 0.0
        %3638 = vmatpush1.msra.mxu0 0.0
        %3639 = vmatprep.subr.mxu0 0.0
        %3640 = vmatpush1.msra.mxu0 0.0
        %3641 = vmatprep.subr.mxu0 0.0
        %3642 = vmatpush1.msra.mxu0 0.0
        %3643 = vmatprep.subr.mxu0 0.0
        %3644 = vmatpush1.msra.mxu0 0.0
        %3645 = vmatprep.subr.mxu0 0.0
        %3646 = vmatpush1.msra.mxu0 0.0
        %3647 = vmatprep.subr.mxu0 0.0
        %3648 = vmatpush1.msra.mxu0 0.0
        %3649 = vmatprep.subr.mxu0 0.0
        %3650 = vmatpush1.msra.mxu0 0.0
        %3651 = vmatprep.subr.mxu0 0.0
        %3652 = vmatpush1.msra.mxu0 0.0
        %3653 = vmatprep.subr.mxu0 0.0
        %3654 = vmatpush1.msra.mxu0 0.0
        %3655 = vmatprep.subr.mxu0 0.0
        %3656 = vmatpush1.msra.mxu0 0.0
        %3657 = vmatprep.subr.mxu0 0.0
        %3658 = vmatpush1.msra.mxu0 0.0
        %3659 = vmatprep.subr.mxu0 0.0
        %3660 = vmatpush1.msra.mxu0 0.0
        %3661 = vmatprep.subr.mxu0 0.0
        %3662 = vmatpush1.msra.mxu0 0.0
        %3663 = vmatprep.subr.mxu0 0.0
        %3664 = vmatpush1.msra.mxu0 0.0
        %3665 = vmatprep.subr.mxu0 0.0
        %3666 = vmatpush1.msra.mxu0 0.0
        %3667 = vmatprep.subr.mxu0 0.0
        %3668 = vmatpush1.msra.mxu0 0.0
        %3669 = vmatprep.subr.mxu0 0.0
        %3670 = vmatpush1.msra.mxu0 0.0
        %3671 = vmatprep.subr.mxu0 0.0
        %3672 = vmatpush1.msra.mxu0 0.0
        %3673 = vmatprep.subr.mxu0 0.0
        %3674 = vmatpush1.msra.mxu0 0.0
        %3675 = vmatprep.mubr.f32.mxu0 0.0
        %3676 = vmatmul.mubr.f32.gmra.mrb[0].mxu0 %v3606
        %v3677 = vpop.f32.mrb[0].mxu0
        %v3678 = vadd.f32 0.0, %v3677
        %v3679 = vpop.f32.mrb[0].mxu0
        %3680 = vmatprep.mubr.f32.mxu0 0.0
        %3681 = vmatmul.mubr.f32.gmra.mrb[0].mxu0 %v3609
        %v3682 = vpop.f32.mrb[0].mxu0
        %v3683 = vadd.f32 0.0, %v3682
        %v3684 = vpop.f32.mrb[0].mxu0
        %3685 = vdwg.mxu0
        %v3686 = vadd.f32 %v3594, %v3678
        %v3687 = vadd.f32 %v3599, %v3683
        %s3688 = scalar_lea.vmem %s12, 16
        %v3689 = vld [vmem:[%s3688] sm:$0xff]
        %v3690 = vld [vmem:[%s3688 + $0x8] sm:$0xff]
        %v3692 = vsel %vm2152, %v3689, 0
        %v3695 = vsel %vm2152, %v3690, 0
        %3697 = vmatprep.subr.mxu0 0.0
        %3698 = vmatpush1.msra.mxu0 %v1983
        %3699 = vmatprep.subr.mxu0 0.0
        %3700 = vmatpush1.msra.mxu0 0.0
        %3701 = vmatprep.subr.mxu0 0.0
        %3702 = vmatpush1.msra.mxu0 0.0
        %3703 = vmatprep.subr.mxu0 0.0
        %3704 = vmatpush1.msra.mxu0 0.0
        %3705 = vmatprep.subr.mxu0 0.0
        %3706 = vmatpush1.msra.mxu0 0.0
        %3707 = vmatprep.subr.mxu0 0.0
        %3708 = vmatpush1.msra.mxu0 0.0
        %3709 = vmatprep.subr.mxu0 0.0
        %3710 = vmatpush1.msra.mxu0 0.0
        %3711 = vmatprep.subr.mxu0 0.0
        %3712 = vmatpush1.msra.mxu0 0.0
        %3713 = vmatprep.subr.mxu0 0.0
        %3714 = vmatpush1.msra.mxu0 0.0
        %3715 = vmatprep.subr.mxu0 0.0
        %3716 = vmatpush1.msra.mxu0 0.0
        %3717 = vmatprep.subr.mxu0 0.0
        %3718 = vmatpush1.msra.mxu0 0.0
        %3719 = vmatprep.subr.mxu0 0.0
        %3720 = vmatpush1.msra.mxu0 0.0
        %3721 = vmatprep.subr.mxu0 0.0
        %3722 = vmatpush1.msra.mxu0 0.0
        %3723 = vmatprep.subr.mxu0 0.0
        %3724 = vmatpush1.msra.mxu0 0.0
        %3725 = vmatprep.subr.mxu0 0.0
        %3726 = vmatpush1.msra.mxu0 0.0
        %3727 = vmatprep.subr.mxu0 0.0
        %3728 = vmatpush1.msra.mxu0 0.0
        %3729 = vmatprep.subr.mxu0 0.0
        %3730 = vmatpush1.msra.mxu0 0.0
        %3731 = vmatprep.subr.mxu0 0.0
        %3732 = vmatpush1.msra.mxu0 0.0
        %3733 = vmatprep.subr.mxu0 0.0
        %3734 = vmatpush1.msra.mxu0 0.0
        %3735 = vmatprep.subr.mxu0 0.0
        %3736 = vmatpush1.msra.mxu0 0.0
        %3737 = vmatprep.subr.mxu0 0.0
        %3738 = vmatpush1.msra.mxu0 0.0
        %3739 = vmatprep.subr.mxu0 0.0
        %3740 = vmatpush1.msra.mxu0 0.0
        %3741 = vmatprep.subr.mxu0 0.0
        %3742 = vmatpush1.msra.mxu0 0.0
        %3743 = vmatprep.subr.mxu0 0.0
        %3744 = vmatpush1.msra.mxu0 0.0
        %3745 = vmatprep.subr.mxu0 0.0
        %3746 = vmatpush1.msra.mxu0 0.0
        %3747 = vmatprep.subr.mxu0 0.0
        %3748 = vmatpush1.msra.mxu0 0.0
        %3749 = vmatprep.subr.mxu0 0.0
        %3750 = vmatpush1.msra.mxu0 0.0
        %3751 = vmatprep.subr.mxu0 0.0
        %3752 = vmatpush1.msra.mxu0 0.0
        %3753 = vmatprep.subr.mxu0 0.0
        %3754 = vmatpush1.msra.mxu0 0.0
        %3755 = vmatprep.subr.mxu0 0.0
        %3756 = vmatpush1.msra.mxu0 0.0
        %3757 = vmatprep.subr.mxu0 0.0
        %3758 = vmatpush1.msra.mxu0 0.0
        %3759 = vmatprep.subr.mxu0 0.0
        %3760 = vmatpush1.msra.mxu0 0.0
        %3761 = vmatprep.mubr.f32.mxu0 0.0
        %3762 = vmatmul.mubr.f32.gmra.mrb[0].mxu0 %v3692
        %v3763 = vpop.f32.mrb[0].mxu0
        %v3764 = vadd.f32 0.0, %v3763
        %v3765 = vpop.f32.mrb[0].mxu0
        %3766 = vmatprep.mubr.f32.mxu0 0.0
        %3767 = vmatmul.mubr.f32.gmra.mrb[0].mxu0 %v3695
        %v3768 = vpop.f32.mrb[0].mxu0
        %v3769 = vadd.f32 0.0, %v3768
        %v3770 = vpop.f32.mrb[0].mxu0
        %3771 = vdwg.mxu0
        %v3772 = vadd.f32 %v3686, %v3764
        %v3773 = vadd.f32 %v3687, %v3769
        %s3774 = scalar_lea.vmem %s11, 32
        %v3775 = vld [vmem:[%s3774] sm:$0xff]
        %v3776 = vld [vmem:[%s3774 + $0x8] sm:$0xff]
        %v3778 = vsel %vm3198, %v3775, 0
        %v3781 = vsel %vm3198, %v3776, 0
        %3783 = vmatprep.subr.mxu0 0.0
        %3784 = vmatpush1.msra.mxu0 %v3428
        %3785 = vmatprep.subr.mxu0 0.0
        %3786 = vmatpush1.msra.mxu0 %v3433
        %3787 = vmatprep.subr.mxu0 0.0
        %3788 = vmatpush1.msra.mxu0 0.0
        %3789 = vmatprep.subr.mxu0 0.0
        %3790 = vmatpush1.msra.mxu0 0.0
        %3791 = vmatprep.subr.mxu0 0.0
        %3792 = vmatpush1.msra.mxu0 0.0
        %3793 = vmatprep.subr.mxu0 0.0
        %3794 = vmatpush1.msra.mxu0 0.0
        %3795 = vmatprep.subr.mxu0 0.0
        %3796 = vmatpush1.msra.mxu0 0.0
        %3797 = vmatprep.subr.mxu0 0.0
        %3798 = vmatpush1.msra.mxu0 0.0
        %3799 = vmatprep.subr.mxu0 0.0
        %3800 = vmatpush1.msra.mxu0 0.0
        %3801 = vmatprep.subr.mxu0 0.0
        %3802 = vmatpush1.msra.mxu0 0.0
        %3803 = vmatprep.subr.mxu0 0.0
        %3804 = vmatpush1.msra.mxu0 0.0
        %3805 = vmatprep.subr.mxu0 0.0
        %3806 = vmatpush1.msra.mxu0 0.0
        %3807 = vmatprep.subr.mxu0 0.0
        %3808 = vmatpush1.msra.mxu0 0.0
        %3809 = vmatprep.subr.mxu0 0.0
        %3810 = vmatpush1.msra.mxu0 0.0
        %3811 = vmatprep.subr.mxu0 0.0
        %3812 = vmatpush1.msra.mxu0 0.0
        %3813 = vmatprep.subr.mxu0 0.0
        %3814 = vmatpush1.msra.mxu0 0.0
        %3815 = vmatprep.subr.mxu0 0.0
        %3816 = vmatpush1.msra.mxu0 0.0
        %3817 = vmatprep.subr.mxu0 0.0
        %3818 = vmatpush1.msra.mxu0 0.0
        %3819 = vmatprep.subr.mxu0 0.0
        %3820 = vmatpush1.msra.mxu0 0.0
        %3821 = vmatprep.subr.mxu0 0.0
        %3822 = vmatpush1.msra.mxu0 0.0
        %3823 = vmatprep.subr.mxu0 0.0
        %3824 = vmatpush1.msra.mxu0 0.0
        %3825 = vmatprep.subr.mxu0 0.0
        %3826 = vmatpush1.msra.mxu0 0.0
        %3827 = vmatprep.subr.mxu0 0.0
        %3828 = vmatpush1.msra.mxu0 0.0
        %3829 = vmatprep.subr.mxu0 0.0
        %3830 = vmatpush1.msra.mxu0 0.0
        %3831 = vmatprep.subr.mxu0 0.0
        %3832 = vmatpush1.msra.mxu0 0.0
        %3833 = vmatprep.subr.mxu0 0.0
        %3834 = vmatpush1.msra.mxu0 0.0
        %3835 = vmatprep.subr.mxu0 0.0
        %3836 = vmatpush1.msra.mxu0 0.0
        %3837 = vmatprep.subr.mxu0 0.0
        %3838 = vmatpush1.msra.mxu0 0.0
        %3839 = vmatprep.subr.mxu0 0.0
        %3840 = vmatpush1.msra.mxu0 0.0
        %3841 = vmatprep.subr.mxu0 0.0
        %3842 = vmatpush1.msra.mxu0 0.0
        %3843 = vmatprep.subr.mxu0 0.0
        %3844 = vmatpush1.msra.mxu0 0.0
        %3845 = vmatprep.subr.mxu0 0.0
        %3846 = vmatpush1.msra.mxu0 0.0
        %3847 = vmatprep.mubr.f32.mxu0 0.0
        %3848 = vmatmul.mubr.f32.gmra.mrb[0].mxu0 %v3778
        %v3849 = vpop.f32.mrb[0].mxu0
        %v3850 = vadd.f32 0.0, %v3849
        %v3851 = vpop.f32.mrb[0].mxu0
        %3852 = vmatprep.mubr.f32.mxu0 0.0
        %3853 = vmatmul.mubr.f32.gmra.mrb[0].mxu0 %v3781
        %v3854 = vpop.f32.mrb[0].mxu0
        %v3855 = vadd.f32 0.0, %v3854
        %v3856 = vpop.f32.mrb[0].mxu0
        %3857 = vdwg.mxu0
        %v3858 = vadd.f32 %v3772, %v3850
        %v3859 = vadd.f32 %v3773, %v3855
        %s3860 = scalar_lea.vmem %s12, 32
        %v3861 = vld [vmem:[%s3860] sm:$0xff]
        %v3862 = vld [vmem:[%s3860 + $0x8] sm:$0xff]
        %v3864 = vsel %vm2152, %v3861, 0
        %v3867 = vsel %vm2152, %v3862, 0
        %3869 = vmatprep.subr.mxu0 0.0
        %3870 = vmatpush1.msra.mxu0 %v2144
        %3871 = vmatprep.subr.mxu0 0.0
        %3872 = vmatpush1.msra.mxu0 0.0
        %3873 = vmatprep.subr.mxu0 0.0
        %3874 = vmatpush1.msra.mxu0 0.0
        %3875 = vmatprep.subr.mxu0 0.0
        %3876 = vmatpush1.msra.mxu0 0.0
        %3877 = vmatprep.subr.mxu0 0.0
        %3878 = vmatpush1.msra.mxu0 0.0
        %3879 = vmatprep.subr.mxu0 0.0
        %3880 = vmatpush1.msra.mxu0 0.0
        %3881 = vmatprep.subr.mxu0 0.0
        %3882 = vmatpush1.msra.mxu0 0.0
        %3883 = vmatprep.subr.mxu0 0.0
        %3884 = vmatpush1.msra.mxu0 0.0
        %3885 = vmatprep.subr.mxu0 0.0
        %3886 = vmatpush1.msra.mxu0 0.0
        %3887 = vmatprep.subr.mxu0 0.0
        %3888 = vmatpush1.msra.mxu0 0.0
        %3889 = vmatprep.subr.mxu0 0.0
        %3890 = vmatpush1.msra.mxu0 0.0
        %3891 = vmatprep.subr.mxu0 0.0
        %3892 = vmatpush1.msra.mxu0 0.0
        %3893 = vmatprep.subr.mxu0 0.0
        %3894 = vmatpush1.msra.mxu0 0.0
        %3895 = vmatprep.subr.mxu0 0.0
        %3896 = vmatpush1.msra.mxu0 0.0
        %3897 = vmatprep.subr.mxu0 0.0
        %3898 = vmatpush1.msra.mxu0 0.0
        %3899 = vmatprep.subr.mxu0 0.0
        %3900 = vmatpush1.msra.mxu0 0.0
        %3901 = vmatprep.subr.mxu0 0.0
        %3902 = vmatpush1.msra.mxu0 0.0
        %3903 = vmatprep.subr.mxu0 0.0
        %3904 = vmatpush1.msra.mxu0 0.0
        %3905 = vmatprep.subr.mxu0 0.0
        %3906 = vmatpush1.msra.mxu0 0.0
        %3907 = vmatprep.subr.mxu0 0.0
        %3908 = vmatpush1.msra.mxu0 0.0
        %3909 = vmatprep.subr.mxu0 0.0
        %3910 = vmatpush1.msra.mxu0 0.0
        %3911 = vmatprep.subr.mxu0 0.0
        %3912 = vmatpush1.msra.mxu0 0.0
        %3913 = vmatprep.subr.mxu0 0.0
        %3914 = vmatpush1.msra.mxu0 0.0
        %3915 = vmatprep.subr.mxu0 0.0
        %3916 = vmatpush1.msra.mxu0 0.0
        %3917 = vmatprep.subr.mxu0 0.0
        %3918 = vmatpush1.msra.mxu0 0.0
        %3919 = vmatprep.subr.mxu0 0.0
        %3920 = vmatpush1.msra.mxu0 0.0
        %3921 = vmatprep.subr.mxu0 0.0
        %3922 = vmatpush1.msra.mxu0 0.0
        %3923 = vmatprep.subr.mxu0 0.0
        %3924 = vmatpush1.msra.mxu0 0.0
        %3925 = vmatprep.subr.mxu0 0.0
        %3926 = vmatpush1.msra.mxu0 0.0
        %3927 = vmatprep.subr.mxu0 0.0
        %3928 = vmatpush1.msra.mxu0 0.0
        %3929 = vmatprep.subr.mxu0 0.0
        %3930 = vmatpush1.msra.mxu0 0.0
        %3931 = vmatprep.subr.mxu0 0.0
        %3932 = vmatpush1.msra.mxu0 0.0
        %3933 = vmatprep.mubr.f32.mxu0 0.0
        %3934 = vmatmul.mubr.f32.gmra.mrb[0].mxu0 %v3864
        %v3935 = vpop.f32.mrb[0].mxu0
        %v3936 = vadd.f32 0.0, %v3935
        %v3937 = vpop.f32.mrb[0].mxu0
        %3938 = vmatprep.mubr.f32.mxu0 0.0
        %3939 = vmatmul.mubr.f32.gmra.mrb[0].mxu0 %v3867
        %v3940 = vpop.f32.mrb[0].mxu0
        %v3941 = vadd.f32 0.0, %v3940
        %v3942 = vpop.f32.mrb[0].mxu0
        %3943 = vdwg.mxu0
        %v3944 = vadd.f32 %v3858, %v3936
        %v3945 = vadd.f32 %v3859, %v3941
        %s3946 = scalar_lea.vmem %s11, 48
        %v3947 = vld [vmem:[%s3946] sm:$0xff]
        %v3948 = vld [vmem:[%s3946 + $0x8] sm:$0xff]
        %s3949 = scalar_lea.vmem %s12, 48
        %v3950 = vld [vmem:[%s3949] sm:$0xff]
        %v3951 = vld [vmem:[%s3949 + $0x8] sm:$0xff]
        %v3953 = vsel %vm2152, %v3950, 0
        %v3956 = vsel %vm2152, %v3951, 0
        %3958 = vmatprep.subr.mxu0 0.0
        %3959 = vmatpush1.msra.mxu0 %v2065
        %3960 = vmatprep.subr.mxu0 0.0
        %3961 = vmatpush1.msra.mxu0 0.0
        %3962 = vmatprep.subr.mxu0 0.0
        %3963 = vmatpush1.msra.mxu0 0.0
        %3964 = vmatprep.subr.mxu0 0.0
        %3965 = vmatpush1.msra.mxu0 0.0
        %3966 = vmatprep.subr.mxu0 0.0
        %3967 = vmatpush1.msra.mxu0 0.0
        %3968 = vmatprep.subr.mxu0 0.0
        %3969 = vmatpush1.msra.mxu0 0.0
        %3970 = vmatprep.subr.mxu0 0.0
        %3971 = vmatpush1.msra.mxu0 0.0
        %3972 = vmatprep.subr.mxu0 0.0
        %3973 = vmatpush1.msra.mxu0 0.0
        %3974 = vmatprep.subr.mxu0 0.0
        %3975 = vmatpush1.msra.mxu0 0.0
        %3976 = vmatprep.subr.mxu0 0.0
        %3977 = vmatpush1.msra.mxu0 0.0
        %3978 = vmatprep.subr.mxu0 0.0
        %3979 = vmatpush1.msra.mxu0 0.0
        %3980 = vmatprep.subr.mxu0 0.0
        %3981 = vmatpush1.msra.mxu0 0.0
        %3982 = vmatprep.subr.mxu0 0.0
        %3983 = vmatpush1.msra.mxu0 0.0
        %3984 = vmatprep.subr.mxu0 0.0
        %3985 = vmatpush1.msra.mxu0 0.0
        %3986 = vmatprep.subr.mxu0 0.0
        %3987 = vmatpush1.msra.mxu0 0.0
        %3988 = vmatprep.subr.mxu0 0.0
        %3989 = vmatpush1.msra.mxu0 0.0
        %3990 = vmatprep.subr.mxu0 0.0
        %3991 = vmatpush1.msra.mxu0 0.0
        %3992 = vmatprep.subr.mxu0 0.0
        %3993 = vmatpush1.msra.mxu0 0.0
        %3994 = vmatprep.subr.mxu0 0.0
        %3995 = vmatpush1.msra.mxu0 0.0
        %3996 = vmatprep.subr.mxu0 0.0
        %3997 = vmatpush1.msra.mxu0 0.0
        %3998 = vmatprep.subr.mxu0 0.0
        %3999 = vmatpush1.msra.mxu0 0.0
        %4000 = vmatprep.subr.mxu0 0.0
        %4001 = vmatpush1.msra.mxu0 0.0
        %4002 = vmatprep.subr.mxu0 0.0
        %4003 = vmatpush1.msra.mxu0 0.0
        %4004 = vmatprep.subr.mxu0 0.0
        %4005 = vmatpush1.msra.mxu0 0.0
        %4006 = vmatprep.subr.mxu0 0.0
        %4007 = vmatpush1.msra.mxu0 0.0
        %4008 = vmatprep.subr.mxu0 0.0
        %4009 = vmatpush1.msra.mxu0 0.0
        %4010 = vmatprep.subr.mxu0 0.0
        %4011 = vmatpush1.msra.mxu0 0.0
        %4012 = vmatprep.subr.mxu0 0.0
        %4013 = vmatpush1.msra.mxu0 0.0
        %4014 = vmatprep.subr.mxu0 0.0
        %4015 = vmatpush1.msra.mxu0 0.0
        %4016 = vmatprep.subr.mxu0 0.0
        %4017 = vmatpush1.msra.mxu0 0.0
        %4018 = vmatprep.subr.mxu0 0.0
        %4019 = vmatpush1.msra.mxu0 0.0
        %4020 = vmatprep.subr.mxu0 0.0
        %4021 = vmatpush1.msra.mxu0 0.0
        %4022 = vmatprep.mubr.f32.mxu0 0.0
        %4023 = vmatmul.mubr.f32.gmra.mrb[0].mxu0 %v3953
        %v4024 = vpop.f32.mrb[0].mxu0
        %v4025 = vadd.f32 0.0, %v4024
        %v4026 = vpop.f32.mrb[0].mxu0
        %4027 = vmatprep.mubr.f32.mxu0 0.0
        %4028 = vmatmul.mubr.f32.gmra.mrb[0].mxu0 %v3956
        %v4029 = vpop.f32.mrb[0].mxu0
        %v4030 = vadd.f32 0.0, %v4029
        %v4031 = vpop.f32.mrb[0].mxu0
        %4032 = vdwg.mxu0
        %v4034 = vsel %vm3198, %v3947, 0
        %v4037 = vsel %vm3198, %v3948, 0
        %4039 = vmatprep.subr.mxu0 0.0
        %4040 = vmatpush1.msra.mxu0 %v3353
        %4041 = vmatprep.subr.mxu0 0.0
        %4042 = vmatpush1.msra.mxu0 %v3358
        %4043 = vmatprep.subr.mxu0 0.0
        %4044 = vmatpush1.msra.mxu0 0.0
        %4045 = vmatprep.subr.mxu0 0.0
        %4046 = vmatpush1.msra.mxu0 0.0
        %4047 = vmatprep.subr.mxu0 0.0
        %4048 = vmatpush1.msra.mxu0 0.0
        %4049 = vmatprep.subr.mxu0 0.0
        %4050 = vmatpush1.msra.mxu0 0.0
        %4051 = vmatprep.subr.mxu0 0.0
        %4052 = vmatpush1.msra.mxu0 0.0
        %4053 = vmatprep.subr.mxu0 0.0
        %4054 = vmatpush1.msra.mxu0 0.0
        %4055 = vmatprep.subr.mxu0 0.0
        %4056 = vmatpush1.msra.mxu0 0.0
        %4057 = vmatprep.subr.mxu0 0.0
        %4058 = vmatpush1.msra.mxu0 0.0
        %4059 = vmatprep.subr.mxu0 0.0
        %4060 = vmatpush1.msra.mxu0 0.0
        %4061 = vmatprep.subr.mxu0 0.0
        %4062 = vmatpush1.msra.mxu0 0.0
        %4063 = vmatprep.subr.mxu0 0.0
        %4064 = vmatpush1.msra.mxu0 0.0
        %4065 = vmatprep.subr.mxu0 0.0
        %4066 = vmatpush1.msra.mxu0 0.0
        %4067 = vmatprep.subr.mxu0 0.0
        %4068 = vmatpush1.msra.mxu0 0.0
        %4069 = vmatprep.subr.mxu0 0.0
        %4070 = vmatpush1.msra.mxu0 0.0
        %4071 = vmatprep.subr.mxu0 0.0
        %4072 = vmatpush1.msra.mxu0 0.0
        %4073 = vmatprep.subr.mxu0 0.0
        %4074 = vmatpush1.msra.mxu0 0.0
        %4075 = vmatprep.subr.mxu0 0.0
        %4076 = vmatpush1.msra.mxu0 0.0
        %4077 = vmatprep.subr.mxu0 0.0
        %4078 = vmatpush1.msra.mxu0 0.0
        %4079 = vmatprep.subr.mxu0 0.0
        %4080 = vmatpush1.msra.mxu0 0.0
        %4081 = vmatprep.subr.mxu0 0.0
        %4082 = vmatpush1.msra.mxu0 0.0
        %4083 = vmatprep.subr.mxu0 0.0
        %4084 = vmatpush1.msra.mxu0 0.0
        %4085 = vmatprep.subr.mxu0 0.0
        %4086 = vmatpush1.msra.mxu0 0.0
        %4087 = vmatprep.subr.mxu0 0.0
        %4088 = vmatpush1.msra.mxu0 0.0
        %4089 = vmatprep.subr.mxu0 0.0
        %4090 = vmatpush1.msra.mxu0 0.0
        %4091 = vmatprep.subr.mxu0 0.0
        %4092 = vmatpush1.msra.mxu0 0.0
        %4093 = vmatprep.subr.mxu0 0.0
        %4094 = vmatpush1.msra.mxu0 0.0
        %4095 = vmatprep.subr.mxu0 0.0
        %4096 = vmatpush1.msra.mxu0 0.0
        %4097 = vmatprep.subr.mxu0 0.0
        %4098 = vmatpush1.msra.mxu0 0.0
        %4099 = vmatprep.subr.mxu0 0.0
        %4100 = vmatpush1.msra.mxu0 0.0
        %4101 = vmatprep.subr.mxu0 0.0
        %4102 = vmatpush1.msra.mxu0 0.0
        %4103 = vmatprep.mubr.f32.mxu0 0.0
        %4104 = vmatmul.mubr.f32.gmra.mrb[0].mxu0 %v4034
        %v4105 = vpop.f32.mrb[0].mxu0
        %v4106 = vadd.f32 %v4025, %v4105
        %v4107 = vpop.f32.mrb[0].mxu0
        %4108 = vmatprep.mubr.f32.mxu0 0.0
        %4109 = vmatmul.mubr.f32.gmra.mrb[0].mxu0 %v4037
        %v4110 = vpop.f32.mrb[0].mxu0
        %v4111 = vadd.f32 %v4030, %v4110
        %v4112 = vpop.f32.mrb[0].mxu0
        %4113 = vdwg.mxu0
        %s4114 = scalar_lea.vmem %s11, 64
        %v4115 = vld [vmem:[%s4114] sm:$0xff]
        %v4116 = vld [vmem:[%s4114 + $0x8] sm:$0xff]
        %v4118 = vsel %vm3198, %v4115, 0
        %v4121 = vsel %vm3198, %v4116, 0
        %4123 = vmatprep.subr.mxu0 0.0
        %4124 = vmatpush1.msra.mxu0 %v3272
        %4125 = vmatprep.subr.mxu0 0.0
        %4126 = vmatpush1.msra.mxu0 %v3277
        %4127 = vmatprep.subr.mxu0 0.0
        %4128 = vmatpush1.msra.mxu0 0.0
        %4129 = vmatprep.subr.mxu0 0.0
        %4130 = vmatpush1.msra.mxu0 0.0
        %4131 = vmatprep.subr.mxu0 0.0
        %4132 = vmatpush1.msra.mxu0 0.0
        %4133 = vmatprep.subr.mxu0 0.0
        %4134 = vmatpush1.msra.mxu0 0.0
        %4135 = vmatprep.subr.mxu0 0.0
        %4136 = vmatpush1.msra.mxu0 0.0
        %4137 = vmatprep.subr.mxu0 0.0
        %4138 = vmatpush1.msra.mxu0 0.0
        %4139 = vmatprep.subr.mxu0 0.0
        %4140 = vmatpush1.msra.mxu0 0.0
        %4141 = vmatprep.subr.mxu0 0.0
        %4142 = vmatpush1.msra.mxu0 0.0
        %4143 = vmatprep.subr.mxu0 0.0
        %4144 = vmatpush1.msra.mxu0 0.0
        %4145 = vmatprep.subr.mxu0 0.0
        %4146 = vmatpush1.msra.mxu0 0.0
        %4147 = vmatprep.subr.mxu0 0.0
        %4148 = vmatpush1.msra.mxu0 0.0
        %4149 = vmatprep.subr.mxu0 0.0
        %4150 = vmatpush1.msra.mxu0 0.0
        %4151 = vmatprep.subr.mxu0 0.0
        %4152 = vmatpush1.msra.mxu0 0.0
        %4153 = vmatprep.subr.mxu0 0.0
        %4154 = vmatpush1.msra.mxu0 0.0
        %4155 = vmatprep.subr.mxu0 0.0
        %4156 = vmatpush1.msra.mxu0 0.0
        %4157 = vmatprep.subr.mxu0 0.0
        %4158 = vmatpush1.msra.mxu0 0.0
        %4159 = vmatprep.subr.mxu0 0.0
        %4160 = vmatpush1.msra.mxu0 0.0
        %4161 = vmatprep.subr.mxu0 0.0
        %4162 = vmatpush1.msra.mxu0 0.0
        %4163 = vmatprep.subr.mxu0 0.0
        %4164 = vmatpush1.msra.mxu0 0.0
        %4165 = vmatprep.subr.mxu0 0.0
        %4166 = vmatpush1.msra.mxu0 0.0
        %4167 = vmatprep.subr.mxu0 0.0
        %4168 = vmatpush1.msra.mxu0 0.0
        %4169 = vmatprep.subr.mxu0 0.0
        %4170 = vmatpush1.msra.mxu0 0.0
        %4171 = vmatprep.subr.mxu0 0.0
        %4172 = vmatpush1.msra.mxu0 0.0
        %4173 = vmatprep.subr.mxu0 0.0
        %4174 = vmatpush1.msra.mxu0 0.0
        %4175 = vmatprep.subr.mxu0 0.0
        %4176 = vmatpush1.msra.mxu0 0.0
        %4177 = vmatprep.subr.mxu0 0.0
        %4178 = vmatpush1.msra.mxu0 0.0
        %4179 = vmatprep.subr.mxu0 0.0
        %4180 = vmatpush1.msra.mxu0 0.0
        %4181 = vmatprep.subr.mxu0 0.0
        %4182 = vmatpush1.msra.mxu0 0.0
        %4183 = vmatprep.subr.mxu0 0.0
        %4184 = vmatpush1.msra.mxu0 0.0
        %4185 = vmatprep.subr.mxu0 0.0
        %4186 = vmatpush1.msra.mxu0 0.0
        %4187 = vmatprep.mubr.f32.mxu0 0.0
        %4188 = vmatmul.mubr.f32.gmra.mrb[0].mxu0 %v4118
        %v4189 = vpop.f32.mrb[0].mxu0
        %v4190 = vadd.f32 0.0, %v4189
        %v4191 = vpop.f32.mrb[0].mxu0
        %4192 = vmatprep.mubr.f32.mxu0 0.0
        %4193 = vmatmul.mubr.f32.gmra.mrb[0].mxu0 %v4121
        %v4194 = vpop.f32.mrb[0].mxu0
        %v4195 = vadd.f32 0.0, %v4194
        %v4196 = vpop.f32.mrb[0].mxu0
        %4197 = vdwg.mxu0
        %v4198 = vadd.f32 %v4106, %v4190
        %v4199 = vadd.f32 %v4111, %v4195
        %s4200 = scalar_lea.vmem %s12, 64
        %v4201 = vld [vmem:[%s4200] sm:$0xff]
        %v4202 = vld [vmem:[%s4200 + $0x8] sm:$0xff]
        %v4204 = vsel %vm2152, %v4201, 0
        %v4207 = vsel %vm2152, %v4202, 0
        %4209 = vmatprep.subr.mxu0 0.0
        %4210 = vmatpush1.msra.mxu0 %v1983
        %4211 = vmatprep.subr.mxu0 0.0
        %4212 = vmatpush1.msra.mxu0 0.0
        %4213 = vmatprep.subr.mxu0 0.0
        %4214 = vmatpush1.msra.mxu0 0.0
        %4215 = vmatprep.subr.mxu0 0.0
        %4216 = vmatpush1.msra.mxu0 0.0
        %4217 = vmatprep.subr.mxu0 0.0
        %4218 = vmatpush1.msra.mxu0 0.0
        %4219 = vmatprep.subr.mxu0 0.0
        %4220 = vmatpush1.msra.mxu0 0.0
        %4221 = vmatprep.subr.mxu0 0.0
        %4222 = vmatpush1.msra.mxu0 0.0
        %4223 = vmatprep.subr.mxu0 0.0
        %4224 = vmatpush1.msra.mxu0 0.0
        %4225 = vmatprep.subr.mxu0 0.0
        %4226 = vmatpush1.msra.mxu0 0.0
        %4227 = vmatprep.subr.mxu0 0.0
        %4228 = vmatpush1.msra.mxu0 0.0
        %4229 = vmatprep.subr.mxu0 0.0
        %4230 = vmatpush1.msra.mxu0 0.0
        %4231 = vmatprep.subr.mxu0 0.0
        %4232 = vmatpush1.msra.mxu0 0.0
        %4233 = vmatprep.subr.mxu0 0.0
        %4234 = vmatpush1.msra.mxu0 0.0
        %4235 = vmatprep.subr.mxu0 0.0
        %4236 = vmatpush1.msra.mxu0 0.0
        %4237 = vmatprep.subr.mxu0 0.0
        %4238 = vmatpush1.msra.mxu0 0.0
        %4239 = vmatprep.subr.mxu0 0.0
        %4240 = vmatpush1.msra.mxu0 0.0
        %4241 = vmatprep.subr.mxu0 0.0
        %4242 = vmatpush1.msra.mxu0 0.0
        %4243 = vmatprep.subr.mxu0 0.0
        %4244 = vmatpush1.msra.mxu0 0.0
        %4245 = vmatprep.subr.mxu0 0.0
        %4246 = vmatpush1.msra.mxu0 0.0
        %4247 = vmatprep.subr.mxu0 0.0
        %4248 = vmatpush1.msra.mxu0 0.0
        %4249 = vmatprep.subr.mxu0 0.0
        %4250 = vmatpush1.msra.mxu0 0.0
        %4251 = vmatprep.subr.mxu0 0.0
        %4252 = vmatpush1.msra.mxu0 0.0
        %4253 = vmatprep.subr.mxu0 0.0
        %4254 = vmatpush1.msra.mxu0 0.0
        %4255 = vmatprep.subr.mxu0 0.0
        %4256 = vmatpush1.msra.mxu0 0.0
        %4257 = vmatprep.subr.mxu0 0.0
        %4258 = vmatpush1.msra.mxu0 0.0
        %4259 = vmatprep.subr.mxu0 0.0
        %4260 = vmatpush1.msra.mxu0 0.0
        %4261 = vmatprep.subr.mxu0 0.0
        %4262 = vmatpush1.msra.mxu0 0.0
        %4263 = vmatprep.subr.mxu0 0.0
        %4264 = vmatpush1.msra.mxu0 0.0
        %4265 = vmatprep.subr.mxu0 0.0
        %4266 = vmatpush1.msra.mxu0 0.0
        %4267 = vmatprep.subr.mxu0 0.0
        %4268 = vmatpush1.msra.mxu0 0.0
        %4269 = vmatprep.subr.mxu0 0.0
        %4270 = vmatpush1.msra.mxu0 0.0
        %4271 = vmatprep.subr.mxu0 0.0
        %4272 = vmatpush1.msra.mxu0 0.0
        %4273 = vmatprep.mubr.f32.mxu0 0.0
        %4274 = vmatmul.mubr.f32.gmra.mrb[0].mxu0 %v4204
        %v4275 = vpop.f32.mrb[0].mxu0
        %v4276 = vadd.f32 0.0, %v4275
        %v4277 = vpop.f32.mrb[0].mxu0
        %4278 = vmatprep.mubr.f32.mxu0 0.0
        %4279 = vmatmul.mubr.f32.gmra.mrb[0].mxu0 %v4207
        %v4280 = vpop.f32.mrb[0].mxu0
        %v4281 = vadd.f32 0.0, %v4280
        %v4282 = vpop.f32.mrb[0].mxu0
        %4283 = vdwg.mxu0
        %v4284 = vadd.f32 %v4198, %v4276
        %v4285 = vadd.f32 %v4199, %v4281
        %s4286 = scalar_lea.vmem %s11, 80
        %v4287 = vld [vmem:[%s4286] sm:$0xff]
        %v4288 = vld [vmem:[%s4286 + $0x8] sm:$0xff]
        %v4290 = vsel %vm3198, %v4287, 0
        %v4293 = vsel %vm3198, %v4288, 0
        %4295 = vmatprep.subr.mxu0 0.0
        %4296 = vmatpush1.msra.mxu0 %v3428
        %4297 = vmatprep.subr.mxu0 0.0
        %4298 = vmatpush1.msra.mxu0 %v3433
        %4299 = vmatprep.subr.mxu0 0.0
        %4300 = vmatpush1.msra.mxu0 0.0
        %4301 = vmatprep.subr.mxu0 0.0
        %4302 = vmatpush1.msra.mxu0 0.0
        %4303 = vmatprep.subr.mxu0 0.0
        %4304 = vmatpush1.msra.mxu0 0.0
        %4305 = vmatprep.subr.mxu0 0.0
        %4306 = vmatpush1.msra.mxu0 0.0
        %4307 = vmatprep.subr.mxu0 0.0
        %4308 = vmatpush1.msra.mxu0 0.0
        %4309 = vmatprep.subr.mxu0 0.0
        %4310 = vmatpush1.msra.mxu0 0.0
        %4311 = vmatprep.subr.mxu0 0.0
        %4312 = vmatpush1.msra.mxu0 0.0
        %4313 = vmatprep.subr.mxu0 0.0
        %4314 = vmatpush1.msra.mxu0 0.0
        %4315 = vmatprep.subr.mxu0 0.0
        %4316 = vmatpush1.msra.mxu0 0.0
        %4317 = vmatprep.subr.mxu0 0.0
        %4318 = vmatpush1.msra.mxu0 0.0
        %4319 = vmatprep.subr.mxu0 0.0
        %4320 = vmatpush1.msra.mxu0 0.0
        %4321 = vmatprep.subr.mxu0 0.0
        %4322 = vmatpush1.msra.mxu0 0.0
        %4323 = vmatprep.subr.mxu0 0.0
        %4324 = vmatpush1.msra.mxu0 0.0
        %4325 = vmatprep.subr.mxu0 0.0
        %4326 = vmatpush1.msra.mxu0 0.0
        %4327 = vmatprep.subr.mxu0 0.0
        %4328 = vmatpush1.msra.mxu0 0.0
        %4329 = vmatprep.subr.mxu0 0.0
        %4330 = vmatpush1.msra.mxu0 0.0
        %4331 = vmatprep.subr.mxu0 0.0
        %4332 = vmatpush1.msra.mxu0 0.0
        %4333 = vmatprep.subr.mxu0 0.0
        %4334 = vmatpush1.msra.mxu0 0.0
        %4335 = vmatprep.subr.mxu0 0.0
        %4336 = vmatpush1.msra.mxu0 0.0
        %4337 = vmatprep.subr.mxu0 0.0
        %4338 = vmatpush1.msra.mxu0 0.0
        %4339 = vmatprep.subr.mxu0 0.0
        %4340 = vmatpush1.msra.mxu0 0.0
        %4341 = vmatprep.subr.mxu0 0.0
        %4342 = vmatpush1.msra.mxu0 0.0
        %4343 = vmatprep.subr.mxu0 0.0
        %4344 = vmatpush1.msra.mxu0 0.0
        %4345 = vmatprep.subr.mxu0 0.0
        %4346 = vmatpush1.msra.mxu0 0.0
        %4347 = vmatprep.subr.mxu0 0.0
        %4348 = vmatpush1.msra.mxu0 0.0
        %4349 = vmatprep.subr.mxu0 0.0
        %4350 = vmatpush1.msra.mxu0 0.0
        %4351 = vmatprep.subr.mxu0 0.0
        %4352 = vmatpush1.msra.mxu0 0.0
        %4353 = vmatprep.subr.mxu0 0.0
        %4354 = vmatpush1.msra.mxu0 0.0
        %4355 = vmatprep.subr.mxu0 0.0
        %4356 = vmatpush1.msra.mxu0 0.0
        %4357 = vmatprep.subr.mxu0 0.0
        %4358 = vmatpush1.msra.mxu0 0.0
        %4359 = vmatprep.mubr.f32.mxu0 0.0
        %4360 = vmatmul.mubr.f32.gmra.mrb[0].mxu0 %v4290
        %v4361 = vpop.f32.mrb[0].mxu0
        %v4362 = vadd.f32 0.0, %v4361
        %v4363 = vpop.f32.mrb[0].mxu0
        %4364 = vmatprep.mubr.f32.mxu0 0.0
        %4365 = vmatmul.mubr.f32.gmra.mrb[0].mxu0 %v4293
        %v4366 = vpop.f32.mrb[0].mxu0
        %v4367 = vadd.f32 0.0, %v4366
        %v4368 = vpop.f32.mrb[0].mxu0
        %4369 = vdwg.mxu0
        %v4370 = vadd.f32 %v4284, %v4362
        %v4371 = vadd.f32 %v4285, %v4367
        %s4372 = scalar_lea.vmem %s12, 80
        %v4373 = vld [vmem:[%s4372] sm:$0xff]
        %v4374 = vld [vmem:[%s4372 + $0x8] sm:$0xff]
        %v4376 = vsel %vm2152, %v4373, 0
        %v4379 = vsel %vm2152, %v4374, 0
        %4381 = vmatprep.subr.mxu0 0.0
        %4382 = vmatpush1.msra.mxu0 %v2144
        %4383 = vmatprep.subr.mxu0 0.0
        %4384 = vmatpush1.msra.mxu0 0.0
        %4385 = vmatprep.subr.mxu0 0.0
        %4386 = vmatpush1.msra.mxu0 0.0
        %4387 = vmatprep.subr.mxu0 0.0
        %4388 = vmatpush1.msra.mxu0 0.0
        %4389 = vmatprep.subr.mxu0 0.0
        %4390 = vmatpush1.msra.mxu0 0.0
        %4391 = vmatprep.subr.mxu0 0.0
        %4392 = vmatpush1.msra.mxu0 0.0
        %4393 = vmatprep.subr.mxu0 0.0
        %4394 = vmatpush1.msra.mxu0 0.0
        %4395 = vmatprep.subr.mxu0 0.0
        %4396 = vmatpush1.msra.mxu0 0.0
        %4397 = vmatprep.subr.mxu0 0.0
        %4398 = vmatpush1.msra.mxu0 0.0
        %4399 = vmatprep.subr.mxu0 0.0
        %4400 = vmatpush1.msra.mxu0 0.0
        %4401 = vmatprep.subr.mxu0 0.0
        %4402 = vmatpush1.msra.mxu0 0.0
        %4403 = vmatprep.subr.mxu0 0.0
        %4404 = vmatpush1.msra.mxu0 0.0
        %4405 = vmatprep.subr.mxu0 0.0
        %4406 = vmatpush1.msra.mxu0 0.0
        %4407 = vmatprep.subr.mxu0 0.0
        %4408 = vmatpush1.msra.mxu0 0.0
        %4409 = vmatprep.subr.mxu0 0.0
        %4410 = vmatpush1.msra.mxu0 0.0
        %4411 = vmatprep.subr.mxu0 0.0
        %4412 = vmatpush1.msra.mxu0 0.0
        %4413 = vmatprep.subr.mxu0 0.0
        %4414 = vmatpush1.msra.mxu0 0.0
        %4415 = vmatprep.subr.mxu0 0.0
        %4416 = vmatpush1.msra.mxu0 0.0
        %4417 = vmatprep.subr.mxu0 0.0
        %4418 = vmatpush1.msra.mxu0 0.0
        %4419 = vmatprep.subr.mxu0 0.0
        %4420 = vmatpush1.msra.mxu0 0.0
        %4421 = vmatprep.subr.mxu0 0.0
        %4422 = vmatpush1.msra.mxu0 0.0
        %4423 = vmatprep.subr.mxu0 0.0
        %4424 = vmatpush1.msra.mxu0 0.0
        %4425 = vmatprep.subr.mxu0 0.0
        %4426 = vmatpush1.msra.mxu0 0.0
        %4427 = vmatprep.subr.mxu0 0.0
        %4428 = vmatpush1.msra.mxu0 0.0
        %4429 = vmatprep.subr.mxu0 0.0
        %4430 = vmatpush1.msra.mxu0 0.0
        %4431 = vmatprep.subr.mxu0 0.0
        %4432 = vmatpush1.msra.mxu0 0.0
        %4433 = vmatprep.subr.mxu0 0.0
        %4434 = vmatpush1.msra.mxu0 0.0
        %4435 = vmatprep.subr.mxu0 0.0
        %4436 = vmatpush1.msra.mxu0 0.0
        %4437 = vmatprep.subr.mxu0 0.0
        %4438 = vmatpush1.msra.mxu0 0.0
        %4439 = vmatprep.subr.mxu0 0.0
        %4440 = vmatpush1.msra.mxu0 0.0
        %4441 = vmatprep.subr.mxu0 0.0
        %4442 = vmatpush1.msra.mxu0 0.0
        %4443 = vmatprep.subr.mxu0 0.0
        %4444 = vmatpush1.msra.mxu0 0.0
        %4445 = vmatprep.mubr.f32.mxu0 0.0
        %4446 = vmatmul.mubr.f32.gmra.mrb[0].mxu0 %v4376
        %v4447 = vpop.f32.mrb[0].mxu0
        %v4448 = vadd.f32 0.0, %v4447
        %v4449 = vpop.f32.mrb[0].mxu0
        %4450 = vmatprep.mubr.f32.mxu0 0.0
        %4451 = vmatmul.mubr.f32.gmra.mrb[0].mxu0 %v4379
        %v4452 = vpop.f32.mrb[0].mxu0
        %v4453 = vadd.f32 0.0, %v4452
        %v4454 = vpop.f32.mrb[0].mxu0
        %4455 = vdwg.mxu0
        %v4456 = vadd.f32 %v4370, %v4448
        %v4457 = vadd.f32 %v4371, %v4453
        %v4459 = vsel %vm1994, %v3944, 0
        %v4462 = vsel %vm1994, %v3945, 0
        %4464 = vmatprep.subr.mxu0 0.0
        %4465 = vmatpush1.msra.mxu0 %v2402
        %4466 = vmatprep.subr.mxu0 0.0
        %4467 = vmatpush1.msra.mxu0 %v2403
        %4468 = vmatprep.subr.mxu0 0.0
        %4469 = vmatpush1.msra.mxu0 %v2404
        %4470 = vmatprep.subr.mxu0 0.0
        %4471 = vmatpush1.msra.mxu0 %v2405
        %4472 = vmatprep.subr.mxu0 0.0
        %4473 = vmatpush1.msra.mxu0 %v2406
        %4474 = vmatprep.subr.mxu0 0.0
        %4475 = vmatpush1.msra.mxu0 %v2407
        %4476 = vmatprep.subr.mxu0 0.0
        %4477 = vmatpush1.msra.mxu0 %v2408
        %4478 = vmatprep.subr.mxu0 0.0
        %4479 = vmatpush1.msra.mxu0 %v2409
        %4480 = vmatprep.subr.mxu0 0.0
        %4481 = vmatpush1.msra.mxu0 0.0
        %4482 = vmatprep.subr.mxu0 0.0
        %4483 = vmatpush1.msra.mxu0 0.0
        %4484 = vmatprep.subr.mxu0 0.0
        %4485 = vmatpush1.msra.mxu0 0.0
        %4486 = vmatprep.subr.mxu0 0.0
        %4487 = vmatpush1.msra.mxu0 0.0
        %4488 = vmatprep.subr.mxu0 0.0
        %4489 = vmatpush1.msra.mxu0 0.0
        %4490 = vmatprep.subr.mxu0 0.0
        %4491 = vmatpush1.msra.mxu0 0.0
        %4492 = vmatprep.subr.mxu0 0.0
        %4493 = vmatpush1.msra.mxu0 0.0
        %4494 = vmatprep.subr.mxu0 0.0
        %4495 = vmatpush1.msra.mxu0 0.0
        %4496 = vmatprep.subr.mxu0 0.0
        %4497 = vmatpush1.msra.mxu0 0.0
        %4498 = vmatprep.subr.mxu0 0.0
        %4499 = vmatpush1.msra.mxu0 0.0
        %4500 = vmatprep.subr.mxu0 0.0
        %4501 = vmatpush1.msra.mxu0 0.0
        %4502 = vmatprep.subr.mxu0 0.0
        %4503 = vmatpush1.msra.mxu0 0.0
        %4504 = vmatprep.subr.mxu0 0.0
        %4505 = vmatpush1.msra.mxu0 0.0
        %4506 = vmatprep.subr.mxu0 0.0
        %4507 = vmatpush1.msra.mxu0 0.0
        %4508 = vmatprep.subr.mxu0 0.0
        %4509 = vmatpush1.msra.mxu0 0.0
        %4510 = vmatprep.subr.mxu0 0.0
        %4511 = vmatpush1.msra.mxu0 0.0
        %4512 = vmatprep.subr.mxu0 0.0
        %4513 = vmatpush1.msra.mxu0 0.0
        %4514 = vmatprep.subr.mxu0 0.0
        %4515 = vmatpush1.msra.mxu0 0.0
        %4516 = vmatprep.subr.mxu0 0.0
        %4517 = vmatpush1.msra.mxu0 0.0
        %4518 = vmatprep.subr.mxu0 0.0
        %4519 = vmatpush1.msra.mxu0 0.0
        %4520 = vmatprep.subr.mxu0 0.0
        %4521 = vmatpush1.msra.mxu0 0.0
        %4522 = vmatprep.subr.mxu0 0.0
        %4523 = vmatpush1.msra.mxu0 0.0
        %4524 = vmatprep.subr.mxu0 0.0
        %4525 = vmatpush1.msra.mxu0 0.0
        %4526 = vmatprep.subr.mxu0 0.0
        %4527 = vmatpush1.msra.mxu0 0.0
        %4528 = vmatprep.mubr.f32.mxu0 0.0
        %4529 = vmatmul.mubr.f32.gmra.mrb[0].mxu0 %v4459
        %v4530 = vpop.f32.mrb[0].mxu0
        %v4531 = vadd.f32 %v4456, %v4530
        %v4532 = vpop.f32.mrb[0].mxu0
        %4533 = vmatprep.mubr.f32.mxu0 0.0
        %4534 = vmatmul.mubr.f32.gmra.mrb[0].mxu0 %v4462
        %v4535 = vpop.f32.mrb[0].mxu0
        %v4536 = vadd.f32 %v4457, %v4535
        %v4537 = vpop.f32.mrb[0].mxu0
        %4538 = vdwg.mxu0
        %s4539 = scalar_lea.vmem %s11, 96
        %v4540 = vld [vmem:[%s4539] sm:$0xff]
        %v4541 = vld [vmem:[%s4539 + $0x8] sm:$0xff]
        %s4542 = scalar_lea.vmem %s12, 96
        %v4543 = vld [vmem:[%s4542] sm:$0xff]
        %v4544 = vld [vmem:[%s4542 + $0x8] sm:$0xff]
        %v4546 = vsel %vm2152, %v4543, 0
        %v4549 = vsel %vm2152, %v4544, 0
        %4551 = vmatprep.subr.mxu0 0.0
        %4552 = vmatpush1.msra.mxu0 %v2065
        %4553 = vmatprep.subr.mxu0 0.0
        %4554 = vmatpush1.msra.mxu0 0.0
        %4555 = vmatprep.subr.mxu0 0.0
        %4556 = vmatpush1.msra.mxu0 0.0
        %4557 = vmatprep.subr.mxu0 0.0
        %4558 = vmatpush1.msra.mxu0 0.0
        %4559 = vmatprep.subr.mxu0 0.0
        %4560 = vmatpush1.msra.mxu0 0.0
        %4561 = vmatprep.subr.mxu0 0.0
        %4562 = vmatpush1.msra.mxu0 0.0
        %4563 = vmatprep.subr.mxu0 0.0
        %4564 = vmatpush1.msra.mxu0 0.0
        %4565 = vmatprep.subr.mxu0 0.0
        %4566 = vmatpush1.msra.mxu0 0.0
        %4567 = vmatprep.subr.mxu0 0.0
        %4568 = vmatpush1.msra.mxu0 0.0
        %4569 = vmatprep.subr.mxu0 0.0
        %4570 = vmatpush1.msra.mxu0 0.0
        %4571 = vmatprep.subr.mxu0 0.0
        %4572 = vmatpush1.msra.mxu0 0.0
        %4573 = vmatprep.subr.mxu0 0.0
        %4574 = vmatpush1.msra.mxu0 0.0
        %4575 = vmatprep.subr.mxu0 0.0
        %4576 = vmatpush1.msra.mxu0 0.0
        %4577 = vmatprep.subr.mxu0 0.0
        %4578 = vmatpush1.msra.mxu0 0.0
        %4579 = vmatprep.subr.mxu0 0.0
        %4580 = vmatpush1.msra.mxu0 0.0
        %4581 = vmatprep.subr.mxu0 0.0
        %4582 = vmatpush1.msra.mxu0 0.0
        %4583 = vmatprep.subr.mxu0 0.0
        %4584 = vmatpush1.msra.mxu0 0.0
        %4585 = vmatprep.subr.mxu0 0.0
        %4586 = vmatpush1.msra.mxu0 0.0
        %4587 = vmatprep.subr.mxu0 0.0
        %4588 = vmatpush1.msra.mxu0 0.0
        %4589 = vmatprep.subr.mxu0 0.0
        %4590 = vmatpush1.msra.mxu0 0.0
        %4591 = vmatprep.subr.mxu0 0.0
        %4592 = vmatpush1.msra.mxu0 0.0
        %4593 = vmatprep.subr.mxu0 0.0
        %4594 = vmatpush1.msra.mxu0 0.0
        %4595 = vmatprep.subr.mxu0 0.0
        %4596 = vmatpush1.msra.mxu0 0.0
        %4597 = vmatprep.subr.mxu0 0.0
        %4598 = vmatpush1.msra.mxu0 0.0
        %4599 = vmatprep.subr.mxu0 0.0
        %4600 = vmatpush1.msra.mxu0 0.0
        %4601 = vmatprep.subr.mxu0 0.0
        %4602 = vmatpush1.msra.mxu0 0.0
        %4603 = vmatprep.subr.mxu0 0.0
        %4604 = vmatpush1.msra.mxu0 0.0
        %4605 = vmatprep.subr.mxu0 0.0
        %4606 = vmatpush1.msra.mxu0 0.0
        %4607 = vmatprep.subr.mxu0 0.0
        %4608 = vmatpush1.msra.mxu0 0.0
        %4609 = vmatprep.subr.mxu0 0.0
        %4610 = vmatpush1.msra.mxu0 0.0
        %4611 = vmatprep.subr.mxu0 0.0
        %4612 = vmatpush1.msra.mxu0 0.0
        %4613 = vmatprep.subr.mxu0 0.0
        %4614 = vmatpush1.msra.mxu0 0.0
        %4615 = vmatprep.mubr.f32.mxu0 0.0
        %4616 = vmatmul.mubr.f32.gmra.mrb[0].mxu0 %v4546
        %v4617 = vpop.f32.mrb[0].mxu0
        %v4618 = vadd.f32 0.0, %v4617
        %v4619 = vpop.f32.mrb[0].mxu0
        %4620 = vmatprep.mubr.f32.mxu0 0.0
        %4621 = vmatmul.mubr.f32.gmra.mrb[0].mxu0 %v4549
        %v4622 = vpop.f32.mrb[0].mxu0
        %v4623 = vadd.f32 0.0, %v4622
        %v4624 = vpop.f32.mrb[0].mxu0
        %4625 = vdwg.mxu0
        %v4627 = vsel %vm3198, %v4540, 0
        %v4630 = vsel %vm3198, %v4541, 0
        %4632 = vmatprep.subr.mxu0 0.0
        %4633 = vmatpush1.msra.mxu0 %v3353
        %4634 = vmatprep.subr.mxu0 0.0
        %4635 = vmatpush1.msra.mxu0 %v3358
        %4636 = vmatprep.subr.mxu0 0.0
        %4637 = vmatpush1.msra.mxu0 0.0
        %4638 = vmatprep.subr.mxu0 0.0
        %4639 = vmatpush1.msra.mxu0 0.0
        %4640 = vmatprep.subr.mxu0 0.0
        %4641 = vmatpush1.msra.mxu0 0.0
        %4642 = vmatprep.subr.mxu0 0.0
        %4643 = vmatpush1.msra.mxu0 0.0
        %4644 = vmatprep.subr.mxu0 0.0
        %4645 = vmatpush1.msra.mxu0 0.0
        %4646 = vmatprep.subr.mxu0 0.0
        %4647 = vmatpush1.msra.mxu0 0.0
        %4648 = vmatprep.subr.mxu0 0.0
        %4649 = vmatpush1.msra.mxu0 0.0
        %4650 = vmatprep.subr.mxu0 0.0
        %4651 = vmatpush1.msra.mxu0 0.0
        %4652 = vmatprep.subr.mxu0 0.0
        %4653 = vmatpush1.msra.mxu0 0.0
        %4654 = vmatprep.subr.mxu0 0.0
        %4655 = vmatpush1.msra.mxu0 0.0
        %4656 = vmatprep.subr.mxu0 0.0
        %4657 = vmatpush1.msra.mxu0 0.0
        %4658 = vmatprep.subr.mxu0 0.0
        %4659 = vmatpush1.msra.mxu0 0.0
        %4660 = vmatprep.subr.mxu0 0.0
        %4661 = vmatpush1.msra.mxu0 0.0
        %4662 = vmatprep.subr.mxu0 0.0
        %4663 = vmatpush1.msra.mxu0 0.0
        %4664 = vmatprep.subr.mxu0 0.0
        %4665 = vmatpush1.msra.mxu0 0.0
        %4666 = vmatprep.subr.mxu0 0.0
        %4667 = vmatpush1.msra.mxu0 0.0
        %4668 = vmatprep.subr.mxu0 0.0
        %4669 = vmatpush1.msra.mxu0 0.0
        %4670 = vmatprep.subr.mxu0 0.0
        %4671 = vmatpush1.msra.mxu0 0.0
        %4672 = vmatprep.subr.mxu0 0.0
        %4673 = vmatpush1.msra.mxu0 0.0
        %4674 = vmatprep.subr.mxu0 0.0
        %4675 = vmatpush1.msra.mxu0 0.0
        %4676 = vmatprep.subr.mxu0 0.0
        %4677 = vmatpush1.msra.mxu0 0.0
        %4678 = vmatprep.subr.mxu0 0.0
        %4679 = vmatpush1.msra.mxu0 0.0
        %4680 = vmatprep.subr.mxu0 0.0
        %4681 = vmatpush1.msra.mxu0 0.0
        %4682 = vmatprep.subr.mxu0 0.0
        %4683 = vmatpush1.msra.mxu0 0.0
        %4684 = vmatprep.subr.mxu0 0.0
        %4685 = vmatpush1.msra.mxu0 0.0
        %4686 = vmatprep.subr.mxu0 0.0
        %4687 = vmatpush1.msra.mxu0 0.0
        %4688 = vmatprep.subr.mxu0 0.0
        %4689 = vmatpush1.msra.mxu0 0.0
        %4690 = vmatprep.subr.mxu0 0.0
        %4691 = vmatpush1.msra.mxu0 0.0
        %4692 = vmatprep.subr.mxu0 0.0
        %4693 = vmatpush1.msra.mxu0 0.0
        %4694 = vmatprep.subr.mxu0 0.0
        %4695 = vmatpush1.msra.mxu0 0.0
        %4696 = vmatprep.mubr.f32.mxu0 0.0
        %4697 = vmatmul.mubr.f32.gmra.mrb[0].mxu0 %v4627
        %v4698 = vpop.f32.mrb[0].mxu0
        %v4699 = vadd.f32 %v4618, %v4698
        %v4700 = vpop.f32.mrb[0].mxu0
        %4701 = vmatprep.mubr.f32.mxu0 0.0
        %4702 = vmatmul.mubr.f32.gmra.mrb[0].mxu0 %v4630
        %v4703 = vpop.f32.mrb[0].mxu0
        %v4704 = vadd.f32 %v4623, %v4703
        %v4705 = vpop.f32.mrb[0].mxu0
        %4706 = vdwg.mxu0
        %s4707 = scalar_lea.vmem %s11, 112
        %v4708 = vld [vmem:[%s4707] sm:$0xff]
        %v4709 = vld [vmem:[%s4707 + $0x8] sm:$0xff]
        %v4711 = vsel %vm3198, %v4708, 0
        %v4714 = vsel %vm3198, %v4709, 0
        %4716 = vmatprep.subr.mxu0 0.0
        %4717 = vmatpush1.msra.mxu0 %v3272
        %4718 = vmatprep.subr.mxu0 0.0
        %4719 = vmatpush1.msra.mxu0 %v3277
        %4720 = vmatprep.subr.mxu0 0.0
        %4721 = vmatpush1.msra.mxu0 0.0
        %4722 = vmatprep.subr.mxu0 0.0
        %4723 = vmatpush1.msra.mxu0 0.0
        %4724 = vmatprep.subr.mxu0 0.0
        %4725 = vmatpush1.msra.mxu0 0.0
        %4726 = vmatprep.subr.mxu0 0.0
        %4727 = vmatpush1.msra.mxu0 0.0
        %4728 = vmatprep.subr.mxu0 0.0
        %4729 = vmatpush1.msra.mxu0 0.0
        %4730 = vmatprep.subr.mxu0 0.0
        %4731 = vmatpush1.msra.mxu0 0.0
        %4732 = vmatprep.subr.mxu0 0.0
        %4733 = vmatpush1.msra.mxu0 0.0
        %4734 = vmatprep.subr.mxu0 0.0
        %4735 = vmatpush1.msra.mxu0 0.0
        %4736 = vmatprep.subr.mxu0 0.0
        %4737 = vmatpush1.msra.mxu0 0.0
        %4738 = vmatprep.subr.mxu0 0.0
        %4739 = vmatpush1.msra.mxu0 0.0
        %4740 = vmatprep.subr.mxu0 0.0
        %4741 = vmatpush1.msra.mxu0 0.0
        %4742 = vmatprep.subr.mxu0 0.0
        %4743 = vmatpush1.msra.mxu0 0.0
        %4744 = vmatprep.subr.mxu0 0.0
        %4745 = vmatpush1.msra.mxu0 0.0
        %4746 = vmatprep.subr.mxu0 0.0
        %4747 = vmatpush1.msra.mxu0 0.0
        %4748 = vmatprep.subr.mxu0 0.0
        %4749 = vmatpush1.msra.mxu0 0.0
        %4750 = vmatprep.subr.mxu0 0.0
        %4751 = vmatpush1.msra.mxu0 0.0
        %4752 = vmatprep.subr.mxu0 0.0
        %4753 = vmatpush1.msra.mxu0 0.0
        %4754 = vmatprep.subr.mxu0 0.0
        %4755 = vmatpush1.msra.mxu0 0.0
        %4756 = vmatprep.subr.mxu0 0.0
        %4757 = vmatpush1.msra.mxu0 0.0
        %4758 = vmatprep.subr.mxu0 0.0
        %4759 = vmatpush1.msra.mxu0 0.0
        %4760 = vmatprep.subr.mxu0 0.0
        %4761 = vmatpush1.msra.mxu0 0.0
        %4762 = vmatprep.subr.mxu0 0.0
        %4763 = vmatpush1.msra.mxu0 0.0
        %4764 = vmatprep.subr.mxu0 0.0
        %4765 = vmatpush1.msra.mxu0 0.0
        %4766 = vmatprep.subr.mxu0 0.0
        %4767 = vmatpush1.msra.mxu0 0.0
        %4768 = vmatprep.subr.mxu0 0.0
        %4769 = vmatpush1.msra.mxu0 0.0
        %4770 = vmatprep.subr.mxu0 0.0
        %4771 = vmatpush1.msra.mxu0 0.0
        %4772 = vmatprep.subr.mxu0 0.0
        %4773 = vmatpush1.msra.mxu0 0.0
        %4774 = vmatprep.subr.mxu0 0.0
        %4775 = vmatpush1.msra.mxu0 0.0
        %4776 = vmatprep.subr.mxu0 0.0
        %4777 = vmatpush1.msra.mxu0 0.0
        %4778 = vmatprep.subr.mxu0 0.0
        %4779 = vmatpush1.msra.mxu0 0.0
        %4780 = vmatprep.mubr.f32.mxu0 0.0
        %4781 = vmatmul.mubr.f32.gmra.mrb[0].mxu0 %v4711
        %v4782 = vpop.f32.mrb[0].mxu0
        %v4783 = vadd.f32 0.0, %v4782
        %v4784 = vpop.f32.mrb[0].mxu0
        %4785 = vmatprep.mubr.f32.mxu0 0.0
        %4786 = vmatmul.mubr.f32.gmra.mrb[0].mxu0 %v4714
        %v4787 = vpop.f32.mrb[0].mxu0
        %v4788 = vadd.f32 0.0, %v4787
        %v4789 = vpop.f32.mrb[0].mxu0
        %4790 = vdwg.mxu0
        %v4791 = vadd.f32 %v4699, %v4783
        %v4792 = vadd.f32 %v4704, %v4788
        %s4793 = scalar_lea.vmem %s12, 112
        %v4794 = vld [vmem:[%s4793] sm:$0xff]
        %v4795 = vld [vmem:[%s4793 + $0x8] sm:$0xff]
        %v4797 = vsel %vm2152, %v4794, 0
        %v4800 = vsel %vm2152, %v4795, 0
        %4802 = vmatprep.subr.mxu0 0.0
        %4803 = vmatpush1.msra.mxu0 %v1983
        %4804 = vmatprep.subr.mxu0 0.0
        %4805 = vmatpush1.msra.mxu0 0.0
        %4806 = vmatprep.subr.mxu0 0.0
        %4807 = vmatpush1.msra.mxu0 0.0
        %4808 = vmatprep.subr.mxu0 0.0
        %4809 = vmatpush1.msra.mxu0 0.0
        %4810 = vmatprep.subr.mxu0 0.0
        %4811 = vmatpush1.msra.mxu0 0.0
        %4812 = vmatprep.subr.mxu0 0.0
        %4813 = vmatpush1.msra.mxu0 0.0
        %4814 = vmatprep.subr.mxu0 0.0
        %4815 = vmatpush1.msra.mxu0 0.0
        %4816 = vmatprep.subr.mxu0 0.0
        %4817 = vmatpush1.msra.mxu0 0.0
        %4818 = vmatprep.subr.mxu0 0.0
        %4819 = vmatpush1.msra.mxu0 0.0
        %4820 = vmatprep.subr.mxu0 0.0
        %4821 = vmatpush1.msra.mxu0 0.0
        %4822 = vmatprep.subr.mxu0 0.0
        %4823 = vmatpush1.msra.mxu0 0.0
        %4824 = vmatprep.subr.mxu0 0.0
        %4825 = vmatpush1.msra.mxu0 0.0
        %4826 = vmatprep.subr.mxu0 0.0
        %4827 = vmatpush1.msra.mxu0 0.0
        %4828 = vmatprep.subr.mxu0 0.0
        %4829 = vmatpush1.msra.mxu0 0.0
        %4830 = vmatprep.subr.mxu0 0.0
        %4831 = vmatpush1.msra.mxu0 0.0
        %4832 = vmatprep.subr.mxu0 0.0
        %4833 = vmatpush1.msra.mxu0 0.0
        %4834 = vmatprep.subr.mxu0 0.0
        %4835 = vmatpush1.msra.mxu0 0.0
        %4836 = vmatprep.subr.mxu0 0.0
        %4837 = vmatpush1.msra.mxu0 0.0
        %4838 = vmatprep.subr.mxu0 0.0
        %4839 = vmatpush1.msra.mxu0 0.0
        %4840 = vmatprep.subr.mxu0 0.0
        %4841 = vmatpush1.msra.mxu0 0.0
        %4842 = vmatprep.subr.mxu0 0.0
        %4843 = vmatpush1.msra.mxu0 0.0
        %4844 = vmatprep.subr.mxu0 0.0
        %4845 = vmatpush1.msra.mxu0 0.0
        %4846 = vmatprep.subr.mxu0 0.0
        %4847 = vmatpush1.msra.mxu0 0.0
        %4848 = vmatprep.subr.mxu0 0.0
        %4849 = vmatpush1.msra.mxu0 0.0
        %4850 = vmatprep.subr.mxu0 0.0
        %4851 = vmatpush1.msra.mxu0 0.0
        %4852 = vmatprep.subr.mxu0 0.0
        %4853 = vmatpush1.msra.mxu0 0.0
        %4854 = vmatprep.subr.mxu0 0.0
        %4855 = vmatpush1.msra.mxu0 0.0
        %4856 = vmatprep.subr.mxu0 0.0
        %4857 = vmatpush1.msra.mxu0 0.0
        %4858 = vmatprep.subr.mxu0 0.0
        %4859 = vmatpush1.msra.mxu0 0.0
        %4860 = vmatprep.subr.mxu0 0.0
        %4861 = vmatpush1.msra.mxu0 0.0
        %4862 = vmatprep.subr.mxu0 0.0
        %4863 = vmatpush1.msra.mxu0 0.0
        %4864 = vmatprep.subr.mxu0 0.0
        %4865 = vmatpush1.msra.mxu0 0.0
        %4866 = vmatprep.mubr.f32.mxu0 0.0
        %4867 = vmatmul.mubr.f32.gmra.mrb[0].mxu0 %v4797
        %v4868 = vpop.f32.mrb[0].mxu0
        %v4869 = vadd.f32 0.0, %v4868
        %v4870 = vpop.f32.mrb[0].mxu0
        %4871 = vmatprep.mubr.f32.mxu0 0.0
        %4872 = vmatmul.mubr.f32.gmra.mrb[0].mxu0 %v4800
        %v4873 = vpop.f32.mrb[0].mxu0
        %v4874 = vadd.f32 0.0, %v4873
        %v4875 = vpop.f32.mrb[0].mxu0
        %4876 = vdwg.mxu0
        %v4877 = vadd.f32 %v4791, %v4869
        %v4878 = vadd.f32 %v4792, %v4874
        %s4879 = scalar_lea.vmem %s11, 128
        %v4880 = vld [vmem:[%s4879] sm:$0xff]
        %v4881 = vld [vmem:[%s4879 + $0x8] sm:$0xff]
        %v4883 = vsel %vm3198, %v4880, 0
        %v4886 = vsel %vm3198, %v4881, 0
        %4888 = vmatprep.subr.mxu0 0.0
        %4889 = vmatpush1.msra.mxu0 %v3428
        %4890 = vmatprep.subr.mxu0 0.0
        %4891 = vmatpush1.msra.mxu0 %v3433
        %4892 = vmatprep.subr.mxu0 0.0
        %4893 = vmatpush1.msra.mxu0 0.0
        %4894 = vmatprep.subr.mxu0 0.0
        %4895 = vmatpush1.msra.mxu0 0.0
        %4896 = vmatprep.subr.mxu0 0.0
        %4897 = vmatpush1.msra.mxu0 0.0
        %4898 = vmatprep.subr.mxu0 0.0
        %4899 = vmatpush1.msra.mxu0 0.0
        %4900 = vmatprep.subr.mxu0 0.0
        %4901 = vmatpush1.msra.mxu0 0.0
        %4902 = vmatprep.subr.mxu0 0.0
        %4903 = vmatpush1.msra.mxu0 0.0
        %4904 = vmatprep.subr.mxu0 0.0
        %4905 = vmatpush1.msra.mxu0 0.0
        %4906 = vmatprep.subr.mxu0 0.0
        %4907 = vmatpush1.msra.mxu0 0.0
        %4908 = vmatprep.subr.mxu0 0.0
        %4909 = vmatpush1.msra.mxu0 0.0
        %4910 = vmatprep.subr.mxu0 0.0
        %4911 = vmatpush1.msra.mxu0 0.0
        %4912 = vmatprep.subr.mxu0 0.0
        %4913 = vmatpush1.msra.mxu0 0.0
        %4914 = vmatprep.subr.mxu0 0.0
        %4915 = vmatpush1.msra.mxu0 0.0
        %4916 = vmatprep.subr.mxu0 0.0
        %4917 = vmatpush1.msra.mxu0 0.0
        %4918 = vmatprep.subr.mxu0 0.0
        %4919 = vmatpush1.msra.mxu0 0.0
        %4920 = vmatprep.subr.mxu0 0.0
        %4921 = vmatpush1.msra.mxu0 0.0
        %4922 = vmatprep.subr.mxu0 0.0
        %4923 = vmatpush1.msra.mxu0 0.0
        %4924 = vmatprep.subr.mxu0 0.0
        %4925 = vmatpush1.msra.mxu0 0.0
        %4926 = vmatprep.subr.mxu0 0.0
        %4927 = vmatpush1.msra.mxu0 0.0
        %4928 = vmatprep.subr.mxu0 0.0
        %4929 = vmatpush1.msra.mxu0 0.0
        %4930 = vmatprep.subr.mxu0 0.0
        %4931 = vmatpush1.msra.mxu0 0.0
        %4932 = vmatprep.subr.mxu0 0.0
        %4933 = vmatpush1.msra.mxu0 0.0
        %4934 = vmatprep.subr.mxu0 0.0
        %4935 = vmatpush1.msra.mxu0 0.0
        %4936 = vmatprep.subr.mxu0 0.0
        %4937 = vmatpush1.msra.mxu0 0.0
        %4938 = vmatprep.subr.mxu0 0.0
        %4939 = vmatpush1.msra.mxu0 0.0
        %4940 = vmatprep.subr.mxu0 0.0
        %4941 = vmatpush1.msra.mxu0 0.0
        %4942 = vmatprep.subr.mxu0 0.0
        %4943 = vmatpush1.msra.mxu0 0.0
        %4944 = vmatprep.subr.mxu0 0.0
        %4945 = vmatpush1.msra.mxu0 0.0
        %4946 = vmatprep.subr.mxu0 0.0
        %4947 = vmatpush1.msra.mxu0 0.0
        %4948 = vmatprep.subr.mxu0 0.0
        %4949 = vmatpush1.msra.mxu0 0.0
        %4950 = vmatprep.subr.mxu0 0.0
        %4951 = vmatpush1.msra.mxu0 0.0
        %4952 = vmatprep.mubr.f32.mxu0 0.0
        %4953 = vmatmul.mubr.f32.gmra.mrb[0].mxu0 %v4883
        %v4954 = vpop.f32.mrb[0].mxu0
        %v4955 = vadd.f32 0.0, %v4954
        %v4956 = vpop.f32.mrb[0].mxu0
        %4957 = vmatprep.mubr.f32.mxu0 0.0
        %4958 = vmatmul.mubr.f32.gmra.mrb[0].mxu0 %v4886
        %v4959 = vpop.f32.mrb[0].mxu0
        %v4960 = vadd.f32 0.0, %v4959
        %v4961 = vpop.f32.mrb[0].mxu0
        %4962 = vdwg.mxu0
        %v4963 = vadd.f32 %v4877, %v4955
        %v4964 = vadd.f32 %v4878, %v4960
        %s4965 = scalar_lea.vmem %s12, 128
        %v4966 = vld [vmem:[%s4965] sm:$0xff]
        %v4967 = vld [vmem:[%s4965 + $0x8] sm:$0xff]
        %v4969 = vsel %vm2152, %v4966, 0
        %v4972 = vsel %vm2152, %v4967, 0
        %4974 = vmatprep.subr.mxu0 0.0
        %4975 = vmatpush1.msra.mxu0 %v2144
        %4976 = vmatprep.subr.mxu0 0.0
        %4977 = vmatpush1.msra.mxu0 0.0
        %4978 = vmatprep.subr.mxu0 0.0
        %4979 = vmatpush1.msra.mxu0 0.0
        %4980 = vmatprep.subr.mxu0 0.0
        %4981 = vmatpush1.msra.mxu0 0.0
        %4982 = vmatprep.subr.mxu0 0.0
        %4983 = vmatpush1.msra.mxu0 0.0
        %4984 = vmatprep.subr.mxu0 0.0
        %4985 = vmatpush1.msra.mxu0 0.0
        %4986 = vmatprep.subr.mxu0 0.0
        %4987 = vmatpush1.msra.mxu0 0.0
        %4988 = vmatprep.subr.mxu0 0.0
        %4989 = vmatpush1.msra.mxu0 0.0
        %4990 = vmatprep.subr.mxu0 0.0
        %4991 = vmatpush1.msra.mxu0 0.0
        %4992 = vmatprep.subr.mxu0 0.0
        %4993 = vmatpush1.msra.mxu0 0.0
        %4994 = vmatprep.subr.mxu0 0.0
        %4995 = vmatpush1.msra.mxu0 0.0
        %4996 = vmatprep.subr.mxu0 0.0
        %4997 = vmatpush1.msra.mxu0 0.0
        %4998 = vmatprep.subr.mxu0 0.0
        %4999 = vmatpush1.msra.mxu0 0.0
        %5000 = vmatprep.subr.mxu0 0.0
        %5001 = vmatpush1.msra.mxu0 0.0
        %5002 = vmatprep.subr.mxu0 0.0
        %5003 = vmatpush1.msra.mxu0 0.0
        %5004 = vmatprep.subr.mxu0 0.0
        %5005 = vmatpush1.msra.mxu0 0.0
        %5006 = vmatprep.subr.mxu0 0.0
        %5007 = vmatpush1.msra.mxu0 0.0
        %5008 = vmatprep.subr.mxu0 0.0
        %5009 = vmatpush1.msra.mxu0 0.0
        %5010 = vmatprep.subr.mxu0 0.0
        %5011 = vmatpush1.msra.mxu0 0.0
        %5012 = vmatprep.subr.mxu0 0.0
        %5013 = vmatpush1.msra.mxu0 0.0
        %5014 = vmatprep.subr.mxu0 0.0
        %5015 = vmatpush1.msra.mxu0 0.0
        %5016 = vmatprep.subr.mxu0 0.0
        %5017 = vmatpush1.msra.mxu0 0.0
        %5018 = vmatprep.subr.mxu0 0.0
        %5019 = vmatpush1.msra.mxu0 0.0
        %5020 = vmatprep.subr.mxu0 0.0
        %5021 = vmatpush1.msra.mxu0 0.0
        %5022 = vmatprep.subr.mxu0 0.0
        %5023 = vmatpush1.msra.mxu0 0.0
        %5024 = vmatprep.subr.mxu0 0.0
        %5025 = vmatpush1.msra.mxu0 0.0
        %5026 = vmatprep.subr.mxu0 0.0
        %5027 = vmatpush1.msra.mxu0 0.0
        %5028 = vmatprep.subr.mxu0 0.0
        %5029 = vmatpush1.msra.mxu0 0.0
        %5030 = vmatprep.subr.mxu0 0.0
        %5031 = vmatpush1.msra.mxu0 0.0
        %5032 = vmatprep.subr.mxu0 0.0
        %5033 = vmatpush1.msra.mxu0 0.0
        %5034 = vmatprep.subr.mxu0 0.0
        %5035 = vmatpush1.msra.mxu0 0.0
        %5036 = vmatprep.subr.mxu0 0.0
        %5037 = vmatpush1.msra.mxu0 0.0
        %5038 = vmatprep.mubr.f32.mxu0 0.0
        %5039 = vmatmul.mubr.f32.gmra.mrb[0].mxu0 %v4969
        %v5040 = vpop.f32.mrb[0].mxu0
        %v5041 = vadd.f32 0.0, %v5040
        %v5042 = vpop.f32.mrb[0].mxu0
        %5043 = vmatprep.mubr.f32.mxu0 0.0
        %5044 = vmatmul.mubr.f32.gmra.mrb[0].mxu0 %v4972
        %v5045 = vpop.f32.mrb[0].mxu0
        %v5046 = vadd.f32 0.0, %v5045
        %v5047 = vpop.f32.mrb[0].mxu0
        %5048 = vdwg.mxu0
        %v5049 = vadd.f32 %v4963, %v5041
        %v5050 = vadd.f32 %v4964, %v5046
        %v5052 = vsel %vm1994, %v5049, 0
        %v5055 = vsel %vm1994, %v5050, 0
        %5057 = vmatprep.subr.mxu0 0.0
        %5058 = vmatpush1.msra.mxu0 %v3000
        %5059 = vmatprep.subr.mxu0 0.0
        %5060 = vmatpush1.msra.mxu0 %v3001
        %5061 = vmatprep.subr.mxu0 0.0
        %5062 = vmatpush1.msra.mxu0 %v3002
        %5063 = vmatprep.subr.mxu0 0.0
        %5064 = vmatpush1.msra.mxu0 %v3003
        %5065 = vmatprep.subr.mxu0 0.0
        %5066 = vmatpush1.msra.mxu0 %v3004
        %5067 = vmatprep.subr.mxu0 0.0
        %5068 = vmatpush1.msra.mxu0 %v3005
        %5069 = vmatprep.subr.mxu0 0.0
        %5070 = vmatpush1.msra.mxu0 %v3006
        %5071 = vmatprep.subr.mxu0 0.0
        %5072 = vmatpush1.msra.mxu0 %v3007
        %5073 = vmatprep.subr.mxu0 0.0
        %5074 = vmatpush1.msra.mxu0 0.0
        %5075 = vmatprep.subr.mxu0 0.0
        %5076 = vmatpush1.msra.mxu0 0.0
        %5077 = vmatprep.subr.mxu0 0.0
        %5078 = vmatpush1.msra.mxu0 0.0
        %5079 = vmatprep.subr.mxu0 0.0
        %5080 = vmatpush1.msra.mxu0 0.0
        %5081 = vmatprep.subr.mxu0 0.0
        %5082 = vmatpush1.msra.mxu0 0.0
        %5083 = vmatprep.subr.mxu0 0.0
        %5084 = vmatpush1.msra.mxu0 0.0
        %5085 = vmatprep.subr.mxu0 0.0
        %5086 = vmatpush1.msra.mxu0 0.0
        %5087 = vmatprep.subr.mxu0 0.0
        %5088 = vmatpush1.msra.mxu0 0.0
        %5089 = vmatprep.subr.mxu0 0.0
        %5090 = vmatpush1.msra.mxu0 0.0
        %5091 = vmatprep.subr.mxu0 0.0
        %5092 = vmatpush1.msra.mxu0 0.0
        %5093 = vmatprep.subr.mxu0 0.0
        %5094 = vmatpush1.msra.mxu0 0.0
        %5095 = vmatprep.subr.mxu0 0.0
        %5096 = vmatpush1.msra.mxu0 0.0
        %5097 = vmatprep.subr.mxu0 0.0
        %5098 = vmatpush1.msra.mxu0 0.0
        %5099 = vmatprep.subr.mxu0 0.0
        %5100 = vmatpush1.msra.mxu0 0.0
        %5101 = vmatprep.subr.mxu0 0.0
        %5102 = vmatpush1.msra.mxu0 0.0
        %5103 = vmatprep.subr.mxu0 0.0
        %5104 = vmatpush1.msra.mxu0 0.0
        %5105 = vmatprep.subr.mxu0 0.0
        %5106 = vmatpush1.msra.mxu0 0.0
        %5107 = vmatprep.subr.mxu0 0.0
        %5108 = vmatpush1.msra.mxu0 0.0
        %5109 = vmatprep.subr.mxu0 0.0
        %5110 = vmatpush1.msra.mxu0 0.0
        %5111 = vmatprep.subr.mxu0 0.0
        %5112 = vmatpush1.msra.mxu0 0.0
        %5113 = vmatprep.subr.mxu0 0.0
        %5114 = vmatpush1.msra.mxu0 0.0
        %5115 = vmatprep.subr.mxu0 0.0
        %5116 = vmatpush1.msra.mxu0 0.0
        %5117 = vmatprep.subr.mxu0 0.0
        %5118 = vmatpush1.msra.mxu0 0.0
        %5119 = vmatprep.subr.mxu0 0.0
        %5120 = vmatpush1.msra.mxu0 0.0
        %5121 = vmatprep.mubr.f32.mxu0 0.0
        %5122 = vmatmul.mubr.f32.gmra.mrb[0].mxu0 %v5052
        %v5123 = vpop.f32.mrb[0].mxu0
        %v5124 = vadd.f32 0.0, %v5123
        %v5125 = vpop.f32.mrb[0].mxu0
        %5126 = vmatprep.mubr.f32.mxu0 0.0
        %5127 = vmatmul.mubr.f32.gmra.mrb[0].mxu0 %v5055
        %v5128 = vpop.f32.mrb[0].mxu0
        %v5129 = vadd.f32 0.0, %v5128
        %v5130 = vpop.f32.mrb[0].mxu0
        %5131 = vdwg.mxu0
        %v5132 = vadd.f32 %v4531, %v5124
        %v5133 = vadd.f32 %v4536, %v5129
        %v5134 = vld [vmem:[%s13] sm:$0xff]
        %v5135 = vld [vmem:[%s13 + $0x8] sm:$0xff]
        %5137 = vset.pattern.permute.xlu0 0
        %5138 = vperm.xlu0 %5137, %v5134
        %v5139 = vpop.permute.xlu0 %5138
        %5142 = vset.pattern.permute.xlu0 0
        %5143 = vperm.xlu0 %5142, %v5135
        %v5144 = vpop.permute.xlu0 %5143
        %v5146 = vadd.f32 %v5132, %v5139
        %v5147 = vadd.f32 %v5133, %v5144
        %v5148 = vmax.f32 %v5146, 0.0
        %v5149 = vmax.f32 %v5147, 0.0
        %v5150 = vld [vmem:[%s6] sm:$0xff]
        %v5151 = vld [vmem:[%s6 + $0x8] sm:$0xff]
        %v5152 = vld [vmem:[%s6 + $0x10] sm:$0xff]
        %v5153 = vld [vmem:[%s6 + $0x18] sm:$0xff]
        %v5154 = vld [vmem:[%s6 + $0x20] sm:$0xff]
        %v5155 = vld [vmem:[%s6 + $0x28] sm:$0xff]
        %v5156 = vld [vmem:[%s6 + $0x30] sm:$0xff]
        %v5157 = vld [vmem:[%s6 + $0x38] sm:$0xff]
        %v5158 = vld [vmem:[%s6 + $0x40] sm:$0xff]
        %v5159 = vld [vmem:[%s6 + $0x48] sm:$0xff]
        %v5160 = vld [vmem:[%s6 + $0x50] sm:$0xff]
        %v5161 = vld [vmem:[%s6 + $0x58] sm:$0xff]
        %v5162 = vld [vmem:[%s6 + $0x60] sm:$0xff]
        %v5163 = vld [vmem:[%s6 + $0x68] sm:$0xff]
        %v5164 = vld [vmem:[%s6 + $0x70] sm:$0xff]
        %v5165 = vld [vmem:[%s6 + $0x78] sm:$0xff]
        %v5167 = vsel %vm1994, %v5148, 0
        %v5170 = vsel %vm1994, %v5149, 0
        %5172 = vmatprep.subr.mxu0 %v5151
        %5173 = vmatpush1.msra.mxu0 %v5150
        %5174 = vmatprep.subr.mxu0 %v5153
        %5175 = vmatpush1.msra.mxu0 %v5152
        %5176 = vmatprep.subr.mxu0 %v5155
        %5177 = vmatpush1.msra.mxu0 %v5154
        %5178 = vmatprep.subr.mxu0 %v5157
        %5179 = vmatpush1.msra.mxu0 %v5156
        %5180 = vmatprep.subr.mxu0 %v5159
        %5181 = vmatpush1.msra.mxu0 %v5158
        %5182 = vmatprep.subr.mxu0 %v5161
        %5183 = vmatpush1.msra.mxu0 %v5160
        %5184 = vmatprep.subr.mxu0 %v5163
        %5185 = vmatpush1.msra.mxu0 %v5162
        %5186 = vmatprep.subr.mxu0 %v5165
        %5187 = vmatpush1.msra.mxu0 %v5164
        %5188 = vmatprep.subr.mxu0 0.0
        %5189 = vmatpush1.msra.mxu0 0.0
        %5190 = vmatprep.subr.mxu0 0.0
        %5191 = vmatpush1.msra.mxu0 0.0
        %5192 = vmatprep.subr.mxu0 0.0
        %5193 = vmatpush1.msra.mxu0 0.0
        %5194 = vmatprep.subr.mxu0 0.0
        %5195 = vmatpush1.msra.mxu0 0.0
        %5196 = vmatprep.subr.mxu0 0.0
        %5197 = vmatpush1.msra.mxu0 0.0
        %5198 = vmatprep.subr.mxu0 0.0
        %5199 = vmatpush1.msra.mxu0 0.0
        %5200 = vmatprep.subr.mxu0 0.0
        %5201 = vmatpush1.msra.mxu0 0.0
        %5202 = vmatprep.subr.mxu0 0.0
        %5203 = vmatpush1.msra.mxu0 0.0
        %5204 = vmatprep.subr.mxu0 0.0
        %5205 = vmatpush1.msra.mxu0 0.0
        %5206 = vmatprep.subr.mxu0 0.0
        %5207 = vmatpush1.msra.mxu0 0.0
        %5208 = vmatprep.subr.mxu0 0.0
        %5209 = vmatpush1.msra.mxu0 0.0
        %5210 = vmatprep.subr.mxu0 0.0
        %5211 = vmatpush1.msra.mxu0 0.0
        %5212 = vmatprep.subr.mxu0 0.0
        %5213 = vmatpush1.msra.mxu0 0.0
        %5214 = vmatprep.subr.mxu0 0.0
        %5215 = vmatpush1.msra.mxu0 0.0
        %5216 = vmatprep.subr.mxu0 0.0
        %5217 = vmatpush1.msra.mxu0 0.0
        %5218 = vmatprep.subr.mxu0 0.0
        %5219 = vmatpush1.msra.mxu0 0.0
        %5220 = vmatprep.subr.mxu0 0.0
        %5221 = vmatpush1.msra.mxu0 0.0
        %5222 = vmatprep.subr.mxu0 0.0
        %5223 = vmatpush1.msra.mxu0 0.0
        %5224 = vmatprep.subr.mxu0 0.0
        %5225 = vmatpush1.msra.mxu0 0.0
        %5226 = vmatprep.subr.mxu0 0.0
        %5227 = vmatpush1.msra.mxu0 0.0
        %5228 = vmatprep.subr.mxu0 0.0
        %5229 = vmatpush1.msra.mxu0 0.0
        %5230 = vmatprep.subr.mxu0 0.0
        %5231 = vmatpush1.msra.mxu0 0.0
        %5232 = vmatprep.subr.mxu0 0.0
        %5233 = vmatpush1.msra.mxu0 0.0
        %5234 = vmatprep.subr.mxu0 0.0
        %5235 = vmatpush1.msra.mxu0 0.0
        %5236 = vmatprep.mubr.f32.mxu0 0.0
        %5237 = vmatmul.mubr.f32.gmra.mrb[0].mxu0 %v5167
        %v5238 = vpop.f32.mrb[0].mxu0
        %v5239 = vadd.f32 0.0, %v5238
        %v5240 = vpop.f32.mrb[0].mxu0
        %v5241 = vadd.f32 0.0, %v5240
        %5242 = vmatprep.mubr.f32.mxu0 0.0
        %5243 = vmatmul.mubr.f32.gmra.mrb[0].mxu0 %v5170
        %v5244 = vpop.f32.mrb[0].mxu0
        %v5245 = vadd.f32 0.0, %v5244
        %v5246 = vpop.f32.mrb[0].mxu0
        %v5247 = vadd.f32 0.0, %v5246
        %5248 = vdwg.mxu0
        %5249 = vmatprep.subr.mxu0 %v620
        %5250 = vmatpush1.msra.mxu0 %v619
        %5251 = vmatprep.subr.mxu0 %v622
        %5252 = vmatpush1.msra.mxu0 %v621
        %5253 = vmatprep.subr.mxu0 %v624
        %5254 = vmatpush1.msra.mxu0 %v623
        %5255 = vmatprep.subr.mxu0 %v626
        %5256 = vmatpush1.msra.mxu0 %v625
        %5257 = vmatprep.subr.mxu0 %v628
        %5258 = vmatpush1.msra.mxu0 %v627
        %5259 = vmatprep.subr.mxu0 %v630
        %5260 = vmatpush1.msra.mxu0 %v629
        %5261 = vmatprep.subr.mxu0 %v632
        %5262 = vmatpush1.msra.mxu0 %v631
        %5263 = vmatprep.subr.mxu0 %v634
        %5264 = vmatpush1.msra.mxu0 %v633
        %5265 = vmatprep.subr.mxu0 %v636
        %5266 = vmatpush1.msra.mxu0 %v635
        %5267 = vmatprep.subr.mxu0 %v638
        %5268 = vmatpush1.msra.mxu0 %v637
        %5269 = vmatprep.subr.mxu0 %v640
        %5270 = vmatpush1.msra.mxu0 %v639
        %5271 = vmatprep.subr.mxu0 %v642
        %5272 = vmatpush1.msra.mxu0 %v641
        %5273 = vmatprep.subr.mxu0 %v644
        %5274 = vmatpush1.msra.mxu0 %v643
        %5275 = vmatprep.subr.mxu0 %v646
        %5276 = vmatpush1.msra.mxu0 %v645
        %5277 = vmatprep.subr.mxu0 %v648
        %5278 = vmatpush1.msra.mxu0 %v647
        %5279 = vmatprep.subr.mxu0 %v650
        %5280 = vmatpush1.msra.mxu0 %v649
        %5281 = vmatprep.subr.mxu0 %v652
        %5282 = vmatpush1.msra.mxu0 %v651
        %5283 = vmatprep.subr.mxu0 %v654
        %5284 = vmatpush1.msra.mxu0 %v653
        %5285 = vmatprep.subr.mxu0 %v656
        %5286 = vmatpush1.msra.mxu0 %v655
        %5287 = vmatprep.subr.mxu0 %v658
        %5288 = vmatpush1.msra.mxu0 %v657
        %5289 = vmatprep.subr.mxu0 %v660
        %5290 = vmatpush1.msra.mxu0 %v659
        %5291 = vmatprep.subr.mxu0 %v662
        %5292 = vmatpush1.msra.mxu0 %v661
        %5293 = vmatprep.subr.mxu0 %v664
        %5294 = vmatpush1.msra.mxu0 %v663
        %5295 = vmatprep.subr.mxu0 %v666
        %5296 = vmatpush1.msra.mxu0 %v665
        %5297 = vmatprep.subr.mxu0 %v668
        %5298 = vmatpush1.msra.mxu0 %v667
        %5299 = vmatprep.subr.mxu0 %v670
        %5300 = vmatpush1.msra.mxu0 %v669
        %5301 = vmatprep.subr.mxu0 %v672
        %5302 = vmatpush1.msra.mxu0 %v671
        %5303 = vmatprep.subr.mxu0 %v674
        %5304 = vmatpush1.msra.mxu0 %v673
        %5305 = vmatprep.subr.mxu0 %v676
        %5306 = vmatpush1.msra.mxu0 %v675
        %5307 = vmatprep.subr.mxu0 %v678
        %5308 = vmatpush1.msra.mxu0 %v677
        %5309 = vmatprep.subr.mxu0 %v680
        %5310 = vmatpush1.msra.mxu0 %v679
        %5311 = vmatprep.subr.mxu0 %v682
        %5312 = vmatpush1.msra.mxu0 %v681
        %5313 = vmatprep.mubr.f32.mxu0 %v5241
        %5314 = vmatmul.mubr.f32.gmra.mrb[0].mxu0 %v5239
        %v5315 = vpop.f32.mrb[0].mxu0
        %v5316 = vadd.f32 0.0, %v5315
        %v5317 = vpop.f32.mrb[0].mxu0
        %v5318 = vadd.f32 0.0, %v5317
        %5319 = vmatprep.mubr.f32.mxu0 %v5247
        %5320 = vmatmul.mubr.f32.gmra.mrb[0].mxu0 %v5245
        %v5321 = vpop.f32.mrb[0].mxu0
        %v5322 = vadd.f32 0.0, %v5321
        %v5323 = vpop.f32.mrb[0].mxu0
        %v5324 = vadd.f32 0.0, %v5323
        %5325 = vdwg.mxu0
        %5326 = vmatprep.subr.mxu0 %v759
        %5327 = vmatpush1.msra.mxu0 %v758
        %5328 = vmatprep.subr.mxu0 %v761
        %5329 = vmatpush1.msra.mxu0 %v760
        %5330 = vmatprep.subr.mxu0 %v763
        %5331 = vmatpush1.msra.mxu0 %v762
        %5332 = vmatprep.subr.mxu0 %v765
        %5333 = vmatpush1.msra.mxu0 %v764
        %5334 = vmatprep.subr.mxu0 %v767
        %5335 = vmatpush1.msra.mxu0 %v766
        %5336 = vmatprep.subr.mxu0 %v769
        %5337 = vmatpush1.msra.mxu0 %v768
        %5338 = vmatprep.subr.mxu0 %v771
        %5339 = vmatpush1.msra.mxu0 %v770
        %5340 = vmatprep.subr.mxu0 %v773
        %5341 = vmatpush1.msra.mxu0 %v772
        %5342 = vmatprep.subr.mxu0 %v775
        %5343 = vmatpush1.msra.mxu0 %v774
        %5344 = vmatprep.subr.mxu0 %v777
        %5345 = vmatpush1.msra.mxu0 %v776
        %5346 = vmatprep.subr.mxu0 %v779
        %5347 = vmatpush1.msra.mxu0 %v778
        %5348 = vmatprep.subr.mxu0 %v781
        %5349 = vmatpush1.msra.mxu0 %v780
        %5350 = vmatprep.subr.mxu0 %v783
        %5351 = vmatpush1.msra.mxu0 %v782
        %5352 = vmatprep.subr.mxu0 %v785
        %5353 = vmatpush1.msra.mxu0 %v784
        %5354 = vmatprep.subr.mxu0 %v787
        %5355 = vmatpush1.msra.mxu0 %v786
        %5356 = vmatprep.subr.mxu0 %v789
        %5357 = vmatpush1.msra.mxu0 %v788
        %5358 = vmatprep.subr.mxu0 %v791
        %5359 = vmatpush1.msra.mxu0 %v790
        %5360 = vmatprep.subr.mxu0 %v793
        %5361 = vmatpush1.msra.mxu0 %v792
        %5362 = vmatprep.subr.mxu0 %v795
        %5363 = vmatpush1.msra.mxu0 %v794
        %5364 = vmatprep.subr.mxu0 %v797
        %5365 = vmatpush1.msra.mxu0 %v796
        %5366 = vmatprep.subr.mxu0 %v799
        %5367 = vmatpush1.msra.mxu0 %v798
        %5368 = vmatprep.subr.mxu0 %v801
        %5369 = vmatpush1.msra.mxu0 %v800
        %5370 = vmatprep.subr.mxu0 %v803
        %5371 = vmatpush1.msra.mxu0 %v802
        %5372 = vmatprep.subr.mxu0 %v805
        %5373 = vmatpush1.msra.mxu0 %v804
        %5374 = vmatprep.subr.mxu0 %v807
        %5375 = vmatpush1.msra.mxu0 %v806
        %5376 = vmatprep.subr.mxu0 %v809
        %5377 = vmatpush1.msra.mxu0 %v808
        %5378 = vmatprep.subr.mxu0 %v811
        %5379 = vmatpush1.msra.mxu0 %v810
        %5380 = vmatprep.subr.mxu0 %v813
        %5381 = vmatpush1.msra.mxu0 %v812
        %5382 = vmatprep.subr.mxu0 %v815
        %5383 = vmatpush1.msra.mxu0 %v814
        %5384 = vmatprep.subr.mxu0 %v817
        %5385 = vmatpush1.msra.mxu0 %v816
        %5386 = vmatprep.subr.mxu0 %v819
        %5387 = vmatpush1.msra.mxu0 %v818
        %5388 = vmatprep.subr.mxu0 %v821
        %5389 = vmatpush1.msra.mxu0 %v820
        %5390 = vmatprep.mubr.f32.mxu0 %v5241
        %5391 = vmatmul.mubr.f32.gmra.mrb[0].mxu0 %v5239
        %v5392 = vpop.f32.mrb[0].mxu0
        %v5393 = vadd.f32 0.0, %v5392
        %v5394 = vpop.f32.mrb[0].mxu0
        %v5395 = vadd.f32 0.0, %v5394
        %5396 = vmatprep.mubr.f32.mxu0 %v5247
        %5397 = vmatmul.mubr.f32.gmra.mrb[0].mxu0 %v5245
        %v5398 = vpop.f32.mrb[0].mxu0
        %v5399 = vadd.f32 0.0, %v5398
        %v5400 = vpop.f32.mrb[0].mxu0
        %v5401 = vadd.f32 0.0, %v5400
        %5402 = vdwg.mxu0
        %v5403 = vld [vmem:[%s14] sm:$0xff]
        %v5404 = vld [vmem:[%s15] sm:$0xff]
        %v5406 = vsel %vm896, %v5404, 0
        %5408 = vmatprep.subr.mxu0 %v983
        %5409 = vmatpush1.msra.mxu0 %v980
        %5410 = vmatprep.subr.mxu0 0.0
        %5411 = vmatpush1.msra.mxu0 0.0
        %5412 = vmatprep.subr.mxu0 0.0
        %5413 = vmatpush1.msra.mxu0 0.0
        %5414 = vmatprep.subr.mxu0 0.0
        %5415 = vmatpush1.msra.mxu0 0.0
        %5416 = vmatprep.subr.mxu0 0.0
        %5417 = vmatpush1.msra.mxu0 0.0
        %5418 = vmatprep.subr.mxu0 0.0
        %5419 = vmatpush1.msra.mxu0 0.0
        %5420 = vmatprep.subr.mxu0 0.0
        %5421 = vmatpush1.msra.mxu0 0.0
        %5422 = vmatprep.subr.mxu0 0.0
        %5423 = vmatpush1.msra.mxu0 0.0
        %5424 = vmatprep.subr.mxu0 0.0
        %5425 = vmatpush1.msra.mxu0 0.0
        %5426 = vmatprep.subr.mxu0 0.0
        %5427 = vmatpush1.msra.mxu0 0.0
        %5428 = vmatprep.subr.mxu0 0.0
        %5429 = vmatpush1.msra.mxu0 0.0
        %5430 = vmatprep.subr.mxu0 0.0
        %5431 = vmatpush1.msra.mxu0 0.0
        %5432 = vmatprep.subr.mxu0 0.0
        %5433 = vmatpush1.msra.mxu0 0.0
        %5434 = vmatprep.subr.mxu0 0.0
        %5435 = vmatpush1.msra.mxu0 0.0
        %5436 = vmatprep.subr.mxu0 0.0
        %5437 = vmatpush1.msra.mxu0 0.0
        %5438 = vmatprep.subr.mxu0 0.0
        %5439 = vmatpush1.msra.mxu0 0.0
        %5440 = vmatprep.subr.mxu0 0.0
        %5441 = vmatpush1.msra.mxu0 0.0
        %5442 = vmatprep.subr.mxu0 0.0
        %5443 = vmatpush1.msra.mxu0 0.0
        %5444 = vmatprep.subr.mxu0 0.0
        %5445 = vmatpush1.msra.mxu0 0.0
        %5446 = vmatprep.subr.mxu0 0.0
        %5447 = vmatpush1.msra.mxu0 0.0
        %5448 = vmatprep.subr.mxu0 0.0
        %5449 = vmatpush1.msra.mxu0 0.0
        %5450 = vmatprep.subr.mxu0 0.0
        %5451 = vmatpush1.msra.mxu0 0.0
        %5452 = vmatprep.subr.mxu0 0.0
        %5453 = vmatpush1.msra.mxu0 0.0
        %5454 = vmatprep.subr.mxu0 0.0
        %5455 = vmatpush1.msra.mxu0 0.0
        %5456 = vmatprep.subr.mxu0 0.0
        %5457 = vmatpush1.msra.mxu0 0.0
        %5458 = vmatprep.subr.mxu0 0.0
        %5459 = vmatpush1.msra.mxu0 0.0
        %5460 = vmatprep.subr.mxu0 0.0
        %5461 = vmatpush1.msra.mxu0 0.0
        %5462 = vmatprep.subr.mxu0 0.0
        %5463 = vmatpush1.msra.mxu0 0.0
        %5464 = vmatprep.subr.mxu0 0.0
        %5465 = vmatpush1.msra.mxu0 0.0
        %5466 = vmatprep.subr.mxu0 0.0
        %5467 = vmatpush1.msra.mxu0 0.0
        %5468 = vmatprep.subr.mxu0 0.0
        %5469 = vmatpush1.msra.mxu0 0.0
        %5470 = vmatprep.subr.mxu0 0.0
        %5471 = vmatpush1.msra.mxu0 0.0
        %5472 = vmatprep.mubr.f32.mxu0 0.0
        %5473 = vmatmul.mubr.f32.gmra.mrb[0].mxu0 %v5406
        %v5474 = vpop.f32.mrb[0].mxu0
        %v5475 = vadd.f32 0.0, %v5474
        %v5476 = vpop.f32.mrb[0].mxu0
        %v5477 = vadd.f32 0.0, %v5476
        %5478 = vdwg.mxu0
        %v5480 = vsel %vm3198, %v5403, 0
        %5482 = vmatprep.subr.mxu0 %v5318
        %5483 = vmatpush1.msra.mxu0 %v5316
        %5484 = vmatprep.subr.mxu0 %v5324
        %5485 = vmatpush1.msra.mxu0 %v5322
        %5486 = vmatprep.subr.mxu0 0.0
        %5487 = vmatpush1.msra.mxu0 0.0
        %5488 = vmatprep.subr.mxu0 0.0
        %5489 = vmatpush1.msra.mxu0 0.0
        %5490 = vmatprep.subr.mxu0 0.0
        %5491 = vmatpush1.msra.mxu0 0.0
        %5492 = vmatprep.subr.mxu0 0.0
        %5493 = vmatpush1.msra.mxu0 0.0
        %5494 = vmatprep.subr.mxu0 0.0
        %5495 = vmatpush1.msra.mxu0 0.0
        %5496 = vmatprep.subr.mxu0 0.0
        %5497 = vmatpush1.msra.mxu0 0.0
        %5498 = vmatprep.subr.mxu0 0.0
        %5499 = vmatpush1.msra.mxu0 0.0
        %5500 = vmatprep.subr.mxu0 0.0
        %5501 = vmatpush1.msra.mxu0 0.0
        %5502 = vmatprep.subr.mxu0 0.0
        %5503 = vmatpush1.msra.mxu0 0.0
        %5504 = vmatprep.subr.mxu0 0.0
        %5505 = vmatpush1.msra.mxu0 0.0
        %5506 = vmatprep.subr.mxu0 0.0
        %5507 = vmatpush1.msra.mxu0 0.0
        %5508 = vmatprep.subr.mxu0 0.0
        %5509 = vmatpush1.msra.mxu0 0.0
        %5510 = vmatprep.subr.mxu0 0.0
        %5511 = vmatpush1.msra.mxu0 0.0
        %5512 = vmatprep.subr.mxu0 0.0
        %5513 = vmatpush1.msra.mxu0 0.0
        %5514 = vmatprep.subr.mxu0 0.0
        %5515 = vmatpush1.msra.mxu0 0.0
        %5516 = vmatprep.subr.mxu0 0.0
        %5517 = vmatpush1.msra.mxu0 0.0
        %5518 = vmatprep.subr.mxu0 0.0
        %5519 = vmatpush1.msra.mxu0 0.0
        %5520 = vmatprep.subr.mxu0 0.0
        %5521 = vmatpush1.msra.mxu0 0.0
        %5522 = vmatprep.subr.mxu0 0.0
        %5523 = vmatpush1.msra.mxu0 0.0
        %5524 = vmatprep.subr.mxu0 0.0
        %5525 = vmatpush1.msra.mxu0 0.0
        %5526 = vmatprep.subr.mxu0 0.0
        %5527 = vmatpush1.msra.mxu0 0.0
        %5528 = vmatprep.subr.mxu0 0.0
        %5529 = vmatpush1.msra.mxu0 0.0
        %5530 = vmatprep.subr.mxu0 0.0
        %5531 = vmatpush1.msra.mxu0 0.0
        %5532 = vmatprep.subr.mxu0 0.0
        %5533 = vmatpush1.msra.mxu0 0.0
        %5534 = vmatprep.subr.mxu0 0.0
        %5535 = vmatpush1.msra.mxu0 0.0
        %5536 = vmatprep.subr.mxu0 0.0
        %5537 = vmatpush1.msra.mxu0 0.0
        %5538 = vmatprep.subr.mxu0 0.0
        %5539 = vmatpush1.msra.mxu0 0.0
        %5540 = vmatprep.subr.mxu0 0.0
        %5541 = vmatpush1.msra.mxu0 0.0
        %5542 = vmatprep.subr.mxu0 0.0
        %5543 = vmatpush1.msra.mxu0 0.0
        %5544 = vmatprep.subr.mxu0 0.0
        %5545 = vmatpush1.msra.mxu0 0.0
        %5546 = vmatprep.mubr.f32.mxu0 0.0
        %5547 = vmatmul.mubr.f32.gmra.mrb[0].mxu0 %v5480
        %v5548 = vpop.f32.mrb[0].mxu0
        %v5549 = vadd.f32 %v5475, %v5548
        %v5550 = vpop.f32.mrb[0].mxu0
        %v5551 = vadd.f32 %v5477, %v5550
        %5552 = vdwg.mxu0
        %s5553 = scalar_lea.vmem %s14, 8
        %v5554 = vld [vmem:[%s5553] sm:$0xff]
        %v5556 = vsel %vm3198, %v5554, 0
        %5558 = vmatprep.subr.mxu0 %v5241
        %5559 = vmatpush1.msra.mxu0 %v5239
        %5560 = vmatprep.subr.mxu0 %v5247
        %5561 = vmatpush1.msra.mxu0 %v5245
        %5562 = vmatprep.subr.mxu0 0.0
        %5563 = vmatpush1.msra.mxu0 0.0
        %5564 = vmatprep.subr.mxu0 0.0
        %5565 = vmatpush1.msra.mxu0 0.0
        %5566 = vmatprep.subr.mxu0 0.0
        %5567 = vmatpush1.msra.mxu0 0.0
        %5568 = vmatprep.subr.mxu0 0.0
        %5569 = vmatpush1.msra.mxu0 0.0
        %5570 = vmatprep.subr.mxu0 0.0
        %5571 = vmatpush1.msra.mxu0 0.0
        %5572 = vmatprep.subr.mxu0 0.0
        %5573 = vmatpush1.msra.mxu0 0.0
        %5574 = vmatprep.subr.mxu0 0.0
        %5575 = vmatpush1.msra.mxu0 0.0
        %5576 = vmatprep.subr.mxu0 0.0
        %5577 = vmatpush1.msra.mxu0 0.0
        %5578 = vmatprep.subr.mxu0 0.0
        %5579 = vmatpush1.msra.mxu0 0.0
        %5580 = vmatprep.subr.mxu0 0.0
        %5581 = vmatpush1.msra.mxu0 0.0
        %5582 = vmatprep.subr.mxu0 0.0
        %5583 = vmatpush1.msra.mxu0 0.0
        %5584 = vmatprep.subr.mxu0 0.0
        %5585 = vmatpush1.msra.mxu0 0.0
        %5586 = vmatprep.subr.mxu0 0.0
        %5587 = vmatpush1.msra.mxu0 0.0
        %5588 = vmatprep.subr.mxu0 0.0
        %5589 = vmatpush1.msra.mxu0 0.0
        %5590 = vmatprep.subr.mxu0 0.0
        %5591 = vmatpush1.msra.mxu0 0.0
        %5592 = vmatprep.subr.mxu0 0.0
        %5593 = vmatpush1.msra.mxu0 0.0
        %5594 = vmatprep.subr.mxu0 0.0
        %5595 = vmatpush1.msra.mxu0 0.0
        %5596 = vmatprep.subr.mxu0 0.0
        %5597 = vmatpush1.msra.mxu0 0.0
        %5598 = vmatprep.subr.mxu0 0.0
        %5599 = vmatpush1.msra.mxu0 0.0
        %5600 = vmatprep.subr.mxu0 0.0
        %5601 = vmatpush1.msra.mxu0 0.0
        %5602 = vmatprep.subr.mxu0 0.0
        %5603 = vmatpush1.msra.mxu0 0.0
        %5604 = vmatprep.subr.mxu0 0.0
        %5605 = vmatpush1.msra.mxu0 0.0
        %5606 = vmatprep.subr.mxu0 0.0
        %5607 = vmatpush1.msra.mxu0 0.0
        %5608 = vmatprep.subr.mxu0 0.0
        %5609 = vmatpush1.msra.mxu0 0.0
        %5610 = vmatprep.subr.mxu0 0.0
        %5611 = vmatpush1.msra.mxu0 0.0
        %5612 = vmatprep.subr.mxu0 0.0
        %5613 = vmatpush1.msra.mxu0 0.0
        %5614 = vmatprep.subr.mxu0 0.0
        %5615 = vmatpush1.msra.mxu0 0.0
        %5616 = vmatprep.subr.mxu0 0.0
        %5617 = vmatpush1.msra.mxu0 0.0
        %5618 = vmatprep.subr.mxu0 0.0
        %5619 = vmatpush1.msra.mxu0 0.0
        %5620 = vmatprep.subr.mxu0 0.0
        %5621 = vmatpush1.msra.mxu0 0.0
        %5622 = vmatprep.mubr.f32.mxu0 0.0
        %5623 = vmatmul.mubr.f32.gmra.mrb[0].mxu0 %v5556
        %v5624 = vpop.f32.mrb[0].mxu0
        %v5625 = vadd.f32 0.0, %v5624
        %v5626 = vpop.f32.mrb[0].mxu0
        %v5627 = vadd.f32 0.0, %v5626
        %5628 = vdwg.mxu0
        %v5629 = vadd.f32 %v5549, %v5625
        %v5630 = vadd.f32 %v5551, %v5627
        %s5631 = scalar_lea.vmem %s15, 8
        %v5632 = vld [vmem:[%s5631] sm:$0xff]
        %v5634 = vsel %vm896, %v5632, 0
        %5636 = vmatprep.subr.mxu0 %v903
        %5637 = vmatpush1.msra.mxu0 %v901
        %5638 = vmatprep.subr.mxu0 0.0
        %5639 = vmatpush1.msra.mxu0 0.0
        %5640 = vmatprep.subr.mxu0 0.0
        %5641 = vmatpush1.msra.mxu0 0.0
        %5642 = vmatprep.subr.mxu0 0.0
        %5643 = vmatpush1.msra.mxu0 0.0
        %5644 = vmatprep.subr.mxu0 0.0
        %5645 = vmatpush1.msra.mxu0 0.0
        %5646 = vmatprep.subr.mxu0 0.0
        %5647 = vmatpush1.msra.mxu0 0.0
        %5648 = vmatprep.subr.mxu0 0.0
        %5649 = vmatpush1.msra.mxu0 0.0
        %5650 = vmatprep.subr.mxu0 0.0
        %5651 = vmatpush1.msra.mxu0 0.0
        %5652 = vmatprep.subr.mxu0 0.0
        %5653 = vmatpush1.msra.mxu0 0.0
        %5654 = vmatprep.subr.mxu0 0.0
        %5655 = vmatpush1.msra.mxu0 0.0
        %5656 = vmatprep.subr.mxu0 0.0
        %5657 = vmatpush1.msra.mxu0 0.0
        %5658 = vmatprep.subr.mxu0 0.0
        %5659 = vmatpush1.msra.mxu0 0.0
        %5660 = vmatprep.subr.mxu0 0.0
        %5661 = vmatpush1.msra.mxu0 0.0
        %5662 = vmatprep.subr.mxu0 0.0
        %5663 = vmatpush1.msra.mxu0 0.0
        %5664 = vmatprep.subr.mxu0 0.0
        %5665 = vmatpush1.msra.mxu0 0.0
        %5666 = vmatprep.subr.mxu0 0.0
        %5667 = vmatpush1.msra.mxu0 0.0
        %5668 = vmatprep.subr.mxu0 0.0
        %5669 = vmatpush1.msra.mxu0 0.0
        %5670 = vmatprep.subr.mxu0 0.0
        %5671 = vmatpush1.msra.mxu0 0.0
        %5672 = vmatprep.subr.mxu0 0.0
        %5673 = vmatpush1.msra.mxu0 0.0
        %5674 = vmatprep.subr.mxu0 0.0
        %5675 = vmatpush1.msra.mxu0 0.0
        %5676 = vmatprep.subr.mxu0 0.0
        %5677 = vmatpush1.msra.mxu0 0.0
        %5678 = vmatprep.subr.mxu0 0.0
        %5679 = vmatpush1.msra.mxu0 0.0
        %5680 = vmatprep.subr.mxu0 0.0
        %5681 = vmatpush1.msra.mxu0 0.0
        %5682 = vmatprep.subr.mxu0 0.0
        %5683 = vmatpush1.msra.mxu0 0.0
        %5684 = vmatprep.subr.mxu0 0.0
        %5685 = vmatpush1.msra.mxu0 0.0
        %5686 = vmatprep.subr.mxu0 0.0
        %5687 = vmatpush1.msra.mxu0 0.0
        %5688 = vmatprep.subr.mxu0 0.0
        %5689 = vmatpush1.msra.mxu0 0.0
        %5690 = vmatprep.subr.mxu0 0.0
        %5691 = vmatpush1.msra.mxu0 0.0
        %5692 = vmatprep.subr.mxu0 0.0
        %5693 = vmatpush1.msra.mxu0 0.0
        %5694 = vmatprep.subr.mxu0 0.0
        %5695 = vmatpush1.msra.mxu0 0.0
        %5696 = vmatprep.subr.mxu0 0.0
        %5697 = vmatpush1.msra.mxu0 0.0
        %5698 = vmatprep.subr.mxu0 0.0
        %5699 = vmatpush1.msra.mxu0 0.0
        %5700 = vmatprep.mubr.f32.mxu0 0.0
        %5701 = vmatmul.mubr.f32.gmra.mrb[0].mxu0 %v5634
        %v5702 = vpop.f32.mrb[0].mxu0
        %v5703 = vadd.f32 0.0, %v5702
        %v5704 = vpop.f32.mrb[0].mxu0
        %v5705 = vadd.f32 0.0, %v5704
        %5706 = vdwg.mxu0
        %v5707 = vadd.f32 %v5629, %v5703
        %v5708 = vadd.f32 %v5630, %v5705
        %s5709 = scalar_lea.vmem %s14, 16
        %v5710 = vld [vmem:[%s5709] sm:$0xff]
        %v5712 = vsel %vm3198, %v5710, 0
        %5714 = vmatprep.subr.mxu0 %v5395
        %5715 = vmatpush1.msra.mxu0 %v5393
        %5716 = vmatprep.subr.mxu0 %v5401
        %5717 = vmatpush1.msra.mxu0 %v5399
        %5718 = vmatprep.subr.mxu0 0.0
        %5719 = vmatpush1.msra.mxu0 0.0
        %5720 = vmatprep.subr.mxu0 0.0
        %5721 = vmatpush1.msra.mxu0 0.0
        %5722 = vmatprep.subr.mxu0 0.0
        %5723 = vmatpush1.msra.mxu0 0.0
        %5724 = vmatprep.subr.mxu0 0.0
        %5725 = vmatpush1.msra.mxu0 0.0
        %5726 = vmatprep.subr.mxu0 0.0
        %5727 = vmatpush1.msra.mxu0 0.0
        %5728 = vmatprep.subr.mxu0 0.0
        %5729 = vmatpush1.msra.mxu0 0.0
        %5730 = vmatprep.subr.mxu0 0.0
        %5731 = vmatpush1.msra.mxu0 0.0
        %5732 = vmatprep.subr.mxu0 0.0
        %5733 = vmatpush1.msra.mxu0 0.0
        %5734 = vmatprep.subr.mxu0 0.0
        %5735 = vmatpush1.msra.mxu0 0.0
        %5736 = vmatprep.subr.mxu0 0.0
        %5737 = vmatpush1.msra.mxu0 0.0
        %5738 = vmatprep.subr.mxu0 0.0
        %5739 = vmatpush1.msra.mxu0 0.0
        %5740 = vmatprep.subr.mxu0 0.0
        %5741 = vmatpush1.msra.mxu0 0.0
        %5742 = vmatprep.subr.mxu0 0.0
        %5743 = vmatpush1.msra.mxu0 0.0
        %5744 = vmatprep.subr.mxu0 0.0
        %5745 = vmatpush1.msra.mxu0 0.0
        %5746 = vmatprep.subr.mxu0 0.0
        %5747 = vmatpush1.msra.mxu0 0.0
        %5748 = vmatprep.subr.mxu0 0.0
        %5749 = vmatpush1.msra.mxu0 0.0
        %5750 = vmatprep.subr.mxu0 0.0
        %5751 = vmatpush1.msra.mxu0 0.0
        %5752 = vmatprep.subr.mxu0 0.0
        %5753 = vmatpush1.msra.mxu0 0.0
        %5754 = vmatprep.subr.mxu0 0.0
        %5755 = vmatpush1.msra.mxu0 0.0
        %5756 = vmatprep.subr.mxu0 0.0
        %5757 = vmatpush1.msra.mxu0 0.0
        %5758 = vmatprep.subr.mxu0 0.0
        %5759 = vmatpush1.msra.mxu0 0.0
        %5760 = vmatprep.subr.mxu0 0.0
        %5761 = vmatpush1.msra.mxu0 0.0
        %5762 = vmatprep.subr.mxu0 0.0
        %5763 = vmatpush1.msra.mxu0 0.0
        %5764 = vmatprep.subr.mxu0 0.0
        %5765 = vmatpush1.msra.mxu0 0.0
        %5766 = vmatprep.subr.mxu0 0.0
        %5767 = vmatpush1.msra.mxu0 0.0
        %5768 = vmatprep.subr.mxu0 0.0
        %5769 = vmatpush1.msra.mxu0 0.0
        %5770 = vmatprep.subr.mxu0 0.0
        %5771 = vmatpush1.msra.mxu0 0.0
        %5772 = vmatprep.subr.mxu0 0.0
        %5773 = vmatpush1.msra.mxu0 0.0
        %5774 = vmatprep.subr.mxu0 0.0
        %5775 = vmatpush1.msra.mxu0 0.0
        %5776 = vmatprep.subr.mxu0 0.0
        %5777 = vmatpush1.msra.mxu0 0.0
        %5778 = vmatprep.mubr.f32.mxu0 0.0
        %5779 = vmatmul.mubr.f32.gmra.mrb[0].mxu0 %v5712
        %v5780 = vpop.f32.mrb[0].mxu0
        %v5781 = vadd.f32 0.0, %v5780
        %v5782 = vpop.f32.mrb[0].mxu0
        %v5783 = vadd.f32 0.0, %v5782
        %5784 = vdwg.mxu0
        %v5785 = vadd.f32 %v5707, %v5781
        %v5786 = vadd.f32 %v5708, %v5783
        %s5787 = scalar_lea.vmem %s15, 16
        %v5788 = vld [vmem:[%s5787] sm:$0xff]
        %v5790 = vsel %vm896, %v5788, 0
        %5792 = vmatprep.subr.mxu0 %v1065
        %5793 = vmatpush1.msra.mxu0 %v1062
        %5794 = vmatprep.subr.mxu0 0.0
        %5795 = vmatpush1.msra.mxu0 0.0
        %5796 = vmatprep.subr.mxu0 0.0
        %5797 = vmatpush1.msra.mxu0 0.0
        %5798 = vmatprep.subr.mxu0 0.0
        %5799 = vmatpush1.msra.mxu0 0.0
        %5800 = vmatprep.subr.mxu0 0.0
        %5801 = vmatpush1.msra.mxu0 0.0
        %5802 = vmatprep.subr.mxu0 0.0
        %5803 = vmatpush1.msra.mxu0 0.0
        %5804 = vmatprep.subr.mxu0 0.0
        %5805 = vmatpush1.msra.mxu0 0.0
        %5806 = vmatprep.subr.mxu0 0.0
        %5807 = vmatpush1.msra.mxu0 0.0
        %5808 = vmatprep.subr.mxu0 0.0
        %5809 = vmatpush1.msra.mxu0 0.0
        %5810 = vmatprep.subr.mxu0 0.0
        %5811 = vmatpush1.msra.mxu0 0.0
        %5812 = vmatprep.subr.mxu0 0.0
        %5813 = vmatpush1.msra.mxu0 0.0
        %5814 = vmatprep.subr.mxu0 0.0
        %5815 = vmatpush1.msra.mxu0 0.0
        %5816 = vmatprep.subr.mxu0 0.0
        %5817 = vmatpush1.msra.mxu0 0.0
        %5818 = vmatprep.subr.mxu0 0.0
        %5819 = vmatpush1.msra.mxu0 0.0
        %5820 = vmatprep.subr.mxu0 0.0
        %5821 = vmatpush1.msra.mxu0 0.0
        %5822 = vmatprep.subr.mxu0 0.0
        %5823 = vmatpush1.msra.mxu0 0.0
        %5824 = vmatprep.subr.mxu0 0.0
        %5825 = vmatpush1.msra.mxu0 0.0
        %5826 = vmatprep.subr.mxu0 0.0
        %5827 = vmatpush1.msra.mxu0 0.0
        %5828 = vmatprep.subr.mxu0 0.0
        %5829 = vmatpush1.msra.mxu0 0.0
        %5830 = vmatprep.subr.mxu0 0.0
        %5831 = vmatpush1.msra.mxu0 0.0
        %5832 = vmatprep.subr.mxu0 0.0
        %5833 = vmatpush1.msra.mxu0 0.0
        %5834 = vmatprep.subr.mxu0 0.0
        %5835 = vmatpush1.msra.mxu0 0.0
        %5836 = vmatprep.subr.mxu0 0.0
        %5837 = vmatpush1.msra.mxu0 0.0
        %5838 = vmatprep.subr.mxu0 0.0
        %5839 = vmatpush1.msra.mxu0 0.0
        %5840 = vmatprep.subr.mxu0 0.0
        %5841 = vmatpush1.msra.mxu0 0.0
        %5842 = vmatprep.subr.mxu0 0.0
        %5843 = vmatpush1.msra.mxu0 0.0
        %5844 = vmatprep.subr.mxu0 0.0
        %5845 = vmatpush1.msra.mxu0 0.0
        %5846 = vmatprep.subr.mxu0 0.0
        %5847 = vmatpush1.msra.mxu0 0.0
        %5848 = vmatprep.subr.mxu0 0.0
        %5849 = vmatpush1.msra.mxu0 0.0
        %5850 = vmatprep.subr.mxu0 0.0
        %5851 = vmatpush1.msra.mxu0 0.0
        %5852 = vmatprep.subr.mxu0 0.0
        %5853 = vmatpush1.msra.mxu0 0.0
        %5854 = vmatprep.subr.mxu0 0.0
        %5855 = vmatpush1.msra.mxu0 0.0
        %5856 = vmatprep.mubr.f32.mxu0 0.0
        %5857 = vmatmul.mubr.f32.gmra.mrb[0].mxu0 %v5790
        %v5858 = vpop.f32.mrb[0].mxu0
        %v5859 = vadd.f32 0.0, %v5858
        %v5860 = vpop.f32.mrb[0].mxu0
        %v5861 = vadd.f32 0.0, %v5860
        %5862 = vdwg.mxu0
        %v5863 = vadd.f32 %v5785, %v5859
        %v5864 = vadd.f32 %v5786, %v5861
        %s5865 = scalar_lea.vmem %s14, 24
        %v5866 = vld [vmem:[%s5865] sm:$0xff]
        %s5867 = scalar_lea.vmem %s15, 24
        %v5868 = vld [vmem:[%s5867] sm:$0xff]
        %v5870 = vsel %vm896, %v5868, 0
        %5872 = vmatprep.subr.mxu0 %v983
        %5873 = vmatpush1.msra.mxu0 %v980
        %5874 = vmatprep.subr.mxu0 0.0
        %5875 = vmatpush1.msra.mxu0 0.0
        %5876 = vmatprep.subr.mxu0 0.0
        %5877 = vmatpush1.msra.mxu0 0.0
        %5878 = vmatprep.subr.mxu0 0.0
        %5879 = vmatpush1.msra.mxu0 0.0
        %5880 = vmatprep.subr.mxu0 0.0
        %5881 = vmatpush1.msra.mxu0 0.0
        %5882 = vmatprep.subr.mxu0 0.0
        %5883 = vmatpush1.msra.mxu0 0.0
        %5884 = vmatprep.subr.mxu0 0.0
        %5885 = vmatpush1.msra.mxu0 0.0
        %5886 = vmatprep.subr.mxu0 0.0
        %5887 = vmatpush1.msra.mxu0 0.0
        %5888 = vmatprep.subr.mxu0 0.0
        %5889 = vmatpush1.msra.mxu0 0.0
        %5890 = vmatprep.subr.mxu0 0.0
        %5891 = vmatpush1.msra.mxu0 0.0
        %5892 = vmatprep.subr.mxu0 0.0
        %5893 = vmatpush1.msra.mxu0 0.0
        %5894 = vmatprep.subr.mxu0 0.0
        %5895 = vmatpush1.msra.mxu0 0.0
        %5896 = vmatprep.subr.mxu0 0.0
        %5897 = vmatpush1.msra.mxu0 0.0
        %5898 = vmatprep.subr.mxu0 0.0
        %5899 = vmatpush1.msra.mxu0 0.0
        %5900 = vmatprep.subr.mxu0 0.0
        %5901 = vmatpush1.msra.mxu0 0.0
        %5902 = vmatprep.subr.mxu0 0.0
        %5903 = vmatpush1.msra.mxu0 0.0
        %5904 = vmatprep.subr.mxu0 0.0
        %5905 = vmatpush1.msra.mxu0 0.0
        %5906 = vmatprep.subr.mxu0 0.0
        %5907 = vmatpush1.msra.mxu0 0.0
        %5908 = vmatprep.subr.mxu0 0.0
        %5909 = vmatpush1.msra.mxu0 0.0
        %5910 = vmatprep.subr.mxu0 0.0
        %5911 = vmatpush1.msra.mxu0 0.0
        %5912 = vmatprep.subr.mxu0 0.0
        %5913 = vmatpush1.msra.mxu0 0.0
        %5914 = vmatprep.subr.mxu0 0.0
        %5915 = vmatpush1.msra.mxu0 0.0
        %5916 = vmatprep.subr.mxu0 0.0
        %5917 = vmatpush1.msra.mxu0 0.0
        %5918 = vmatprep.subr.mxu0 0.0
        %5919 = vmatpush1.msra.mxu0 0.0
        %5920 = vmatprep.subr.mxu0 0.0
        %5921 = vmatpush1.msra.mxu0 0.0
        %5922 = vmatprep.subr.mxu0 0.0
        %5923 = vmatpush1.msra.mxu0 0.0
        %5924 = vmatprep.subr.mxu0 0.0
        %5925 = vmatpush1.msra.mxu0 0.0
        %5926 = vmatprep.subr.mxu0 0.0
        %5927 = vmatpush1.msra.mxu0 0.0
        %5928 = vmatprep.subr.mxu0 0.0
        %5929 = vmatpush1.msra.mxu0 0.0
        %5930 = vmatprep.subr.mxu0 0.0
        %5931 = vmatpush1.msra.mxu0 0.0
        %5932 = vmatprep.subr.mxu0 0.0
        %5933 = vmatpush1.msra.mxu0 0.0
        %5934 = vmatprep.subr.mxu0 0.0
        %5935 = vmatpush1.msra.mxu0 0.0
        %5936 = vmatprep.mubr.f32.mxu0 0.0
        %5937 = vmatmul.mubr.f32.gmra.mrb[0].mxu0 %v5870
        %v5938 = vpop.f32.mrb[0].mxu0
        %v5939 = vadd.f32 0.0, %v5938
        %v5940 = vpop.f32.mrb[0].mxu0
        %v5941 = vadd.f32 0.0, %v5940
        %5942 = vdwg.mxu0
        %v5944 = vsel %vm3198, %v5866, 0
        %5946 = vmatprep.subr.mxu0 %v5318
        %5947 = vmatpush1.msra.mxu0 %v5316
        %5948 = vmatprep.subr.mxu0 %v5324
        %5949 = vmatpush1.msra.mxu0 %v5322
        %5950 = vmatprep.subr.mxu0 0.0
        %5951 = vmatpush1.msra.mxu0 0.0
        %5952 = vmatprep.subr.mxu0 0.0
        %5953 = vmatpush1.msra.mxu0 0.0
        %5954 = vmatprep.subr.mxu0 0.0
        %5955 = vmatpush1.msra.mxu0 0.0
        %5956 = vmatprep.subr.mxu0 0.0
        %5957 = vmatpush1.msra.mxu0 0.0
        %5958 = vmatprep.subr.mxu0 0.0
        %5959 = vmatpush1.msra.mxu0 0.0
        %5960 = vmatprep.subr.mxu0 0.0
        %5961 = vmatpush1.msra.mxu0 0.0
        %5962 = vmatprep.subr.mxu0 0.0
        %5963 = vmatpush1.msra.mxu0 0.0
        %5964 = vmatprep.subr.mxu0 0.0
        %5965 = vmatpush1.msra.mxu0 0.0
        %5966 = vmatprep.subr.mxu0 0.0
        %5967 = vmatpush1.msra.mxu0 0.0
        %5968 = vmatprep.subr.mxu0 0.0
        %5969 = vmatpush1.msra.mxu0 0.0
        %5970 = vmatprep.subr.mxu0 0.0
        %5971 = vmatpush1.msra.mxu0 0.0
        %5972 = vmatprep.subr.mxu0 0.0
        %5973 = vmatpush1.msra.mxu0 0.0
        %5974 = vmatprep.subr.mxu0 0.0
        %5975 = vmatpush1.msra.mxu0 0.0
        %5976 = vmatprep.subr.mxu0 0.0
        %5977 = vmatpush1.msra.mxu0 0.0
        %5978 = vmatprep.subr.mxu0 0.0
        %5979 = vmatpush1.msra.mxu0 0.0
        %5980 = vmatprep.subr.mxu0 0.0
        %5981 = vmatpush1.msra.mxu0 0.0
        %5982 = vmatprep.subr.mxu0 0.0
        %5983 = vmatpush1.msra.mxu0 0.0
        %5984 = vmatprep.subr.mxu0 0.0
        %5985 = vmatpush1.msra.mxu0 0.0
        %5986 = vmatprep.subr.mxu0 0.0
        %5987 = vmatpush1.msra.mxu0 0.0
        %5988 = vmatprep.subr.mxu0 0.0
        %5989 = vmatpush1.msra.mxu0 0.0
        %5990 = vmatprep.subr.mxu0 0.0
        %5991 = vmatpush1.msra.mxu0 0.0
        %5992 = vmatprep.subr.mxu0 0.0
        %5993 = vmatpush1.msra.mxu0 0.0
        %5994 = vmatprep.subr.mxu0 0.0
        %5995 = vmatpush1.msra.mxu0 0.0
        %5996 = vmatprep.subr.mxu0 0.0
        %5997 = vmatpush1.msra.mxu0 0.0
        %5998 = vmatprep.subr.mxu0 0.0
        %5999 = vmatpush1.msra.mxu0 0.0
        %6000 = vmatprep.subr.mxu0 0.0
        %6001 = vmatpush1.msra.mxu0 0.0
        %6002 = vmatprep.subr.mxu0 0.0
        %6003 = vmatpush1.msra.mxu0 0.0
        %6004 = vmatprep.subr.mxu0 0.0
        %6005 = vmatpush1.msra.mxu0 0.0
        %6006 = vmatprep.subr.mxu0 0.0
        %6007 = vmatpush1.msra.mxu0 0.0
        %6008 = vmatprep.subr.mxu0 0.0
        %6009 = vmatpush1.msra.mxu0 0.0
        %6010 = vmatprep.mubr.f32.mxu0 0.0
        %6011 = vmatmul.mubr.f32.gmra.mrb[0].mxu0 %v5944
        %v6012 = vpop.f32.mrb[0].mxu0
        %v6013 = vadd.f32 %v5939, %v6012
        %v6014 = vpop.f32.mrb[0].mxu0
        %v6015 = vadd.f32 %v5941, %v6014
        %6016 = vdwg.mxu0
        %s6017 = scalar_lea.vmem %s14, 32
        %v6018 = vld [vmem:[%s6017] sm:$0xff]
        %v6020 = vsel %vm3198, %v6018, 0
        %6022 = vmatprep.subr.mxu0 %v5241
        %6023 = vmatpush1.msra.mxu0 %v5239
        %6024 = vmatprep.subr.mxu0 %v5247
        %6025 = vmatpush1.msra.mxu0 %v5245
        %6026 = vmatprep.subr.mxu0 0.0
        %6027 = vmatpush1.msra.mxu0 0.0
        %6028 = vmatprep.subr.mxu0 0.0
        %6029 = vmatpush1.msra.mxu0 0.0
        %6030 = vmatprep.subr.mxu0 0.0
        %6031 = vmatpush1.msra.mxu0 0.0
        %6032 = vmatprep.subr.mxu0 0.0
        %6033 = vmatpush1.msra.mxu0 0.0
        %6034 = vmatprep.subr.mxu0 0.0
        %6035 = vmatpush1.msra.mxu0 0.0
        %6036 = vmatprep.subr.mxu0 0.0
        %6037 = vmatpush1.msra.mxu0 0.0
        %6038 = vmatprep.subr.mxu0 0.0
        %6039 = vmatpush1.msra.mxu0 0.0
        %6040 = vmatprep.subr.mxu0 0.0
        %6041 = vmatpush1.msra.mxu0 0.0
        %6042 = vmatprep.subr.mxu0 0.0
        %6043 = vmatpush1.msra.mxu0 0.0
        %6044 = vmatprep.subr.mxu0 0.0
        %6045 = vmatpush1.msra.mxu0 0.0
        %6046 = vmatprep.subr.mxu0 0.0
        %6047 = vmatpush1.msra.mxu0 0.0
        %6048 = vmatprep.subr.mxu0 0.0
        %6049 = vmatpush1.msra.mxu0 0.0
        %6050 = vmatprep.subr.mxu0 0.0
        %6051 = vmatpush1.msra.mxu0 0.0
        %6052 = vmatprep.subr.mxu0 0.0
        %6053 = vmatpush1.msra.mxu0 0.0
        %6054 = vmatprep.subr.mxu0 0.0
        %6055 = vmatpush1.msra.mxu0 0.0
        %6056 = vmatprep.subr.mxu0 0.0
        %6057 = vmatpush1.msra.mxu0 0.0
        %6058 = vmatprep.subr.mxu0 0.0
        %6059 = vmatpush1.msra.mxu0 0.0
        %6060 = vmatprep.subr.mxu0 0.0
        %6061 = vmatpush1.msra.mxu0 0.0
        %6062 = vmatprep.subr.mxu0 0.0
        %6063 = vmatpush1.msra.mxu0 0.0
        %6064 = vmatprep.subr.mxu0 0.0
        %6065 = vmatpush1.msra.mxu0 0.0
        %6066 = vmatprep.subr.mxu0 0.0
        %6067 = vmatpush1.msra.mxu0 0.0
        %6068 = vmatprep.subr.mxu0 0.0
        %6069 = vmatpush1.msra.mxu0 0.0
        %6070 = vmatprep.subr.mxu0 0.0
        %6071 = vmatpush1.msra.mxu0 0.0
        %6072 = vmatprep.subr.mxu0 0.0
        %6073 = vmatpush1.msra.mxu0 0.0
        %6074 = vmatprep.subr.mxu0 0.0
        %6075 = vmatpush1.msra.mxu0 0.0
        %6076 = vmatprep.subr.mxu0 0.0
        %6077 = vmatpush1.msra.mxu0 0.0
        %6078 = vmatprep.subr.mxu0 0.0
        %6079 = vmatpush1.msra.mxu0 0.0
        %6080 = vmatprep.subr.mxu0 0.0
        %6081 = vmatpush1.msra.mxu0 0.0
        %6082 = vmatprep.subr.mxu0 0.0
        %6083 = vmatpush1.msra.mxu0 0.0
        %6084 = vmatprep.subr.mxu0 0.0
        %6085 = vmatpush1.msra.mxu0 0.0
        %6086 = vmatprep.mubr.f32.mxu0 0.0
        %6087 = vmatmul.mubr.f32.gmra.mrb[0].mxu0 %v6020
        %v6088 = vpop.f32.mrb[0].mxu0
        %v6089 = vadd.f32 0.0, %v6088
        %v6090 = vpop.f32.mrb[0].mxu0
        %v6091 = vadd.f32 0.0, %v6090
        %6092 = vdwg.mxu0
        %v6093 = vadd.f32 %v6013, %v6089
        %v6094 = vadd.f32 %v6015, %v6091
        %s6095 = scalar_lea.vmem %s15, 32
        %v6096 = vld [vmem:[%s6095] sm:$0xff]
        %v6098 = vsel %vm896, %v6096, 0
        %6100 = vmatprep.subr.mxu0 %v903
        %6101 = vmatpush1.msra.mxu0 %v901
        %6102 = vmatprep.subr.mxu0 0.0
        %6103 = vmatpush1.msra.mxu0 0.0
        %6104 = vmatprep.subr.mxu0 0.0
        %6105 = vmatpush1.msra.mxu0 0.0
        %6106 = vmatprep.subr.mxu0 0.0
        %6107 = vmatpush1.msra.mxu0 0.0
        %6108 = vmatprep.subr.mxu0 0.0
        %6109 = vmatpush1.msra.mxu0 0.0
        %6110 = vmatprep.subr.mxu0 0.0
        %6111 = vmatpush1.msra.mxu0 0.0
        %6112 = vmatprep.subr.mxu0 0.0
        %6113 = vmatpush1.msra.mxu0 0.0
        %6114 = vmatprep.subr.mxu0 0.0
        %6115 = vmatpush1.msra.mxu0 0.0
        %6116 = vmatprep.subr.mxu0 0.0
        %6117 = vmatpush1.msra.mxu0 0.0
        %6118 = vmatprep.subr.mxu0 0.0
        %6119 = vmatpush1.msra.mxu0 0.0
        %6120 = vmatprep.subr.mxu0 0.0
        %6121 = vmatpush1.msra.mxu0 0.0
        %6122 = vmatprep.subr.mxu0 0.0
        %6123 = vmatpush1.msra.mxu0 0.0
        %6124 = vmatprep.subr.mxu0 0.0
        %6125 = vmatpush1.msra.mxu0 0.0
        %6126 = vmatprep.subr.mxu0 0.0
        %6127 = vmatpush1.msra.mxu0 0.0
        %6128 = vmatprep.subr.mxu0 0.0
        %6129 = vmatpush1.msra.mxu0 0.0
        %6130 = vmatprep.subr.mxu0 0.0
        %6131 = vmatpush1.msra.mxu0 0.0
        %6132 = vmatprep.subr.mxu0 0.0
        %6133 = vmatpush1.msra.mxu0 0.0
        %6134 = vmatprep.subr.mxu0 0.0
        %6135 = vmatpush1.msra.mxu0 0.0
        %6136 = vmatprep.subr.mxu0 0.0
        %6137 = vmatpush1.msra.mxu0 0.0
        %6138 = vmatprep.subr.mxu0 0.0
        %6139 = vmatpush1.msra.mxu0 0.0
        %6140 = vmatprep.subr.mxu0 0.0
        %6141 = vmatpush1.msra.mxu0 0.0
        %6142 = vmatprep.subr.mxu0 0.0
        %6143 = vmatpush1.msra.mxu0 0.0
        %6144 = vmatprep.subr.mxu0 0.0
        %6145 = vmatpush1.msra.mxu0 0.0
        %6146 = vmatprep.subr.mxu0 0.0
        %6147 = vmatpush1.msra.mxu0 0.0
        %6148 = vmatprep.subr.mxu0 0.0
        %6149 = vmatpush1.msra.mxu0 0.0
        %6150 = vmatprep.subr.mxu0 0.0
        %6151 = vmatpush1.msra.mxu0 0.0
        %6152 = vmatprep.subr.mxu0 0.0
        %6153 = vmatpush1.msra.mxu0 0.0
        %6154 = vmatprep.subr.mxu0 0.0
        %6155 = vmatpush1.msra.mxu0 0.0
        %6156 = vmatprep.subr.mxu0 0.0
        %6157 = vmatpush1.msra.mxu0 0.0
        %6158 = vmatprep.subr.mxu0 0.0
        %6159 = vmatpush1.msra.mxu0 0.0
        %6160 = vmatprep.subr.mxu0 0.0
        %6161 = vmatpush1.msra.mxu0 0.0
        %6162 = vmatprep.subr.mxu0 0.0
        %6163 = vmatpush1.msra.mxu0 0.0
        %6164 = vmatprep.mubr.f32.mxu0 0.0
        %6165 = vmatmul.mubr.f32.gmra.mrb[0].mxu0 %v6098
        %v6166 = vpop.f32.mrb[0].mxu0
        %v6167 = vadd.f32 0.0, %v6166
        %v6168 = vpop.f32.mrb[0].mxu0
        %v6169 = vadd.f32 0.0, %v6168
        %6170 = vdwg.mxu0
        %v6171 = vadd.f32 %v6093, %v6167
        %v6172 = vadd.f32 %v6094, %v6169
        %s6173 = scalar_lea.vmem %s14, 40
        %v6174 = vld [vmem:[%s6173] sm:$0xff]
        %v6176 = vsel %vm3198, %v6174, 0
        %6178 = vmatprep.subr.mxu0 %v5395
        %6179 = vmatpush1.msra.mxu0 %v5393
        %6180 = vmatprep.subr.mxu0 %v5401
        %6181 = vmatpush1.msra.mxu0 %v5399
        %6182 = vmatprep.subr.mxu0 0.0
        %6183 = vmatpush1.msra.mxu0 0.0
        %6184 = vmatprep.subr.mxu0 0.0
        %6185 = vmatpush1.msra.mxu0 0.0
        %6186 = vmatprep.subr.mxu0 0.0
        %6187 = vmatpush1.msra.mxu0 0.0
        %6188 = vmatprep.subr.mxu0 0.0
        %6189 = vmatpush1.msra.mxu0 0.0
        %6190 = vmatprep.subr.mxu0 0.0
        %6191 = vmatpush1.msra.mxu0 0.0
        %6192 = vmatprep.subr.mxu0 0.0
        %6193 = vmatpush1.msra.mxu0 0.0
        %6194 = vmatprep.subr.mxu0 0.0
        %6195 = vmatpush1.msra.mxu0 0.0
        %6196 = vmatprep.subr.mxu0 0.0
        %6197 = vmatpush1.msra.mxu0 0.0
        %6198 = vmatprep.subr.mxu0 0.0
        %6199 = vmatpush1.msra.mxu0 0.0
        %6200 = vmatprep.subr.mxu0 0.0
        %6201 = vmatpush1.msra.mxu0 0.0
        %6202 = vmatprep.subr.mxu0 0.0
        %6203 = vmatpush1.msra.mxu0 0.0
        %6204 = vmatprep.subr.mxu0 0.0
        %6205 = vmatpush1.msra.mxu0 0.0
        %6206 = vmatprep.subr.mxu0 0.0
        %6207 = vmatpush1.msra.mxu0 0.0
        %6208 = vmatprep.subr.mxu0 0.0
        %6209 = vmatpush1.msra.mxu0 0.0
        %6210 = vmatprep.subr.mxu0 0.0
        %6211 = vmatpush1.msra.mxu0 0.0
        %6212 = vmatprep.subr.mxu0 0.0
        %6213 = vmatpush1.msra.mxu0 0.0
        %6214 = vmatprep.subr.mxu0 0.0
        %6215 = vmatpush1.msra.mxu0 0.0
        %6216 = vmatprep.subr.mxu0 0.0
        %6217 = vmatpush1.msra.mxu0 0.0
        %6218 = vmatprep.subr.mxu0 0.0
        %6219 = vmatpush1.msra.mxu0 0.0
        %6220 = vmatprep.subr.mxu0 0.0
        %6221 = vmatpush1.msra.mxu0 0.0
        %6222 = vmatprep.subr.mxu0 0.0
        %6223 = vmatpush1.msra.mxu0 0.0
        %6224 = vmatprep.subr.mxu0 0.0
        %6225 = vmatpush1.msra.mxu0 0.0
        %6226 = vmatprep.subr.mxu0 0.0
        %6227 = vmatpush1.msra.mxu0 0.0
        %6228 = vmatprep.subr.mxu0 0.0
        %6229 = vmatpush1.msra.mxu0 0.0
        %6230 = vmatprep.subr.mxu0 0.0
        %6231 = vmatpush1.msra.mxu0 0.0
        %6232 = vmatprep.subr.mxu0 0.0
        %6233 = vmatpush1.msra.mxu0 0.0
        %6234 = vmatprep.subr.mxu0 0.0
        %6235 = vmatpush1.msra.mxu0 0.0
        %6236 = vmatprep.subr.mxu0 0.0
        %6237 = vmatpush1.msra.mxu0 0.0
        %6238 = vmatprep.subr.mxu0 0.0
        %6239 = vmatpush1.msra.mxu0 0.0
        %6240 = vmatprep.subr.mxu0 0.0
        %6241 = vmatpush1.msra.mxu0 0.0
        %6242 = vmatprep.mubr.f32.mxu0 0.0
        %6243 = vmatmul.mubr.f32.gmra.mrb[0].mxu0 %v6176
        %v6244 = vpop.f32.mrb[0].mxu0
        %v6245 = vadd.f32 0.0, %v6244
        %v6246 = vpop.f32.mrb[0].mxu0
        %v6247 = vadd.f32 0.0, %v6246
        %6248 = vdwg.mxu0
        %v6249 = vadd.f32 %v6171, %v6245
        %v6250 = vadd.f32 %v6172, %v6247
        %s6251 = scalar_lea.vmem %s15, 40
        %v6252 = vld [vmem:[%s6251] sm:$0xff]
        %v6254 = vsel %vm896, %v6252, 0
        %6256 = vmatprep.subr.mxu0 %v1065
        %6257 = vmatpush1.msra.mxu0 %v1062
        %6258 = vmatprep.subr.mxu0 0.0
        %6259 = vmatpush1.msra.mxu0 0.0
        %6260 = vmatprep.subr.mxu0 0.0
        %6261 = vmatpush1.msra.mxu0 0.0
        %6262 = vmatprep.subr.mxu0 0.0
        %6263 = vmatpush1.msra.mxu0 0.0
        %6264 = vmatprep.subr.mxu0 0.0
        %6265 = vmatpush1.msra.mxu0 0.0
        %6266 = vmatprep.subr.mxu0 0.0
        %6267 = vmatpush1.msra.mxu0 0.0
        %6268 = vmatprep.subr.mxu0 0.0
        %6269 = vmatpush1.msra.mxu0 0.0
        %6270 = vmatprep.subr.mxu0 0.0
        %6271 = vmatpush1.msra.mxu0 0.0
        %6272 = vmatprep.subr.mxu0 0.0
        %6273 = vmatpush1.msra.mxu0 0.0
        %6274 = vmatprep.subr.mxu0 0.0
        %6275 = vmatpush1.msra.mxu0 0.0
        %6276 = vmatprep.subr.mxu0 0.0
        %6277 = vmatpush1.msra.mxu0 0.0
        %6278 = vmatprep.subr.mxu0 0.0
        %6279 = vmatpush1.msra.mxu0 0.0
        %6280 = vmatprep.subr.mxu0 0.0
        %6281 = vmatpush1.msra.mxu0 0.0
        %6282 = vmatprep.subr.mxu0 0.0
        %6283 = vmatpush1.msra.mxu0 0.0
        %6284 = vmatprep.subr.mxu0 0.0
        %6285 = vmatpush1.msra.mxu0 0.0
        %6286 = vmatprep.subr.mxu0 0.0
        %6287 = vmatpush1.msra.mxu0 0.0
        %6288 = vmatprep.subr.mxu0 0.0
        %6289 = vmatpush1.msra.mxu0 0.0
        %6290 = vmatprep.subr.mxu0 0.0
        %6291 = vmatpush1.msra.mxu0 0.0
        %6292 = vmatprep.subr.mxu0 0.0
        %6293 = vmatpush1.msra.mxu0 0.0
        %6294 = vmatprep.subr.mxu0 0.0
        %6295 = vmatpush1.msra.mxu0 0.0
        %6296 = vmatprep.subr.mxu0 0.0
        %6297 = vmatpush1.msra.mxu0 0.0
        %6298 = vmatprep.subr.mxu0 0.0
        %6299 = vmatpush1.msra.mxu0 0.0
        %6300 = vmatprep.subr.mxu0 0.0
        %6301 = vmatpush1.msra.mxu0 0.0
        %6302 = vmatprep.subr.mxu0 0.0
        %6303 = vmatpush1.msra.mxu0 0.0
        %6304 = vmatprep.subr.mxu0 0.0
        %6305 = vmatpush1.msra.mxu0 0.0
        %6306 = vmatprep.subr.mxu0 0.0
        %6307 = vmatpush1.msra.mxu0 0.0
        %6308 = vmatprep.subr.mxu0 0.0
        %6309 = vmatpush1.msra.mxu0 0.0
        %6310 = vmatprep.subr.mxu0 0.0
        %6311 = vmatpush1.msra.mxu0 0.0
        %6312 = vmatprep.subr.mxu0 0.0
        %6313 = vmatpush1.msra.mxu0 0.0
        %6314 = vmatprep.subr.mxu0 0.0
        %6315 = vmatpush1.msra.mxu0 0.0
        %6316 = vmatprep.subr.mxu0 0.0
        %6317 = vmatpush1.msra.mxu0 0.0
        %6318 = vmatprep.subr.mxu0 0.0
        %6319 = vmatpush1.msra.mxu0 0.0
        %6320 = vmatprep.mubr.f32.mxu0 0.0
        %6321 = vmatmul.mubr.f32.gmra.mrb[0].mxu0 %v6254
        %v6322 = vpop.f32.mrb[0].mxu0
        %v6323 = vadd.f32 0.0, %v6322
        %v6324 = vpop.f32.mrb[0].mxu0
        %v6325 = vadd.f32 0.0, %v6324
        %6326 = vdwg.mxu0
        %v6327 = vadd.f32 %v6249, %v6323
        %v6328 = vadd.f32 %v6250, %v6325
        %6329 = vmatprep.subr.mxu0 %v1142
        %6330 = vmatpush1.msra.mxu0 %v1141
        %6331 = vmatprep.subr.mxu0 %v1144
        %6332 = vmatpush1.msra.mxu0 %v1143
        %6333 = vmatprep.subr.mxu0 %v1146
        %6334 = vmatpush1.msra.mxu0 %v1145
        %6335 = vmatprep.subr.mxu0 %v1148
        %6336 = vmatpush1.msra.mxu0 %v1147
        %6337 = vmatprep.subr.mxu0 %v1150
        %6338 = vmatpush1.msra.mxu0 %v1149
        %6339 = vmatprep.subr.mxu0 %v1152
        %6340 = vmatpush1.msra.mxu0 %v1151
        %6341 = vmatprep.subr.mxu0 %v1154
        %6342 = vmatpush1.msra.mxu0 %v1153
        %6343 = vmatprep.subr.mxu0 %v1156
        %6344 = vmatpush1.msra.mxu0 %v1155
        %6345 = vmatprep.subr.mxu0 %v1158
        %6346 = vmatpush1.msra.mxu0 %v1157
        %6347 = vmatprep.subr.mxu0 %v1160
        %6348 = vmatpush1.msra.mxu0 %v1159
        %6349 = vmatprep.subr.mxu0 %v1162
        %6350 = vmatpush1.msra.mxu0 %v1161
        %6351 = vmatprep.subr.mxu0 %v1164
        %6352 = vmatpush1.msra.mxu0 %v1163
        %6353 = vmatprep.subr.mxu0 %v1166
        %6354 = vmatpush1.msra.mxu0 %v1165
        %6355 = vmatprep.subr.mxu0 %v1168
        %6356 = vmatpush1.msra.mxu0 %v1167
        %6357 = vmatprep.subr.mxu0 %v1170
        %6358 = vmatpush1.msra.mxu0 %v1169
        %6359 = vmatprep.subr.mxu0 %v1172
        %6360 = vmatpush1.msra.mxu0 %v1171
        %6361 = vmatprep.subr.mxu0 %v1174
        %6362 = vmatpush1.msra.mxu0 %v1173
        %6363 = vmatprep.subr.mxu0 %v1176
        %6364 = vmatpush1.msra.mxu0 %v1175
        %6365 = vmatprep.subr.mxu0 %v1178
        %6366 = vmatpush1.msra.mxu0 %v1177
        %6367 = vmatprep.subr.mxu0 %v1180
        %6368 = vmatpush1.msra.mxu0 %v1179
        %6369 = vmatprep.subr.mxu0 %v1182
        %6370 = vmatpush1.msra.mxu0 %v1181
        %6371 = vmatprep.subr.mxu0 %v1184
        %6372 = vmatpush1.msra.mxu0 %v1183
        %6373 = vmatprep.subr.mxu0 %v1186
        %6374 = vmatpush1.msra.mxu0 %v1185
        %6375 = vmatprep.subr.mxu0 %v1188
        %6376 = vmatpush1.msra.mxu0 %v1187
        %6377 = vmatprep.subr.mxu0 %v1190
        %6378 = vmatpush1.msra.mxu0 %v1189
        %6379 = vmatprep.subr.mxu0 %v1192
        %6380 = vmatpush1.msra.mxu0 %v1191
        %6381 = vmatprep.subr.mxu0 %v1194
        %6382 = vmatpush1.msra.mxu0 %v1193
        %6383 = vmatprep.subr.mxu0 %v1196
        %6384 = vmatpush1.msra.mxu0 %v1195
        %6385 = vmatprep.subr.mxu0 %v1198
        %6386 = vmatpush1.msra.mxu0 %v1197
        %6387 = vmatprep.subr.mxu0 %v1200
        %6388 = vmatpush1.msra.mxu0 %v1199
        %6389 = vmatprep.subr.mxu0 %v1202
        %6390 = vmatpush1.msra.mxu0 %v1201
        %6391 = vmatprep.subr.mxu0 %v1204
        %6392 = vmatpush1.msra.mxu0 %v1203
        %6393 = vmatprep.mubr.f32.mxu0 %v5864
        %6394 = vmatmul.mubr.f32.gmra.mrb[0].mxu0 %v5863
        %v6395 = vpop.f32.mrb[0].mxu0
        %v6396 = vadd.f32 %v6327, %v6395
        %v6397 = vpop.f32.mrb[0].mxu0
        %v6398 = vadd.f32 %v6328, %v6397
        %6399 = vdwg.mxu0
        %s6400 = scalar_lea.vmem %s14, 48
        %v6401 = vld [vmem:[%s6400] sm:$0xff]
        %s6402 = scalar_lea.vmem %s15, 48
        %v6403 = vld [vmem:[%s6402] sm:$0xff]
        %v6405 = vsel %vm896, %v6403, 0
        %6407 = vmatprep.subr.mxu0 %v983
        %6408 = vmatpush1.msra.mxu0 %v980
        %6409 = vmatprep.subr.mxu0 0.0
        %6410 = vmatpush1.msra.mxu0 0.0
        %6411 = vmatprep.subr.mxu0 0.0
        %6412 = vmatpush1.msra.mxu0 0.0
        %6413 = vmatprep.subr.mxu0 0.0
        %6414 = vmatpush1.msra.mxu0 0.0
        %6415 = vmatprep.subr.mxu0 0.0
        %6416 = vmatpush1.msra.mxu0 0.0
        %6417 = vmatprep.subr.mxu0 0.0
        %6418 = vmatpush1.msra.mxu0 0.0
        %6419 = vmatprep.subr.mxu0 0.0
        %6420 = vmatpush1.msra.mxu0 0.0
        %6421 = vmatprep.subr.mxu0 0.0
        %6422 = vmatpush1.msra.mxu0 0.0
        %6423 = vmatprep.subr.mxu0 0.0
        %6424 = vmatpush1.msra.mxu0 0.0
        %6425 = vmatprep.subr.mxu0 0.0
        %6426 = vmatpush1.msra.mxu0 0.0
        %6427 = vmatprep.subr.mxu0 0.0
        %6428 = vmatpush1.msra.mxu0 0.0
        %6429 = vmatprep.subr.mxu0 0.0
        %6430 = vmatpush1.msra.mxu0 0.0
        %6431 = vmatprep.subr.mxu0 0.0
        %6432 = vmatpush1.msra.mxu0 0.0
        %6433 = vmatprep.subr.mxu0 0.0
        %6434 = vmatpush1.msra.mxu0 0.0
        %6435 = vmatprep.subr.mxu0 0.0
        %6436 = vmatpush1.msra.mxu0 0.0
        %6437 = vmatprep.subr.mxu0 0.0
        %6438 = vmatpush1.msra.mxu0 0.0
        %6439 = vmatprep.subr.mxu0 0.0
        %6440 = vmatpush1.msra.mxu0 0.0
        %6441 = vmatprep.subr.mxu0 0.0
        %6442 = vmatpush1.msra.mxu0 0.0
        %6443 = vmatprep.subr.mxu0 0.0
        %6444 = vmatpush1.msra.mxu0 0.0
        %6445 = vmatprep.subr.mxu0 0.0
        %6446 = vmatpush1.msra.mxu0 0.0
        %6447 = vmatprep.subr.mxu0 0.0
        %6448 = vmatpush1.msra.mxu0 0.0
        %6449 = vmatprep.subr.mxu0 0.0
        %6450 = vmatpush1.msra.mxu0 0.0
        %6451 = vmatprep.subr.mxu0 0.0
        %6452 = vmatpush1.msra.mxu0 0.0
        %6453 = vmatprep.subr.mxu0 0.0
        %6454 = vmatpush1.msra.mxu0 0.0
        %6455 = vmatprep.subr.mxu0 0.0
        %6456 = vmatpush1.msra.mxu0 0.0
        %6457 = vmatprep.subr.mxu0 0.0
        %6458 = vmatpush1.msra.mxu0 0.0
        %6459 = vmatprep.subr.mxu0 0.0
        %6460 = vmatpush1.msra.mxu0 0.0
        %6461 = vmatprep.subr.mxu0 0.0
        %6462 = vmatpush1.msra.mxu0 0.0
        %6463 = vmatprep.subr.mxu0 0.0
        %6464 = vmatpush1.msra.mxu0 0.0
        %6465 = vmatprep.subr.mxu0 0.0
        %6466 = vmatpush1.msra.mxu0 0.0
        %6467 = vmatprep.subr.mxu0 0.0
        %6468 = vmatpush1.msra.mxu0 0.0
        %6469 = vmatprep.subr.mxu0 0.0
        %6470 = vmatpush1.msra.mxu0 0.0
        %6471 = vmatprep.mubr.f32.mxu0 0.0
        %6472 = vmatmul.mubr.f32.gmra.mrb[0].mxu0 %v6405
        %v6473 = vpop.f32.mrb[0].mxu0
        %v6474 = vadd.f32 0.0, %v6473
        %v6475 = vpop.f32.mrb[0].mxu0
        %v6476 = vadd.f32 0.0, %v6475
        %6477 = vdwg.mxu0
        %v6479 = vsel %vm3198, %v6401, 0
        %6481 = vmatprep.subr.mxu0 %v5318
        %6482 = vmatpush1.msra.mxu0 %v5316
        %6483 = vmatprep.subr.mxu0 %v5324
        %6484 = vmatpush1.msra.mxu0 %v5322
        %6485 = vmatprep.subr.mxu0 0.0
        %6486 = vmatpush1.msra.mxu0 0.0
        %6487 = vmatprep.subr.mxu0 0.0
        %6488 = vmatpush1.msra.mxu0 0.0
        %6489 = vmatprep.subr.mxu0 0.0
        %6490 = vmatpush1.msra.mxu0 0.0
        %6491 = vmatprep.subr.mxu0 0.0
        %6492 = vmatpush1.msra.mxu0 0.0
        %6493 = vmatprep.subr.mxu0 0.0
        %6494 = vmatpush1.msra.mxu0 0.0
        %6495 = vmatprep.subr.mxu0 0.0
        %6496 = vmatpush1.msra.mxu0 0.0
        %6497 = vmatprep.subr.mxu0 0.0
        %6498 = vmatpush1.msra.mxu0 0.0
        %6499 = vmatprep.subr.mxu0 0.0
        %6500 = vmatpush1.msra.mxu0 0.0
        %6501 = vmatprep.subr.mxu0 0.0
        %6502 = vmatpush1.msra.mxu0 0.0
        %6503 = vmatprep.subr.mxu0 0.0
        %6504 = vmatpush1.msra.mxu0 0.0
        %6505 = vmatprep.subr.mxu0 0.0
        %6506 = vmatpush1.msra.mxu0 0.0
        %6507 = vmatprep.subr.mxu0 0.0
        %6508 = vmatpush1.msra.mxu0 0.0
        %6509 = vmatprep.subr.mxu0 0.0
        %6510 = vmatpush1.msra.mxu0 0.0
        %6511 = vmatprep.subr.mxu0 0.0
        %6512 = vmatpush1.msra.mxu0 0.0
        %6513 = vmatprep.subr.mxu0 0.0
        %6514 = vmatpush1.msra.mxu0 0.0
        %6515 = vmatprep.subr.mxu0 0.0
        %6516 = vmatpush1.msra.mxu0 0.0
        %6517 = vmatprep.subr.mxu0 0.0
        %6518 = vmatpush1.msra.mxu0 0.0
        %6519 = vmatprep.subr.mxu0 0.0
        %6520 = vmatpush1.msra.mxu0 0.0
        %6521 = vmatprep.subr.mxu0 0.0
        %6522 = vmatpush1.msra.mxu0 0.0
        %6523 = vmatprep.subr.mxu0 0.0
        %6524 = vmatpush1.msra.mxu0 0.0
        %6525 = vmatprep.subr.mxu0 0.0
        %6526 = vmatpush1.msra.mxu0 0.0
        %6527 = vmatprep.subr.mxu0 0.0
        %6528 = vmatpush1.msra.mxu0 0.0
        %6529 = vmatprep.subr.mxu0 0.0
        %6530 = vmatpush1.msra.mxu0 0.0
        %6531 = vmatprep.subr.mxu0 0.0
        %6532 = vmatpush1.msra.mxu0 0.0
        %6533 = vmatprep.subr.mxu0 0.0
        %6534 = vmatpush1.msra.mxu0 0.0
        %6535 = vmatprep.subr.mxu0 0.0
        %6536 = vmatpush1.msra.mxu0 0.0
        %6537 = vmatprep.subr.mxu0 0.0
        %6538 = vmatpush1.msra.mxu0 0.0
        %6539 = vmatprep.subr.mxu0 0.0
        %6540 = vmatpush1.msra.mxu0 0.0
        %6541 = vmatprep.subr.mxu0 0.0
        %6542 = vmatpush1.msra.mxu0 0.0
        %6543 = vmatprep.subr.mxu0 0.0
        %6544 = vmatpush1.msra.mxu0 0.0
        %6545 = vmatprep.mubr.f32.mxu0 0.0
        %6546 = vmatmul.mubr.f32.gmra.mrb[0].mxu0 %v6479
        %v6547 = vpop.f32.mrb[0].mxu0
        %v6548 = vadd.f32 %v6474, %v6547
        %v6549 = vpop.f32.mrb[0].mxu0
        %v6550 = vadd.f32 %v6476, %v6549
        %6551 = vdwg.mxu0
        %s6552 = scalar_lea.vmem %s14, 56
        %v6553 = vld [vmem:[%s6552] sm:$0xff]
        %v6555 = vsel %vm3198, %v6553, 0
        %6557 = vmatprep.subr.mxu0 %v5241
        %6558 = vmatpush1.msra.mxu0 %v5239
        %6559 = vmatprep.subr.mxu0 %v5247
        %6560 = vmatpush1.msra.mxu0 %v5245
        %6561 = vmatprep.subr.mxu0 0.0
        %6562 = vmatpush1.msra.mxu0 0.0
        %6563 = vmatprep.subr.mxu0 0.0
        %6564 = vmatpush1.msra.mxu0 0.0
        %6565 = vmatprep.subr.mxu0 0.0
        %6566 = vmatpush1.msra.mxu0 0.0
        %6567 = vmatprep.subr.mxu0 0.0
        %6568 = vmatpush1.msra.mxu0 0.0
        %6569 = vmatprep.subr.mxu0 0.0
        %6570 = vmatpush1.msra.mxu0 0.0
        %6571 = vmatprep.subr.mxu0 0.0
        %6572 = vmatpush1.msra.mxu0 0.0
        %6573 = vmatprep.subr.mxu0 0.0
        %6574 = vmatpush1.msra.mxu0 0.0
        %6575 = vmatprep.subr.mxu0 0.0
        %6576 = vmatpush1.msra.mxu0 0.0
        %6577 = vmatprep.subr.mxu0 0.0
        %6578 = vmatpush1.msra.mxu0 0.0
        %6579 = vmatprep.subr.mxu0 0.0
        %6580 = vmatpush1.msra.mxu0 0.0
        %6581 = vmatprep.subr.mxu0 0.0
        %6582 = vmatpush1.msra.mxu0 0.0
        %6583 = vmatprep.subr.mxu0 0.0
        %6584 = vmatpush1.msra.mxu0 0.0
        %6585 = vmatprep.subr.mxu0 0.0
        %6586 = vmatpush1.msra.mxu0 0.0
        %6587 = vmatprep.subr.mxu0 0.0
        %6588 = vmatpush1.msra.mxu0 0.0
        %6589 = vmatprep.subr.mxu0 0.0
        %6590 = vmatpush1.msra.mxu0 0.0
        %6591 = vmatprep.subr.mxu0 0.0
        %6592 = vmatpush1.msra.mxu0 0.0
        %6593 = vmatprep.subr.mxu0 0.0
        %6594 = vmatpush1.msra.mxu0 0.0
        %6595 = vmatprep.subr.mxu0 0.0
        %6596 = vmatpush1.msra.mxu0 0.0
        %6597 = vmatprep.subr.mxu0 0.0
        %6598 = vmatpush1.msra.mxu0 0.0
        %6599 = vmatprep.subr.mxu0 0.0
        %6600 = vmatpush1.msra.mxu0 0.0
        %6601 = vmatprep.subr.mxu0 0.0
        %6602 = vmatpush1.msra.mxu0 0.0
        %6603 = vmatprep.subr.mxu0 0.0
        %6604 = vmatpush1.msra.mxu0 0.0
        %6605 = vmatprep.subr.mxu0 0.0
        %6606 = vmatpush1.msra.mxu0 0.0
        %6607 = vmatprep.subr.mxu0 0.0
        %6608 = vmatpush1.msra.mxu0 0.0
        %6609 = vmatprep.subr.mxu0 0.0
        %6610 = vmatpush1.msra.mxu0 0.0
        %6611 = vmatprep.subr.mxu0 0.0
        %6612 = vmatpush1.msra.mxu0 0.0
        %6613 = vmatprep.subr.mxu0 0.0
        %6614 = vmatpush1.msra.mxu0 0.0
        %6615 = vmatprep.subr.mxu0 0.0
        %6616 = vmatpush1.msra.mxu0 0.0
        %6617 = vmatprep.subr.mxu0 0.0
        %6618 = vmatpush1.msra.mxu0 0.0
        %6619 = vmatprep.subr.mxu0 0.0
        %6620 = vmatpush1.msra.mxu0 0.0
        %6621 = vmatprep.mubr.f32.mxu0 0.0
        %6622 = vmatmul.mubr.f32.gmra.mrb[0].mxu0 %v6555
        %v6623 = vpop.f32.mrb[0].mxu0
        %v6624 = vadd.f32 0.0, %v6623
        %v6625 = vpop.f32.mrb[0].mxu0
        %v6626 = vadd.f32 0.0, %v6625
        %6627 = vdwg.mxu0
        %v6628 = vadd.f32 %v6548, %v6624
        %v6629 = vadd.f32 %v6550, %v6626
        %s6630 = scalar_lea.vmem %s15, 56
        %v6631 = vld [vmem:[%s6630] sm:$0xff]
        %v6633 = vsel %vm896, %v6631, 0
        %6635 = vmatprep.subr.mxu0 %v903
        %6636 = vmatpush1.msra.mxu0 %v901
        %6637 = vmatprep.subr.mxu0 0.0
        %6638 = vmatpush1.msra.mxu0 0.0
        %6639 = vmatprep.subr.mxu0 0.0
        %6640 = vmatpush1.msra.mxu0 0.0
        %6641 = vmatprep.subr.mxu0 0.0
        %6642 = vmatpush1.msra.mxu0 0.0
        %6643 = vmatprep.subr.mxu0 0.0
        %6644 = vmatpush1.msra.mxu0 0.0
        %6645 = vmatprep.subr.mxu0 0.0
        %6646 = vmatpush1.msra.mxu0 0.0
        %6647 = vmatprep.subr.mxu0 0.0
        %6648 = vmatpush1.msra.mxu0 0.0
        %6649 = vmatprep.subr.mxu0 0.0
        %6650 = vmatpush1.msra.mxu0 0.0
        %6651 = vmatprep.subr.mxu0 0.0
        %6652 = vmatpush1.msra.mxu0 0.0
        %6653 = vmatprep.subr.mxu0 0.0
        %6654 = vmatpush1.msra.mxu0 0.0
        %6655 = vmatprep.subr.mxu0 0.0
        %6656 = vmatpush1.msra.mxu0 0.0
        %6657 = vmatprep.subr.mxu0 0.0
        %6658 = vmatpush1.msra.mxu0 0.0
        %6659 = vmatprep.subr.mxu0 0.0
        %6660 = vmatpush1.msra.mxu0 0.0
        %6661 = vmatprep.subr.mxu0 0.0
        %6662 = vmatpush1.msra.mxu0 0.0
        %6663 = vmatprep.subr.mxu0 0.0
        %6664 = vmatpush1.msra.mxu0 0.0
        %6665 = vmatprep.subr.mxu0 0.0
        %6666 = vmatpush1.msra.mxu0 0.0
        %6667 = vmatprep.subr.mxu0 0.0
        %6668 = vmatpush1.msra.mxu0 0.0
        %6669 = vmatprep.subr.mxu0 0.0
        %6670 = vmatpush1.msra.mxu0 0.0
        %6671 = vmatprep.subr.mxu0 0.0
        %6672 = vmatpush1.msra.mxu0 0.0
        %6673 = vmatprep.subr.mxu0 0.0
        %6674 = vmatpush1.msra.mxu0 0.0
        %6675 = vmatprep.subr.mxu0 0.0
        %6676 = vmatpush1.msra.mxu0 0.0
        %6677 = vmatprep.subr.mxu0 0.0
        %6678 = vmatpush1.msra.mxu0 0.0
        %6679 = vmatprep.subr.mxu0 0.0
        %6680 = vmatpush1.msra.mxu0 0.0
        %6681 = vmatprep.subr.mxu0 0.0
        %6682 = vmatpush1.msra.mxu0 0.0
        %6683 = vmatprep.subr.mxu0 0.0
        %6684 = vmatpush1.msra.mxu0 0.0
        %6685 = vmatprep.subr.mxu0 0.0
        %6686 = vmatpush1.msra.mxu0 0.0
        %6687 = vmatprep.subr.mxu0 0.0
        %6688 = vmatpush1.msra.mxu0 0.0
        %6689 = vmatprep.subr.mxu0 0.0
        %6690 = vmatpush1.msra.mxu0 0.0
        %6691 = vmatprep.subr.mxu0 0.0
        %6692 = vmatpush1.msra.mxu0 0.0
        %6693 = vmatprep.subr.mxu0 0.0
        %6694 = vmatpush1.msra.mxu0 0.0
        %6695 = vmatprep.subr.mxu0 0.0
        %6696 = vmatpush1.msra.mxu0 0.0
        %6697 = vmatprep.subr.mxu0 0.0
        %6698 = vmatpush1.msra.mxu0 0.0
        %6699 = vmatprep.mubr.f32.mxu0 0.0
        %6700 = vmatmul.mubr.f32.gmra.mrb[0].mxu0 %v6633
        %v6701 = vpop.f32.mrb[0].mxu0
        %v6702 = vadd.f32 0.0, %v6701
        %v6703 = vpop.f32.mrb[0].mxu0
        %v6704 = vadd.f32 0.0, %v6703
        %6705 = vdwg.mxu0
        %v6706 = vadd.f32 %v6628, %v6702
        %v6707 = vadd.f32 %v6629, %v6704
        %s6708 = scalar_lea.vmem %s14, 64
        %v6709 = vld [vmem:[%s6708] sm:$0xff]
        %v6711 = vsel %vm3198, %v6709, 0
        %6713 = vmatprep.subr.mxu0 %v5395
        %6714 = vmatpush1.msra.mxu0 %v5393
        %6715 = vmatprep.subr.mxu0 %v5401
        %6716 = vmatpush1.msra.mxu0 %v5399
        %6717 = vmatprep.subr.mxu0 0.0
        %6718 = vmatpush1.msra.mxu0 0.0
        %6719 = vmatprep.subr.mxu0 0.0
        %6720 = vmatpush1.msra.mxu0 0.0
        %6721 = vmatprep.subr.mxu0 0.0
        %6722 = vmatpush1.msra.mxu0 0.0
        %6723 = vmatprep.subr.mxu0 0.0
        %6724 = vmatpush1.msra.mxu0 0.0
        %6725 = vmatprep.subr.mxu0 0.0
        %6726 = vmatpush1.msra.mxu0 0.0
        %6727 = vmatprep.subr.mxu0 0.0
        %6728 = vmatpush1.msra.mxu0 0.0
        %6729 = vmatprep.subr.mxu0 0.0
        %6730 = vmatpush1.msra.mxu0 0.0
        %6731 = vmatprep.subr.mxu0 0.0
        %6732 = vmatpush1.msra.mxu0 0.0
        %6733 = vmatprep.subr.mxu0 0.0
        %6734 = vmatpush1.msra.mxu0 0.0
        %6735 = vmatprep.subr.mxu0 0.0
        %6736 = vmatpush1.msra.mxu0 0.0
        %6737 = vmatprep.subr.mxu0 0.0
        %6738 = vmatpush1.msra.mxu0 0.0
        %6739 = vmatprep.subr.mxu0 0.0
        %6740 = vmatpush1.msra.mxu0 0.0
        %6741 = vmatprep.subr.mxu0 0.0
        %6742 = vmatpush1.msra.mxu0 0.0
        %6743 = vmatprep.subr.mxu0 0.0
        %6744 = vmatpush1.msra.mxu0 0.0
        %6745 = vmatprep.subr.mxu0 0.0
        %6746 = vmatpush1.msra.mxu0 0.0
        %6747 = vmatprep.subr.mxu0 0.0
        %6748 = vmatpush1.msra.mxu0 0.0
        %6749 = vmatprep.subr.mxu0 0.0
        %6750 = vmatpush1.msra.mxu0 0.0
        %6751 = vmatprep.subr.mxu0 0.0
        %6752 = vmatpush1.msra.mxu0 0.0
        %6753 = vmatprep.subr.mxu0 0.0
        %6754 = vmatpush1.msra.mxu0 0.0
        %6755 = vmatprep.subr.mxu0 0.0
        %6756 = vmatpush1.msra.mxu0 0.0
        %6757 = vmatprep.subr.mxu0 0.0
        %6758 = vmatpush1.msra.mxu0 0.0
        %6759 = vmatprep.subr.mxu0 0.0
        %6760 = vmatpush1.msra.mxu0 0.0
        %6761 = vmatprep.subr.mxu0 0.0
        %6762 = vmatpush1.msra.mxu0 0.0
        %6763 = vmatprep.subr.mxu0 0.0
        %6764 = vmatpush1.msra.mxu0 0.0
        %6765 = vmatprep.subr.mxu0 0.0
        %6766 = vmatpush1.msra.mxu0 0.0
        %6767 = vmatprep.subr.mxu0 0.0
        %6768 = vmatpush1.msra.mxu0 0.0
        %6769 = vmatprep.subr.mxu0 0.0
        %6770 = vmatpush1.msra.mxu0 0.0
        %6771 = vmatprep.subr.mxu0 0.0
        %6772 = vmatpush1.msra.mxu0 0.0
        %6773 = vmatprep.subr.mxu0 0.0
        %6774 = vmatpush1.msra.mxu0 0.0
        %6775 = vmatprep.subr.mxu0 0.0
        %6776 = vmatpush1.msra.mxu0 0.0
        %6777 = vmatprep.mubr.f32.mxu0 0.0
        %6778 = vmatmul.mubr.f32.gmra.mrb[0].mxu0 %v6711
        %v6779 = vpop.f32.mrb[0].mxu0
        %v6780 = vadd.f32 0.0, %v6779
        %v6781 = vpop.f32.mrb[0].mxu0
        %v6782 = vadd.f32 0.0, %v6781
        %6783 = vdwg.mxu0
        %v6784 = vadd.f32 %v6706, %v6780
        %v6785 = vadd.f32 %v6707, %v6782
        %s6786 = scalar_lea.vmem %s15, 64
        %v6787 = vld [vmem:[%s6786] sm:$0xff]
        %v6789 = vsel %vm896, %v6787, 0
        %6791 = vmatprep.subr.mxu0 %v1065
        %6792 = vmatpush1.msra.mxu0 %v1062
        %6793 = vmatprep.subr.mxu0 0.0
        %6794 = vmatpush1.msra.mxu0 0.0
        %6795 = vmatprep.subr.mxu0 0.0
        %6796 = vmatpush1.msra.mxu0 0.0
        %6797 = vmatprep.subr.mxu0 0.0
        %6798 = vmatpush1.msra.mxu0 0.0
        %6799 = vmatprep.subr.mxu0 0.0
        %6800 = vmatpush1.msra.mxu0 0.0
        %6801 = vmatprep.subr.mxu0 0.0
        %6802 = vmatpush1.msra.mxu0 0.0
        %6803 = vmatprep.subr.mxu0 0.0
        %6804 = vmatpush1.msra.mxu0 0.0
        %6805 = vmatprep.subr.mxu0 0.0
        %6806 = vmatpush1.msra.mxu0 0.0
        %6807 = vmatprep.subr.mxu0 0.0
        %6808 = vmatpush1.msra.mxu0 0.0
        %6809 = vmatprep.subr.mxu0 0.0
        %6810 = vmatpush1.msra.mxu0 0.0
        %6811 = vmatprep.subr.mxu0 0.0
        %6812 = vmatpush1.msra.mxu0 0.0
        %6813 = vmatprep.subr.mxu0 0.0
        %6814 = vmatpush1.msra.mxu0 0.0
        %6815 = vmatprep.subr.mxu0 0.0
        %6816 = vmatpush1.msra.mxu0 0.0
        %6817 = vmatprep.subr.mxu0 0.0
        %6818 = vmatpush1.msra.mxu0 0.0
        %6819 = vmatprep.subr.mxu0 0.0
        %6820 = vmatpush1.msra.mxu0 0.0
        %6821 = vmatprep.subr.mxu0 0.0
        %6822 = vmatpush1.msra.mxu0 0.0
        %6823 = vmatprep.subr.mxu0 0.0
        %6824 = vmatpush1.msra.mxu0 0.0
        %6825 = vmatprep.subr.mxu0 0.0
        %6826 = vmatpush1.msra.mxu0 0.0
        %6827 = vmatprep.subr.mxu0 0.0
        %6828 = vmatpush1.msra.mxu0 0.0
        %6829 = vmatprep.subr.mxu0 0.0
        %6830 = vmatpush1.msra.mxu0 0.0
        %6831 = vmatprep.subr.mxu0 0.0
        %6832 = vmatpush1.msra.mxu0 0.0
        %6833 = vmatprep.subr.mxu0 0.0
        %6834 = vmatpush1.msra.mxu0 0.0
        %6835 = vmatprep.subr.mxu0 0.0
        %6836 = vmatpush1.msra.mxu0 0.0
        %6837 = vmatprep.subr.mxu0 0.0
        %6838 = vmatpush1.msra.mxu0 0.0
        %6839 = vmatprep.subr.mxu0 0.0
        %6840 = vmatpush1.msra.mxu0 0.0
        %6841 = vmatprep.subr.mxu0 0.0
        %6842 = vmatpush1.msra.mxu0 0.0
        %6843 = vmatprep.subr.mxu0 0.0
        %6844 = vmatpush1.msra.mxu0 0.0
        %6845 = vmatprep.subr.mxu0 0.0
        %6846 = vmatpush1.msra.mxu0 0.0
        %6847 = vmatprep.subr.mxu0 0.0
        %6848 = vmatpush1.msra.mxu0 0.0
        %6849 = vmatprep.subr.mxu0 0.0
        %6850 = vmatpush1.msra.mxu0 0.0
        %6851 = vmatprep.subr.mxu0 0.0
        %6852 = vmatpush1.msra.mxu0 0.0
        %6853 = vmatprep.subr.mxu0 0.0
        %6854 = vmatpush1.msra.mxu0 0.0
        %6855 = vmatprep.mubr.f32.mxu0 0.0
        %6856 = vmatmul.mubr.f32.gmra.mrb[0].mxu0 %v6789
        %v6857 = vpop.f32.mrb[0].mxu0
        %v6858 = vadd.f32 0.0, %v6857
        %v6859 = vpop.f32.mrb[0].mxu0
        %v6860 = vadd.f32 0.0, %v6859
        %6861 = vdwg.mxu0
        %v6862 = vadd.f32 %v6784, %v6858
        %v6863 = vadd.f32 %v6785, %v6860
        %6864 = vmatprep.subr.mxu0 %v1738
        %6865 = vmatpush1.msra.mxu0 %v1737
        %6866 = vmatprep.subr.mxu0 %v1740
        %6867 = vmatpush1.msra.mxu0 %v1739
        %6868 = vmatprep.subr.mxu0 %v1742
        %6869 = vmatpush1.msra.mxu0 %v1741
        %6870 = vmatprep.subr.mxu0 %v1744
        %6871 = vmatpush1.msra.mxu0 %v1743
        %6872 = vmatprep.subr.mxu0 %v1746
        %6873 = vmatpush1.msra.mxu0 %v1745
        %6874 = vmatprep.subr.mxu0 %v1748
        %6875 = vmatpush1.msra.mxu0 %v1747
        %6876 = vmatprep.subr.mxu0 %v1750
        %6877 = vmatpush1.msra.mxu0 %v1749
        %6878 = vmatprep.subr.mxu0 %v1752
        %6879 = vmatpush1.msra.mxu0 %v1751
        %6880 = vmatprep.subr.mxu0 %v1754
        %6881 = vmatpush1.msra.mxu0 %v1753
        %6882 = vmatprep.subr.mxu0 %v1756
        %6883 = vmatpush1.msra.mxu0 %v1755
        %6884 = vmatprep.subr.mxu0 %v1758
        %6885 = vmatpush1.msra.mxu0 %v1757
        %6886 = vmatprep.subr.mxu0 %v1760
        %6887 = vmatpush1.msra.mxu0 %v1759
        %6888 = vmatprep.subr.mxu0 %v1762
        %6889 = vmatpush1.msra.mxu0 %v1761
        %6890 = vmatprep.subr.mxu0 %v1764
        %6891 = vmatpush1.msra.mxu0 %v1763
        %6892 = vmatprep.subr.mxu0 %v1766
        %6893 = vmatpush1.msra.mxu0 %v1765
        %6894 = vmatprep.subr.mxu0 %v1768
        %6895 = vmatpush1.msra.mxu0 %v1767
        %6896 = vmatprep.subr.mxu0 %v1770
        %6897 = vmatpush1.msra.mxu0 %v1769
        %6898 = vmatprep.subr.mxu0 %v1772
        %6899 = vmatpush1.msra.mxu0 %v1771
        %6900 = vmatprep.subr.mxu0 %v1774
        %6901 = vmatpush1.msra.mxu0 %v1773
        %6902 = vmatprep.subr.mxu0 %v1776
        %6903 = vmatpush1.msra.mxu0 %v1775
        %6904 = vmatprep.subr.mxu0 %v1778
        %6905 = vmatpush1.msra.mxu0 %v1777
        %6906 = vmatprep.subr.mxu0 %v1780
        %6907 = vmatpush1.msra.mxu0 %v1779
        %6908 = vmatprep.subr.mxu0 %v1782
        %6909 = vmatpush1.msra.mxu0 %v1781
        %6910 = vmatprep.subr.mxu0 %v1784
        %6911 = vmatpush1.msra.mxu0 %v1783
        %6912 = vmatprep.subr.mxu0 %v1786
        %6913 = vmatpush1.msra.mxu0 %v1785
        %6914 = vmatprep.subr.mxu0 %v1788
        %6915 = vmatpush1.msra.mxu0 %v1787
        %6916 = vmatprep.subr.mxu0 %v1790
        %6917 = vmatpush1.msra.mxu0 %v1789
        %6918 = vmatprep.subr.mxu0 %v1792
        %6919 = vmatpush1.msra.mxu0 %v1791
        %6920 = vmatprep.subr.mxu0 %v1794
        %6921 = vmatpush1.msra.mxu0 %v1793
        %6922 = vmatprep.subr.mxu0 %v1796
        %6923 = vmatpush1.msra.mxu0 %v1795
        %6924 = vmatprep.subr.mxu0 %v1798
        %6925 = vmatpush1.msra.mxu0 %v1797
        %6926 = vmatprep.subr.mxu0 %v1800
        %6927 = vmatpush1.msra.mxu0 %v1799
        %6928 = vmatprep.mubr.f32.mxu0 %v6863
        %6929 = vmatmul.mubr.f32.gmra.mrb[0].mxu0 %v6862
        %v6930 = vpop.f32.mrb[0].mxu0
        %v6931 = vadd.f32 0.0, %v6930
        %v6932 = vpop.f32.mrb[0].mxu0
        %v6933 = vadd.f32 0.0, %v6932
        %6934 = vdwg.mxu0
        %v6935 = vadd.f32 %v6396, %v6931
        %v6936 = vadd.f32 %v6398, %v6933
        %v6937 = vld [vmem:[%s16] sm:$0xff]
        %6939 = vset.pattern.permute.xlu0 0
        %6940 = vperm.xlu0 %6939, %v6937
        %v6941 = vpop.permute.xlu0 %6940
        %v6943 = vadd.f32 %v6935, %v6941
        %v6944 = vadd.f32 %v6936, %v6941
        %v6945 = vmax.f32 %v6943, 0.0
        %v6946 = vmax.f32 %v6944, 0.0
        %6947 = vmatprep.subr.mxu0 %v620
        %6948 = vmatpush1.msra.mxu0 %v619
        %6949 = vmatprep.subr.mxu0 %v622
        %6950 = vmatpush1.msra.mxu0 %v621
        %6951 = vmatprep.subr.mxu0 %v624
        %6952 = vmatpush1.msra.mxu0 %v623
        %6953 = vmatprep.subr.mxu0 %v626
        %6954 = vmatpush1.msra.mxu0 %v625
        %6955 = vmatprep.subr.mxu0 %v628
        %6956 = vmatpush1.msra.mxu0 %v627
        %6957 = vmatprep.subr.mxu0 %v630
        %6958 = vmatpush1.msra.mxu0 %v629
        %6959 = vmatprep.subr.mxu0 %v632
        %6960 = vmatpush1.msra.mxu0 %v631
        %6961 = vmatprep.subr.mxu0 %v634
        %6962 = vmatpush1.msra.mxu0 %v633
        %6963 = vmatprep.subr.mxu0 %v636
        %6964 = vmatpush1.msra.mxu0 %v635
        %6965 = vmatprep.subr.mxu0 %v638
        %6966 = vmatpush1.msra.mxu0 %v637
        %6967 = vmatprep.subr.mxu0 %v640
        %6968 = vmatpush1.msra.mxu0 %v639
        %6969 = vmatprep.subr.mxu0 %v642
        %6970 = vmatpush1.msra.mxu0 %v641
        %6971 = vmatprep.subr.mxu0 %v644
        %6972 = vmatpush1.msra.mxu0 %v643
        %6973 = vmatprep.subr.mxu0 %v646
        %6974 = vmatpush1.msra.mxu0 %v645
        %6975 = vmatprep.subr.mxu0 %v648
        %6976 = vmatpush1.msra.mxu0 %v647
        %6977 = vmatprep.subr.mxu0 %v650
        %6978 = vmatpush1.msra.mxu0 %v649
        %6979 = vmatprep.subr.mxu0 %v652
        %6980 = vmatpush1.msra.mxu0 %v651
        %6981 = vmatprep.subr.mxu0 %v654
        %6982 = vmatpush1.msra.mxu0 %v653
        %6983 = vmatprep.subr.mxu0 %v656
        %6984 = vmatpush1.msra.mxu0 %v655
        %6985 = vmatprep.subr.mxu0 %v658
        %6986 = vmatpush1.msra.mxu0 %v657
        %6987 = vmatprep.subr.mxu0 %v660
        %6988 = vmatpush1.msra.mxu0 %v659
        %6989 = vmatprep.subr.mxu0 %v662
        %6990 = vmatpush1.msra.mxu0 %v661
        %6991 = vmatprep.subr.mxu0 %v664
        %6992 = vmatpush1.msra.mxu0 %v663
        %6993 = vmatprep.subr.mxu0 %v666
        %6994 = vmatpush1.msra.mxu0 %v665
        %6995 = vmatprep.subr.mxu0 %v668
        %6996 = vmatpush1.msra.mxu0 %v667
        %6997 = vmatprep.subr.mxu0 %v670
        %6998 = vmatpush1.msra.mxu0 %v669
        %6999 = vmatprep.subr.mxu0 %v672
        %7000 = vmatpush1.msra.mxu0 %v671
        %7001 = vmatprep.subr.mxu0 %v674
        %7002 = vmatpush1.msra.mxu0 %v673
        %7003 = vmatprep.subr.mxu0 %v676
        %7004 = vmatpush1.msra.mxu0 %v675
        %7005 = vmatprep.subr.mxu0 %v678
        %7006 = vmatpush1.msra.mxu0 %v677
        %7007 = vmatprep.subr.mxu0 %v680
        %7008 = vmatpush1.msra.mxu0 %v679
        %7009 = vmatprep.subr.mxu0 %v682
        %7010 = vmatpush1.msra.mxu0 %v681
        %7011 = vmatprep.mubr.f32.mxu0 %v6946
        %7012 = vmatmul.mubr.f32.gmra.mrb[0].mxu0 %v6945
        %v7013 = vpop.f32.mrb[0].mxu0
        %v7014 = vadd.f32 0.0, %v7013
        %v7015 = vpop.f32.mrb[0].mxu0
        %v7016 = vadd.f32 0.0, %v7015
        %7017 = vdwg.mxu0
        %7018 = vmatprep.subr.mxu0 %v759
        %7019 = vmatpush1.msra.mxu0 %v758
        %7020 = vmatprep.subr.mxu0 %v761
        %7021 = vmatpush1.msra.mxu0 %v760
        %7022 = vmatprep.subr.mxu0 %v763
        %7023 = vmatpush1.msra.mxu0 %v762
        %7024 = vmatprep.subr.mxu0 %v765
        %7025 = vmatpush1.msra.mxu0 %v764
        %7026 = vmatprep.subr.mxu0 %v767
        %7027 = vmatpush1.msra.mxu0 %v766
        %7028 = vmatprep.subr.mxu0 %v769
        %7029 = vmatpush1.msra.mxu0 %v768
        %7030 = vmatprep.subr.mxu0 %v771
        %7031 = vmatpush1.msra.mxu0 %v770
        %7032 = vmatprep.subr.mxu0 %v773
        %7033 = vmatpush1.msra.mxu0 %v772
        %7034 = vmatprep.subr.mxu0 %v775
        %7035 = vmatpush1.msra.mxu0 %v774
        %7036 = vmatprep.subr.mxu0 %v777
        %7037 = vmatpush1.msra.mxu0 %v776
        %7038 = vmatprep.subr.mxu0 %v779
        %7039 = vmatpush1.msra.mxu0 %v778
        %7040 = vmatprep.subr.mxu0 %v781
        %7041 = vmatpush1.msra.mxu0 %v780
        %7042 = vmatprep.subr.mxu0 %v783
        %7043 = vmatpush1.msra.mxu0 %v782
        %7044 = vmatprep.subr.mxu0 %v785
        %7045 = vmatpush1.msra.mxu0 %v784
        %7046 = vmatprep.subr.mxu0 %v787
        %7047 = vmatpush1.msra.mxu0 %v786
        %7048 = vmatprep.subr.mxu0 %v789
        %7049 = vmatpush1.msra.mxu0 %v788
        %7050 = vmatprep.subr.mxu0 %v791
        %7051 = vmatpush1.msra.mxu0 %v790
        %7052 = vmatprep.subr.mxu0 %v793
        %7053 = vmatpush1.msra.mxu0 %v792
        %7054 = vmatprep.subr.mxu0 %v795
        %7055 = vmatpush1.msra.mxu0 %v794
        %7056 = vmatprep.subr.mxu0 %v797
        %7057 = vmatpush1.msra.mxu0 %v796
        %7058 = vmatprep.subr.mxu0 %v799
        %7059 = vmatpush1.msra.mxu0 %v798
        %7060 = vmatprep.subr.mxu0 %v801
        %7061 = vmatpush1.msra.mxu0 %v800
        %7062 = vmatprep.subr.mxu0 %v803
        %7063 = vmatpush1.msra.mxu0 %v802
        %7064 = vmatprep.subr.mxu0 %v805
        %7065 = vmatpush1.msra.mxu0 %v804
        %7066 = vmatprep.subr.mxu0 %v807
        %7067 = vmatpush1.msra.mxu0 %v806
        %7068 = vmatprep.subr.mxu0 %v809
        %7069 = vmatpush1.msra.mxu0 %v808
        %7070 = vmatprep.subr.mxu0 %v811
        %7071 = vmatpush1.msra.mxu0 %v810
        %7072 = vmatprep.subr.mxu0 %v813
        %7073 = vmatpush1.msra.mxu0 %v812
        %7074 = vmatprep.subr.mxu0 %v815
        %7075 = vmatpush1.msra.mxu0 %v814
        %7076 = vmatprep.subr.mxu0 %v817
        %7077 = vmatpush1.msra.mxu0 %v816
        %7078 = vmatprep.subr.mxu0 %v819
        %7079 = vmatpush1.msra.mxu0 %v818
        %7080 = vmatprep.subr.mxu0 %v821
        %7081 = vmatpush1.msra.mxu0 %v820
        %7082 = vmatprep.mubr.f32.mxu0 %v6946
        %7083 = vmatmul.mubr.f32.gmra.mrb[0].mxu0 %v6945
        %v7084 = vpop.f32.mrb[0].mxu0
        %v7085 = vadd.f32 0.0, %v7084
        %v7086 = vpop.f32.mrb[0].mxu0
        %v7087 = vadd.f32 0.0, %v7086
        %7088 = vdwg.mxu0
        %v7089 = vld [vmem:[%s17] sm:$0x7]
        %s7090 = scalar_lea.vmem %s17, 4
        %v7091 = vld [vmem:[%s7090] sm:$0x7]
        %v7093 = vsel %vm2152, %v7091, 0
        %7095 = vmatprep.subr.mxu0 %v6946
        %7096 = vmatpush1.msra.mxu0 %v6945
        %7097 = vmatprep.subr.mxu0 0.0
        %7098 = vmatpush1.msra.mxu0 0.0
        %7099 = vmatprep.subr.mxu0 0.0
        %7100 = vmatpush1.msra.mxu0 0.0
        %7101 = vmatprep.subr.mxu0 0.0
        %7102 = vmatpush1.msra.mxu0 0.0
        %7103 = vmatprep.subr.mxu0 0.0
        %7104 = vmatpush1.msra.mxu0 0.0
        %7105 = vmatprep.subr.mxu0 0.0
        %7106 = vmatpush1.msra.mxu0 0.0
        %7107 = vmatprep.subr.mxu0 0.0
        %7108 = vmatpush1.msra.mxu0 0.0
        %7109 = vmatprep.subr.mxu0 0.0
        %7110 = vmatpush1.msra.mxu0 0.0
        %7111 = vmatprep.subr.mxu0 0.0
        %7112 = vmatpush1.msra.mxu0 0.0
        %7113 = vmatprep.subr.mxu0 0.0
        %7114 = vmatpush1.msra.mxu0 0.0
        %7115 = vmatprep.subr.mxu0 0.0
        %7116 = vmatpush1.msra.mxu0 0.0
        %7117 = vmatprep.subr.mxu0 0.0
        %7118 = vmatpush1.msra.mxu0 0.0
        %7119 = vmatprep.subr.mxu0 0.0
        %7120 = vmatpush1.msra.mxu0 0.0
        %7121 = vmatprep.subr.mxu0 0.0
        %7122 = vmatpush1.msra.mxu0 0.0
        %7123 = vmatprep.subr.mxu0 0.0
        %7124 = vmatpush1.msra.mxu0 0.0
        %7125 = vmatprep.subr.mxu0 0.0
        %7126 = vmatpush1.msra.mxu0 0.0
        %7127 = vmatprep.subr.mxu0 0.0
        %7128 = vmatpush1.msra.mxu0 0.0
        %7129 = vmatprep.subr.mxu0 0.0
        %7130 = vmatpush1.msra.mxu0 0.0
        %7131 = vmatprep.subr.mxu0 0.0
        %7132 = vmatpush1.msra.mxu0 0.0
        %7133 = vmatprep.subr.mxu0 0.0
        %7134 = vmatpush1.msra.mxu0 0.0
        %7135 = vmatprep.subr.mxu0 0.0
        %7136 = vmatpush1.msra.mxu0 0.0
        %7137 = vmatprep.subr.mxu0 0.0
        %7138 = vmatpush1.msra.mxu0 0.0
        %7139 = vmatprep.subr.mxu0 0.0
        %7140 = vmatpush1.msra.mxu0 0.0
        %7141 = vmatprep.subr.mxu0 0.0
        %7142 = vmatpush1.msra.mxu0 0.0
        %7143 = vmatprep.subr.mxu0 0.0
        %7144 = vmatpush1.msra.mxu0 0.0
        %7145 = vmatprep.subr.mxu0 0.0
        %7146 = vmatpush1.msra.mxu0 0.0
        %7147 = vmatprep.subr.mxu0 0.0
        %7148 = vmatpush1.msra.mxu0 0.0
        %7149 = vmatprep.subr.mxu0 0.0
        %7150 = vmatpush1.msra.mxu0 0.0
        %7151 = vmatprep.subr.mxu0 0.0
        %7152 = vmatpush1.msra.mxu0 0.0
        %7153 = vmatprep.subr.mxu0 0.0
        %7154 = vmatpush1.msra.mxu0 0.0
        %7155 = vmatprep.subr.mxu0 0.0
        %7156 = vmatpush1.msra.mxu0 0.0
        %7157 = vmatprep.subr.mxu0 0.0
        %7158 = vmatpush1.msra.mxu0 0.0
        %7159 = vmatprep.mubr.f32.mxu0 0.0
        %7160 = vmatmul.mubr.f32.gmra.mrb[0].mxu0 %v7093
        %v7161 = vpop.f32.mrb[0].mxu0
        %v7162 = vadd.f32 0.0, %v7161
        %v7163 = vpop.f32.mrb[0].mxu0
        %v7164 = vadd.f32 0.0, %v7163
        %7165 = vdwg.mxu0
        %v7167 = vsel %vm2152, %v7089, 0
        %7169 = vmatprep.subr.mxu0 %v7016
        %7170 = vmatpush1.msra.mxu0 %v7014
        %7171 = vmatprep.subr.mxu0 0.0
        %7172 = vmatpush1.msra.mxu0 0.0
        %7173 = vmatprep.subr.mxu0 0.0
        %7174 = vmatpush1.msra.mxu0 0.0
        %7175 = vmatprep.subr.mxu0 0.0
        %7176 = vmatpush1.msra.mxu0 0.0
        %7177 = vmatprep.subr.mxu0 0.0
        %7178 = vmatpush1.msra.mxu0 0.0
        %7179 = vmatprep.subr.mxu0 0.0
        %7180 = vmatpush1.msra.mxu0 0.0
        %7181 = vmatprep.subr.mxu0 0.0
        %7182 = vmatpush1.msra.mxu0 0.0
        %7183 = vmatprep.subr.mxu0 0.0
        %7184 = vmatpush1.msra.mxu0 0.0
        %7185 = vmatprep.subr.mxu0 0.0
        %7186 = vmatpush1.msra.mxu0 0.0
        %7187 = vmatprep.subr.mxu0 0.0
        %7188 = vmatpush1.msra.mxu0 0.0
        %7189 = vmatprep.subr.mxu0 0.0
        %7190 = vmatpush1.msra.mxu0 0.0
        %7191 = vmatprep.subr.mxu0 0.0
        %7192 = vmatpush1.msra.mxu0 0.0
        %7193 = vmatprep.subr.mxu0 0.0
        %7194 = vmatpush1.msra.mxu0 0.0
        %7195 = vmatprep.subr.mxu0 0.0
        %7196 = vmatpush1.msra.mxu0 0.0
        %7197 = vmatprep.subr.mxu0 0.0
        %7198 = vmatpush1.msra.mxu0 0.0
        %7199 = vmatprep.subr.mxu0 0.0
        %7200 = vmatpush1.msra.mxu0 0.0
        %7201 = vmatprep.subr.mxu0 0.0
        %7202 = vmatpush1.msra.mxu0 0.0
        %7203 = vmatprep.subr.mxu0 0.0
        %7204 = vmatpush1.msra.mxu0 0.0
        %7205 = vmatprep.subr.mxu0 0.0
        %7206 = vmatpush1.msra.mxu0 0.0
        %7207 = vmatprep.subr.mxu0 0.0
        %7208 = vmatpush1.msra.mxu0 0.0
        %7209 = vmatprep.subr.mxu0 0.0
        %7210 = vmatpush1.msra.mxu0 0.0
        %7211 = vmatprep.subr.mxu0 0.0
        %7212 = vmatpush1.msra.mxu0 0.0
        %7213 = vmatprep.subr.mxu0 0.0
        %7214 = vmatpush1.msra.mxu0 0.0
        %7215 = vmatprep.subr.mxu0 0.0
        %7216 = vmatpush1.msra.mxu0 0.0
        %7217 = vmatprep.subr.mxu0 0.0
        %7218 = vmatpush1.msra.mxu0 0.0
        %7219 = vmatprep.subr.mxu0 0.0
        %7220 = vmatpush1.msra.mxu0 0.0
        %7221 = vmatprep.subr.mxu0 0.0
        %7222 = vmatpush1.msra.mxu0 0.0
        %7223 = vmatprep.subr.mxu0 0.0
        %7224 = vmatpush1.msra.mxu0 0.0
        %7225 = vmatprep.subr.mxu0 0.0
        %7226 = vmatpush1.msra.mxu0 0.0
        %7227 = vmatprep.subr.mxu0 0.0
        %7228 = vmatpush1.msra.mxu0 0.0
        %7229 = vmatprep.subr.mxu0 0.0
        %7230 = vmatpush1.msra.mxu0 0.0
        %7231 = vmatprep.subr.mxu0 0.0
        %7232 = vmatpush1.msra.mxu0 0.0
        %7233 = vmatprep.mubr.f32.mxu0 0.0
        %7234 = vmatmul.mubr.f32.gmra.mrb[0].mxu0 %v7167
        %v7235 = vpop.f32.mrb[0].mxu0
        %v7236 = vadd.f32 %v7162, %v7235
        %v7237 = vpop.f32.mrb[0].mxu0
        %v7238 = vadd.f32 %v7164, %v7237
        %7239 = vdwg.mxu0
        %s7240 = scalar_lea.vmem %s17, 8
        %v7241 = vld [vmem:[%s7240] sm:$0x7]
        %v7243 = vsel %vm2152, %v7241, 0
        %7245 = vmatprep.subr.mxu0 %v7087
        %7246 = vmatpush1.msra.mxu0 %v7085
        %7247 = vmatprep.subr.mxu0 0.0
        %7248 = vmatpush1.msra.mxu0 0.0
        %7249 = vmatprep.subr.mxu0 0.0
        %7250 = vmatpush1.msra.mxu0 0.0
        %7251 = vmatprep.subr.mxu0 0.0
        %7252 = vmatpush1.msra.mxu0 0.0
        %7253 = vmatprep.subr.mxu0 0.0
        %7254 = vmatpush1.msra.mxu0 0.0
        %7255 = vmatprep.subr.mxu0 0.0
        %7256 = vmatpush1.msra.mxu0 0.0
        %7257 = vmatprep.subr.mxu0 0.0
        %7258 = vmatpush1.msra.mxu0 0.0
        %7259 = vmatprep.subr.mxu0 0.0
        %7260 = vmatpush1.msra.mxu0 0.0
        %7261 = vmatprep.subr.mxu0 0.0
        %7262 = vmatpush1.msra.mxu0 0.0
        %7263 = vmatprep.subr.mxu0 0.0
        %7264 = vmatpush1.msra.mxu0 0.0
        %7265 = vmatprep.subr.mxu0 0.0
        %7266 = vmatpush1.msra.mxu0 0.0
        %7267 = vmatprep.subr.mxu0 0.0
        %7268 = vmatpush1.msra.mxu0 0.0
        %7269 = vmatprep.subr.mxu0 0.0
        %7270 = vmatpush1.msra.mxu0 0.0
        %7271 = vmatprep.subr.mxu0 0.0
        %7272 = vmatpush1.msra.mxu0 0.0
        %7273 = vmatprep.subr.mxu0 0.0
        %7274 = vmatpush1.msra.mxu0 0.0
        %7275 = vmatprep.subr.mxu0 0.0
        %7276 = vmatpush1.msra.mxu0 0.0
        %7277 = vmatprep.subr.mxu0 0.0
        %7278 = vmatpush1.msra.mxu0 0.0
        %7279 = vmatprep.subr.mxu0 0.0
        %7280 = vmatpush1.msra.mxu0 0.0
        %7281 = vmatprep.subr.mxu0 0.0
        %7282 = vmatpush1.msra.mxu0 0.0
        %7283 = vmatprep.subr.mxu0 0.0
        %7284 = vmatpush1.msra.mxu0 0.0
        %7285 = vmatprep.subr.mxu0 0.0
        %7286 = vmatpush1.msra.mxu0 0.0
        %7287 = vmatprep.subr.mxu0 0.0
        %7288 = vmatpush1.msra.mxu0 0.0
        %7289 = vmatprep.subr.mxu0 0.0
        %7290 = vmatpush1.msra.mxu0 0.0
        %7291 = vmatprep.subr.mxu0 0.0
        %7292 = vmatpush1.msra.mxu0 0.0
        %7293 = vmatprep.subr.mxu0 0.0
        %7294 = vmatpush1.msra.mxu0 0.0
        %7295 = vmatprep.subr.mxu0 0.0
        %7296 = vmatpush1.msra.mxu0 0.0
        %7297 = vmatprep.subr.mxu0 0.0
        %7298 = vmatpush1.msra.mxu0 0.0
        %7299 = vmatprep.subr.mxu0 0.0
        %7300 = vmatpush1.msra.mxu0 0.0
        %7301 = vmatprep.subr.mxu0 0.0
        %7302 = vmatpush1.msra.mxu0 0.0
        %7303 = vmatprep.subr.mxu0 0.0
        %7304 = vmatpush1.msra.mxu0 0.0
        %7305 = vmatprep.subr.mxu0 0.0
        %7306 = vmatpush1.msra.mxu0 0.0
        %7307 = vmatprep.subr.mxu0 0.0
        %7308 = vmatpush1.msra.mxu0 0.0
        %7309 = vmatprep.mubr.f32.mxu0 0.0
        %7310 = vmatmul.mubr.f32.gmra.mrb[0].mxu0 %v7243
        %v7311 = vpop.f32.mrb[0].mxu0
        %v7312 = vadd.f32 0.0, %v7311
        %v7313 = vpop.f32.mrb[0].mxu0
        %v7314 = vadd.f32 0.0, %v7313
        %7315 = vdwg.mxu0
        %v7316 = vadd.f32 %v7236, %v7312
        %v7317 = vadd.f32 %v7238, %v7314
        %s7318 = scalar_lea.vmem %s17, 12
        %v7319 = vld [vmem:[%s7318] sm:$0x7]
        %s7320 = scalar_lea.vmem %s17, 16
        %v7321 = vld [vmem:[%s7320] sm:$0x7]
        %v7323 = vsel %vm2152, %v7321, 0
        %7325 = vmatprep.subr.mxu0 %v6946
        %7326 = vmatpush1.msra.mxu0 %v6945
        %7327 = vmatprep.subr.mxu0 0.0
        %7328 = vmatpush1.msra.mxu0 0.0
        %7329 = vmatprep.subr.mxu0 0.0
        %7330 = vmatpush1.msra.mxu0 0.0
        %7331 = vmatprep.subr.mxu0 0.0
        %7332 = vmatpush1.msra.mxu0 0.0
        %7333 = vmatprep.subr.mxu0 0.0
        %7334 = vmatpush1.msra.mxu0 0.0
        %7335 = vmatprep.subr.mxu0 0.0
        %7336 = vmatpush1.msra.mxu0 0.0
        %7337 = vmatprep.subr.mxu0 0.0
        %7338 = vmatpush1.msra.mxu0 0.0
        %7339 = vmatprep.subr.mxu0 0.0
        %7340 = vmatpush1.msra.mxu0 0.0
        %7341 = vmatprep.subr.mxu0 0.0
        %7342 = vmatpush1.msra.mxu0 0.0
        %7343 = vmatprep.subr.mxu0 0.0
        %7344 = vmatpush1.msra.mxu0 0.0
        %7345 = vmatprep.subr.mxu0 0.0
        %7346 = vmatpush1.msra.mxu0 0.0
        %7347 = vmatprep.subr.mxu0 0.0
        %7348 = vmatpush1.msra.mxu0 0.0
        %7349 = vmatprep.subr.mxu0 0.0
        %7350 = vmatpush1.msra.mxu0 0.0
        %7351 = vmatprep.subr.mxu0 0.0
        %7352 = vmatpush1.msra.mxu0 0.0
        %7353 = vmatprep.subr.mxu0 0.0
        %7354 = vmatpush1.msra.mxu0 0.0
        %7355 = vmatprep.subr.mxu0 0.0
        %7356 = vmatpush1.msra.mxu0 0.0
        %7357 = vmatprep.subr.mxu0 0.0
        %7358 = vmatpush1.msra.mxu0 0.0
        %7359 = vmatprep.subr.mxu0 0.0
        %7360 = vmatpush1.msra.mxu0 0.0
        %7361 = vmatprep.subr.mxu0 0.0
        %7362 = vmatpush1.msra.mxu0 0.0
        %7363 = vmatprep.subr.mxu0 0.0
        %7364 = vmatpush1.msra.mxu0 0.0
        %7365 = vmatprep.subr.mxu0 0.0
        %7366 = vmatpush1.msra.mxu0 0.0
        %7367 = vmatprep.subr.mxu0 0.0
        %7368 = vmatpush1.msra.mxu0 0.0
        %7369 = vmatprep.subr.mxu0 0.0
        %7370 = vmatpush1.msra.mxu0 0.0
        %7371 = vmatprep.subr.mxu0 0.0
        %7372 = vmatpush1.msra.mxu0 0.0
        %7373 = vmatprep.subr.mxu0 0.0
        %7374 = vmatpush1.msra.mxu0 0.0
        %7375 = vmatprep.subr.mxu0 0.0
        %7376 = vmatpush1.msra.mxu0 0.0
        %7377 = vmatprep.subr.mxu0 0.0
        %7378 = vmatpush1.msra.mxu0 0.0
        %7379 = vmatprep.subr.mxu0 0.0
        %7380 = vmatpush1.msra.mxu0 0.0
        %7381 = vmatprep.subr.mxu0 0.0
        %7382 = vmatpush1.msra.mxu0 0.0
        %7383 = vmatprep.subr.mxu0 0.0
        %7384 = vmatpush1.msra.mxu0 0.0
        %7385 = vmatprep.subr.mxu0 0.0
        %7386 = vmatpush1.msra.mxu0 0.0
        %7387 = vmatprep.subr.mxu0 0.0
        %7388 = vmatpush1.msra.mxu0 0.0
        %7389 = vmatprep.mubr.f32.mxu0 0.0
        %7390 = vmatmul.mubr.f32.gmra.mrb[0].mxu0 %v7323
        %v7391 = vpop.f32.mrb[0].mxu0
        %v7392 = vadd.f32 0.0, %v7391
        %v7393 = vpop.f32.mrb[0].mxu0
        %v7394 = vadd.f32 0.0, %v7393
        %7395 = vdwg.mxu0
        %v7397 = vsel %vm2152, %v7319, 0
        %7399 = vmatprep.subr.mxu0 %v7016
        %7400 = vmatpush1.msra.mxu0 %v7014
        %7401 = vmatprep.subr.mxu0 0.0
        %7402 = vmatpush1.msra.mxu0 0.0
        %7403 = vmatprep.subr.mxu0 0.0
        %7404 = vmatpush1.msra.mxu0 0.0
        %7405 = vmatprep.subr.mxu0 0.0
        %7406 = vmatpush1.msra.mxu0 0.0
        %7407 = vmatprep.subr.mxu0 0.0
        %7408 = vmatpush1.msra.mxu0 0.0
        %7409 = vmatprep.subr.mxu0 0.0
        %7410 = vmatpush1.msra.mxu0 0.0
        %7411 = vmatprep.subr.mxu0 0.0
        %7412 = vmatpush1.msra.mxu0 0.0
        %7413 = vmatprep.subr.mxu0 0.0
        %7414 = vmatpush1.msra.mxu0 0.0
        %7415 = vmatprep.subr.mxu0 0.0
        %7416 = vmatpush1.msra.mxu0 0.0
        %7417 = vmatprep.subr.mxu0 0.0
        %7418 = vmatpush1.msra.mxu0 0.0
        %7419 = vmatprep.subr.mxu0 0.0
        %7420 = vmatpush1.msra.mxu0 0.0
        %7421 = vmatprep.subr.mxu0 0.0
        %7422 = vmatpush1.msra.mxu0 0.0
        %7423 = vmatprep.subr.mxu0 0.0
        %7424 = vmatpush1.msra.mxu0 0.0
        %7425 = vmatprep.subr.mxu0 0.0
        %7426 = vmatpush1.msra.mxu0 0.0
        %7427 = vmatprep.subr.mxu0 0.0
        %7428 = vmatpush1.msra.mxu0 0.0
        %7429 = vmatprep.subr.mxu0 0.0
        %7430 = vmatpush1.msra.mxu0 0.0
        %7431 = vmatprep.subr.mxu0 0.0
        %7432 = vmatpush1.msra.mxu0 0.0
        %7433 = vmatprep.subr.mxu0 0.0
        %7434 = vmatpush1.msra.mxu0 0.0
        %7435 = vmatprep.subr.mxu0 0.0
        %7436 = vmatpush1.msra.mxu0 0.0
        %7437 = vmatprep.subr.mxu0 0.0
        %7438 = vmatpush1.msra.mxu0 0.0
        %7439 = vmatprep.subr.mxu0 0.0
        %7440 = vmatpush1.msra.mxu0 0.0
        %7441 = vmatprep.subr.mxu0 0.0
        %7442 = vmatpush1.msra.mxu0 0.0
        %7443 = vmatprep.subr.mxu0 0.0
        %7444 = vmatpush1.msra.mxu0 0.0
        %7445 = vmatprep.subr.mxu0 0.0
        %7446 = vmatpush1.msra.mxu0 0.0
        %7447 = vmatprep.subr.mxu0 0.0
        %7448 = vmatpush1.msra.mxu0 0.0
        %7449 = vmatprep.subr.mxu0 0.0
        %7450 = vmatpush1.msra.mxu0 0.0
        %7451 = vmatprep.subr.mxu0 0.0
        %7452 = vmatpush1.msra.mxu0 0.0
        %7453 = vmatprep.subr.mxu0 0.0
        %7454 = vmatpush1.msra.mxu0 0.0
        %7455 = vmatprep.subr.mxu0 0.0
        %7456 = vmatpush1.msra.mxu0 0.0
        %7457 = vmatprep.subr.mxu0 0.0
        %7458 = vmatpush1.msra.mxu0 0.0
        %7459 = vmatprep.subr.mxu0 0.0
        %7460 = vmatpush1.msra.mxu0 0.0
        %7461 = vmatprep.subr.mxu0 0.0
        %7462 = vmatpush1.msra.mxu0 0.0
        %7463 = vmatprep.mubr.f32.mxu0 0.0
        %7464 = vmatmul.mubr.f32.gmra.mrb[0].mxu0 %v7397
        %v7465 = vpop.f32.mrb[0].mxu0
        %v7466 = vadd.f32 %v7392, %v7465
        %v7467 = vpop.f32.mrb[0].mxu0
        %v7468 = vadd.f32 %v7394, %v7467
        %7469 = vdwg.mxu0
        %s7470 = scalar_lea.vmem %s17, 20
        %v7471 = vld [vmem:[%s7470] sm:$0x7]
        %v7473 = vsel %vm2152, %v7471, 0
        %7475 = vmatprep.subr.mxu0 %v7087
        %7476 = vmatpush1.msra.mxu0 %v7085
        %7477 = vmatprep.subr.mxu0 0.0
        %7478 = vmatpush1.msra.mxu0 0.0
        %7479 = vmatprep.subr.mxu0 0.0
        %7480 = vmatpush1.msra.mxu0 0.0
        %7481 = vmatprep.subr.mxu0 0.0
        %7482 = vmatpush1.msra.mxu0 0.0
        %7483 = vmatprep.subr.mxu0 0.0
        %7484 = vmatpush1.msra.mxu0 0.0
        %7485 = vmatprep.subr.mxu0 0.0
        %7486 = vmatpush1.msra.mxu0 0.0
        %7487 = vmatprep.subr.mxu0 0.0
        %7488 = vmatpush1.msra.mxu0 0.0
        %7489 = vmatprep.subr.mxu0 0.0
        %7490 = vmatpush1.msra.mxu0 0.0
        %7491 = vmatprep.subr.mxu0 0.0
        %7492 = vmatpush1.msra.mxu0 0.0
        %7493 = vmatprep.subr.mxu0 0.0
        %7494 = vmatpush1.msra.mxu0 0.0
        %7495 = vmatprep.subr.mxu0 0.0
        %7496 = vmatpush1.msra.mxu0 0.0
        %7497 = vmatprep.subr.mxu0 0.0
        %7498 = vmatpush1.msra.mxu0 0.0
        %7499 = vmatprep.subr.mxu0 0.0
        %7500 = vmatpush1.msra.mxu0 0.0
        %7501 = vmatprep.subr.mxu0 0.0
        %7502 = vmatpush1.msra.mxu0 0.0
        %7503 = vmatprep.subr.mxu0 0.0
        %7504 = vmatpush1.msra.mxu0 0.0
        %7505 = vmatprep.subr.mxu0 0.0
        %7506 = vmatpush1.msra.mxu0 0.0
        %7507 = vmatprep.subr.mxu0 0.0
        %7508 = vmatpush1.msra.mxu0 0.0
        %7509 = vmatprep.subr.mxu0 0.0
        %7510 = vmatpush1.msra.mxu0 0.0
        %7511 = vmatprep.subr.mxu0 0.0
        %7512 = vmatpush1.msra.mxu0 0.0
        %7513 = vmatprep.subr.mxu0 0.0
        %7514 = vmatpush1.msra.mxu0 0.0
        %7515 = vmatprep.subr.mxu0 0.0
        %7516 = vmatpush1.msra.mxu0 0.0
        %7517 = vmatprep.subr.mxu0 0.0
        %7518 = vmatpush1.msra.mxu0 0.0
        %7519 = vmatprep.subr.mxu0 0.0
        %7520 = vmatpush1.msra.mxu0 0.0
        %7521 = vmatprep.subr.mxu0 0.0
        %7522 = vmatpush1.msra.mxu0 0.0
        %7523 = vmatprep.subr.mxu0 0.0
        %7524 = vmatpush1.msra.mxu0 0.0
        %7525 = vmatprep.subr.mxu0 0.0
        %7526 = vmatpush1.msra.mxu0 0.0
        %7527 = vmatprep.subr.mxu0 0.0
        %7528 = vmatpush1.msra.mxu0 0.0
        %7529 = vmatprep.subr.mxu0 0.0
        %7530 = vmatpush1.msra.mxu0 0.0
        %7531 = vmatprep.subr.mxu0 0.0
        %7532 = vmatpush1.msra.mxu0 0.0
        %7533 = vmatprep.subr.mxu0 0.0
        %7534 = vmatpush1.msra.mxu0 0.0
        %7535 = vmatprep.subr.mxu0 0.0
        %7536 = vmatpush1.msra.mxu0 0.0
        %7537 = vmatprep.subr.mxu0 0.0
        %7538 = vmatpush1.msra.mxu0 0.0
        %7539 = vmatprep.mubr.f32.mxu0 0.0
        %7540 = vmatmul.mubr.f32.gmra.mrb[0].mxu0 %v7473
        %v7541 = vpop.f32.mrb[0].mxu0
        %v7542 = vadd.f32 0.0, %v7541
        %v7543 = vpop.f32.mrb[0].mxu0
        %v7544 = vadd.f32 0.0, %v7543
        %7545 = vdwg.mxu0
        %v7546 = vadd.f32 %v7466, %v7542
        %v7547 = vadd.f32 %v7468, %v7544
        %7548 = vmatprep.subr.mxu0 %v1142
        %7549 = vmatpush1.msra.mxu0 %v1141
        %7550 = vmatprep.subr.mxu0 %v1144
        %7551 = vmatpush1.msra.mxu0 %v1143
        %7552 = vmatprep.subr.mxu0 %v1146
        %7553 = vmatpush1.msra.mxu0 %v1145
        %7554 = vmatprep.subr.mxu0 %v1148
        %7555 = vmatpush1.msra.mxu0 %v1147
        %7556 = vmatprep.subr.mxu0 %v1150
        %7557 = vmatpush1.msra.mxu0 %v1149
        %7558 = vmatprep.subr.mxu0 %v1152
        %7559 = vmatpush1.msra.mxu0 %v1151
        %7560 = vmatprep.subr.mxu0 %v1154
        %7561 = vmatpush1.msra.mxu0 %v1153
        %7562 = vmatprep.subr.mxu0 %v1156
        %7563 = vmatpush1.msra.mxu0 %v1155
        %7564 = vmatprep.subr.mxu0 %v1158
        %7565 = vmatpush1.msra.mxu0 %v1157
        %7566 = vmatprep.subr.mxu0 %v1160
        %7567 = vmatpush1.msra.mxu0 %v1159
        %7568 = vmatprep.subr.mxu0 %v1162
        %7569 = vmatpush1.msra.mxu0 %v1161
        %7570 = vmatprep.subr.mxu0 %v1164
        %7571 = vmatpush1.msra.mxu0 %v1163
        %7572 = vmatprep.subr.mxu0 %v1166
        %7573 = vmatpush1.msra.mxu0 %v1165
        %7574 = vmatprep.subr.mxu0 %v1168
        %7575 = vmatpush1.msra.mxu0 %v1167
        %7576 = vmatprep.subr.mxu0 %v1170
        %7577 = vmatpush1.msra.mxu0 %v1169
        %7578 = vmatprep.subr.mxu0 %v1172
        %7579 = vmatpush1.msra.mxu0 %v1171
        %7580 = vmatprep.subr.mxu0 %v1174
        %7581 = vmatpush1.msra.mxu0 %v1173
        %7582 = vmatprep.subr.mxu0 %v1176
        %7583 = vmatpush1.msra.mxu0 %v1175
        %7584 = vmatprep.subr.mxu0 %v1178
        %7585 = vmatpush1.msra.mxu0 %v1177
        %7586 = vmatprep.subr.mxu0 %v1180
        %7587 = vmatpush1.msra.mxu0 %v1179
        %7588 = vmatprep.subr.mxu0 %v1182
        %7589 = vmatpush1.msra.mxu0 %v1181
        %7590 = vmatprep.subr.mxu0 %v1184
        %7591 = vmatpush1.msra.mxu0 %v1183
        %7592 = vmatprep.subr.mxu0 %v1186
        %7593 = vmatpush1.msra.mxu0 %v1185
        %7594 = vmatprep.subr.mxu0 %v1188
        %7595 = vmatpush1.msra.mxu0 %v1187
        %7596 = vmatprep.subr.mxu0 %v1190
        %7597 = vmatpush1.msra.mxu0 %v1189
        %7598 = vmatprep.subr.mxu0 %v1192
        %7599 = vmatpush1.msra.mxu0 %v1191
        %7600 = vmatprep.subr.mxu0 %v1194
        %7601 = vmatpush1.msra.mxu0 %v1193
        %7602 = vmatprep.subr.mxu0 %v1196
        %7603 = vmatpush1.msra.mxu0 %v1195
        %7604 = vmatprep.subr.mxu0 %v1198
        %7605 = vmatpush1.msra.mxu0 %v1197
        %7606 = vmatprep.subr.mxu0 %v1200
        %7607 = vmatpush1.msra.mxu0 %v1199
        %7608 = vmatprep.subr.mxu0 %v1202
        %7609 = vmatpush1.msra.mxu0 %v1201
        %7610 = vmatprep.subr.mxu0 %v1204
        %7611 = vmatpush1.msra.mxu0 %v1203
        %7612 = vmatprep.mubr.f32.mxu0 %v7317
        %7613 = vmatmul.mubr.f32.gmra.mrb[0].mxu0 %v7316
        %v7614 = vpop.f32.mrb[0].mxu0
        %v7615 = vadd.f32 %v7546, %v7614
        %v7616 = vpop.f32.mrb[0].mxu0
        %v7617 = vadd.f32 %v7547, %v7616
        %7618 = vdwg.mxu0
        %s7619 = scalar_lea.vmem %s17, 24
        %v7620 = vld [vmem:[%s7619] sm:$0x7]
        %s7621 = scalar_lea.vmem %s17, 28
        %v7622 = vld [vmem:[%s7621] sm:$0x7]
        %v7624 = vsel %vm2152, %v7622, 0
        %7626 = vmatprep.subr.mxu0 %v6946
        %7627 = vmatpush1.msra.mxu0 %v6945
        %7628 = vmatprep.subr.mxu0 0.0
        %7629 = vmatpush1.msra.mxu0 0.0
        %7630 = vmatprep.subr.mxu0 0.0
        %7631 = vmatpush1.msra.mxu0 0.0
        %7632 = vmatprep.subr.mxu0 0.0
        %7633 = vmatpush1.msra.mxu0 0.0
        %7634 = vmatprep.subr.mxu0 0.0
        %7635 = vmatpush1.msra.mxu0 0.0
        %7636 = vmatprep.subr.mxu0 0.0
        %7637 = vmatpush1.msra.mxu0 0.0
        %7638 = vmatprep.subr.mxu0 0.0
        %7639 = vmatpush1.msra.mxu0 0.0
        %7640 = vmatprep.subr.mxu0 0.0
        %7641 = vmatpush1.msra.mxu0 0.0
        %7642 = vmatprep.subr.mxu0 0.0
        %7643 = vmatpush1.msra.mxu0 0.0
        %7644 = vmatprep.subr.mxu0 0.0
        %7645 = vmatpush1.msra.mxu0 0.0
        %7646 = vmatprep.subr.mxu0 0.0
        %7647 = vmatpush1.msra.mxu0 0.0
        %7648 = vmatprep.subr.mxu0 0.0
        %7649 = vmatpush1.msra.mxu0 0.0
        %7650 = vmatprep.subr.mxu0 0.0
        %7651 = vmatpush1.msra.mxu0 0.0
        %7652 = vmatprep.subr.mxu0 0.0
        %7653 = vmatpush1.msra.mxu0 0.0
        %7654 = vmatprep.subr.mxu0 0.0
        %7655 = vmatpush1.msra.mxu0 0.0
        %7656 = vmatprep.subr.mxu0 0.0
        %7657 = vmatpush1.msra.mxu0 0.0
        %7658 = vmatprep.subr.mxu0 0.0
        %7659 = vmatpush1.msra.mxu0 0.0
        %7660 = vmatprep.subr.mxu0 0.0
        %7661 = vmatpush1.msra.mxu0 0.0
        %7662 = vmatprep.subr.mxu0 0.0
        %7663 = vmatpush1.msra.mxu0 0.0
        %7664 = vmatprep.subr.mxu0 0.0
        %7665 = vmatpush1.msra.mxu0 0.0
        %7666 = vmatprep.subr.mxu0 0.0
        %7667 = vmatpush1.msra.mxu0 0.0
        %7668 = vmatprep.subr.mxu0 0.0
        %7669 = vmatpush1.msra.mxu0 0.0
        %7670 = vmatprep.subr.mxu0 0.0
        %7671 = vmatpush1.msra.mxu0 0.0
        %7672 = vmatprep.subr.mxu0 0.0
        %7673 = vmatpush1.msra.mxu0 0.0
        %7674 = vmatprep.subr.mxu0 0.0
        %7675 = vmatpush1.msra.mxu0 0.0
        %7676 = vmatprep.subr.mxu0 0.0
        %7677 = vmatpush1.msra.mxu0 0.0
        %7678 = vmatprep.subr.mxu0 0.0
        %7679 = vmatpush1.msra.mxu0 0.0
        %7680 = vmatprep.subr.mxu0 0.0
        %7681 = vmatpush1.msra.mxu0 0.0
        %7682 = vmatprep.subr.mxu0 0.0
        %7683 = vmatpush1.msra.mxu0 0.0
        %7684 = vmatprep.subr.mxu0 0.0
        %7685 = vmatpush1.msra.mxu0 0.0
        %7686 = vmatprep.subr.mxu0 0.0
        %7687 = vmatpush1.msra.mxu0 0.0
        %7688 = vmatprep.subr.mxu0 0.0
        %7689 = vmatpush1.msra.mxu0 0.0
        %7690 = vmatprep.mubr.f32.mxu0 0.0
        %7691 = vmatmul.mubr.f32.gmra.mrb[0].mxu0 %v7624
        %v7692 = vpop.f32.mrb[0].mxu0
        %v7693 = vadd.f32 0.0, %v7692
        %v7694 = vpop.f32.mrb[0].mxu0
        %v7695 = vadd.f32 0.0, %v7694
        %7696 = vdwg.mxu0
        %v7698 = vsel %vm2152, %v7620, 0
        %7700 = vmatprep.subr.mxu0 %v7016
        %7701 = vmatpush1.msra.mxu0 %v7014
        %7702 = vmatprep.subr.mxu0 0.0
        %7703 = vmatpush1.msra.mxu0 0.0
        %7704 = vmatprep.subr.mxu0 0.0
        %7705 = vmatpush1.msra.mxu0 0.0
        %7706 = vmatprep.subr.mxu0 0.0
        %7707 = vmatpush1.msra.mxu0 0.0
        %7708 = vmatprep.subr.mxu0 0.0
        %7709 = vmatpush1.msra.mxu0 0.0
        %7710 = vmatprep.subr.mxu0 0.0
        %7711 = vmatpush1.msra.mxu0 0.0
        %7712 = vmatprep.subr.mxu0 0.0
        %7713 = vmatpush1.msra.mxu0 0.0
        %7714 = vmatprep.subr.mxu0 0.0
        %7715 = vmatpush1.msra.mxu0 0.0
        %7716 = vmatprep.subr.mxu0 0.0
        %7717 = vmatpush1.msra.mxu0 0.0
        %7718 = vmatprep.subr.mxu0 0.0
        %7719 = vmatpush1.msra.mxu0 0.0
        %7720 = vmatprep.subr.mxu0 0.0
        %7721 = vmatpush1.msra.mxu0 0.0
        %7722 = vmatprep.subr.mxu0 0.0
        %7723 = vmatpush1.msra.mxu0 0.0
        %7724 = vmatprep.subr.mxu0 0.0
        %7725 = vmatpush1.msra.mxu0 0.0
        %7726 = vmatprep.subr.mxu0 0.0
        %7727 = vmatpush1.msra.mxu0 0.0
        %7728 = vmatprep.subr.mxu0 0.0
        %7729 = vmatpush1.msra.mxu0 0.0
        %7730 = vmatprep.subr.mxu0 0.0
        %7731 = vmatpush1.msra.mxu0 0.0
        %7732 = vmatprep.subr.mxu0 0.0
        %7733 = vmatpush1.msra.mxu0 0.0
        %7734 = vmatprep.subr.mxu0 0.0
        %7735 = vmatpush1.msra.mxu0 0.0
        %7736 = vmatprep.subr.mxu0 0.0
        %7737 = vmatpush1.msra.mxu0 0.0
        %7738 = vmatprep.subr.mxu0 0.0
        %7739 = vmatpush1.msra.mxu0 0.0
        %7740 = vmatprep.subr.mxu0 0.0
        %7741 = vmatpush1.msra.mxu0 0.0
        %7742 = vmatprep.subr.mxu0 0.0
        %7743 = vmatpush1.msra.mxu0 0.0
        %7744 = vmatprep.subr.mxu0 0.0
        %7745 = vmatpush1.msra.mxu0 0.0
        %7746 = vmatprep.subr.mxu0 0.0
        %7747 = vmatpush1.msra.mxu0 0.0
        %7748 = vmatprep.subr.mxu0 0.0
        %7749 = vmatpush1.msra.mxu0 0.0
        %7750 = vmatprep.subr.mxu0 0.0
        %7751 = vmatpush1.msra.mxu0 0.0
        %7752 = vmatprep.subr.mxu0 0.0
        %7753 = vmatpush1.msra.mxu0 0.0
        %7754 = vmatprep.subr.mxu0 0.0
        %7755 = vmatpush1.msra.mxu0 0.0
        %7756 = vmatprep.subr.mxu0 0.0
        %7757 = vmatpush1.msra.mxu0 0.0
        %7758 = vmatprep.subr.mxu0 0.0
        %7759 = vmatpush1.msra.mxu0 0.0
        %7760 = vmatprep.subr.mxu0 0.0
        %7761 = vmatpush1.msra.mxu0 0.0
        %7762 = vmatprep.subr.mxu0 0.0
        %7763 = vmatpush1.msra.mxu0 0.0
        %7764 = vmatprep.mubr.f32.mxu0 0.0
        %7765 = vmatmul.mubr.f32.gmra.mrb[0].mxu0 %v7698
        %v7766 = vpop.f32.mrb[0].mxu0
        %v7767 = vadd.f32 %v7693, %v7766
        %v7768 = vpop.f32.mrb[0].mxu0
        %v7769 = vadd.f32 %v7695, %v7768
        %7770 = vdwg.mxu0
        %s7771 = scalar_lea.vmem %s17, 32
        %v7772 = vld [vmem:[%s7771] sm:$0x7]
        %v7774 = vsel %vm2152, %v7772, 0
        %7776 = vmatprep.subr.mxu0 %v7087
        %7777 = vmatpush1.msra.mxu0 %v7085
        %7778 = vmatprep.subr.mxu0 0.0
        %7779 = vmatpush1.msra.mxu0 0.0
        %7780 = vmatprep.subr.mxu0 0.0
        %7781 = vmatpush1.msra.mxu0 0.0
        %7782 = vmatprep.subr.mxu0 0.0
        %7783 = vmatpush1.msra.mxu0 0.0
        %7784 = vmatprep.subr.mxu0 0.0
        %7785 = vmatpush1.msra.mxu0 0.0
        %7786 = vmatprep.subr.mxu0 0.0
        %7787 = vmatpush1.msra.mxu0 0.0
        %7788 = vmatprep.subr.mxu0 0.0
        %7789 = vmatpush1.msra.mxu0 0.0
        %7790 = vmatprep.subr.mxu0 0.0
        %7791 = vmatpush1.msra.mxu0 0.0
        %7792 = vmatprep.subr.mxu0 0.0
        %7793 = vmatpush1.msra.mxu0 0.0
        %7794 = vmatprep.subr.mxu0 0.0
        %7795 = vmatpush1.msra.mxu0 0.0
        %7796 = vmatprep.subr.mxu0 0.0
        %7797 = vmatpush1.msra.mxu0 0.0
        %7798 = vmatprep.subr.mxu0 0.0
        %7799 = vmatpush1.msra.mxu0 0.0
        %7800 = vmatprep.subr.mxu0 0.0
        %7801 = vmatpush1.msra.mxu0 0.0
        %7802 = vmatprep.subr.mxu0 0.0
        %7803 = vmatpush1.msra.mxu0 0.0
        %7804 = vmatprep.subr.mxu0 0.0
        %7805 = vmatpush1.msra.mxu0 0.0
        %7806 = vmatprep.subr.mxu0 0.0
        %7807 = vmatpush1.msra.mxu0 0.0
        %7808 = vmatprep.subr.mxu0 0.0
        %7809 = vmatpush1.msra.mxu0 0.0
        %7810 = vmatprep.subr.mxu0 0.0
        %7811 = vmatpush1.msra.mxu0 0.0
        %7812 = vmatprep.subr.mxu0 0.0
        %7813 = vmatpush1.msra.mxu0 0.0
        %7814 = vmatprep.subr.mxu0 0.0
        %7815 = vmatpush1.msra.mxu0 0.0
        %7816 = vmatprep.subr.mxu0 0.0
        %7817 = vmatpush1.msra.mxu0 0.0
        %7818 = vmatprep.subr.mxu0 0.0
        %7819 = vmatpush1.msra.mxu0 0.0
        %7820 = vmatprep.subr.mxu0 0.0
        %7821 = vmatpush1.msra.mxu0 0.0
        %7822 = vmatprep.subr.mxu0 0.0
        %7823 = vmatpush1.msra.mxu0 0.0
        %7824 = vmatprep.subr.mxu0 0.0
        %7825 = vmatpush1.msra.mxu0 0.0
        %7826 = vmatprep.subr.mxu0 0.0
        %7827 = vmatpush1.msra.mxu0 0.0
        %7828 = vmatprep.subr.mxu0 0.0
        %7829 = vmatpush1.msra.mxu0 0.0
        %7830 = vmatprep.subr.mxu0 0.0
        %7831 = vmatpush1.msra.mxu0 0.0
        %7832 = vmatprep.subr.mxu0 0.0
        %7833 = vmatpush1.msra.mxu0 0.0
        %7834 = vmatprep.subr.mxu0 0.0
        %7835 = vmatpush1.msra.mxu0 0.0
        %7836 = vmatprep.subr.mxu0 0.0
        %7837 = vmatpush1.msra.mxu0 0.0
        %7838 = vmatprep.subr.mxu0 0.0
        %7839 = vmatpush1.msra.mxu0 0.0
        %7840 = vmatprep.mubr.f32.mxu0 0.0
        %7841 = vmatmul.mubr.f32.gmra.mrb[0].mxu0 %v7774
        %v7842 = vpop.f32.mrb[0].mxu0
        %v7843 = vadd.f32 0.0, %v7842
        %v7844 = vpop.f32.mrb[0].mxu0
        %v7845 = vadd.f32 0.0, %v7844
        %7846 = vdwg.mxu0
        %v7847 = vadd.f32 %v7767, %v7843
        %v7848 = vadd.f32 %v7769, %v7845
        %7849 = vmatprep.subr.mxu0 %v1738
        %7850 = vmatpush1.msra.mxu0 %v1737
        %7851 = vmatprep.subr.mxu0 %v1740
        %7852 = vmatpush1.msra.mxu0 %v1739
        %7853 = vmatprep.subr.mxu0 %v1742
        %7854 = vmatpush1.msra.mxu0 %v1741
        %7855 = vmatprep.subr.mxu0 %v1744
        %7856 = vmatpush1.msra.mxu0 %v1743
        %7857 = vmatprep.subr.mxu0 %v1746
        %7858 = vmatpush1.msra.mxu0 %v1745
        %7859 = vmatprep.subr.mxu0 %v1748
        %7860 = vmatpush1.msra.mxu0 %v1747
        %7861 = vmatprep.subr.mxu0 %v1750
        %7862 = vmatpush1.msra.mxu0 %v1749
        %7863 = vmatprep.subr.mxu0 %v1752
        %7864 = vmatpush1.msra.mxu0 %v1751
        %7865 = vmatprep.subr.mxu0 %v1754
        %7866 = vmatpush1.msra.mxu0 %v1753
        %7867 = vmatprep.subr.mxu0 %v1756
        %7868 = vmatpush1.msra.mxu0 %v1755
        %7869 = vmatprep.subr.mxu0 %v1758
        %7870 = vmatpush1.msra.mxu0 %v1757
        %7871 = vmatprep.subr.mxu0 %v1760
        %7872 = vmatpush1.msra.mxu0 %v1759
        %7873 = vmatprep.subr.mxu0 %v1762
        %7874 = vmatpush1.msra.mxu0 %v1761
        %7875 = vmatprep.subr.mxu0 %v1764
        %7876 = vmatpush1.msra.mxu0 %v1763
        %7877 = vmatprep.subr.mxu0 %v1766
        %7878 = vmatpush1.msra.mxu0 %v1765
        %7879 = vmatprep.subr.mxu0 %v1768
        %7880 = vmatpush1.msra.mxu0 %v1767
        %7881 = vmatprep.subr.mxu0 %v1770
        %7882 = vmatpush1.msra.mxu0 %v1769
        %7883 = vmatprep.subr.mxu0 %v1772
        %7884 = vmatpush1.msra.mxu0 %v1771
        %7885 = vmatprep.subr.mxu0 %v1774
        %7886 = vmatpush1.msra.mxu0 %v1773
        %7887 = vmatprep.subr.mxu0 %v1776
        %7888 = vmatpush1.msra.mxu0 %v1775
        %7889 = vmatprep.subr.mxu0 %v1778
        %7890 = vmatpush1.msra.mxu0 %v1777
        %7891 = vmatprep.subr.mxu0 %v1780
        %7892 = vmatpush1.msra.mxu0 %v1779
        %7893 = vmatprep.subr.mxu0 %v1782
        %7894 = vmatpush1.msra.mxu0 %v1781
        %7895 = vmatprep.subr.mxu0 %v1784
        %7896 = vmatpush1.msra.mxu0 %v1783
        %7897 = vmatprep.subr.mxu0 %v1786
        %7898 = vmatpush1.msra.mxu0 %v1785
        %7899 = vmatprep.subr.mxu0 %v1788
        %7900 = vmatpush1.msra.mxu0 %v1787
        %7901 = vmatprep.subr.mxu0 %v1790
        %7902 = vmatpush1.msra.mxu0 %v1789
        %7903 = vmatprep.subr.mxu0 %v1792
        %7904 = vmatpush1.msra.mxu0 %v1791
        %7905 = vmatprep.subr.mxu0 %v1794
        %7906 = vmatpush1.msra.mxu0 %v1793
        %7907 = vmatprep.subr.mxu0 %v1796
        %7908 = vmatpush1.msra.mxu0 %v1795
        %7909 = vmatprep.subr.mxu0 %v1798
        %7910 = vmatpush1.msra.mxu0 %v1797
        %7911 = vmatprep.subr.mxu0 %v1800
        %7912 = vmatpush1.msra.mxu0 %v1799
        %7913 = vmatprep.mubr.f32.mxu0 %v7848
        %7914 = vmatmul.mubr.f32.gmra.mrb[0].mxu0 %v7847
        %v7915 = vpop.f32.mrb[0].mxu0
        %v7916 = vadd.f32 0.0, %v7915
        %v7917 = vpop.f32.mrb[0].mxu0
        %v7918 = vadd.f32 0.0, %v7917
        %7919 = vdwg.mxu0
        %v7920 = vadd.f32 %v7615, %v7916
        %v7921 = vadd.f32 %v7617, %v7918
        %v7922 = vld [vmem:[%s18] sm:$0x7]
        %7924 = vset.pattern.permute.xlu0 0
        %7925 = vperm.xlu0 %7924, %v7922
        %v7926 = vpop.permute.xlu0 %7925
        %v7928 = vadd.f32 %v7920, %v7926
        %v7929 = vadd.f32 %v7921, %v7926
        %v7932 = vcombine.low %v7928, %v7929
        %7934 = vst [vmem:[%s617] sm:$0x77] %v7932
        %p7935 = scmp.lt.s32.totalorder %s31, 1
        %s7936 = scalar_select %p7935, %s31, 1
        %s7937 = smul.addr %s7936, 2
        %s7938 = smul.addr %s7937, 4
        %s7939 = scalar_lea.vmem %s19, %s7938
        // Predicated region
        $region101: #{seg_wrapper_forward.1} parent=95 // pred_check
          %p7940 = pneg %p453
        $region102: #{seg_wrapper_forward.1} parent=95 // pred_check_branch
          %7942 = sbr.rel (%p7940) target = $region104
        $region103: #{seg_wrapper_forward.1} parent=95 // pred_region
          _
        $region104: #{seg_wrapper_forward.1} parent=95 // pred_fallthru
          _
      $region96: #{seg_wrapper_forward.1} parent=5 // pred_fallthru
        _
      %p7943 = scmp.le.s32.totalorder 2, %s26
      // Predicated region
      $region105: #{seg_wrapper_forward.1} parent=5 // pred_check
        %p7944 = pneg %p7943
      $region106: #{seg_wrapper_forward.1} parent=5 // pred_check_branch
        %7946 = sbr.rel (%p7944) target = $region108
      $region107: #{seg_wrapper_forward.1} parent=5 // pred_region
        %s7947 = ssub.s32 %s26, 2
        // Predicated region
        $region109: #{seg_wrapper_forward.1} parent=107 // pred_check
          %p7948 = pneg %p459
        $region110: #{seg_wrapper_forward.1} parent=107 // pred_check_branch
          %7950 = sbr.rel (%p7948) target = $region112
        $region111: #{seg_wrapper_forward.1} parent=107 // pred_region
          %p7951 = scmp.lt.s32.totalorder %s32, 1
          %s7952 = scalar_select %p7951, %s32, 1
          %s7953 = smul.addr %s7952, 2
          %s7954 = smul.addr %s7953, 4
          %s7955 = scalar_lea.vmem %s19, %s7954
        $region112: #{seg_wrapper_forward.1} parent=107 // pred_fallthru
          _
      $region108: #{seg_wrapper_forward.1} parent=5 // pred_fallthru
        _
    $region6: #{seg_wrapper_forward.1} parent=1 // loop_footer
      %s30 = sadd.s32 1, %s26
    $region7: #{seg_wrapper_forward.1} parent=1 // loop_footer_branch
      %25 = sbr.rel target = $region3
    $region8: #{seg_wrapper_forward.1} parent=1 // loop_exit
      _
    %7956 = vsyncpa [#allocation3], 1
    %s7957 = scalar_lea.sflag [#allocation3], 1
    %7958 = vsyncpa %s7957, 1

</llo_original>
